<compile_context>
chip_gen: v7x
topology: tpu7x:2x2x1
jax: 0.10.0
libtpu: 0.0.40
codegen_flags: <defaults>
</compile_context>

<pallas_src>
import jax
import jax.numpy as jnp
from jax.experimental import pallas as pl
from jax.experimental.pallas import tpu as pltpu


# ----------------------------------------------------------------------------
# Fused kernel: one batch tile per grid step, three 2-D matmuls, all in VMEM.
#   x_ref : (Bt, nc*49)   f32   natural NCHW flatten of the inputs
#   wc_ref: (nc*49, mid*49) bf16  pixel-block-diagonal 1x1-conv weight
#   bc_ref: (1, mid*49)   f32   conv bias broadcast over pixels
#   w1_ref: (mid*49, last) bf16  fc1 weight (in-features first)
#   b1_ref: (1, last)     f32
#   w2_ref: (last, last)  bf16  fc2 weight (in-features first)
#   b2_ref: (1, last)     f32
#   o_ref : (Bt, last)    f32
# ----------------------------------------------------------------------------
def _merger_kernel(x_ref, wc_ref, bc_ref, w1_ref, b1_ref, w2_ref, b2_ref,
                   o_ref):
    x = x_ref[...].astype(jnp.bfloat16)                           # (Bt, nc*49)

    # Stage 1: 1x1 conv + ReLU.  Output columns are m*49+p (torch flatten).
    y = jnp.dot(x, wc_ref[...], preferred_element_type=jnp.float32)
    y = jnp.maximum(y + bc_ref[...], 0.0)                         # (Bt, mid*49)

    # Stage 2: fc1 + ReLU — one K=392 contraction.
    h1 = jnp.dot(y.astype(jnp.bfloat16), w1_ref[...],
                 preferred_element_type=jnp.float32)
    h1 = jnp.maximum(h1 + b1_ref[...], 0.0)                       # (Bt, last)

    # Stage 3: fc2 + ReLU.
    h2 = jnp.dot(h1.astype(jnp.bfloat16), w2_ref[...],
                 preferred_element_type=jnp.float32)
    o_ref[...] = jnp.maximum(h2 + b2_ref[...], 0.0).astype(o_ref.dtype)


def _pick_block_b(batch, max_block_b=256):
    """Batch-tile size: <=max_block_b, multiple of 8, >=2 grid steps when possible."""
    if batch <= 8:
        return batch
    half = -(-batch // 2)                 # ceil(B/2): keep both v7x TCs busy
    return max(8, min(max_block_b, ((half + 7) // 8) * 8))


def merger_forward(x2, wc_big, bc_row, w1t, b1_row, w2t, b2_row, *,
                   max_block_b=256):
    """x2: (B, in_dim*vote*49) f32 (channel-major per-sample flatten)."""
    batch, k_in = x2.shape
    cls_dim = wc_big.shape[1]
    last_dim = w1t.shape[1]

    bt = _pick_block_b(batch, max_block_b)
    n_blocks = pl.cdiv(batch, bt)
    b_pad = n_blocks * bt
    if b_pad != batch:                    # pad tail tile with zero rows
        x2 = jnp.pad(x2, ((0, b_pad - batch), (0, 0)))

    out = pl.pallas_call(
        _merger_kernel,
        out_shape=jax.ShapeDtypeStruct((b_pad, last_dim), jnp.float32),
        grid=(n_blocks,),
        in_specs=[
            pl.BlockSpec((bt, k_in), lambda i: (i, 0)),          # x (streamed)
            pl.BlockSpec((k_in, cls_dim), lambda i: (0, 0)),     # conv weight
            pl.BlockSpec((1, cls_dim), lambda i: (0, 0)),        # conv bias
            pl.BlockSpec((cls_dim, last_dim), lambda i: (0, 0)),  # fc1 weight
            pl.BlockSpec((1, last_dim), lambda i: (0, 0)),       # fc1 bias
            pl.BlockSpec((last_dim, last_dim), lambda i: (0, 0)),  # fc2 weight
            pl.BlockSpec((1, last_dim), lambda i: (0, 0)),       # fc2 bias
        ],
        out_specs=pl.BlockSpec((bt, last_dim), lambda i: (i, 0)),
        compiler_params=pltpu.CompilerParams(
            dimension_semantics=("parallel",),
            vmem_limit_bytes=32 * 1024 * 1024),
    )(x2, wc_big, bc_row, w1t, b1_row, w2t, b2_row)
    return out[:batch]


# ----------------------------------------------------------------------------
# Merger module (parameters initialized deterministically in-script)
# ----------------------------------------------------------------------------
class MergerPallas:
    def __init__(self, in_dim=8, mid_dim=8, last_dim=32, vote_num=7,
                 key=jax.random.PRNGKey(0)):
        self.in_dim = in_dim
        self.mid_dim = mid_dim
        self.last_dim = last_dim
        self.vote_num = vote_num
        self.wh = 7 * 7
        self.cls_input = mid_dim * self.wh
        nc = in_dim * vote_num

        k = jax.random.split(key, 6)
        scale = 0.05
        # Reference ("torch") parameter layouts — used by merger_ref unchanged.
        self.conv_w = scale * jax.random.normal(k[0], (mid_dim, nc), jnp.float32)
        self.conv_b = scale * jax.random.normal(k[1], (mid_dim,), jnp.float32)
        self.fc1_w = scale * jax.random.normal(
            k[2], (last_dim, self.cls_input), jnp.float32)
        self.fc1_b = scale * jax.random.normal(k[3], (last_dim,), jnp.float32)
        self.fc2_w = scale * jax.random.normal(
            k[4], (last_dim, last_dim), jnp.float32)
        self.fc2_b = scale * jax.random.normal(k[5], (last_dim,), jnp.float32)

        # --- one-time kernel-side weight prep (no per-call work) ------------
        wh = self.wh
        # Pixel-block-diagonal expansion of the 1x1 conv:
        #   Wc[k*49 + p', m*49 + p] = conv_w[m, k] * (p == p')
        # so x_flat[b, k*49+p] @ Wc yields the conv output directly in torch's
        # channel-major flatten order (m*49+p), with zero in-kernel relayouts.
        eye_p = jnp.eye(wh, dtype=jnp.float32)
        wc_big = (self.conv_w.T[:, None, :, None] * eye_p[None, :, None, :])
        self._wc_big = wc_big.reshape(nc * wh, mid_dim * wh).astype(jnp.bfloat16)
        self._bc_row = jnp.repeat(self.conv_b, wh).reshape(1, self.cls_input)
        self._w1t = self.fc1_w.T.astype(jnp.bfloat16)        # (cls_input, last)
        self._b1_row = self.fc1_b.reshape(1, last_dim)
        self._w2t = self.fc2_w.T.astype(jnp.bfloat16)        # (last, last)
        self._b2_row = self.fc2_b.reshape(1, last_dim)

    def __call__(self, feat_x, *, max_block_b=256):
        b, n, c, w, h = feat_x.shape
        assert n == self.vote_num
        assert c == self.in_dim
        assert w == 7 and h == 7, "cls_input hardcodes 7x7 spatial (as in PyTorch)"
        # (b,n,c,w,h) -> (b, n*c*49): contiguous (free) reshape; per-sample
        # column order k*49+p is exactly what _wc_big consumes.
        x2 = feat_x.reshape(b, n * c * w * h)
        return merger_forward(x2, self._wc_big, self._bc_row, self._w1t,
                              self._b1_row, self._w2t, self._b2_row,
                              max_block_b=max_block_b)


# ----------------------------------------------------------------------------
# Pure-JAX f32 reference (original torch semantics / weight layouts)
# ----------------------------------------------------------------------------
def merger_ref(m: MergerPallas, feat_x):
    b, n, c, w, h = feat_x.shape
    x = feat_x.reshape(b, n * c, w, h)
    y = jnp.einsum('bkij,mk->bmij', x, m.conv_w) + m.conv_b[None, :, None, None]
    y = jax.nn.relu(y).reshape(b, m.cls_input)
    y = jax.nn.relu(y @ m.fc1_w.T + m.fc1_b)
    y = jax.nn.relu(y @ m.fc2_w.T + m.fc2_b)
    return y


if __name__ == "__main__":
    key = jax.random.PRNGKey(0)
    k_param, k_data = jax.random.split(key)

    VOTE, IN_DIM, MID_DIM, LAST_DIM, W, H = 7, 8, 8, 32, 7, 7
    merger = MergerPallas(in_dim=IN_DIM, mid_dim=MID_DIM, last_dim=LAST_DIM,
                          vote_num=VOTE, key=k_param)

    # B=256: two 128-row tiles (batch tiling + both v7x TensorCores).
    # B=20 : padded tail tile.   B=2 : single full-extent tile.
    for batch in (256, 20, 2):
        feat_x = jax.random.normal(jax.random.fold_in(k_data, batch),
                                   (batch, VOTE, IN_DIM, W, H), jnp.float32)
        out = jax.block_until_ready(merger(feat_x))
        ref = jax.block_until_ready(merger_ref(merger, feat_x))
        assert out.shape == (batch, LAST_DIM)
        max_err = float(jnp.max(jnp.abs(out - ref)))
        # bf16 MXU inputs (f32 accumulation) vs the f32 reference.
        assert jnp.allclose(out, ref, atol=2e-2, rtol=2e-2), (
            f"mismatch vs reference at batch={batch}: max_abs_err={max_err}")

    print("KERNEL_OK")
</pallas_src>

<mosaic_0001>
module attributes {stable_mosaic.version = 11 : i64} {
  func.func @_merger_kernel(%arg0: i32, %arg1: memref<128x2744xf32, #tpu.memory_space<vmem>>, %arg2: memref<2744x392xbf16, #tpu.memory_space<vmem>>, %arg3: memref<1x392xf32, #tpu.memory_space<vmem>>, %arg4: memref<392x32xbf16, #tpu.memory_space<vmem>>, %arg5: memref<1x32xf32, #tpu.memory_space<vmem>>, %arg6: memref<32x32xbf16, #tpu.memory_space<vmem>>, %arg7: memref<1x32xf32, #tpu.memory_space<vmem>>, %arg8: memref<128x32xf32, #tpu.memory_space<vmem>>) attributes {dimension_semantics = [#tpu.dimension_semantics<parallel>], iteration_bounds = array<i64: 2>, scalar_prefetch = 0 : i64, scratch_operands = 0 : i64, tpu.core_type = #tpu.core_type<tc>, window_params = [{transform_indices = @transform_0, window_bounds = array<i64: 128, 2744>}, {pipeline_mode = #tpu.pipeline_mode<synchronous>, transform_indices = @transform_1, window_bounds = array<i64: 2744, 392>}, {pipeline_mode = #tpu.pipeline_mode<synchronous>, transform_indices = @transform_2, window_bounds = array<i64: 1, 392>}, {pipeline_mode = #tpu.pipeline_mode<synchronous>, transform_indices = @transform_3, window_bounds = array<i64: 392, 32>}, {pipeline_mode = #tpu.pipeline_mode<synchronous>, transform_indices = @transform_4, window_bounds = array<i64: 1, 32>}, {pipeline_mode = #tpu.pipeline_mode<synchronous>, transform_indices = @transform_5, window_bounds = array<i64: 32, 32>}, {pipeline_mode = #tpu.pipeline_mode<synchronous>, transform_indices = @transform_6, window_bounds = array<i64: 1, 32>}, {transform_indices = @transform_7, window_bounds = array<i64: 128, 32>}]} {
    %c0 = arith.constant 0 : index
    %c0_0 = arith.constant 0 : index
    %0 = vector.load %arg1[%c0, %c0_0] : memref<128x2744xf32, #tpu.memory_space<vmem>>, vector<128x2744xf32>
    %1 = arith.truncf %0 : vector<128x2744xf32> to vector<128x2744xbf16>
    %c0_1 = arith.constant 0 : index
    %c0_2 = arith.constant 0 : index
    %2 = vector.load %arg2[%c0_1, %c0_2] : memref<2744x392xbf16, #tpu.memory_space<vmem>>, vector<2744x392xbf16>
    %cst = arith.constant dense<0.000000e+00> : vector<128x392xf32>
    %3 = tpu.matmul %1, %2, %cst {dimension_numbers = #tpu.dot_dimension_numbers<[1], [0], [0], [1], [0, 0, 1, 1], [], []>} : vector<128x2744xbf16>, vector<2744x392xbf16>, vector<128x392xf32> -> vector<128x392xf32>
    %c0_3 = arith.constant 0 : index
    %c0_4 = arith.constant 0 : index
    %4 = vector.load %arg3[%c0_3, %c0_4] : memref<1x392xf32, #tpu.memory_space<vmem>>, vector<1x392xf32>
    %5 = vector.broadcast %4 : vector<1x392xf32> to vector<128x392xf32>
    %6 = arith.addf %3, %5 : vector<128x392xf32>
    %cst_5 = arith.constant 0.000000e+00 : f32
    %7 = vector.broadcast %cst_5 : f32 to vector<128x392xf32>
    %8 = arith.maximumf %6, %7 : vector<128x392xf32>
    %9 = arith.truncf %8 : vector<128x392xf32> to vector<128x392xbf16>
    %c0_6 = arith.constant 0 : index
    %c0_7 = arith.constant 0 : index
    %10 = vector.load %arg4[%c0_6, %c0_7] : memref<392x32xbf16, #tpu.memory_space<vmem>>, vector<392x32xbf16>
    %cst_8 = arith.constant dense<0.000000e+00> : vector<128x32xf32>
    %11 = tpu.matmul %9, %10, %cst_8 {dimension_numbers = #tpu.dot_dimension_numbers<[1], [0], [0], [1], [0, 0, 1, 1], [], []>} : vector<128x392xbf16>, vector<392x32xbf16>, vector<128x32xf32> -> vector<128x32xf32>
    %c0_9 = arith.constant 0 : index
    %c0_10 = arith.constant 0 : index
    %12 = vector.load %arg5[%c0_9, %c0_10] : memref<1x32xf32, #tpu.memory_space<vmem>>, vector<1x32xf32>
    %13 = vector.broadcast %12 : vector<1x32xf32> to vector<128x32xf32>
    %14 = arith.addf %11, %13 : vector<128x32xf32>
    %cst_11 = arith.constant 0.000000e+00 : f32
    %15 = vector.broadcast %cst_11 : f32 to vector<128x32xf32>
    %16 = arith.maximumf %14, %15 : vector<128x32xf32>
    %17 = arith.truncf %16 : vector<128x32xf32> to vector<128x32xbf16>
    %c0_12 = arith.constant 0 : index
    %c0_13 = arith.constant 0 : index
    %18 = vector.load %arg6[%c0_12, %c0_13] : memref<32x32xbf16, #tpu.memory_space<vmem>>, vector<32x32xbf16>
    %cst_14 = arith.constant dense<0.000000e+00> : vector<128x32xf32>
    %19 = tpu.matmul %17, %18, %cst_14 {dimension_numbers = #tpu.dot_dimension_numbers<[1], [0], [0], [1], [0, 0, 1, 1], [], []>} : vector<128x32xbf16>, vector<32x32xbf16>, vector<128x32xf32> -> vector<128x32xf32>
    %c0_15 = arith.constant 0 : index
    %c0_16 = arith.constant 0 : index
    %20 = vector.load %arg7[%c0_15, %c0_16] : memref<1x32xf32, #tpu.memory_space<vmem>>, vector<1x32xf32>
    %21 = vector.broadcast %20 : vector<1x32xf32> to vector<128x32xf32>
    %22 = arith.addf %19, %21 : vector<128x32xf32>
    %cst_17 = arith.constant 0.000000e+00 : f32
    %23 = vector.broadcast %cst_17 : f32 to vector<128x32xf32>
    %24 = arith.maximumf %22, %23 : vector<128x32xf32>
    %c0_18 = arith.constant 0 : index
    %c0_19 = arith.constant 0 : index
    %25 = vector.load %arg8[%c0_18, %c0_19] : memref<128x32xf32, #tpu.memory_space<vmem>>, vector<128x32xf32>
    tpu.vector_store %arg8[%c0_18, %c0_19], %24 {strides = array<i32>} : memref<128x32xf32, #tpu.memory_space<vmem>>, vector<128x32xf32>,
    return
  }
  func.func @transform_0(%arg0: i32) -> (i32, i32) {
    %c0_i32 = arith.constant 0 : i32
    %c0_i32_0 = arith.constant 0 : i32
    return %arg0, %c0_i32 : i32, i32
  }
  func.func @transform_1(%arg0: i32) -> (i32, i32) {
    %c0_i32 = arith.constant 0 : i32
    %c0_i32_0 = arith.constant 0 : i32
    %c0_i32_1 = arith.constant 0 : i32
    return %c0_i32, %c0_i32_0 : i32, i32
  }
  func.func @transform_2(%arg0: i32) -> (i32, i32) {
    %c0_i32 = arith.constant 0 : i32
    %c0_i32_0 = arith.constant 0 : i32
    %c0_i32_1 = arith.constant 0 : i32
    return %c0_i32, %c0_i32_0 : i32, i32
  }
  func.func @transform_3(%arg0: i32) -> (i32, i32) {
    %c0_i32 = arith.constant 0 : i32
    %c0_i32_0 = arith.constant 0 : i32
    %c0_i32_1 = arith.constant 0 : i32
    return %c0_i32, %c0_i32_0 : i32, i32
  }
  func.func @transform_4(%arg0: i32) -> (i32, i32) {
    %c0_i32 = arith.constant 0 : i32
    %c0_i32_0 = arith.constant 0 : i32
    %c0_i32_1 = arith.constant 0 : i32
    return %c0_i32, %c0_i32_0 : i32, i32
  }
  func.func @transform_5(%arg0: i32) -> (i32, i32) {
    %c0_i32 = arith.constant 0 : i32
    %c0_i32_0 = arith.constant 0 : i32
    %c0_i32_1 = arith.constant 0 : i32
    return %c0_i32, %c0_i32_0 : i32, i32
  }
  func.func @transform_6(%arg0: i32) -> (i32, i32) {
    %c0_i32 = arith.constant 0 : i32
    %c0_i32_0 = arith.constant 0 : i32
    %c0_i32_1 = arith.constant 0 : i32
    return %c0_i32, %c0_i32_0 : i32, i32
  }
  func.func @transform_7(%arg0: i32) -> (i32, i32) {
    %c0_i32 = arith.constant 0 : i32
    %c0_i32_0 = arith.constant 0 : i32
    return %arg0, %c0_i32 : i32, i32
  }
}

</mosaic_0001>

<llo_original>
// kernel: tpu_custom_call.1
$region0: #{tpu_custom_call.1}
  #allocation0 [shape = 'u32[]', space=smem, size = 0x4, offset = 0x4, fixed_abs, tag = 'smem constant byte address 0x4 - core index']
  #allocation1 [shape = 'u32[144,128]{1,0:T(1,128)}', space=vmem, size = 0x12000, scoped, tag = 'internal scratch']
  %s0 = inlined_call_operand.vmem [shape: f32[256,2744], index: 0, kind: input, shape index: {}]
  %s1 = inlined_call_operand.vmem [shape: bf16[2744,392], index: 1, kind: input, shape index: {}]
  %s2 = inlined_call_operand.vmem [shape: f32[1,392], index: 2, kind: input, shape index: {}]
  %s3 = inlined_call_operand.vmem [shape: bf16[392,32], index: 3, kind: input, shape index: {}]
  %s4 = inlined_call_operand.vmem [shape: f32[1,32], index: 4, kind: input, shape index: {}]
  %s5 = inlined_call_operand.vmem [shape: bf16[32,32], index: 5, kind: input, shape index: {}]
  %s6 = inlined_call_operand.vmem [shape: f32[1,32], index: 6, kind: input, shape index: {}]
  %s7 = inlined_call_operand.vmem [shape: f32[256,32], index: 7, kind: output, shape index: {}]
  %s8 = sld [smem:[#allocation0]]
  $region61: #{tpu_custom_call.1} parent=0
    _
  %s10 = ssub.s32 1, %s8
  %s11 = scalar_select 0, %s10, %s8
  loop: start=0, step=1, limit=4
  $region2: #{tpu_custom_call.1} parent=0 // loop_pre_header
    _
  $region3: #{tpu_custom_call.1} parent=0 // loop_header
    %s13 = sphi 0, %s17
    %p14 = scmp.ge.s32.totalorder %s13, 4
    %s23 = sphi 0, %s25
    %s26 = sphi 0, %s23
    %s27 = sphi 0, %s26
    %s43 = sphi 0, %s27
    %s47 = sphi 0, %s47
    %s49 = sphi 0, %s47
    %s50 = sphi 0, %s49
    %s64 = sphi 0, %s50
    %s68 = sphi 0, %s68
    %s70 = sphi 0, %s68
    %s71 = sphi 0, %s70
    %s85 = sphi 0, %s71
    %s89 = sphi 0, %s89
    %s91 = sphi 0, %s89
    %s92 = sphi 0, %s91
    %s106 = sphi 0, %s92
    %s110 = sphi 0, %s110
    %s112 = sphi 0, %s110
    %s113 = sphi 0, %s112
    %s127 = sphi 0, %s113
    %s131 = sphi 0, %s131
    %s133 = sphi 0, %s131
    %s134 = sphi 0, %s133
    %s148 = sphi 0, %s134
    %s152 = sphi 0, %s152
    %s154 = sphi 0, %s152
    %s155 = sphi 0, %s154
    %s169 = sphi 0, %s155
    %s175 = sphi 0, %s177
    %s178 = sphi 0, %s175
    %s179 = sphi 0, %s178
    %s195 = sphi 0, %s179
  $region4: #{tpu_custom_call.1} parent=0 // loop_header_branch
    %16 = sbr.rel (%p14) target = $region8
  $region5: #{tpu_custom_call.1} parent=0 // loop_body
    %s18 = ssub.s32 %s13, 1
    %s19 = ssub.s32 %s13, 2
    %s20 = sadd.s32 %s13, 1
    %s21 = ssub.s32 %s13, %s20
    %p22 = scmp.eq.s32.totalorder %s21, 0
    %s24 = sadd.s32 %s23, 1
    %s25 = scalar_select %p22, %s23, %s24
    %p28 = pneg %p22
    %p29 = scmp.eq.s32.totalorder %s13, 1
    %p30 = por %p28, %p29
    %p31 = scmp.ne.s32.totalorder %s23, %s26
    %p32 = scmp.eq.s32.totalorder %s13, 0
    %p33 = por %p31, %p32
    %p34 = scmp.ne.s32.totalorder %s23, %s26
    %p35 = scmp.eq.s32.totalorder %s18, 1
    %p36 = por %p34, %p35
    %p37 = scmp.ne.s32.totalorder %s26, %s27
    %p38 = scmp.eq.s32.totalorder %s18, 0
    %p39 = por %p37, %p38
    %p40 = scmp.ne.s32.totalorder %s26, %s27
    %p41 = scmp.eq.s32.totalorder %s19, 1
    %p42 = por %p40, %p41
    %p44 = scmp.ne.s32.totalorder %s27, %s43
    %p45 = scmp.eq.s32.totalorder %s19, 0
    %p46 = por %p44, %p45
    %s48 = sadd.s32 %s47, 1
    %p51 = scmp.eq.s32.totalorder %s13, 1
    %p52 = scmp.ne.s32.totalorder %s47, %s49
    %p53 = scmp.eq.s32.totalorder %s13, 0
    %p54 = por %p52, %p53
    %p55 = scmp.ne.s32.totalorder %s47, %s49
    %p56 = scmp.eq.s32.totalorder %s18, 1
    %p57 = por %p55, %p56
    %p58 = scmp.ne.s32.totalorder %s49, %s50
    %p59 = scmp.eq.s32.totalorder %s18, 0
    %p60 = por %p58, %p59
    %p61 = scmp.ne.s32.totalorder %s49, %s50
    %p62 = scmp.eq.s32.totalorder %s19, 1
    %p63 = por %p61, %p62
    %p65 = scmp.ne.s32.totalorder %s50, %s64
    %p66 = scmp.eq.s32.totalorder %s19, 0
    %p67 = por %p65, %p66
    %s69 = sadd.s32 %s68, 1
    %p72 = scmp.eq.s32.totalorder %s13, 1
    %p73 = scmp.ne.s32.totalorder %s68, %s70
    %p74 = scmp.eq.s32.totalorder %s13, 0
    %p75 = por %p73, %p74
    %p76 = scmp.ne.s32.totalorder %s68, %s70
    %p77 = scmp.eq.s32.totalorder %s18, 1
    %p78 = por %p76, %p77
    %p79 = scmp.ne.s32.totalorder %s70, %s71
    %p80 = scmp.eq.s32.totalorder %s18, 0
    %p81 = por %p79, %p80
    %p82 = scmp.ne.s32.totalorder %s70, %s71
    %p83 = scmp.eq.s32.totalorder %s19, 1
    %p84 = por %p82, %p83
    %p86 = scmp.ne.s32.totalorder %s71, %s85
    %p87 = scmp.eq.s32.totalorder %s19, 0
    %p88 = por %p86, %p87
    %s90 = sadd.s32 %s89, 1
    %p93 = scmp.eq.s32.totalorder %s13, 1
    %p94 = scmp.ne.s32.totalorder %s89, %s91
    %p95 = scmp.eq.s32.totalorder %s13, 0
    %p96 = por %p94, %p95
    %p97 = scmp.ne.s32.totalorder %s89, %s91
    %p98 = scmp.eq.s32.totalorder %s18, 1
    %p99 = por %p97, %p98
    %p100 = scmp.ne.s32.totalorder %s91, %s92
    %p101 = scmp.eq.s32.totalorder %s18, 0
    %p102 = por %p100, %p101
    %p103 = scmp.ne.s32.totalorder %s91, %s92
    %p104 = scmp.eq.s32.totalorder %s19, 1
    %p105 = por %p103, %p104
    %p107 = scmp.ne.s32.totalorder %s92, %s106
    %p108 = scmp.eq.s32.totalorder %s19, 0
    %p109 = por %p107, %p108
    %s111 = sadd.s32 %s110, 1
    %p114 = scmp.eq.s32.totalorder %s13, 1
    %p115 = scmp.ne.s32.totalorder %s110, %s112
    %p116 = scmp.eq.s32.totalorder %s13, 0
    %p117 = por %p115, %p116
    %p118 = scmp.ne.s32.totalorder %s110, %s112
    %p119 = scmp.eq.s32.totalorder %s18, 1
    %p120 = por %p118, %p119
    %p121 = scmp.ne.s32.totalorder %s112, %s113
    %p122 = scmp.eq.s32.totalorder %s18, 0
    %p123 = por %p121, %p122
    %p124 = scmp.ne.s32.totalorder %s112, %s113
    %p125 = scmp.eq.s32.totalorder %s19, 1
    %p126 = por %p124, %p125
    %p128 = scmp.ne.s32.totalorder %s113, %s127
    %p129 = scmp.eq.s32.totalorder %s19, 0
    %p130 = por %p128, %p129
    %s132 = sadd.s32 %s131, 1
    %p135 = scmp.eq.s32.totalorder %s13, 1
    %p136 = scmp.ne.s32.totalorder %s131, %s133
    %p137 = scmp.eq.s32.totalorder %s13, 0
    %p138 = por %p136, %p137
    %p139 = scmp.ne.s32.totalorder %s131, %s133
    %p140 = scmp.eq.s32.totalorder %s18, 1
    %p141 = por %p139, %p140
    %p142 = scmp.ne.s32.totalorder %s133, %s134
    %p143 = scmp.eq.s32.totalorder %s18, 0
    %p144 = por %p142, %p143
    %p145 = scmp.ne.s32.totalorder %s133, %s134
    %p146 = scmp.eq.s32.totalorder %s19, 1
    %p147 = por %p145, %p146
    %p149 = scmp.ne.s32.totalorder %s134, %s148
    %p150 = scmp.eq.s32.totalorder %s19, 0
    %p151 = por %p149, %p150
    %s153 = sadd.s32 %s152, 1
    %p156 = scmp.eq.s32.totalorder %s13, 1
    %p157 = scmp.ne.s32.totalorder %s152, %s154
    %p158 = scmp.eq.s32.totalorder %s13, 0
    %p159 = por %p157, %p158
    %p160 = scmp.ne.s32.totalorder %s152, %s154
    %p161 = scmp.eq.s32.totalorder %s18, 1
    %p162 = por %p160, %p161
    %p163 = scmp.ne.s32.totalorder %s154, %s155
    %p164 = scmp.eq.s32.totalorder %s18, 0
    %p165 = por %p163, %p164
    %p166 = scmp.ne.s32.totalorder %s154, %s155
    %p167 = scmp.eq.s32.totalorder %s19, 1
    %p168 = por %p166, %p167
    %p170 = scmp.ne.s32.totalorder %s155, %s169
    %p171 = scmp.eq.s32.totalorder %s19, 0
    %p172 = por %p170, %p171
    %s173 = ssub.s32 %s13, %s20
    %p174 = scmp.eq.s32.totalorder %s173, 0
    %s176 = sadd.s32 %s175, 1
    %s177 = scalar_select %p174, %s175, %s176
    %p180 = pneg %p174
    %p181 = scmp.eq.s32.totalorder %s13, 1
    %p182 = por %p180, %p181
    %p183 = scmp.ne.s32.totalorder %s175, %s178
    %p184 = scmp.eq.s32.totalorder %s13, 0
    %p185 = por %p183, %p184
    %p186 = scmp.ne.s32.totalorder %s175, %s178
    %p187 = scmp.eq.s32.totalorder %s18, 1
    %p188 = por %p186, %p187
    %p189 = scmp.ne.s32.totalorder %s178, %s179
    %p190 = scmp.eq.s32.totalorder %s18, 0
    %p191 = por %p189, %p190
    %p192 = scmp.ne.s32.totalorder %s178, %s179
    %p193 = scmp.eq.s32.totalorder %s19, 1
    %p194 = por %p192, %p193
    %p196 = scmp.ne.s32.totalorder %s179, %s195
    %p197 = scmp.eq.s32.totalorder %s19, 0
    %p198 = por %p196, %p197
    %p199 = scmp.le.s32.totalorder 1, %s13
    %p200 = scmp.lt.s32.totalorder %s13, 3
    %p201 = pnand %p199, %p200
    %p202 = pneg %p201
    // Predicated region
    $region9: #{tpu_custom_call.1} parent=5 // pred_check
      _
    $region10: #{tpu_custom_call.1} parent=5 // pred_check_branch
      %204 = sbr.rel (%p201) target = $region12
    $region11: #{tpu_custom_call.1} parent=5 // pred_region
      %s205 = ssub.s32 %s13, 1
      // Predicated region
      $region13: #{tpu_custom_call.1} parent=11 // pred_check
        %p206 = pneg %p60
      $region14: #{tpu_custom_call.1} parent=11 // pred_check_branch
        %208 = sbr.rel (%p206) target = $region16
      $region15: #{tpu_custom_call.1} parent=11 // pred_region
        _
      $region16: #{tpu_custom_call.1} parent=11 // pred_fallthru
        _
      // Predicated region
      $region17: #{tpu_custom_call.1} parent=11 // pred_check
        %p209 = pneg %p81
      $region18: #{tpu_custom_call.1} parent=11 // pred_check_branch
        %211 = sbr.rel (%p209) target = $region20
      $region19: #{tpu_custom_call.1} parent=11 // pred_region
        _
      $region20: #{tpu_custom_call.1} parent=11 // pred_fallthru
        _
      // Predicated region
      $region21: #{tpu_custom_call.1} parent=11 // pred_check
        %p212 = pneg %p102
      $region22: #{tpu_custom_call.1} parent=11 // pred_check_branch
        %214 = sbr.rel (%p212) target = $region24
      $region23: #{tpu_custom_call.1} parent=11 // pred_region
        _
      $region24: #{tpu_custom_call.1} parent=11 // pred_fallthru
        _
      // Predicated region
      $region25: #{tpu_custom_call.1} parent=11 // pred_check
        %p215 = pneg %p123
      $region26: #{tpu_custom_call.1} parent=11 // pred_check_branch
        %217 = sbr.rel (%p215) target = $region28
      $region27: #{tpu_custom_call.1} parent=11 // pred_region
        _
      $region28: #{tpu_custom_call.1} parent=11 // pred_fallthru
        _
      // Predicated region
      $region29: #{tpu_custom_call.1} parent=11 // pred_check
        %p218 = pneg %p144
      $region30: #{tpu_custom_call.1} parent=11 // pred_check_branch
        %220 = sbr.rel (%p218) target = $region32
      $region31: #{tpu_custom_call.1} parent=11 // pred_region
        _
      $region32: #{tpu_custom_call.1} parent=11 // pred_fallthru
        _
      // Predicated region
      $region33: #{tpu_custom_call.1} parent=11 // pred_check
        %p221 = pneg %p165
      $region34: #{tpu_custom_call.1} parent=11 // pred_check_branch
        %223 = sbr.rel (%p221) target = $region36
      $region35: #{tpu_custom_call.1} parent=11 // pred_region
        _
      $region36: #{tpu_custom_call.1} parent=11 // pred_fallthru
        _
    $region12: #{tpu_custom_call.1} parent=5 // pred_fallthru
      _
    %p224 = scmp.lt.s32.totalorder %s13, 2
    // Predicated region
    $region37: #{tpu_custom_call.1} parent=5 // pred_check
      %p225 = pneg %p224
    $region38: #{tpu_custom_call.1} parent=5 // pred_check_branch
      %227 = sbr.rel (%p225) target = $region40
    $region39: #{tpu_custom_call.1} parent=5 // pred_region
      // Predicated region
      $region41: #{tpu_custom_call.1} parent=39 // pred_check
        %p228 = pneg %p33
      $region42: #{tpu_custom_call.1} parent=39 // pred_check_branch
        %230 = sbr.rel (%p228) target = $region44
      $region43: #{tpu_custom_call.1} parent=39 // pred_region
        %s231 = smul.u32 16, %s13
        %p232 = scmp.lt.s32.totalorder %s231, 31
        %s233 = scalar_select %p232, %s231, 31
        %s234 = smul.addr %s233, 22
        %s235 = smul.addr %s234, 8
        %s236 = scalar_lea.vmem %s0, %s235
        %s237 = smul.u32 16, %s13
      $region44: #{tpu_custom_call.1} parent=39 // pred_fallthru
        _
    $region40: #{tpu_custom_call.1} parent=5 // pred_fallthru
      _
    %p238 = scmp.le.s32.totalorder 1, %s13
    %p239 = scmp.lt.s32.totalorder %s13, 3
    %p240 = pnand %p238, %p239
    %p241 = pneg %p240
    // Predicated region
    $region45: #{tpu_custom_call.1} parent=5 // pred_check
      _
    $region46: #{tpu_custom_call.1} parent=5 // pred_check_branch
      %243 = sbr.rel (%p240) target = $region48
    $region47: #{tpu_custom_call.1} parent=5 // pred_region
      %s244 = ssub.s32 %s13, 1
      %s245 = smul.u32 16, %s18
      %p246 = scmp.lt.s32.totalorder %s245, 31
      %s247 = scalar_select %p246, %s245, 31
      %s248 = smul.addr %s247, 22
      %s249 = smul.addr %s248, 8
      %s250 = scalar_lea.vmem %s0, %s249
      %p251 = pneg %p39
      %p252 = pneg %p36
      %p253 = pneg %p60
      %p254 = pneg %p57
      %p255 = pneg %p81
      %p256 = pneg %p78
      %p257 = pneg %p102
      %p258 = pneg %p99
      %p259 = pneg %p123
      %p260 = pneg %p120
      %p261 = pneg %p144
      %p262 = pneg %p141
      %p263 = pneg %p165
      %p264 = pneg %p162
      %p265 = pneg %p191
      %p266 = pneg %p188
      %s267 = smul.u32 16, %s18
      %p268 = scmp.lt.s32.totalorder %s267, 31
      %s269 = scalar_select %p268, %s267, 31
      %s270 = smul.addr %s269, 8
      %s271 = scalar_lea.vmem %s7, %s270
      %s272 = smul.u32 16, %s18
      %p273 = scmp.lt.s32.totalorder %s272, 31
      %s274 = scalar_select %p273, %s272, 31
      %s275 = smul.addr %s274, 22
      %s276 = smul.addr %s275, 8
      %s277 = scalar_lea.vmem %s0, %s276
      %s278 = smul.u32 16, %s18
      %s279 = smul.u32 16, %s18
      %p280 = scmp.lt.s32.totalorder %s279, 31
      %s281 = scalar_select %p280, %s279, 31
      %s282 = smul.addr %s281, 8
      %s283 = scalar_lea.vmem %s7, %s282
      %s284 = smul.u32 16, %s18
      %v286 = vld [vmem:[%s277] sm:$0xff]
      %v287 = vld [vmem:[%s277 + $0x8] sm:$0xff]
      %v288 = vld [vmem:[%s277 + $0x10] sm:$0xff]
      %v289 = vld [vmem:[%s277 + $0x18] sm:$0xff]
      %v290 = vld [vmem:[%s277 + $0x20] sm:$0xff]
      %v291 = vld [vmem:[%s277 + $0x28] sm:$0xff]
      %v292 = vld [vmem:[%s277 + $0x30] sm:$0xff]
      %v293 = vld [vmem:[%s277 + $0x38] sm:$0xff]
      %v294 = vld [vmem:[%s277 + $0x40] sm:$0xff]
      %v295 = vld [vmem:[%s277 + $0x48] sm:$0xff]
      %v296 = vld [vmem:[%s277 + $0x50] sm:$0xff]
      %v297 = vld [vmem:[%s277 + $0x58] sm:$0xff]
      %v298 = vld [vmem:[%s277 + $0x60] sm:$0xff]
      %v299 = vld [vmem:[%s277 + $0x68] sm:$0xff]
      %v300 = vld [vmem:[%s277 + $0x70] sm:$0xff]
      %v301 = vld [vmem:[%s277 + $0x78] sm:$0xff]
      %v302 = vld [vmem:[%s277 + $0x80] sm:$0xff]
      %v303 = vld [vmem:[%s277 + $0x88] sm:$0xff]
      %v304 = vld [vmem:[%s277 + $0x90] sm:$0xff]
      %v305 = vld [vmem:[%s277 + $0x98] sm:$0xff]
      %v306 = vld [vmem:[%s277 + $0xa0] sm:$0xff]
      %v307 = vld [vmem:[%s277 + $0xa8] sm:$0xff]
      %v308 = vld [vmem:[%s277 + $0xb0] sm:$0xff]
      %v309 = vld [vmem:[%s277 + $0xb8] sm:$0xff]
      %v310 = vld [vmem:[%s277 + $0xc0] sm:$0xff]
      %v311 = vld [vmem:[%s277 + $0xc8] sm:$0xff]
      %v312 = vld [vmem:[%s277 + $0xd0] sm:$0xff]
      %v313 = vld [vmem:[%s277 + $0xd8] sm:$0xff]
      %v314 = vld [vmem:[%s277 + $0xe0] sm:$0xff]
      %v315 = vld [vmem:[%s277 + $0xe8] sm:$0xff]
      %v316 = vld [vmem:[%s277 + $0xf0] sm:$0xff]
      %v317 = vld [vmem:[%s277 + $0xf8] sm:$0xff]
      %v318 = vld [vmem:[%s277 + $0x100] sm:$0xff]
      %v319 = vld [vmem:[%s277 + $0x108] sm:$0xff]
      %v320 = vld [vmem:[%s277 + $0x110] sm:$0xff]
      %v321 = vld [vmem:[%s277 + $0x118] sm:$0xff]
      %v322 = vld [vmem:[%s277 + $0x120] sm:$0xff]
      %v323 = vld [vmem:[%s277 + $0x128] sm:$0xff]
      %v324 = vld [vmem:[%s277 + $0x130] sm:$0xff]
      %v325 = vld [vmem:[%s277 + $0x138] sm:$0xff]
      %v326 = vld [vmem:[%s277 + $0x140] sm:$0xff]
      %v327 = vld [vmem:[%s277 + $0x148] sm:$0xff]
      %v328 = vld [vmem:[%s277 + $0x150] sm:$0xff]
      %v329 = vld [vmem:[%s277 + $0x158] sm:$0xff]
      %v330 = vld [vmem:[%s277 + $0x160] sm:$0xff]
      %v331 = vld [vmem:[%s277 + $0x168] sm:$0xff]
      %v332 = vld [vmem:[%s277 + $0x170] sm:$0xff]
      %v333 = vld [vmem:[%s277 + $0x178] sm:$0xff]
      %v334 = vld [vmem:[%s277 + $0x180] sm:$0xff]
      %v335 = vld [vmem:[%s277 + $0x188] sm:$0xff]
      %v336 = vld [vmem:[%s277 + $0x190] sm:$0xff]
      %v337 = vld [vmem:[%s277 + $0x198] sm:$0xff]
      %v338 = vld [vmem:[%s277 + $0x1a0] sm:$0xff]
      %v339 = vld [vmem:[%s277 + $0x1a8] sm:$0xff]
      %v340 = vld [vmem:[%s277 + $0x1b0] sm:$0xff]
      %v341 = vld [vmem:[%s277 + $0x1b8] sm:$0xff]
      %v342 = vld [vmem:[%s277 + $0x1c0] sm:$0xff]
      %v343 = vld [vmem:[%s277 + $0x1c8] sm:$0xff]
      %v344 = vld [vmem:[%s277 + $0x1d0] sm:$0xff]
      %v345 = vld [vmem:[%s277 + $0x1d8] sm:$0xff]
      %v346 = vld [vmem:[%s277 + $0x1e0] sm:$0xff]
      %v347 = vld [vmem:[%s277 + $0x1e8] sm:$0xff]
      %v348 = vld [vmem:[%s277 + $0x1f0] sm:$0xff]
      %v349 = vld [vmem:[%s277 + $0x1f8] sm:$0xff]
      %v350 = vld [vmem:[%s277 + $0x200] sm:$0xff]
      %v351 = vld [vmem:[%s277 + $0x208] sm:$0xff]
      %v352 = vld [vmem:[%s277 + $0x210] sm:$0xff]
      %v353 = vld [vmem:[%s277 + $0x218] sm:$0xff]
      %v354 = vld [vmem:[%s277 + $0x220] sm:$0xff]
      %v355 = vld [vmem:[%s277 + $0x228] sm:$0xff]
      %v356 = vld [vmem:[%s277 + $0x230] sm:$0xff]
      %v357 = vld [vmem:[%s277 + $0x238] sm:$0xff]
      %v358 = vld [vmem:[%s277 + $0x240] sm:$0xff]
      %v359 = vld [vmem:[%s277 + $0x248] sm:$0xff]
      %v360 = vld [vmem:[%s277 + $0x250] sm:$0xff]
      %v361 = vld [vmem:[%s277 + $0x258] sm:$0xff]
      %v362 = vld [vmem:[%s277 + $0x260] sm:$0xff]
      %v363 = vld [vmem:[%s277 + $0x268] sm:$0xff]
      %v364 = vld [vmem:[%s277 + $0x270] sm:$0xff]
      %v365 = vld [vmem:[%s277 + $0x278] sm:$0xff]
      %v366 = vld [vmem:[%s277 + $0x280] sm:$0xff]
      %v367 = vld [vmem:[%s277 + $0x288] sm:$0xff]
      %v368 = vld [vmem:[%s277 + $0x290] sm:$0xff]
      %v369 = vld [vmem:[%s277 + $0x298] sm:$0xff]
      %v370 = vld [vmem:[%s277 + $0x2a0] sm:$0xff]
      %v371 = vld [vmem:[%s277 + $0x2a8] sm:$0xff]
      %v372 = vld [vmem:[%s277 + $0x2b0] sm:$0xff]
      %v373 = vld [vmem:[%s277 + $0x2b8] sm:$0xff]
      %v374 = vld [vmem:[%s277 + $0x2c0] sm:$0xff]
      %v375 = vld [vmem:[%s277 + $0x2c8] sm:$0xff]
      %v376 = vld [vmem:[%s277 + $0x2d0] sm:$0xff]
      %v377 = vld [vmem:[%s277 + $0x2d8] sm:$0xff]
      %v378 = vld [vmem:[%s277 + $0x2e0] sm:$0xff]
      %v379 = vld [vmem:[%s277 + $0x2e8] sm:$0xff]
      %v380 = vld [vmem:[%s277 + $0x2f0] sm:$0xff]
      %v381 = vld [vmem:[%s277 + $0x2f8] sm:$0xff]
      %v382 = vld [vmem:[%s277 + $0x300] sm:$0xff]
      %v383 = vld [vmem:[%s277 + $0x308] sm:$0xff]
      %v384 = vld [vmem:[%s277 + $0x310] sm:$0xff]
      %v385 = vld [vmem:[%s277 + $0x318] sm:$0xff]
      %v386 = vld [vmem:[%s277 + $0x320] sm:$0xff]
      %v387 = vld [vmem:[%s277 + $0x328] sm:$0xff]
      %v388 = vld [vmem:[%s277 + $0x330] sm:$0xff]
      %v389 = vld [vmem:[%s277 + $0x338] sm:$0xff]
      %v390 = vld [vmem:[%s277 + $0x340] sm:$0xff]
      %v391 = vld [vmem:[%s277 + $0x348] sm:$0xff]
      %v392 = vld [vmem:[%s277 + $0x350] sm:$0xff]
      %v393 = vld [vmem:[%s277 + $0x358] sm:$0xff]
      %v394 = vld [vmem:[%s277 + $0x360] sm:$0xff]
      %v395 = vld [vmem:[%s277 + $0x368] sm:$0xff]
      %v396 = vld [vmem:[%s277 + $0x370] sm:$0xff]
      %v397 = vld [vmem:[%s277 + $0x378] sm:$0xff]
      %v398 = vld [vmem:[%s277 + $0x380] sm:$0xff]
      %v399 = vld [vmem:[%s277 + $0x388] sm:$0xff]
      %v400 = vld [vmem:[%s277 + $0x390] sm:$0xff]
      %v401 = vld [vmem:[%s277 + $0x398] sm:$0xff]
      %v402 = vld [vmem:[%s277 + $0x3a0] sm:$0xff]
      %v403 = vld [vmem:[%s277 + $0x3a8] sm:$0xff]
      %v404 = vld [vmem:[%s277 + $0x3b0] sm:$0xff]
      %v405 = vld [vmem:[%s277 + $0x3b8] sm:$0xff]
      %v406 = vld [vmem:[%s277 + $0x3c0] sm:$0xff]
      %v407 = vld [vmem:[%s277 + $0x3c8] sm:$0xff]
      %v408 = vld [vmem:[%s277 + $0x3d0] sm:$0xff]
      %v409 = vld [vmem:[%s277 + $0x3d8] sm:$0xff]
      %v410 = vld [vmem:[%s277 + $0x3e0] sm:$0xff]
      %v411 = vld [vmem:[%s277 + $0x3e8] sm:$0xff]
      %v412 = vld [vmem:[%s277 + $0x3f0] sm:$0xff]
      %v413 = vld [vmem:[%s277 + $0x3f8] sm:$0xff]
      %v414 = vld [vmem:[%s277 + $0x400] sm:$0xff]
      %v415 = vld [vmem:[%s277 + $0x408] sm:$0xff]
      %v416 = vld [vmem:[%s277 + $0x410] sm:$0xff]
      %v417 = vld [vmem:[%s277 + $0x418] sm:$0xff]
      %v418 = vld [vmem:[%s277 + $0x420] sm:$0xff]
      %v419 = vld [vmem:[%s277 + $0x428] sm:$0xff]
      %v420 = vld [vmem:[%s277 + $0x430] sm:$0xff]
      %v421 = vld [vmem:[%s277 + $0x438] sm:$0xff]
      %v422 = vld [vmem:[%s277 + $0x440] sm:$0xff]
      %v423 = vld [vmem:[%s277 + $0x448] sm:$0xff]
      %v424 = vld [vmem:[%s277 + $0x450] sm:$0xff]
      %v425 = vld [vmem:[%s277 + $0x458] sm:$0xff]
      %v426 = vld [vmem:[%s277 + $0x460] sm:$0xff]
      %v427 = vld [vmem:[%s277 + $0x468] sm:$0xff]
      %v428 = vld [vmem:[%s277 + $0x470] sm:$0xff]
      %v429 = vld [vmem:[%s277 + $0x478] sm:$0xff]
      %v430 = vld [vmem:[%s277 + $0x480] sm:$0xff]
      %v431 = vld [vmem:[%s277 + $0x488] sm:$0xff]
      %v432 = vld [vmem:[%s277 + $0x490] sm:$0xff]
      %v433 = vld [vmem:[%s277 + $0x498] sm:$0xff]
      %v434 = vld [vmem:[%s277 + $0x4a0] sm:$0xff]
      %v435 = vld [vmem:[%s277 + $0x4a8] sm:$0xff]
      %v436 = vld [vmem:[%s277 + $0x4b0] sm:$0xff]
      %v437 = vld [vmem:[%s277 + $0x4b8] sm:$0xff]
      %v438 = vld [vmem:[%s277 + $0x4c0] sm:$0xff]
      %v439 = vld [vmem:[%s277 + $0x4c8] sm:$0xff]
      %v440 = vld [vmem:[%s277 + $0x4d0] sm:$0xff]
      %v441 = vld [vmem:[%s277 + $0x4d8] sm:$0xff]
      %v442 = vld [vmem:[%s277 + $0x4e0] sm:$0xff]
      %v443 = vld [vmem:[%s277 + $0x4e8] sm:$0xff]
      %v444 = vld [vmem:[%s277 + $0x4f0] sm:$0xff]
      %v445 = vld [vmem:[%s277 + $0x4f8] sm:$0xff]
      %v446 = vld [vmem:[%s277 + $0x500] sm:$0xff]
      %v447 = vld [vmem:[%s277 + $0x508] sm:$0xff]
      %v448 = vld [vmem:[%s277 + $0x510] sm:$0xff]
      %v449 = vld [vmem:[%s277 + $0x518] sm:$0xff]
      %v450 = vld [vmem:[%s277 + $0x520] sm:$0xff]
      %v451 = vld [vmem:[%s277 + $0x528] sm:$0xff]
      %v452 = vld [vmem:[%s277 + $0x530] sm:$0xff]
      %v453 = vld [vmem:[%s277 + $0x538] sm:$0xff]
      %v454 = vld [vmem:[%s277 + $0x540] sm:$0xff]
      %v455 = vld [vmem:[%s277 + $0x548] sm:$0xff]
      %v456 = vld [vmem:[%s277 + $0x550] sm:$0xff]
      %v457 = vld [vmem:[%s277 + $0x558] sm:$0xff]
      %v458 = vld [vmem:[%s277 + $0x560] sm:$0xff]
      %v459 = vld [vmem:[%s277 + $0x568] sm:$0xff]
      %v460 = vld [vmem:[%s277 + $0x570] sm:$0xff]
      %v461 = vld [vmem:[%s277 + $0x578] sm:$0xff]
      %v462 = vld [vmem:[%s277 + $0x580] sm:$0xff]
      %v463 = vld [vmem:[%s277 + $0x588] sm:$0xff]
      %v464 = vld [vmem:[%s277 + $0x590] sm:$0xff]
      %v465 = vld [vmem:[%s277 + $0x598] sm:$0xff]
      %v466 = vld [vmem:[%s277 + $0x5a0] sm:$0xff]
      %v467 = vld [vmem:[%s277 + $0x5a8] sm:$0xff]
      %v468 = vld [vmem:[%s277 + $0x5b0] sm:$0xff]
      %v469 = vld [vmem:[%s277 + $0x5b8] sm:$0xff]
      %v470 = vld [vmem:[%s277 + $0x5c0] sm:$0xff]
      %v471 = vld [vmem:[%s277 + $0x5c8] sm:$0xff]
      %v472 = vld [vmem:[%s277 + $0x5d0] sm:$0xff]
      %v473 = vld [vmem:[%s277 + $0x5d8] sm:$0xff]
      %v474 = vld [vmem:[%s277 + $0x5e0] sm:$0xff]
      %v475 = vld [vmem:[%s277 + $0x5e8] sm:$0xff]
      %v476 = vld [vmem:[%s277 + $0x5f0] sm:$0xff]
      %v477 = vld [vmem:[%s277 + $0x5f8] sm:$0xff]
      %v478 = vld [vmem:[%s277 + $0x600] sm:$0xff]
      %v479 = vld [vmem:[%s277 + $0x608] sm:$0xff]
      %v480 = vld [vmem:[%s277 + $0x610] sm:$0xff]
      %v481 = vld [vmem:[%s277 + $0x618] sm:$0xff]
      %v482 = vld [vmem:[%s277 + $0x620] sm:$0xff]
      %v483 = vld [vmem:[%s277 + $0x628] sm:$0xff]
      %v484 = vld [vmem:[%s277 + $0x630] sm:$0xff]
      %v485 = vld [vmem:[%s277 + $0x638] sm:$0xff]
      %v486 = vld [vmem:[%s277 + $0x640] sm:$0xff]
      %v487 = vld [vmem:[%s277 + $0x648] sm:$0xff]
      %v488 = vld [vmem:[%s277 + $0x650] sm:$0xff]
      %v489 = vld [vmem:[%s277 + $0x658] sm:$0xff]
      %v490 = vld [vmem:[%s277 + $0x660] sm:$0xff]
      %v491 = vld [vmem:[%s277 + $0x668] sm:$0xff]
      %v492 = vld [vmem:[%s277 + $0x670] sm:$0xff]
      %v493 = vld [vmem:[%s277 + $0x678] sm:$0xff]
      %v494 = vld [vmem:[%s277 + $0x680] sm:$0xff]
      %v495 = vld [vmem:[%s277 + $0x688] sm:$0xff]
      %v496 = vld [vmem:[%s277 + $0x690] sm:$0xff]
      %v497 = vld [vmem:[%s277 + $0x698] sm:$0xff]
      %v498 = vld [vmem:[%s277 + $0x6a0] sm:$0xff]
      %v499 = vld [vmem:[%s277 + $0x6a8] sm:$0xff]
      %v500 = vld [vmem:[%s277 + $0x6b0] sm:$0xff]
      %v501 = vld [vmem:[%s277 + $0x6b8] sm:$0xff]
      %v502 = vld [vmem:[%s277 + $0x6c0] sm:$0xff]
      %v503 = vld [vmem:[%s277 + $0x6c8] sm:$0xff]
      %v504 = vld [vmem:[%s277 + $0x6d0] sm:$0xff]
      %v505 = vld [vmem:[%s277 + $0x6d8] sm:$0xff]
      %v506 = vld [vmem:[%s277 + $0x6e0] sm:$0xff]
      %v507 = vld [vmem:[%s277 + $0x6e8] sm:$0xff]
      %v508 = vld [vmem:[%s277 + $0x6f0] sm:$0xff]
      %v509 = vld [vmem:[%s277 + $0x6f8] sm:$0xff]
      %v510 = vld [vmem:[%s277 + $0x700] sm:$0xff]
      %v511 = vld [vmem:[%s277 + $0x708] sm:$0xff]
      %v512 = vld [vmem:[%s277 + $0x710] sm:$0xff]
      %v513 = vld [vmem:[%s277 + $0x718] sm:$0xff]
      %v514 = vld [vmem:[%s277 + $0x720] sm:$0xff]
      %v515 = vld [vmem:[%s277 + $0x728] sm:$0xff]
      %v516 = vld [vmem:[%s277 + $0x730] sm:$0xff]
      %v517 = vld [vmem:[%s277 + $0x738] sm:$0xff]
      %v518 = vld [vmem:[%s277 + $0x740] sm:$0xff]
      %v519 = vld [vmem:[%s277 + $0x748] sm:$0xff]
      %v520 = vld [vmem:[%s277 + $0x750] sm:$0xff]
      %v521 = vld [vmem:[%s277 + $0x758] sm:$0xff]
      %v522 = vld [vmem:[%s277 + $0x760] sm:$0xff]
      %v523 = vld [vmem:[%s277 + $0x768] sm:$0xff]
      %v524 = vld [vmem:[%s277 + $0x770] sm:$0xff]
      %v525 = vld [vmem:[%s277 + $0x778] sm:$0xff]
      %v526 = vld [vmem:[%s277 + $0x780] sm:$0xff]
      %v527 = vld [vmem:[%s277 + $0x788] sm:$0xff]
      %v528 = vld [vmem:[%s277 + $0x790] sm:$0xff]
      %v529 = vld [vmem:[%s277 + $0x798] sm:$0xff]
      %v530 = vld [vmem:[%s277 + $0x7a0] sm:$0xff]
      %v531 = vld [vmem:[%s277 + $0x7a8] sm:$0xff]
      %v532 = vld [vmem:[%s277 + $0x7b0] sm:$0xff]
      %v533 = vld [vmem:[%s277 + $0x7b8] sm:$0xff]
      %v534 = vld [vmem:[%s277 + $0x7c0] sm:$0xff]
      %v535 = vld [vmem:[%s277 + $0x7c8] sm:$0xff]
      %v536 = vld [vmem:[%s277 + $0x7d0] sm:$0xff]
      %v537 = vld [vmem:[%s277 + $0x7d8] sm:$0xff]
      %v538 = vld [vmem:[%s277 + $0x7e0] sm:$0xff]
      %v539 = vld [vmem:[%s277 + $0x7e8] sm:$0xff]
      %v540 = vld [vmem:[%s277 + $0x7f0] sm:$0xff]
      %v541 = vld [vmem:[%s277 + $0x7f8] sm:$0xff]
      %v542 = vld [vmem:[%s277 + $0x800] sm:$0xff]
      %v543 = vld [vmem:[%s277 + $0x808] sm:$0xff]
      %v544 = vld [vmem:[%s277 + $0x810] sm:$0xff]
      %v545 = vld [vmem:[%s277 + $0x818] sm:$0xff]
      %v546 = vld [vmem:[%s277 + $0x820] sm:$0xff]
      %v547 = vld [vmem:[%s277 + $0x828] sm:$0xff]
      %v548 = vld [vmem:[%s277 + $0x830] sm:$0xff]
      %v549 = vld [vmem:[%s277 + $0x838] sm:$0xff]
      %v550 = vld [vmem:[%s277 + $0x840] sm:$0xff]
      %v551 = vld [vmem:[%s277 + $0x848] sm:$0xff]
      %v552 = vld [vmem:[%s277 + $0x850] sm:$0xff]
      %v553 = vld [vmem:[%s277 + $0x858] sm:$0xff]
      %v554 = vld [vmem:[%s277 + $0x860] sm:$0xff]
      %v555 = vld [vmem:[%s277 + $0x868] sm:$0xff]
      %v556 = vld [vmem:[%s277 + $0x870] sm:$0xff]
      %v557 = vld [vmem:[%s277 + $0x878] sm:$0xff]
      %v558 = vld [vmem:[%s277 + $0x880] sm:$0xff]
      %v559 = vld [vmem:[%s277 + $0x888] sm:$0xff]
      %v560 = vld [vmem:[%s277 + $0x890] sm:$0xff]
      %v561 = vld [vmem:[%s277 + $0x898] sm:$0xff]
      %v562 = vld [vmem:[%s277 + $0x8a0] sm:$0xff]
      %v563 = vld [vmem:[%s277 + $0x8a8] sm:$0xff]
      %v564 = vld [vmem:[%s277 + $0x8b0] sm:$0xff]
      %v565 = vld [vmem:[%s277 + $0x8b8] sm:$0xff]
      %v566 = vld [vmem:[%s277 + $0x8c0] sm:$0xff]
      %v567 = vld [vmem:[%s277 + $0x8c8] sm:$0xff]
      %v568 = vld [vmem:[%s277 + $0x8d0] sm:$0xff]
      %v569 = vld [vmem:[%s277 + $0x8d8] sm:$0xff]
      %v570 = vld [vmem:[%s277 + $0x8e0] sm:$0xff]
      %v571 = vld [vmem:[%s277 + $0x8e8] sm:$0xff]
      %v572 = vld [vmem:[%s277 + $0x8f0] sm:$0xff]
      %v573 = vld [vmem:[%s277 + $0x8f8] sm:$0xff]
      %v574 = vld [vmem:[%s277 + $0x900] sm:$0xff]
      %v575 = vld [vmem:[%s277 + $0x908] sm:$0xff]
      %v576 = vld [vmem:[%s277 + $0x910] sm:$0xff]
      %v577 = vld [vmem:[%s277 + $0x918] sm:$0xff]
      %v578 = vld [vmem:[%s277 + $0x920] sm:$0xff]
      %v579 = vld [vmem:[%s277 + $0x928] sm:$0xff]
      %v580 = vld [vmem:[%s277 + $0x930] sm:$0xff]
      %v581 = vld [vmem:[%s277 + $0x938] sm:$0xff]
      %v582 = vld [vmem:[%s277 + $0x940] sm:$0xff]
      %v583 = vld [vmem:[%s277 + $0x948] sm:$0xff]
      %v584 = vld [vmem:[%s277 + $0x950] sm:$0xff]
      %v585 = vld [vmem:[%s277 + $0x958] sm:$0xff]
      %v586 = vld [vmem:[%s277 + $0x960] sm:$0xff]
      %v587 = vld [vmem:[%s277 + $0x968] sm:$0xff]
      %v588 = vld [vmem:[%s277 + $0x970] sm:$0xff]
      %v589 = vld [vmem:[%s277 + $0x978] sm:$0xff]
      %v590 = vld [vmem:[%s277 + $0x980] sm:$0xff]
      %v591 = vld [vmem:[%s277 + $0x988] sm:$0xff]
      %v592 = vld [vmem:[%s277 + $0x990] sm:$0xff]
      %v593 = vld [vmem:[%s277 + $0x998] sm:$0xff]
      %v594 = vld [vmem:[%s277 + $0x9a0] sm:$0xff]
      %v595 = vld [vmem:[%s277 + $0x9a8] sm:$0xff]
      %v596 = vld [vmem:[%s277 + $0x9b0] sm:$0xff]
      %v597 = vld [vmem:[%s277 + $0x9b8] sm:$0xff]
      %v598 = vld [vmem:[%s277 + $0x9c0] sm:$0xff]
      %v599 = vld [vmem:[%s277 + $0x9c8] sm:$0xff]
      %v600 = vld [vmem:[%s277 + $0x9d0] sm:$0xff]
      %v601 = vld [vmem:[%s277 + $0x9d8] sm:$0xff]
      %v602 = vld [vmem:[%s277 + $0x9e0] sm:$0xff]
      %v603 = vld [vmem:[%s277 + $0x9e8] sm:$0xff]
      %v604 = vld [vmem:[%s277 + $0x9f0] sm:$0xff]
      %v605 = vld [vmem:[%s277 + $0x9f8] sm:$0xff]
      %v606 = vld [vmem:[%s277 + $0xa00] sm:$0xff]
      %v607 = vld [vmem:[%s277 + $0xa08] sm:$0xff]
      %v608 = vld [vmem:[%s277 + $0xa10] sm:$0xff]
      %v609 = vld [vmem:[%s277 + $0xa18] sm:$0xff]
      %v610 = vld [vmem:[%s277 + $0xa20] sm:$0xff]
      %v611 = vld [vmem:[%s277 + $0xa28] sm:$0xff]
      %v612 = vld [vmem:[%s277 + $0xa30] sm:$0xff]
      %v613 = vld [vmem:[%s277 + $0xa38] sm:$0xff]
      %v614 = vld [vmem:[%s277 + $0xa40] sm:$0xff]
      %v615 = vld [vmem:[%s277 + $0xa48] sm:$0xff]
      %v616 = vld [vmem:[%s277 + $0xa50] sm:$0xff]
      %v617 = vld [vmem:[%s277 + $0xa58] sm:$0xff]
      %v618 = vld [vmem:[%s277 + $0xa60] sm:$0xff]
      %v619 = vld [vmem:[%s277 + $0xa68] sm:$0xff]
      %v620 = vld [vmem:[%s277 + $0xa70] sm:$0xff]
      %v621 = vld [vmem:[%s277 + $0xa78] sm:$0xff]
      %v622 = vld [vmem:[%s277 + $0xa80] sm:$0xff]
      %v623 = vld [vmem:[%s277 + $0xa88] sm:$0xff]
      %v624 = vld [vmem:[%s277 + $0xa90] sm:$0xff]
      %v625 = vld [vmem:[%s277 + $0xa98] sm:$0xff]
      %v626 = vld [vmem:[%s277 + $0xaa0] sm:$0xff]
      %v627 = vld [vmem:[%s277 + $0xaa8] sm:$0xff]
      %v628 = vld [vmem:[%s277 + $0xab0] sm:$0xff]
      %v629 = vld [vmem:[%s277 + $0xab8] sm:$0xff]
      %v630 = vld [vmem:[%s277 + $0xac0] sm:$0xff]
      %v631 = vld [vmem:[%s277 + $0xac8] sm:$0xff]
      %v632 = vld [vmem:[%s277 + $0xad0] sm:$0xff]
      %v633 = vld [vmem:[%s277 + $0xad8] sm:$0xff]
      %v634 = vld [vmem:[%s277 + $0xae0] sm:$0xff]
      %v635 = vld [vmem:[%s277 + $0xae8] sm:$0xff]
      %v636 = vld [vmem:[%s277 + $0xaf0] sm:$0xff]
      %v637 = vld [vmem:[%s277 + $0xaf8] sm:$0xff]
      %v638 = vpack.c.bf16 %v308, %v286
      %v639 = vpack.c.bf16 %v309, %v287
      %v640 = vpack.c.bf16 %v310, %v288
      %v641 = vpack.c.bf16 %v311, %v289
      %v642 = vpack.c.bf16 %v312, %v290
      %v643 = vpack.c.bf16 %v313, %v291
      %v644 = vpack.c.bf16 %v314, %v292
      %v645 = vpack.c.bf16 %v315, %v293
      %v646 = vpack.c.bf16 %v316, %v294
      %v647 = vpack.c.bf16 %v317, %v295
      %v648 = vpack.c.bf16 %v318, %v296
      %v649 = vpack.c.bf16 %v319, %v297
      %v650 = vpack.c.bf16 %v320, %v298
      %v651 = vpack.c.bf16 %v321, %v299
      %v652 = vpack.c.bf16 %v322, %v300
      %v653 = vpack.c.bf16 %v323, %v301
      %v654 = vpack.c.bf16 %v324, %v302
      %v655 = vpack.c.bf16 %v325, %v303
      %v656 = vpack.c.bf16 %v326, %v304
      %v657 = vpack.c.bf16 %v327, %v305
      %v658 = vpack.c.bf16 %v328, %v306
      %v659 = vpack.c.bf16 %v329, %v307
      %v660 = vpack.c.bf16 %v352, %v330
      %v661 = vpack.c.bf16 %v353, %v331
      %v662 = vpack.c.bf16 %v354, %v332
      %v663 = vpack.c.bf16 %v355, %v333
      %v664 = vpack.c.bf16 %v356, %v334
      %v665 = vpack.c.bf16 %v357, %v335
      %v666 = vpack.c.bf16 %v358, %v336
      %v667 = vpack.c.bf16 %v359, %v337
      %v668 = vpack.c.bf16 %v360, %v338
      %v669 = vpack.c.bf16 %v361, %v339
      %v670 = vpack.c.bf16 %v362, %v340
      %v671 = vpack.c.bf16 %v363, %v341
      %v672 = vpack.c.bf16 %v364, %v342
      %v673 = vpack.c.bf16 %v365, %v343
      %v674 = vpack.c.bf16 %v366, %v344
      %v675 = vpack.c.bf16 %v367, %v345
      %v676 = vpack.c.bf16 %v368, %v346
      %v677 = vpack.c.bf16 %v369, %v347
      %v678 = vpack.c.bf16 %v370, %v348
      %v679 = vpack.c.bf16 %v371, %v349
      %v680 = vpack.c.bf16 %v372, %v350
      %v681 = vpack.c.bf16 %v373, %v351
      %v682 = vpack.c.bf16 %v396, %v374
      %v683 = vpack.c.bf16 %v397, %v375
      %v684 = vpack.c.bf16 %v398, %v376
      %v685 = vpack.c.bf16 %v399, %v377
      %v686 = vpack.c.bf16 %v400, %v378
      %v687 = vpack.c.bf16 %v401, %v379
      %v688 = vpack.c.bf16 %v402, %v380
      %v689 = vpack.c.bf16 %v403, %v381
      %v690 = vpack.c.bf16 %v404, %v382
      %v691 = vpack.c.bf16 %v405, %v383
      %v692 = vpack.c.bf16 %v406, %v384
      %v693 = vpack.c.bf16 %v407, %v385
      %v694 = vpack.c.bf16 %v408, %v386
      %v695 = vpack.c.bf16 %v409, %v387
      %v696 = vpack.c.bf16 %v410, %v388
      %v697 = vpack.c.bf16 %v411, %v389
      %v698 = vpack.c.bf16 %v412, %v390
      %v699 = vpack.c.bf16 %v413, %v391
      %v700 = vpack.c.bf16 %v414, %v392
      %v701 = vpack.c.bf16 %v415, %v393
      %v702 = vpack.c.bf16 %v416, %v394
      %v703 = vpack.c.bf16 %v417, %v395
      %v704 = vpack.c.bf16 %v440, %v418
      %v705 = vpack.c.bf16 %v441, %v419
      %v706 = vpack.c.bf16 %v442, %v420
      %v707 = vpack.c.bf16 %v443, %v421
      %v708 = vpack.c.bf16 %v444, %v422
      %v709 = vpack.c.bf16 %v445, %v423
      %v710 = vpack.c.bf16 %v446, %v424
      %v711 = vpack.c.bf16 %v447, %v425
      %v712 = vpack.c.bf16 %v448, %v426
      %v713 = vpack.c.bf16 %v449, %v427
      %v714 = vpack.c.bf16 %v450, %v428
      %v715 = vpack.c.bf16 %v451, %v429
      %v716 = vpack.c.bf16 %v452, %v430
      %v717 = vpack.c.bf16 %v453, %v431
      %v718 = vpack.c.bf16 %v454, %v432
      %v719 = vpack.c.bf16 %v455, %v433
      %v720 = vpack.c.bf16 %v456, %v434
      %v721 = vpack.c.bf16 %v457, %v435
      %v722 = vpack.c.bf16 %v458, %v436
      %v723 = vpack.c.bf16 %v459, %v437
      %v724 = vpack.c.bf16 %v460, %v438
      %v725 = vpack.c.bf16 %v461, %v439
      %v726 = vpack.c.bf16 %v484, %v462
      %v727 = vpack.c.bf16 %v485, %v463
      %v728 = vpack.c.bf16 %v486, %v464
      %v729 = vpack.c.bf16 %v487, %v465
      %v730 = vpack.c.bf16 %v488, %v466
      %v731 = vpack.c.bf16 %v489, %v467
      %v732 = vpack.c.bf16 %v490, %v468
      %v733 = vpack.c.bf16 %v491, %v469
      %v734 = vpack.c.bf16 %v492, %v470
      %v735 = vpack.c.bf16 %v493, %v471
      %v736 = vpack.c.bf16 %v494, %v472
      %v737 = vpack.c.bf16 %v495, %v473
      %v738 = vpack.c.bf16 %v496, %v474
      %v739 = vpack.c.bf16 %v497, %v475
      %v740 = vpack.c.bf16 %v498, %v476
      %v741 = vpack.c.bf16 %v499, %v477
      %v742 = vpack.c.bf16 %v500, %v478
      %v743 = vpack.c.bf16 %v501, %v479
      %v744 = vpack.c.bf16 %v502, %v480
      %v745 = vpack.c.bf16 %v503, %v481
      %v746 = vpack.c.bf16 %v504, %v482
      %v747 = vpack.c.bf16 %v505, %v483
      %v748 = vpack.c.bf16 %v528, %v506
      %v749 = vpack.c.bf16 %v529, %v507
      %v750 = vpack.c.bf16 %v530, %v508
      %v751 = vpack.c.bf16 %v531, %v509
      %v752 = vpack.c.bf16 %v532, %v510
      %v753 = vpack.c.bf16 %v533, %v511
      %v754 = vpack.c.bf16 %v534, %v512
      %v755 = vpack.c.bf16 %v535, %v513
      %v756 = vpack.c.bf16 %v536, %v514
      %v757 = vpack.c.bf16 %v537, %v515
      %v758 = vpack.c.bf16 %v538, %v516
      %v759 = vpack.c.bf16 %v539, %v517
      %v760 = vpack.c.bf16 %v540, %v518
      %v761 = vpack.c.bf16 %v541, %v519
      %v762 = vpack.c.bf16 %v542, %v520
      %v763 = vpack.c.bf16 %v543, %v521
      %v764 = vpack.c.bf16 %v544, %v522
      %v765 = vpack.c.bf16 %v545, %v523
      %v766 = vpack.c.bf16 %v546, %v524
      %v767 = vpack.c.bf16 %v547, %v525
      %v768 = vpack.c.bf16 %v548, %v526
      %v769 = vpack.c.bf16 %v549, %v527
      %v770 = vpack.c.bf16 %v572, %v550
      %v771 = vpack.c.bf16 %v573, %v551
      %v772 = vpack.c.bf16 %v574, %v552
      %v773 = vpack.c.bf16 %v575, %v553
      %v774 = vpack.c.bf16 %v576, %v554
      %v775 = vpack.c.bf16 %v577, %v555
      %v776 = vpack.c.bf16 %v578, %v556
      %v777 = vpack.c.bf16 %v579, %v557
      %v778 = vpack.c.bf16 %v580, %v558
      %v779 = vpack.c.bf16 %v581, %v559
      %v780 = vpack.c.bf16 %v582, %v560
      %v781 = vpack.c.bf16 %v583, %v561
      %v782 = vpack.c.bf16 %v584, %v562
      %v783 = vpack.c.bf16 %v585, %v563
      %v784 = vpack.c.bf16 %v586, %v564
      %v785 = vpack.c.bf16 %v587, %v565
      %v786 = vpack.c.bf16 %v588, %v566
      %v787 = vpack.c.bf16 %v589, %v567
      %v788 = vpack.c.bf16 %v590, %v568
      %v789 = vpack.c.bf16 %v591, %v569
      %v790 = vpack.c.bf16 %v592, %v570
      %v791 = vpack.c.bf16 %v593, %v571
      %v792 = vpack.c.bf16 %v616, %v594
      %v793 = vpack.c.bf16 %v617, %v595
      %v794 = vpack.c.bf16 %v618, %v596
      %v795 = vpack.c.bf16 %v619, %v597
      %v796 = vpack.c.bf16 %v620, %v598
      %v797 = vpack.c.bf16 %v621, %v599
      %v798 = vpack.c.bf16 %v622, %v600
      %v799 = vpack.c.bf16 %v623, %v601
      %v800 = vpack.c.bf16 %v624, %v602
      %v801 = vpack.c.bf16 %v625, %v603
      %v802 = vpack.c.bf16 %v626, %v604
      %v803 = vpack.c.bf16 %v627, %v605
      %v804 = vpack.c.bf16 %v628, %v606
      %v805 = vpack.c.bf16 %v629, %v607
      %v806 = vpack.c.bf16 %v630, %v608
      %v807 = vpack.c.bf16 %v631, %v609
      %v808 = vpack.c.bf16 %v632, %v610
      %v809 = vpack.c.bf16 %v633, %v611
      %v810 = vpack.c.bf16 %v634, %v612
      %v811 = vpack.c.bf16 %v635, %v613
      %v812 = vpack.c.bf16 %v636, %v614
      %v813 = vpack.c.bf16 %v637, %v615
      %v814 = vld [vmem:[%s1] sm:$0xff]
      %v815 = vld [vmem:[%s1 + $0x8] sm:$0xff]
      %v816 = vld [vmem:[%s1 + $0x10] sm:$0xff]
      %v817 = vld [vmem:[%s1 + $0x18] sm:$0xff]
      %v818 = vld [vmem:[%s1 + $0x20] sm:$0xff]
      %v819 = vld [vmem:[%s1 + $0x28] sm:$0xff]
      %v820 = vld [vmem:[%s1 + $0x30] sm:$0xff]
      %v821 = vld [vmem:[%s1 + $0x38] sm:$0xff]
      %v822 = vld [vmem:[%s1 + $0x40] sm:$0xff]
      %v823 = vld [vmem:[%s1 + $0x48] sm:$0xff]
      %v824 = vld [vmem:[%s1 + $0x50] sm:$0xff]
      %v825 = vld [vmem:[%s1 + $0x58] sm:$0xff]
      %v826 = vld [vmem:[%s1 + $0x60] sm:$0xff]
      %v827 = vld [vmem:[%s1 + $0x68] sm:$0xff]
      %v828 = vld [vmem:[%s1 + $0x70] sm:$0xff]
      %v829 = vld [vmem:[%s1 + $0x78] sm:$0xff]
      %v830 = vld [vmem:[%s1 + $0x80] sm:$0xff]
      %v831 = vld [vmem:[%s1 + $0x88] sm:$0xff]
      %v832 = vld [vmem:[%s1 + $0x90] sm:$0xff]
      %v833 = vld [vmem:[%s1 + $0x98] sm:$0xff]
      %v834 = vld [vmem:[%s1 + $0xa0] sm:$0xff]
      %v835 = vld [vmem:[%s1 + $0xa8] sm:$0xff]
      %v836 = vld [vmem:[%s1 + $0xb0] sm:$0xff]
      %v837 = vld [vmem:[%s1 + $0xb8] sm:$0xff]
      %v838 = vld [vmem:[%s1 + $0xc0] sm:$0xff]
      %v839 = vld [vmem:[%s1 + $0xc8] sm:$0xff]
      %v840 = vld [vmem:[%s1 + $0xd0] sm:$0xff]
      %v841 = vld [vmem:[%s1 + $0xd8] sm:$0xff]
      %v842 = vld [vmem:[%s1 + $0xe0] sm:$0xff]
      %v843 = vld [vmem:[%s1 + $0xe8] sm:$0xff]
      %v844 = vld [vmem:[%s1 + $0xf0] sm:$0xff]
      %v845 = vld [vmem:[%s1 + $0xf8] sm:$0xff]
      %v846 = vld [vmem:[%s1 + $0x100] sm:$0xff]
      %v847 = vld [vmem:[%s1 + $0x108] sm:$0xff]
      %v848 = vld [vmem:[%s1 + $0x110] sm:$0xff]
      %v849 = vld [vmem:[%s1 + $0x118] sm:$0xff]
      %v850 = vld [vmem:[%s1 + $0x120] sm:$0xff]
      %v851 = vld [vmem:[%s1 + $0x128] sm:$0xff]
      %v852 = vld [vmem:[%s1 + $0x130] sm:$0xff]
      %v853 = vld [vmem:[%s1 + $0x138] sm:$0xff]
      %v854 = vld [vmem:[%s1 + $0x140] sm:$0xff]
      %v855 = vld [vmem:[%s1 + $0x148] sm:$0xff]
      %v856 = vld [vmem:[%s1 + $0x150] sm:$0xff]
      %v857 = vld [vmem:[%s1 + $0x158] sm:$0xff]
      %v858 = vld [vmem:[%s1 + $0x160] sm:$0xff]
      %v859 = vld [vmem:[%s1 + $0x168] sm:$0xff]
      %v860 = vld [vmem:[%s1 + $0x170] sm:$0xff]
      %v861 = vld [vmem:[%s1 + $0x178] sm:$0xff]
      %v862 = vld [vmem:[%s1 + $0x180] sm:$0xff]
      %v863 = vld [vmem:[%s1 + $0x188] sm:$0xff]
      %v864 = vld [vmem:[%s1 + $0x190] sm:$0xff]
      %v865 = vld [vmem:[%s1 + $0x198] sm:$0xff]
      %v866 = vld [vmem:[%s1 + $0x1a0] sm:$0xff]
      %v867 = vld [vmem:[%s1 + $0x1a8] sm:$0xff]
      %v868 = vld [vmem:[%s1 + $0x1b0] sm:$0xff]
      %v869 = vld [vmem:[%s1 + $0x1b8] sm:$0xff]
      %v870 = vld [vmem:[%s1 + $0x1c0] sm:$0xff]
      %v871 = vld [vmem:[%s1 + $0x1c8] sm:$0xff]
      %v872 = vld [vmem:[%s1 + $0x1d0] sm:$0xff]
      %v873 = vld [vmem:[%s1 + $0x1d8] sm:$0xff]
      %v874 = vld [vmem:[%s1 + $0x1e0] sm:$0xff]
      %v875 = vld [vmem:[%s1 + $0x1e8] sm:$0xff]
      %v876 = vld [vmem:[%s1 + $0x1f0] sm:$0xff]
      %v877 = vld [vmem:[%s1 + $0x1f8] sm:$0xff]
      %v878 = vld [vmem:[%s1 + $0x200] sm:$0xff]
      %v879 = vld [vmem:[%s1 + $0x208] sm:$0xff]
      %v880 = vld [vmem:[%s1 + $0x210] sm:$0xff]
      %v881 = vld [vmem:[%s1 + $0x218] sm:$0xff]
      %v882 = vld [vmem:[%s1 + $0x220] sm:$0xff]
      %v883 = vld [vmem:[%s1 + $0x228] sm:$0xff]
      %v884 = vld [vmem:[%s1 + $0x230] sm:$0xff]
      %v885 = vld [vmem:[%s1 + $0x238] sm:$0xff]
      %v886 = vld [vmem:[%s1 + $0x240] sm:$0xff]
      %v887 = vld [vmem:[%s1 + $0x248] sm:$0xff]
      %v888 = vld [vmem:[%s1 + $0x250] sm:$0xff]
      %v889 = vld [vmem:[%s1 + $0x258] sm:$0xff]
      %v890 = vld [vmem:[%s1 + $0x260] sm:$0xff]
      %v891 = vld [vmem:[%s1 + $0x268] sm:$0xff]
      %v892 = vld [vmem:[%s1 + $0x270] sm:$0xff]
      %v893 = vld [vmem:[%s1 + $0x278] sm:$0xff]
      %v894 = vld [vmem:[%s1 + $0x280] sm:$0xff]
      %v895 = vld [vmem:[%s1 + $0x288] sm:$0xff]
      %v896 = vld [vmem:[%s1 + $0x290] sm:$0xff]
      %v897 = vld [vmem:[%s1 + $0x298] sm:$0xff]
      %v898 = vld [vmem:[%s1 + $0x2a0] sm:$0xff]
      %v899 = vld [vmem:[%s1 + $0x2a8] sm:$0xff]
      %v900 = vld [vmem:[%s1 + $0x2b0] sm:$0xff]
      %v901 = vld [vmem:[%s1 + $0x2b8] sm:$0xff]
      %v902 = vld [vmem:[%s1 + $0x2c0] sm:$0xff]
      %v903 = vld [vmem:[%s1 + $0x2c8] sm:$0xff]
      %v904 = vld [vmem:[%s1 + $0x2d0] sm:$0xff]
      %v905 = vld [vmem:[%s1 + $0x2d8] sm:$0xff]
      %v906 = vld [vmem:[%s1 + $0x2e0] sm:$0xff]
      %v907 = vld [vmem:[%s1 + $0x2e8] sm:$0xff]
      %v908 = vld [vmem:[%s1 + $0x2f0] sm:$0xff]
      %v909 = vld [vmem:[%s1 + $0x2f8] sm:$0xff]
      %v910 = vld [vmem:[%s1 + $0x300] sm:$0xff]
      %v911 = vld [vmem:[%s1 + $0x308] sm:$0xff]
      %v912 = vld [vmem:[%s1 + $0x310] sm:$0xff]
      %v913 = vld [vmem:[%s1 + $0x318] sm:$0xff]
      %v914 = vld [vmem:[%s1 + $0x320] sm:$0xff]
      %v915 = vld [vmem:[%s1 + $0x328] sm:$0xff]
      %v916 = vld [vmem:[%s1 + $0x330] sm:$0xff]
      %v917 = vld [vmem:[%s1 + $0x338] sm:$0xff]
      %v918 = vld [vmem:[%s1 + $0x340] sm:$0xff]
      %v919 = vld [vmem:[%s1 + $0x348] sm:$0xff]
      %v920 = vld [vmem:[%s1 + $0x350] sm:$0xff]
      %v921 = vld [vmem:[%s1 + $0x358] sm:$0xff]
      %v922 = vld [vmem:[%s1 + $0x360] sm:$0xff]
      %v923 = vld [vmem:[%s1 + $0x368] sm:$0xff]
      %v924 = vld [vmem:[%s1 + $0x370] sm:$0xff]
      %v925 = vld [vmem:[%s1 + $0x378] sm:$0xff]
      %v926 = vld [vmem:[%s1 + $0x380] sm:$0xff]
      %v927 = vld [vmem:[%s1 + $0x388] sm:$0xff]
      %v928 = vld [vmem:[%s1 + $0x390] sm:$0xff]
      %v929 = vld [vmem:[%s1 + $0x398] sm:$0xff]
      %v930 = vld [vmem:[%s1 + $0x3a0] sm:$0xff]
      %v931 = vld [vmem:[%s1 + $0x3a8] sm:$0xff]
      %v932 = vld [vmem:[%s1 + $0x3b0] sm:$0xff]
      %v933 = vld [vmem:[%s1 + $0x3b8] sm:$0xff]
      %v934 = vld [vmem:[%s1 + $0x3c0] sm:$0xff]
      %v935 = vld [vmem:[%s1 + $0x3c8] sm:$0xff]
      %v936 = vld [vmem:[%s1 + $0x3d0] sm:$0xff]
      %v937 = vld [vmem:[%s1 + $0x3d8] sm:$0xff]
      %v938 = vld [vmem:[%s1 + $0x3e0] sm:$0xff]
      %v939 = vld [vmem:[%s1 + $0x3e8] sm:$0xff]
      %v940 = vld [vmem:[%s1 + $0x3f0] sm:$0xff]
      %v941 = vld [vmem:[%s1 + $0x3f8] sm:$0xff]
      %v942 = vld [vmem:[%s1 + $0x400] sm:$0xff]
      %v943 = vld [vmem:[%s1 + $0x408] sm:$0xff]
      %v944 = vld [vmem:[%s1 + $0x410] sm:$0xff]
      %v945 = vld [vmem:[%s1 + $0x418] sm:$0xff]
      %v946 = vld [vmem:[%s1 + $0x420] sm:$0xff]
      %v947 = vld [vmem:[%s1 + $0x428] sm:$0xff]
      %v948 = vld [vmem:[%s1 + $0x430] sm:$0xff]
      %v949 = vld [vmem:[%s1 + $0x438] sm:$0xff]
      %v950 = vld [vmem:[%s1 + $0x440] sm:$0xff]
      %v951 = vld [vmem:[%s1 + $0x448] sm:$0xff]
      %v952 = vld [vmem:[%s1 + $0x450] sm:$0xff]
      %v953 = vld [vmem:[%s1 + $0x458] sm:$0xff]
      %v954 = vld [vmem:[%s1 + $0x460] sm:$0xff]
      %v955 = vld [vmem:[%s1 + $0x468] sm:$0xff]
      %v956 = vld [vmem:[%s1 + $0x470] sm:$0xff]
      %v957 = vld [vmem:[%s1 + $0x478] sm:$0xff]
      %v958 = vld [vmem:[%s1 + $0x480] sm:$0xff]
      %v959 = vld [vmem:[%s1 + $0x488] sm:$0xff]
      %v960 = vld [vmem:[%s1 + $0x490] sm:$0xff]
      %v961 = vld [vmem:[%s1 + $0x498] sm:$0xff]
      %v962 = vld [vmem:[%s1 + $0x4a0] sm:$0xff]
      %v963 = vld [vmem:[%s1 + $0x4a8] sm:$0xff]
      %v964 = vld [vmem:[%s1 + $0x4b0] sm:$0xff]
      %v965 = vld [vmem:[%s1 + $0x4b8] sm:$0xff]
      %v966 = vld [vmem:[%s1 + $0x4c0] sm:$0xff]
      %v967 = vld [vmem:[%s1 + $0x4c8] sm:$0xff]
      %v968 = vld [vmem:[%s1 + $0x4d0] sm:$0xff]
      %v969 = vld [vmem:[%s1 + $0x4d8] sm:$0xff]
      %v970 = vld [vmem:[%s1 + $0x4e0] sm:$0xff]
      %v971 = vld [vmem:[%s1 + $0x4e8] sm:$0xff]
      %v972 = vld [vmem:[%s1 + $0x4f0] sm:$0xff]
      %v973 = vld [vmem:[%s1 + $0x4f8] sm:$0xff]
      %v974 = vld [vmem:[%s1 + $0x500] sm:$0xff]
      %v975 = vld [vmem:[%s1 + $0x508] sm:$0xff]
      %v976 = vld [vmem:[%s1 + $0x510] sm:$0xff]
      %v977 = vld [vmem:[%s1 + $0x518] sm:$0xff]
      %v978 = vld [vmem:[%s1 + $0x520] sm:$0xff]
      %v979 = vld [vmem:[%s1 + $0x528] sm:$0xff]
      %v980 = vld [vmem:[%s1 + $0x530] sm:$0xff]
      %v981 = vld [vmem:[%s1 + $0x538] sm:$0xff]
      %v982 = vld [vmem:[%s1 + $0x540] sm:$0xff]
      %v983 = vld [vmem:[%s1 + $0x548] sm:$0xff]
      %v984 = vld [vmem:[%s1 + $0x550] sm:$0xff]
      %v985 = vld [vmem:[%s1 + $0x558] sm:$0xff]
      %v986 = vld [vmem:[%s1 + $0x560] sm:$0xff]
      %v987 = vld [vmem:[%s1 + $0x568] sm:$0xff]
      %v988 = vld [vmem:[%s1 + $0x570] sm:$0xff]
      %v989 = vld [vmem:[%s1 + $0x578] sm:$0xff]
      %v990 = vld [vmem:[%s1 + $0x580] sm:$0xff]
      %v991 = vld [vmem:[%s1 + $0x588] sm:$0xff]
      %v992 = vld [vmem:[%s1 + $0x590] sm:$0xff]
      %v993 = vld [vmem:[%s1 + $0x598] sm:$0xff]
      %v994 = vld [vmem:[%s1 + $0x5a0] sm:$0xff]
      %v995 = vld [vmem:[%s1 + $0x5a8] sm:$0xff]
      %v996 = vld [vmem:[%s1 + $0x5b0] sm:$0xff]
      %v997 = vld [vmem:[%s1 + $0x5b8] sm:$0xff]
      %v998 = vld [vmem:[%s1 + $0x5c0] sm:$0xff]
      %v999 = vld [vmem:[%s1 + $0x5c8] sm:$0xff]
      %v1000 = vld [vmem:[%s1 + $0x5d0] sm:$0xff]
      %v1001 = vld [vmem:[%s1 + $0x5d8] sm:$0xff]
      %v1002 = vld [vmem:[%s1 + $0x5e0] sm:$0xff]
      %v1003 = vld [vmem:[%s1 + $0x5e8] sm:$0xff]
      %v1004 = vld [vmem:[%s1 + $0x5f0] sm:$0xff]
      %v1005 = vld [vmem:[%s1 + $0x5f8] sm:$0xff]
      %v1006 = vld [vmem:[%s1 + $0x600] sm:$0xff]
      %v1007 = vld [vmem:[%s1 + $0x608] sm:$0xff]
      %v1008 = vld [vmem:[%s1 + $0x610] sm:$0xff]
      %v1009 = vld [vmem:[%s1 + $0x618] sm:$0xff]
      %v1010 = vld [vmem:[%s1 + $0x620] sm:$0xff]
      %v1011 = vld [vmem:[%s1 + $0x628] sm:$0xff]
      %v1012 = vld [vmem:[%s1 + $0x630] sm:$0xff]
      %v1013 = vld [vmem:[%s1 + $0x638] sm:$0xff]
      %v1014 = vld [vmem:[%s1 + $0x640] sm:$0xff]
      %v1015 = vld [vmem:[%s1 + $0x648] sm:$0xff]
      %v1016 = vld [vmem:[%s1 + $0x650] sm:$0xff]
      %v1017 = vld [vmem:[%s1 + $0x658] sm:$0xff]
      %v1018 = vld [vmem:[%s1 + $0x660] sm:$0xff]
      %v1019 = vld [vmem:[%s1 + $0x668] sm:$0xff]
      %v1020 = vld [vmem:[%s1 + $0x670] sm:$0xff]
      %v1021 = vld [vmem:[%s1 + $0x678] sm:$0xff]
      %v1022 = vld [vmem:[%s1 + $0x680] sm:$0xff]
      %v1023 = vld [vmem:[%s1 + $0x688] sm:$0xff]
      %v1024 = vld [vmem:[%s1 + $0x690] sm:$0xff]
      %v1025 = vld [vmem:[%s1 + $0x698] sm:$0xff]
      %v1026 = vld [vmem:[%s1 + $0x6a0] sm:$0xff]
      %v1027 = vld [vmem:[%s1 + $0x6a8] sm:$0xff]
      %v1028 = vld [vmem:[%s1 + $0x6b0] sm:$0xff]
      %v1029 = vld [vmem:[%s1 + $0x6b8] sm:$0xff]
      %v1030 = vld [vmem:[%s1 + $0x6c0] sm:$0xff]
      %v1031 = vld [vmem:[%s1 + $0x6c8] sm:$0xff]
      %v1032 = vld [vmem:[%s1 + $0x6d0] sm:$0xff]
      %v1033 = vld [vmem:[%s1 + $0x6d8] sm:$0xff]
      %v1034 = vld [vmem:[%s1 + $0x6e0] sm:$0xff]
      %v1035 = vld [vmem:[%s1 + $0x6e8] sm:$0xff]
      %v1036 = vld [vmem:[%s1 + $0x6f0] sm:$0xff]
      %v1037 = vld [vmem:[%s1 + $0x6f8] sm:$0xff]
      %v1038 = vld [vmem:[%s1 + $0x700] sm:$0xff]
      %v1039 = vld [vmem:[%s1 + $0x708] sm:$0xff]
      %v1040 = vld [vmem:[%s1 + $0x710] sm:$0xff]
      %v1041 = vld [vmem:[%s1 + $0x718] sm:$0xff]
      %v1042 = vld [vmem:[%s1 + $0x720] sm:$0xff]
      %v1043 = vld [vmem:[%s1 + $0x728] sm:$0xff]
      %v1044 = vld [vmem:[%s1 + $0x730] sm:$0xff]
      %v1045 = vld [vmem:[%s1 + $0x738] sm:$0xff]
      %v1046 = vld [vmem:[%s1 + $0x740] sm:$0xff]
      %v1047 = vld [vmem:[%s1 + $0x748] sm:$0xff]
      %v1048 = vld [vmem:[%s1 + $0x750] sm:$0xff]
      %v1049 = vld [vmem:[%s1 + $0x758] sm:$0xff]
      %v1050 = vld [vmem:[%s1 + $0x760] sm:$0xff]
      %v1051 = vld [vmem:[%s1 + $0x768] sm:$0xff]
      %v1052 = vld [vmem:[%s1 + $0x770] sm:$0xff]
      %v1053 = vld [vmem:[%s1 + $0x778] sm:$0xff]
      %v1054 = vld [vmem:[%s1 + $0x780] sm:$0xff]
      %v1055 = vld [vmem:[%s1 + $0x788] sm:$0xff]
      %v1056 = vld [vmem:[%s1 + $0x790] sm:$0xff]
      %v1057 = vld [vmem:[%s1 + $0x798] sm:$0xff]
      %v1058 = vld [vmem:[%s1 + $0x7a0] sm:$0xff]
      %v1059 = vld [vmem:[%s1 + $0x7a8] sm:$0xff]
      %v1060 = vld [vmem:[%s1 + $0x7b0] sm:$0xff]
      %v1061 = vld [vmem:[%s1 + $0x7b8] sm:$0xff]
      %v1062 = vld [vmem:[%s1 + $0x7c0] sm:$0xff]
      %v1063 = vld [vmem:[%s1 + $0x7c8] sm:$0xff]
      %v1064 = vld [vmem:[%s1 + $0x7d0] sm:$0xff]
      %v1065 = vld [vmem:[%s1 + $0x7d8] sm:$0xff]
      %v1066 = vld [vmem:[%s1 + $0x7e0] sm:$0xff]
      %v1067 = vld [vmem:[%s1 + $0x7e8] sm:$0xff]
      %v1068 = vld [vmem:[%s1 + $0x7f0] sm:$0xff]
      %v1069 = vld [vmem:[%s1 + $0x7f8] sm:$0xff]
      %v1070 = vld [vmem:[%s1 + $0x800] sm:$0xff]
      %v1071 = vld [vmem:[%s1 + $0x808] sm:$0xff]
      %v1072 = vld [vmem:[%s1 + $0x810] sm:$0xff]
      %v1073 = vld [vmem:[%s1 + $0x818] sm:$0xff]
      %v1074 = vld [vmem:[%s1 + $0x820] sm:$0xff]
      %v1075 = vld [vmem:[%s1 + $0x828] sm:$0xff]
      %v1076 = vld [vmem:[%s1 + $0x830] sm:$0xff]
      %v1077 = vld [vmem:[%s1 + $0x838] sm:$0xff]
      %v1078 = vld [vmem:[%s1 + $0x840] sm:$0xff]
      %v1079 = vld [vmem:[%s1 + $0x848] sm:$0xff]
      %v1080 = vld [vmem:[%s1 + $0x850] sm:$0xff]
      %v1081 = vld [vmem:[%s1 + $0x858] sm:$0xff]
      %v1082 = vld [vmem:[%s1 + $0x860] sm:$0xff]
      %v1083 = vld [vmem:[%s1 + $0x868] sm:$0xff]
      %v1084 = vld [vmem:[%s1 + $0x870] sm:$0xff]
      %v1085 = vld [vmem:[%s1 + $0x878] sm:$0xff]
      %v1086 = vld [vmem:[%s1 + $0x880] sm:$0xff]
      %v1087 = vld [vmem:[%s1 + $0x888] sm:$0xff]
      %v1088 = vld [vmem:[%s1 + $0x890] sm:$0xff]
      %v1089 = vld [vmem:[%s1 + $0x898] sm:$0xff]
      %v1090 = vld [vmem:[%s1 + $0x8a0] sm:$0xff]
      %v1091 = vld [vmem:[%s1 + $0x8a8] sm:$0xff]
      %v1092 = vld [vmem:[%s1 + $0x8b0] sm:$0xff]
      %v1093 = vld [vmem:[%s1 + $0x8b8] sm:$0xff]
      %v1094 = vld [vmem:[%s1 + $0x8c0] sm:$0xff]
      %v1095 = vld [vmem:[%s1 + $0x8c8] sm:$0xff]
      %v1096 = vld [vmem:[%s1 + $0x8d0] sm:$0xff]
      %v1097 = vld [vmem:[%s1 + $0x8d8] sm:$0xff]
      %v1098 = vld [vmem:[%s1 + $0x8e0] sm:$0xff]
      %v1099 = vld [vmem:[%s1 + $0x8e8] sm:$0xff]
      %v1100 = vld [vmem:[%s1 + $0x8f0] sm:$0xff]
      %v1101 = vld [vmem:[%s1 + $0x8f8] sm:$0xff]
      %v1102 = vld [vmem:[%s1 + $0x900] sm:$0xff]
      %v1103 = vld [vmem:[%s1 + $0x908] sm:$0xff]
      %v1104 = vld [vmem:[%s1 + $0x910] sm:$0xff]
      %v1105 = vld [vmem:[%s1 + $0x918] sm:$0xff]
      %v1106 = vld [vmem:[%s1 + $0x920] sm:$0xff]
      %v1107 = vld [vmem:[%s1 + $0x928] sm:$0xff]
      %v1108 = vld [vmem:[%s1 + $0x930] sm:$0xff]
      %v1109 = vld [vmem:[%s1 + $0x938] sm:$0xff]
      %v1110 = vld [vmem:[%s1 + $0x940] sm:$0xff]
      %v1111 = vld [vmem:[%s1 + $0x948] sm:$0xff]
      %v1112 = vld [vmem:[%s1 + $0x950] sm:$0xff]
      %v1113 = vld [vmem:[%s1 + $0x958] sm:$0xff]
      %v1114 = vld [vmem:[%s1 + $0x960] sm:$0xff]
      %v1115 = vld [vmem:[%s1 + $0x968] sm:$0xff]
      %v1116 = vld [vmem:[%s1 + $0x970] sm:$0xff]
      %v1117 = vld [vmem:[%s1 + $0x978] sm:$0xff]
      %v1118 = vld [vmem:[%s1 + $0x980] sm:$0xff]
      %v1119 = vld [vmem:[%s1 + $0x988] sm:$0xff]
      %v1120 = vld [vmem:[%s1 + $0x990] sm:$0xff]
      %v1121 = vld [vmem:[%s1 + $0x998] sm:$0xff]
      %v1122 = vld [vmem:[%s1 + $0x9a0] sm:$0xff]
      %v1123 = vld [vmem:[%s1 + $0x9a8] sm:$0xff]
      %v1124 = vld [vmem:[%s1 + $0x9b0] sm:$0xff]
      %v1125 = vld [vmem:[%s1 + $0x9b8] sm:$0xff]
      %v1126 = vld [vmem:[%s1 + $0x9c0] sm:$0xff]
      %v1127 = vld [vmem:[%s1 + $0x9c8] sm:$0xff]
      %v1128 = vld [vmem:[%s1 + $0x9d0] sm:$0xff]
      %v1129 = vld [vmem:[%s1 + $0x9d8] sm:$0xff]
      %v1130 = vld [vmem:[%s1 + $0x9e0] sm:$0xff]
      %v1131 = vld [vmem:[%s1 + $0x9e8] sm:$0xff]
      %v1132 = vld [vmem:[%s1 + $0x9f0] sm:$0xff]
      %v1133 = vld [vmem:[%s1 + $0x9f8] sm:$0xff]
      %v1134 = vld [vmem:[%s1 + $0xa00] sm:$0xff]
      %v1135 = vld [vmem:[%s1 + $0xa08] sm:$0xff]
      %v1136 = vld [vmem:[%s1 + $0xa10] sm:$0xff]
      %v1137 = vld [vmem:[%s1 + $0xa18] sm:$0xff]
      %v1138 = vld [vmem:[%s1 + $0xa20] sm:$0xff]
      %v1139 = vld [vmem:[%s1 + $0xa28] sm:$0xff]
      %v1140 = vld [vmem:[%s1 + $0xa30] sm:$0xff]
      %v1141 = vld [vmem:[%s1 + $0xa38] sm:$0xff]
      %v1142 = vld [vmem:[%s1 + $0xa40] sm:$0xff]
      %v1143 = vld [vmem:[%s1 + $0xa48] sm:$0xff]
      %v1144 = vld [vmem:[%s1 + $0xa50] sm:$0xff]
      %v1145 = vld [vmem:[%s1 + $0xa58] sm:$0xff]
      %v1146 = vld [vmem:[%s1 + $0xa60] sm:$0xff]
      %v1147 = vld [vmem:[%s1 + $0xa68] sm:$0xff]
      %v1148 = vld [vmem:[%s1 + $0xa70] sm:$0xff]
      %v1149 = vld [vmem:[%s1 + $0xa78] sm:$0xff]
      %v1150 = vld [vmem:[%s1 + $0xa80] sm:$0xff]
      %v1151 = vld [vmem:[%s1 + $0xa88] sm:$0xff]
      %v1152 = vld [vmem:[%s1 + $0xa90] sm:$0xff]
      %v1153 = vld [vmem:[%s1 + $0xa98] sm:$0xff]
      %v1154 = vld [vmem:[%s1 + $0xaa0] sm:$0xff]
      %v1155 = vld [vmem:[%s1 + $0xaa8] sm:$0xff]
      %v1156 = vld [vmem:[%s1 + $0xab0] sm:$0xff]
      %v1157 = vld [vmem:[%s1 + $0xab8] sm:$0xff]
      %v1158 = vld [vmem:[%s1 + $0xac0] sm:$0xff]
      %v1159 = vld [vmem:[%s1 + $0xac8] sm:$0xff]
      %v1160 = vld [vmem:[%s1 + $0xad0] sm:$0xff]
      %v1161 = vld [vmem:[%s1 + $0xad8] sm:$0xff]
      %v1162 = vld [vmem:[%s1 + $0xae0] sm:$0xff]
      %v1163 = vld [vmem:[%s1 + $0xae8] sm:$0xff]
      %v1164 = vld [vmem:[%s1 + $0xaf0] sm:$0xff]
      %v1165 = vld [vmem:[%s1 + $0xaf8] sm:$0xff]
      %v1166 = vld [vmem:[%s1 + $0xb00] sm:$0xff]
      %v1167 = vld [vmem:[%s1 + $0xb08] sm:$0xff]
      %v1168 = vld [vmem:[%s1 + $0xb10] sm:$0xff]
      %v1169 = vld [vmem:[%s1 + $0xb18] sm:$0xff]
      %v1170 = vld [vmem:[%s1 + $0xb20] sm:$0xff]
      %v1171 = vld [vmem:[%s1 + $0xb28] sm:$0xff]
      %v1172 = vld [vmem:[%s1 + $0xb30] sm:$0xff]
      %v1173 = vld [vmem:[%s1 + $0xb38] sm:$0xff]
      %v1174 = vld [vmem:[%s1 + $0xb40] sm:$0xff]
      %v1175 = vld [vmem:[%s1 + $0xb48] sm:$0xff]
      %v1176 = vld [vmem:[%s1 + $0xb50] sm:$0xff]
      %v1177 = vld [vmem:[%s1 + $0xb58] sm:$0xff]
      %v1178 = vld [vmem:[%s1 + $0xb60] sm:$0xff]
      %v1179 = vld [vmem:[%s1 + $0xb68] sm:$0xff]
      %v1180 = vld [vmem:[%s1 + $0xb70] sm:$0xff]
      %v1181 = vld [vmem:[%s1 + $0xb78] sm:$0xff]
      %v1182 = vld [vmem:[%s1 + $0xb80] sm:$0xff]
      %v1183 = vld [vmem:[%s1 + $0xb88] sm:$0xff]
      %v1184 = vld [vmem:[%s1 + $0xb90] sm:$0xff]
      %v1185 = vld [vmem:[%s1 + $0xb98] sm:$0xff]
      %v1186 = vld [vmem:[%s1 + $0xba0] sm:$0xff]
      %v1187 = vld [vmem:[%s1 + $0xba8] sm:$0xff]
      %v1188 = vld [vmem:[%s1 + $0xbb0] sm:$0xff]
      %v1189 = vld [vmem:[%s1 + $0xbb8] sm:$0xff]
      %v1190 = vld [vmem:[%s1 + $0xbc0] sm:$0xff]
      %v1191 = vld [vmem:[%s1 + $0xbc8] sm:$0xff]
      %v1192 = vld [vmem:[%s1 + $0xbd0] sm:$0xff]
      %v1193 = vld [vmem:[%s1 + $0xbd8] sm:$0xff]
      %v1194 = vld [vmem:[%s1 + $0xbe0] sm:$0xff]
      %v1195 = vld [vmem:[%s1 + $0xbe8] sm:$0xff]
      %v1196 = vld [vmem:[%s1 + $0xbf0] sm:$0xff]
      %v1197 = vld [vmem:[%s1 + $0xbf8] sm:$0xff]
      %v1198 = vld [vmem:[%s1 + $0xc00] sm:$0xff]
      %v1199 = vld [vmem:[%s1 + $0xc08] sm:$0xff]
      %v1200 = vld [vmem:[%s1 + $0xc10] sm:$0xff]
      %v1201 = vld [vmem:[%s1 + $0xc18] sm:$0xff]
      %v1202 = vld [vmem:[%s1 + $0xc20] sm:$0xff]
      %v1203 = vld [vmem:[%s1 + $0xc28] sm:$0xff]
      %v1204 = vld [vmem:[%s1 + $0xc30] sm:$0xff]
      %v1205 = vld [vmem:[%s1 + $0xc38] sm:$0xff]
      %v1206 = vld [vmem:[%s1 + $0xc40] sm:$0xff]
      %v1207 = vld [vmem:[%s1 + $0xc48] sm:$0xff]
      %v1208 = vld [vmem:[%s1 + $0xc50] sm:$0xff]
      %v1209 = vld [vmem:[%s1 + $0xc58] sm:$0xff]
      %v1210 = vld [vmem:[%s1 + $0xc60] sm:$0xff]
      %v1211 = vld [vmem:[%s1 + $0xc68] sm:$0xff]
      %v1212 = vld [vmem:[%s1 + $0xc70] sm:$0xff]
      %v1213 = vld [vmem:[%s1 + $0xc78] sm:$0xff]
      %v1214 = vld [vmem:[%s1 + $0xc80] sm:$0xff]
      %v1215 = vld [vmem:[%s1 + $0xc88] sm:$0xff]
      %v1216 = vld [vmem:[%s1 + $0xc90] sm:$0xff]
      %v1217 = vld [vmem:[%s1 + $0xc98] sm:$0xff]
      %v1218 = vld [vmem:[%s1 + $0xca0] sm:$0xff]
      %v1219 = vld [vmem:[%s1 + $0xca8] sm:$0xff]
      %v1220 = vld [vmem:[%s1 + $0xcb0] sm:$0xff]
      %v1221 = vld [vmem:[%s1 + $0xcb8] sm:$0xff]
      %v1222 = vld [vmem:[%s1 + $0xcc0] sm:$0xff]
      %v1223 = vld [vmem:[%s1 + $0xcc8] sm:$0xff]
      %v1224 = vld [vmem:[%s1 + $0xcd0] sm:$0xff]
      %v1225 = vld [vmem:[%s1 + $0xcd8] sm:$0xff]
      %v1226 = vld [vmem:[%s1 + $0xce0] sm:$0xff]
      %v1227 = vld [vmem:[%s1 + $0xce8] sm:$0xff]
      %v1228 = vld [vmem:[%s1 + $0xcf0] sm:$0xff]
      %v1229 = vld [vmem:[%s1 + $0xcf8] sm:$0xff]
      %v1230 = vld [vmem:[%s1 + $0xd00] sm:$0xff]
      %v1231 = vld [vmem:[%s1 + $0xd08] sm:$0xff]
      %v1232 = vld [vmem:[%s1 + $0xd10] sm:$0xff]
      %v1233 = vld [vmem:[%s1 + $0xd18] sm:$0xff]
      %v1234 = vld [vmem:[%s1 + $0xd20] sm:$0xff]
      %v1235 = vld [vmem:[%s1 + $0xd28] sm:$0xff]
      %v1236 = vld [vmem:[%s1 + $0xd30] sm:$0xff]
      %v1237 = vld [vmem:[%s1 + $0xd38] sm:$0xff]
      %v1238 = vld [vmem:[%s1 + $0xd40] sm:$0xff]
      %v1239 = vld [vmem:[%s1 + $0xd48] sm:$0xff]
      %v1240 = vld [vmem:[%s1 + $0xd50] sm:$0xff]
      %v1241 = vld [vmem:[%s1 + $0xd58] sm:$0xff]
      %v1242 = vld [vmem:[%s1 + $0xd60] sm:$0xff]
      %v1243 = vld [vmem:[%s1 + $0xd68] sm:$0xff]
      %v1244 = vld [vmem:[%s1 + $0xd70] sm:$0xff]
      %v1245 = vld [vmem:[%s1 + $0xd78] sm:$0xff]
      %v1246 = vld [vmem:[%s1 + $0xd80] sm:$0xff]
      %v1247 = vld [vmem:[%s1 + $0xd88] sm:$0xff]
      %v1248 = vld [vmem:[%s1 + $0xd90] sm:$0xff]
      %v1249 = vld [vmem:[%s1 + $0xd98] sm:$0xff]
      %v1250 = vld [vmem:[%s1 + $0xda0] sm:$0xff]
      %v1251 = vld [vmem:[%s1 + $0xda8] sm:$0xff]
      %v1252 = vld [vmem:[%s1 + $0xdb0] sm:$0xff]
      %v1253 = vld [vmem:[%s1 + $0xdb8] sm:$0xff]
      %v1254 = vld [vmem:[%s1 + $0xdc0] sm:$0xff]
      %v1255 = vld [vmem:[%s1 + $0xdc8] sm:$0xff]
      %v1256 = vld [vmem:[%s1 + $0xdd0] sm:$0xff]
      %v1257 = vld [vmem:[%s1 + $0xdd8] sm:$0xff]
      %v1258 = vld [vmem:[%s1 + $0xde0] sm:$0xff]
      %v1259 = vld [vmem:[%s1 + $0xde8] sm:$0xff]
      %v1260 = vld [vmem:[%s1 + $0xdf0] sm:$0xff]
      %v1261 = vld [vmem:[%s1 + $0xdf8] sm:$0xff]
      %v1262 = vld [vmem:[%s1 + $0xe00] sm:$0xff]
      %v1263 = vld [vmem:[%s1 + $0xe08] sm:$0xff]
      %v1264 = vld [vmem:[%s1 + $0xe10] sm:$0xff]
      %v1265 = vld [vmem:[%s1 + $0xe18] sm:$0xff]
      %v1266 = vld [vmem:[%s1 + $0xe20] sm:$0xff]
      %v1267 = vld [vmem:[%s1 + $0xe28] sm:$0xff]
      %v1268 = vld [vmem:[%s1 + $0xe30] sm:$0xff]
      %v1269 = vld [vmem:[%s1 + $0xe38] sm:$0xff]
      %v1270 = vld [vmem:[%s1 + $0xe40] sm:$0xff]
      %v1271 = vld [vmem:[%s1 + $0xe48] sm:$0xff]
      %v1272 = vld [vmem:[%s1 + $0xe50] sm:$0xff]
      %v1273 = vld [vmem:[%s1 + $0xe58] sm:$0xff]
      %v1274 = vld [vmem:[%s1 + $0xe60] sm:$0xff]
      %v1275 = vld [vmem:[%s1 + $0xe68] sm:$0xff]
      %v1276 = vld [vmem:[%s1 + $0xe70] sm:$0xff]
      %v1277 = vld [vmem:[%s1 + $0xe78] sm:$0xff]
      %v1278 = vld [vmem:[%s1 + $0xe80] sm:$0xff]
      %v1279 = vld [vmem:[%s1 + $0xe88] sm:$0xff]
      %v1280 = vld [vmem:[%s1 + $0xe90] sm:$0xff]
      %v1281 = vld [vmem:[%s1 + $0xe98] sm:$0xff]
      %v1282 = vld [vmem:[%s1 + $0xea0] sm:$0xff]
      %v1283 = vld [vmem:[%s1 + $0xea8] sm:$0xff]
      %v1284 = vld [vmem:[%s1 + $0xeb0] sm:$0xff]
      %v1285 = vld [vmem:[%s1 + $0xeb8] sm:$0xff]
      %v1286 = vld [vmem:[%s1 + $0xec0] sm:$0xff]
      %v1287 = vld [vmem:[%s1 + $0xec8] sm:$0xff]
      %v1288 = vld [vmem:[%s1 + $0xed0] sm:$0xff]
      %v1289 = vld [vmem:[%s1 + $0xed8] sm:$0xff]
      %v1290 = vld [vmem:[%s1 + $0xee0] sm:$0xff]
      %v1291 = vld [vmem:[%s1 + $0xee8] sm:$0xff]
      %v1292 = vld [vmem:[%s1 + $0xef0] sm:$0xff]
      %v1293 = vld [vmem:[%s1 + $0xef8] sm:$0xff]
      %v1294 = vld [vmem:[%s1 + $0xf00] sm:$0xff]
      %v1295 = vld [vmem:[%s1 + $0xf08] sm:$0xff]
      %v1296 = vld [vmem:[%s1 + $0xf10] sm:$0xff]
      %v1297 = vld [vmem:[%s1 + $0xf18] sm:$0xff]
      %v1298 = vld [vmem:[%s1 + $0xf20] sm:$0xff]
      %v1299 = vld [vmem:[%s1 + $0xf28] sm:$0xff]
      %v1300 = vld [vmem:[%s1 + $0xf30] sm:$0xff]
      %v1301 = vld [vmem:[%s1 + $0xf38] sm:$0xff]
      %v1302 = vld [vmem:[%s1 + $0xf40] sm:$0xff]
      %v1303 = vld [vmem:[%s1 + $0xf48] sm:$0xff]
      %v1304 = vld [vmem:[%s1 + $0xf50] sm:$0xff]
      %v1305 = vld [vmem:[%s1 + $0xf58] sm:$0xff]
      %v1306 = vld [vmem:[%s1 + $0xf60] sm:$0xff]
      %v1307 = vld [vmem:[%s1 + $0xf68] sm:$0xff]
      %v1308 = vld [vmem:[%s1 + $0xf70] sm:$0xff]
      %v1309 = vld [vmem:[%s1 + $0xf78] sm:$0xff]
      %v1310 = vld [vmem:[%s1 + $0xf80] sm:$0xff]
      %v1311 = vld [vmem:[%s1 + $0xf88] sm:$0xff]
      %v1312 = vld [vmem:[%s1 + $0xf90] sm:$0xff]
      %v1313 = vld [vmem:[%s1 + $0xf98] sm:$0xff]
      %v1314 = vld [vmem:[%s1 + $0xfa0] sm:$0xff]
      %v1315 = vld [vmem:[%s1 + $0xfa8] sm:$0xff]
      %v1316 = vld [vmem:[%s1 + $0xfb0] sm:$0xff]
      %v1317 = vld [vmem:[%s1 + $0xfb8] sm:$0xff]
      %v1318 = vld [vmem:[%s1 + $0xfc0] sm:$0xff]
      %v1319 = vld [vmem:[%s1 + $0xfc8] sm:$0xff]
      %v1320 = vld [vmem:[%s1 + $0xfd0] sm:$0xff]
      %v1321 = vld [vmem:[%s1 + $0xfd8] sm:$0xff]
      %v1322 = vld [vmem:[%s1 + $0xfe0] sm:$0xff]
      %v1323 = vld [vmem:[%s1 + $0xfe8] sm:$0xff]
      %v1324 = vld [vmem:[%s1 + $0xff0] sm:$0xff]
      %v1325 = vld [vmem:[%s1 + $0xff8] sm:$0xff]
      %v1326 = vld [vmem:[%s1 + $0x1000] sm:$0xff]
      %v1327 = vld [vmem:[%s1 + $0x1008] sm:$0xff]
      %v1328 = vld [vmem:[%s1 + $0x1010] sm:$0xff]
      %v1329 = vld [vmem:[%s1 + $0x1018] sm:$0xff]
      %v1330 = vld [vmem:[%s1 + $0x1020] sm:$0xff]
      %v1331 = vld [vmem:[%s1 + $0x1028] sm:$0xff]
      %v1332 = vld [vmem:[%s1 + $0x1030] sm:$0xff]
      %v1333 = vld [vmem:[%s1 + $0x1038] sm:$0xff]
      %v1334 = vld [vmem:[%s1 + $0x1040] sm:$0xff]
      %v1335 = vld [vmem:[%s1 + $0x1048] sm:$0xff]
      %v1336 = vld [vmem:[%s1 + $0x1050] sm:$0xff]
      %v1337 = vld [vmem:[%s1 + $0x1058] sm:$0xff]
      %v1338 = vld [vmem:[%s1 + $0x1060] sm:$0xff]
      %v1339 = vld [vmem:[%s1 + $0x1068] sm:$0xff]
      %v1340 = vld [vmem:[%s1 + $0x1070] sm:$0xff]
      %v1341 = vld [vmem:[%s1 + $0x1078] sm:$0xff]
      %v1342 = vld [vmem:[%s1 + $0x1080] sm:$0xff]
      %v1343 = vld [vmem:[%s1 + $0x1088] sm:$0xff]
      %v1344 = vld [vmem:[%s1 + $0x1090] sm:$0xff]
      %v1345 = vld [vmem:[%s1 + $0x1098] sm:$0xff]
      %v1346 = vld [vmem:[%s1 + $0x10a0] sm:$0xff]
      %v1347 = vld [vmem:[%s1 + $0x10a8] sm:$0xff]
      %v1348 = vld [vmem:[%s1 + $0x10b0] sm:$0xff]
      %v1349 = vld [vmem:[%s1 + $0x10b8] sm:$0xff]
      %v1350 = vld [vmem:[%s1 + $0x10c0] sm:$0xff]
      %v1351 = vld [vmem:[%s1 + $0x10c8] sm:$0xff]
      %v1352 = vld [vmem:[%s1 + $0x10d0] sm:$0xff]
      %v1353 = vld [vmem:[%s1 + $0x10d8] sm:$0xff]
      %v1354 = vld [vmem:[%s1 + $0x10e0] sm:$0xff]
      %v1355 = vld [vmem:[%s1 + $0x10e8] sm:$0xff]
      %v1356 = vld [vmem:[%s1 + $0x10f0] sm:$0xff]
      %v1357 = vld [vmem:[%s1 + $0x10f8] sm:$0xff]
      %v1358 = vld [vmem:[%s1 + $0x1100] sm:$0xff]
      %v1359 = vld [vmem:[%s1 + $0x1108] sm:$0xff]
      %v1360 = vld [vmem:[%s1 + $0x1110] sm:$0xff]
      %v1361 = vld [vmem:[%s1 + $0x1118] sm:$0xff]
      %v1362 = vld [vmem:[%s1 + $0x1120] sm:$0xff]
      %v1363 = vld [vmem:[%s1 + $0x1128] sm:$0xff]
      %v1364 = vld [vmem:[%s1 + $0x1130] sm:$0xff]
      %v1365 = vld [vmem:[%s1 + $0x1138] sm:$0xff]
      %v1366 = vld [vmem:[%s1 + $0x1140] sm:$0xff]
      %v1367 = vld [vmem:[%s1 + $0x1148] sm:$0xff]
      %v1368 = vld [vmem:[%s1 + $0x1150] sm:$0xff]
      %v1369 = vld [vmem:[%s1 + $0x1158] sm:$0xff]
      %v1370 = vld [vmem:[%s1 + $0x1160] sm:$0xff]
      %v1371 = vld [vmem:[%s1 + $0x1168] sm:$0xff]
      %v1372 = vld [vmem:[%s1 + $0x1170] sm:$0xff]
      %v1373 = vld [vmem:[%s1 + $0x1178] sm:$0xff]
      %v1374 = vld [vmem:[%s1 + $0x1180] sm:$0xff]
      %v1375 = vld [vmem:[%s1 + $0x1188] sm:$0xff]
      %v1376 = vld [vmem:[%s1 + $0x1190] sm:$0xff]
      %v1377 = vld [vmem:[%s1 + $0x1198] sm:$0xff]
      %v1378 = vld [vmem:[%s1 + $0x11a0] sm:$0xff]
      %v1379 = vld [vmem:[%s1 + $0x11a8] sm:$0xff]
      %v1380 = vld [vmem:[%s1 + $0x11b0] sm:$0xff]
      %v1381 = vld [vmem:[%s1 + $0x11b8] sm:$0xff]
      %v1382 = vld [vmem:[%s1 + $0x11c0] sm:$0xff]
      %v1383 = vld [vmem:[%s1 + $0x11c8] sm:$0xff]
      %v1384 = vld [vmem:[%s1 + $0x11d0] sm:$0xff]
      %v1385 = vld [vmem:[%s1 + $0x11d8] sm:$0xff]
      %v1386 = vld [vmem:[%s1 + $0x11e0] sm:$0xff]
      %v1387 = vld [vmem:[%s1 + $0x11e8] sm:$0xff]
      %v1388 = vld [vmem:[%s1 + $0x11f0] sm:$0xff]
      %v1389 = vld [vmem:[%s1 + $0x11f8] sm:$0xff]
      %v1390 = vld [vmem:[%s1 + $0x1200] sm:$0xff]
      %v1391 = vld [vmem:[%s1 + $0x1208] sm:$0xff]
      %v1392 = vld [vmem:[%s1 + $0x1210] sm:$0xff]
      %v1393 = vld [vmem:[%s1 + $0x1218] sm:$0xff]
      %v1394 = vld [vmem:[%s1 + $0x1220] sm:$0xff]
      %v1395 = vld [vmem:[%s1 + $0x1228] sm:$0xff]
      %v1396 = vld [vmem:[%s1 + $0x1230] sm:$0xff]
      %v1397 = vld [vmem:[%s1 + $0x1238] sm:$0xff]
      %v1398 = vld [vmem:[%s1 + $0x1240] sm:$0xff]
      %v1399 = vld [vmem:[%s1 + $0x1248] sm:$0xff]
      %v1400 = vld [vmem:[%s1 + $0x1250] sm:$0xff]
      %v1401 = vld [vmem:[%s1 + $0x1258] sm:$0xff]
      %v1402 = vld [vmem:[%s1 + $0x1260] sm:$0xff]
      %v1403 = vld [vmem:[%s1 + $0x1268] sm:$0xff]
      %v1404 = vld [vmem:[%s1 + $0x1270] sm:$0xff]
      %v1405 = vld [vmem:[%s1 + $0x1278] sm:$0xff]
      %v1406 = vld [vmem:[%s1 + $0x1280] sm:$0xff]
      %v1407 = vld [vmem:[%s1 + $0x1288] sm:$0xff]
      %v1408 = vld [vmem:[%s1 + $0x1290] sm:$0xff]
      %v1409 = vld [vmem:[%s1 + $0x1298] sm:$0xff]
      %v1410 = vld [vmem:[%s1 + $0x12a0] sm:$0xff]
      %v1411 = vld [vmem:[%s1 + $0x12a8] sm:$0xff]
      %v1412 = vld [vmem:[%s1 + $0x12b0] sm:$0xff]
      %v1413 = vld [vmem:[%s1 + $0x12b8] sm:$0xff]
      %v1414 = vld [vmem:[%s1 + $0x12c0] sm:$0xff]
      %v1415 = vld [vmem:[%s1 + $0x12c8] sm:$0xff]
      %v1416 = vld [vmem:[%s1 + $0x12d0] sm:$0xff]
      %v1417 = vld [vmem:[%s1 + $0x12d8] sm:$0xff]
      %v1418 = vld [vmem:[%s1 + $0x12e0] sm:$0xff]
      %v1419 = vld [vmem:[%s1 + $0x12e8] sm:$0xff]
      %v1420 = vld [vmem:[%s1 + $0x12f0] sm:$0xff]
      %v1421 = vld [vmem:[%s1 + $0x12f8] sm:$0xff]
      %v1422 = vld [vmem:[%s1 + $0x1300] sm:$0xff]
      %v1423 = vld [vmem:[%s1 + $0x1308] sm:$0xff]
      %v1424 = vld [vmem:[%s1 + $0x1310] sm:$0xff]
      %v1425 = vld [vmem:[%s1 + $0x1318] sm:$0xff]
      %v1426 = vld [vmem:[%s1 + $0x1320] sm:$0xff]
      %v1427 = vld [vmem:[%s1 + $0x1328] sm:$0xff]
      %v1428 = vld [vmem:[%s1 + $0x1330] sm:$0xff]
      %v1429 = vld [vmem:[%s1 + $0x1338] sm:$0xff]
      %v1430 = vld [vmem:[%s1 + $0x1340] sm:$0xff]
      %v1431 = vld [vmem:[%s1 + $0x1348] sm:$0xff]
      %v1432 = vld [vmem:[%s1 + $0x1350] sm:$0xff]
      %v1433 = vld [vmem:[%s1 + $0x1358] sm:$0xff]
      %v1434 = vld [vmem:[%s1 + $0x1360] sm:$0xff]
      %v1435 = vld [vmem:[%s1 + $0x1368] sm:$0xff]
      %v1436 = vld [vmem:[%s1 + $0x1370] sm:$0xff]
      %v1437 = vld [vmem:[%s1 + $0x1378] sm:$0xff]
      %v1438 = vld [vmem:[%s1 + $0x1380] sm:$0xff]
      %v1439 = vld [vmem:[%s1 + $0x1388] sm:$0xff]
      %v1440 = vld [vmem:[%s1 + $0x1390] sm:$0xff]
      %v1441 = vld [vmem:[%s1 + $0x1398] sm:$0xff]
      %v1442 = vld [vmem:[%s1 + $0x13a0] sm:$0xff]
      %v1443 = vld [vmem:[%s1 + $0x13a8] sm:$0xff]
      %v1444 = vld [vmem:[%s1 + $0x13b0] sm:$0xff]
      %v1445 = vld [vmem:[%s1 + $0x13b8] sm:$0xff]
      %v1446 = vld [vmem:[%s1 + $0x13c0] sm:$0xff]
      %v1447 = vld [vmem:[%s1 + $0x13c8] sm:$0xff]
      %v1448 = vld [vmem:[%s1 + $0x13d0] sm:$0xff]
      %v1449 = vld [vmem:[%s1 + $0x13d8] sm:$0xff]
      %v1450 = vld [vmem:[%s1 + $0x13e0] sm:$0xff]
      %v1451 = vld [vmem:[%s1 + $0x13e8] sm:$0xff]
      %v1452 = vld [vmem:[%s1 + $0x13f0] sm:$0xff]
      %v1453 = vld [vmem:[%s1 + $0x13f8] sm:$0xff]
      %v1454 = vld [vmem:[%s1 + $0x1400] sm:$0xff]
      %v1455 = vld [vmem:[%s1 + $0x1408] sm:$0xff]
      %v1456 = vld [vmem:[%s1 + $0x1410] sm:$0xff]
      %v1457 = vld [vmem:[%s1 + $0x1418] sm:$0xff]
      %v1458 = vld [vmem:[%s1 + $0x1420] sm:$0xff]
      %v1459 = vld [vmem:[%s1 + $0x1428] sm:$0xff]
      %v1460 = vld [vmem:[%s1 + $0x1430] sm:$0xff]
      %v1461 = vld [vmem:[%s1 + $0x1438] sm:$0xff]
      %v1462 = vld [vmem:[%s1 + $0x1440] sm:$0xff]
      %v1463 = vld [vmem:[%s1 + $0x1448] sm:$0xff]
      %v1464 = vld [vmem:[%s1 + $0x1450] sm:$0xff]
      %v1465 = vld [vmem:[%s1 + $0x1458] sm:$0xff]
      %v1466 = vld [vmem:[%s1 + $0x1460] sm:$0xff]
      %v1467 = vld [vmem:[%s1 + $0x1468] sm:$0xff]
      %v1468 = vld [vmem:[%s1 + $0x1470] sm:$0xff]
      %v1469 = vld [vmem:[%s1 + $0x1478] sm:$0xff]
      %v1470 = vld [vmem:[%s1 + $0x1480] sm:$0xff]
      %v1471 = vld [vmem:[%s1 + $0x1488] sm:$0xff]
      %v1472 = vld [vmem:[%s1 + $0x1490] sm:$0xff]
      %v1473 = vld [vmem:[%s1 + $0x1498] sm:$0xff]
      %v1474 = vld [vmem:[%s1 + $0x14a0] sm:$0xff]
      %v1475 = vld [vmem:[%s1 + $0x14a8] sm:$0xff]
      %v1476 = vld [vmem:[%s1 + $0x14b0] sm:$0xff]
      %v1477 = vld [vmem:[%s1 + $0x14b8] sm:$0xff]
      %v1478 = vld [vmem:[%s1 + $0x14c0] sm:$0xff]
      %v1479 = vld [vmem:[%s1 + $0x14c8] sm:$0xff]
      %v1480 = vld [vmem:[%s1 + $0x14d0] sm:$0xff]
      %v1481 = vld [vmem:[%s1 + $0x14d8] sm:$0xff]
      %v1482 = vld [vmem:[%s1 + $0x14e0] sm:$0xff]
      %v1483 = vld [vmem:[%s1 + $0x14e8] sm:$0xff]
      %v1484 = vld [vmem:[%s1 + $0x14f0] sm:$0xff]
      %v1485 = vld [vmem:[%s1 + $0x14f8] sm:$0xff]
      %v1486 = vld [vmem:[%s1 + $0x1500] sm:$0xff]
      %v1487 = vld [vmem:[%s1 + $0x1508] sm:$0xff]
      %v1488 = vld [vmem:[%s1 + $0x1510] sm:$0xff]
      %v1489 = vld [vmem:[%s1 + $0x1518] sm:$0xff]
      %v1490 = vld [vmem:[%s1 + $0x1520] sm:$0xff]
      %v1491 = vld [vmem:[%s1 + $0x1528] sm:$0xff]
      %v1492 = vld [vmem:[%s1 + $0x1530] sm:$0xff]
      %v1493 = vld [vmem:[%s1 + $0x1538] sm:$0xff]
      %v1494 = vld [vmem:[%s1 + $0x1540] sm:$0xff]
      %v1495 = vld [vmem:[%s1 + $0x1548] sm:$0xff]
      %v1496 = vld [vmem:[%s1 + $0x1550] sm:$0xff]
      %v1497 = vld [vmem:[%s1 + $0x1558] sm:$0xff]
      %v1498 = vld [vmem:[%s1 + $0x1560] sm:$0xff]
      %v1499 = vld [vmem:[%s1 + $0x1568] sm:$0xff]
      %v1500 = vld [vmem:[%s2] sm:$0xf]
      %v1502 = vlaneseq
      %v1503 = vshrl.u32 %v1502, 7
      %v1504 = vsub.s32 0, %v1503
      %v1505 = vrot.slane %v1500, %v1504
      %v1506 = vlaneseq
      %v1507 = vshrl.u32 %v1506, 7
      %v1508 = vsub.s32 1, %v1507
      %v1509 = vrot.slane %v1500, %v1508
      %v1510 = vlaneseq
      %v1511 = vshrl.u32 %v1510, 7
      %v1512 = vsub.s32 2, %v1511
      %v1513 = vrot.slane %v1500, %v1512
      %v1514 = vlaneseq
      %v1515 = vshrl.u32 %v1514, 7
      %v1516 = vsub.s32 3, %v1515
      %v1517 = vrot.slane %v1500, %v1516
      %v2208 = vunpack.c.l.b16 %v814
      %v2209 = vunpack.c.h.b16 %v814
      %v2210 = vunpack.c.l.b16 %v815
      %v2211 = vunpack.c.h.b16 %v815
      %v2212 = vunpack.c.l.b16 %v816
      %v2213 = vunpack.c.h.b16 %v816
      %v2214 = vunpack.c.l.b16 %v817
      %v2215 = vunpack.c.h.b16 %v817
      %v2216 = vunpack.c.l.b16 %v818
      %v2217 = vunpack.c.h.b16 %v818
      %v2218 = vunpack.c.l.b16 %v819
      %v2219 = vunpack.c.h.b16 %v819
      %v2220 = vunpack.c.l.b16 %v820
      %v2221 = vunpack.c.h.b16 %v820
      %v2222 = vunpack.c.l.b16 %v821
      %v2223 = vunpack.c.h.b16 %v821
      %v2224 = vunpack.c.l.b16 %v822
      %v2225 = vunpack.c.h.b16 %v822
      %v2226 = vunpack.c.l.b16 %v823
      %v2227 = vunpack.c.h.b16 %v823
      %v2228 = vunpack.c.l.b16 %v824
      %v2229 = vunpack.c.h.b16 %v824
      %v2230 = vunpack.c.l.b16 %v825
      %v2231 = vunpack.c.h.b16 %v825
      %v2232 = vunpack.c.l.b16 %v826
      %v2233 = vunpack.c.h.b16 %v826
      %v2234 = vunpack.c.l.b16 %v827
      %v2235 = vunpack.c.h.b16 %v827
      %v2236 = vunpack.c.l.b16 %v828
      %v2237 = vunpack.c.h.b16 %v828
      %v2238 = vunpack.c.l.b16 %v829
      %v2239 = vunpack.c.h.b16 %v829
      %v2240 = vunpack.c.l.b16 %v830
      %v2241 = vunpack.c.h.b16 %v830
      %v2242 = vunpack.c.l.b16 %v831
      %v2243 = vunpack.c.h.b16 %v831
      %v2244 = vunpack.c.l.b16 %v832
      %v2245 = vunpack.c.h.b16 %v832
      %v2246 = vunpack.c.l.b16 %v833
      %v2247 = vunpack.c.h.b16 %v833
      %v2248 = vunpack.c.l.b16 %v834
      %v2249 = vunpack.c.h.b16 %v834
      %v2250 = vunpack.c.l.b16 %v835
      %v2251 = vunpack.c.h.b16 %v835
      %v2252 = vunpack.c.l.b16 %v836
      %v2253 = vunpack.c.h.b16 %v836
      %v2254 = vunpack.c.l.b16 %v837
      %v2255 = vunpack.c.h.b16 %v837
      %v2256 = vunpack.c.l.b16 %v838
      %v2257 = vunpack.c.h.b16 %v838
      %v2258 = vunpack.c.l.b16 %v839
      %v2259 = vunpack.c.h.b16 %v839
      %v2260 = vunpack.c.l.b16 %v840
      %v2261 = vunpack.c.h.b16 %v840
      %v2262 = vunpack.c.l.b16 %v841
      %v2263 = vunpack.c.h.b16 %v841
      %v2264 = vunpack.c.l.b16 %v842
      %v2265 = vunpack.c.h.b16 %v842
      %v2266 = vunpack.c.l.b16 %v843
      %v2267 = vunpack.c.h.b16 %v843
      %v2268 = vunpack.c.l.b16 %v844
      %v2269 = vunpack.c.h.b16 %v844
      %v2270 = vunpack.c.l.b16 %v845
      %v2271 = vunpack.c.h.b16 %v845
      %v2272 = vunpack.c.l.b16 %v846
      %v2273 = vunpack.c.h.b16 %v846
      %v2274 = vunpack.c.l.b16 %v847
      %v2275 = vunpack.c.h.b16 %v847
      %v2276 = vunpack.c.l.b16 %v848
      %v2277 = vunpack.c.h.b16 %v848
      %v2278 = vunpack.c.l.b16 %v849
      %v2279 = vunpack.c.h.b16 %v849
      %v2280 = vunpack.c.l.b16 %v850
      %v2281 = vunpack.c.h.b16 %v850
      %v2282 = vunpack.c.l.b16 %v851
      %v2283 = vunpack.c.h.b16 %v851
      %v2284 = vunpack.c.l.b16 %v852
      %v2285 = vunpack.c.h.b16 %v852
      %v2286 = vunpack.c.l.b16 %v853
      %v2287 = vunpack.c.h.b16 %v853
      %v2288 = vunpack.c.l.b16 %v854
      %v2289 = vunpack.c.h.b16 %v854
      %v2290 = vunpack.c.l.b16 %v855
      %v2291 = vunpack.c.h.b16 %v855
      %v2292 = vunpack.c.l.b16 %v856
      %v2293 = vunpack.c.h.b16 %v856
      %v2294 = vunpack.c.l.b16 %v857
      %v2295 = vunpack.c.h.b16 %v857
      %v2296 = vunpack.c.l.b16 %v858
      %v2297 = vunpack.c.h.b16 %v858
      %v2298 = vunpack.c.l.b16 %v859
      %v2299 = vunpack.c.h.b16 %v859
      %v2300 = vunpack.c.l.b16 %v860
      %v2301 = vunpack.c.h.b16 %v860
      %v2302 = vunpack.c.l.b16 %v861
      %v2303 = vunpack.c.h.b16 %v861
      %v2304 = vunpack.c.l.b16 %v862
      %v2305 = vunpack.c.h.b16 %v862
      %v2306 = vunpack.c.l.b16 %v863
      %v2307 = vunpack.c.h.b16 %v863
      %v2308 = vunpack.c.l.b16 %v864
      %v2309 = vunpack.c.h.b16 %v864
      %v2310 = vunpack.c.l.b16 %v865
      %v2311 = vunpack.c.h.b16 %v865
      %v2312 = vunpack.c.l.b16 %v866
      %v2313 = vunpack.c.h.b16 %v866
      %v2314 = vunpack.c.l.b16 %v867
      %v2315 = vunpack.c.h.b16 %v867
      %v2316 = vunpack.c.l.b16 %v868
      %v2317 = vunpack.c.h.b16 %v868
      %v2318 = vunpack.c.l.b16 %v869
      %v2319 = vunpack.c.h.b16 %v869
      %v2320 = vunpack.c.l.b16 %v870
      %v2321 = vunpack.c.h.b16 %v870
      %v2322 = vunpack.c.l.b16 %v871
      %v2323 = vunpack.c.h.b16 %v871
      %v2324 = vunpack.c.l.b16 %v872
      %v2325 = vunpack.c.h.b16 %v872
      %v2326 = vunpack.c.l.b16 %v873
      %v2327 = vunpack.c.h.b16 %v873
      %v2328 = vunpack.c.l.b16 %v874
      %v2329 = vunpack.c.h.b16 %v874
      %v2330 = vunpack.c.l.b16 %v875
      %v2331 = vunpack.c.h.b16 %v875
      %v2332 = vunpack.c.l.b16 %v876
      %v2333 = vunpack.c.h.b16 %v876
      %v2334 = vunpack.c.l.b16 %v877
      %v2335 = vunpack.c.h.b16 %v877
      %v2336 = vunpack.c.l.b16 %v878
      %v2337 = vunpack.c.h.b16 %v878
      %v2338 = vunpack.c.l.b16 %v879
      %v2339 = vunpack.c.h.b16 %v879
      %v2340 = vunpack.c.l.b16 %v880
      %v2341 = vunpack.c.h.b16 %v880
      %v2342 = vunpack.c.l.b16 %v881
      %v2343 = vunpack.c.h.b16 %v881
      %v2344 = vunpack.c.l.b16 %v882
      %v2345 = vunpack.c.h.b16 %v882
      %v2346 = vunpack.c.l.b16 %v883
      %v2347 = vunpack.c.h.b16 %v883
      %v2348 = vunpack.c.l.b16 %v884
      %v2349 = vunpack.c.h.b16 %v884
      %v2350 = vunpack.c.l.b16 %v885
      %v2351 = vunpack.c.h.b16 %v885
      %v2352 = vunpack.c.l.b16 %v886
      %v2353 = vunpack.c.h.b16 %v886
      %v2354 = vunpack.c.l.b16 %v887
      %v2355 = vunpack.c.h.b16 %v887
      %v2356 = vunpack.c.l.b16 %v888
      %v2357 = vunpack.c.h.b16 %v888
      %v2358 = vunpack.c.l.b16 %v889
      %v2359 = vunpack.c.h.b16 %v889
      %v2360 = vunpack.c.l.b16 %v890
      %v2361 = vunpack.c.h.b16 %v890
      %v2362 = vunpack.c.l.b16 %v891
      %v2363 = vunpack.c.h.b16 %v891
      %v2364 = vunpack.c.l.b16 %v892
      %v2365 = vunpack.c.h.b16 %v892
      %v2366 = vunpack.c.l.b16 %v893
      %v2367 = vunpack.c.h.b16 %v893
      %v2368 = vunpack.c.l.b16 %v894
      %v2369 = vunpack.c.h.b16 %v894
      %v2370 = vunpack.c.l.b16 %v895
      %v2371 = vunpack.c.h.b16 %v895
      %v2372 = vunpack.c.l.b16 %v896
      %v2373 = vunpack.c.h.b16 %v896
      %v2374 = vunpack.c.l.b16 %v897
      %v2375 = vunpack.c.h.b16 %v897
      %v2376 = vunpack.c.l.b16 %v898
      %v2377 = vunpack.c.h.b16 %v898
      %v2378 = vunpack.c.l.b16 %v899
      %v2379 = vunpack.c.h.b16 %v899
      %v2380 = vunpack.c.l.b16 %v900
      %v2381 = vunpack.c.h.b16 %v900
      %v2382 = vunpack.c.l.b16 %v901
      %v2383 = vunpack.c.h.b16 %v901
      %v2384 = vunpack.c.l.b16 %v902
      %v2385 = vunpack.c.h.b16 %v902
      %v2386 = vunpack.c.l.b16 %v903
      %v2387 = vunpack.c.h.b16 %v903
      %v2388 = vunpack.c.l.b16 %v904
      %v2389 = vunpack.c.h.b16 %v904
      %v2390 = vunpack.c.l.b16 %v905
      %v2391 = vunpack.c.h.b16 %v905
      %v2392 = vunpack.c.l.b16 %v906
      %v2393 = vunpack.c.h.b16 %v906
      %v2394 = vunpack.c.l.b16 %v907
      %v2395 = vunpack.c.h.b16 %v907
      %v2396 = vunpack.c.l.b16 %v908
      %v2397 = vunpack.c.h.b16 %v908
      %v2398 = vunpack.c.l.b16 %v909
      %v2399 = vunpack.c.h.b16 %v909
      %v2400 = vunpack.c.l.b16 %v910
      %v2401 = vunpack.c.h.b16 %v910
      %v2402 = vunpack.c.l.b16 %v911
      %v2403 = vunpack.c.h.b16 %v911
      %v2404 = vunpack.c.l.b16 %v912
      %v2405 = vunpack.c.h.b16 %v912
      %v2406 = vunpack.c.l.b16 %v913
      %v2407 = vunpack.c.h.b16 %v913
      %v2408 = vunpack.c.l.b16 %v914
      %v2409 = vunpack.c.h.b16 %v914
      %v2410 = vunpack.c.l.b16 %v915
      %v2411 = vunpack.c.h.b16 %v915
      %v2412 = vunpack.c.l.b16 %v916
      %v2413 = vunpack.c.h.b16 %v916
      %v2414 = vunpack.c.l.b16 %v917
      %v2415 = vunpack.c.h.b16 %v917
      %v2416 = vunpack.c.l.b16 %v918
      %v2417 = vunpack.c.h.b16 %v918
      %v2418 = vunpack.c.l.b16 %v919
      %v2419 = vunpack.c.h.b16 %v919
      %v2420 = vunpack.c.l.b16 %v920
      %v2421 = vunpack.c.h.b16 %v920
      %v2422 = vunpack.c.l.b16 %v921
      %v2423 = vunpack.c.h.b16 %v921
      %v2424 = vunpack.c.l.b16 %v922
      %v2425 = vunpack.c.h.b16 %v922
      %v2426 = vunpack.c.l.b16 %v923
      %v2427 = vunpack.c.h.b16 %v923
      %v2428 = vunpack.c.l.b16 %v924
      %v2429 = vunpack.c.h.b16 %v924
      %v2430 = vunpack.c.l.b16 %v925
      %v2431 = vunpack.c.h.b16 %v925
      %v2432 = vunpack.c.l.b16 %v926
      %v2433 = vunpack.c.h.b16 %v926
      %v2434 = vunpack.c.l.b16 %v927
      %v2435 = vunpack.c.h.b16 %v927
      %v2436 = vunpack.c.l.b16 %v928
      %v2437 = vunpack.c.h.b16 %v928
      %v2438 = vunpack.c.l.b16 %v929
      %v2439 = vunpack.c.h.b16 %v929
      %v2440 = vunpack.c.l.b16 %v930
      %v2441 = vunpack.c.h.b16 %v930
      %v2442 = vunpack.c.l.b16 %v931
      %v2443 = vunpack.c.h.b16 %v931
      %v2444 = vunpack.c.l.b16 %v932
      %v2445 = vunpack.c.h.b16 %v932
      %v2446 = vunpack.c.l.b16 %v933
      %v2447 = vunpack.c.h.b16 %v933
      %v2448 = vunpack.c.l.b16 %v934
      %v2449 = vunpack.c.h.b16 %v934
      %v2450 = vunpack.c.l.b16 %v935
      %v2451 = vunpack.c.h.b16 %v935
      %v2452 = vunpack.c.l.b16 %v936
      %v2453 = vunpack.c.h.b16 %v936
      %v2454 = vunpack.c.l.b16 %v937
      %v2455 = vunpack.c.h.b16 %v937
      %v2456 = vunpack.c.l.b16 %v938
      %v2457 = vunpack.c.h.b16 %v938
      %v2458 = vunpack.c.l.b16 %v939
      %v2459 = vunpack.c.h.b16 %v939
      %v2460 = vunpack.c.l.b16 %v940
      %v2461 = vunpack.c.h.b16 %v940
      %v2462 = vunpack.c.l.b16 %v941
      %v2463 = vunpack.c.h.b16 %v941
      %v2464 = vunpack.c.l.b16 %v942
      %v2465 = vunpack.c.h.b16 %v942
      %v2466 = vunpack.c.l.b16 %v943
      %v2467 = vunpack.c.h.b16 %v943
      %v2468 = vunpack.c.l.b16 %v944
      %v2469 = vunpack.c.h.b16 %v944
      %v2470 = vunpack.c.l.b16 %v945
      %v2471 = vunpack.c.h.b16 %v945
      %v2472 = vunpack.c.l.b16 %v946
      %v2473 = vunpack.c.h.b16 %v946
      %v2474 = vunpack.c.l.b16 %v947
      %v2475 = vunpack.c.h.b16 %v947
      %v2476 = vunpack.c.l.b16 %v948
      %v2477 = vunpack.c.h.b16 %v948
      %v2478 = vunpack.c.l.b16 %v949
      %v2479 = vunpack.c.h.b16 %v949
      %v2480 = vunpack.c.l.b16 %v950
      %v2481 = vunpack.c.h.b16 %v950
      %v2482 = vunpack.c.l.b16 %v951
      %v2483 = vunpack.c.h.b16 %v951
      %v2484 = vunpack.c.l.b16 %v952
      %v2485 = vunpack.c.h.b16 %v952
      %v2486 = vunpack.c.l.b16 %v953
      %v2487 = vunpack.c.h.b16 %v953
      %v2488 = vunpack.c.l.b16 %v954
      %v2489 = vunpack.c.h.b16 %v954
      %v2490 = vunpack.c.l.b16 %v955
      %v2491 = vunpack.c.h.b16 %v955
      %v2492 = vunpack.c.l.b16 %v956
      %v2493 = vunpack.c.h.b16 %v956
      %v2494 = vunpack.c.l.b16 %v957
      %v2495 = vunpack.c.h.b16 %v957
      %v2496 = vunpack.c.l.b16 %v958
      %v2497 = vunpack.c.h.b16 %v958
      %v2498 = vunpack.c.l.b16 %v959
      %v2499 = vunpack.c.h.b16 %v959
      %v2500 = vunpack.c.l.b16 %v960
      %v2501 = vunpack.c.h.b16 %v960
      %v2502 = vunpack.c.l.b16 %v961
      %v2503 = vunpack.c.h.b16 %v961
      %v2504 = vunpack.c.l.b16 %v962
      %v2505 = vunpack.c.h.b16 %v962
      %v2506 = vunpack.c.l.b16 %v963
      %v2507 = vunpack.c.h.b16 %v963
      %v2508 = vunpack.c.l.b16 %v964
      %v2509 = vunpack.c.h.b16 %v964
      %v2510 = vunpack.c.l.b16 %v965
      %v2511 = vunpack.c.h.b16 %v965
      %v2512 = vunpack.c.l.b16 %v966
      %v2513 = vunpack.c.h.b16 %v966
      %v2514 = vunpack.c.l.b16 %v967
      %v2515 = vunpack.c.h.b16 %v967
      %v2516 = vunpack.c.l.b16 %v968
      %v2517 = vunpack.c.h.b16 %v968
      %v2518 = vunpack.c.l.b16 %v969
      %v2519 = vunpack.c.h.b16 %v969
      %v2520 = vunpack.c.l.b16 %v970
      %v2521 = vunpack.c.h.b16 %v970
      %v2522 = vunpack.c.l.b16 %v971
      %v2523 = vunpack.c.h.b16 %v971
      %v2524 = vunpack.c.l.b16 %v972
      %v2525 = vunpack.c.h.b16 %v972
      %v2526 = vunpack.c.l.b16 %v973
      %v2527 = vunpack.c.h.b16 %v973
      %v2528 = vunpack.c.l.b16 %v974
      %v2529 = vunpack.c.h.b16 %v974
      %v2530 = vunpack.c.l.b16 %v975
      %v2531 = vunpack.c.h.b16 %v975
      %v2532 = vunpack.c.l.b16 %v976
      %v2533 = vunpack.c.h.b16 %v976
      %v2534 = vunpack.c.l.b16 %v977
      %v2535 = vunpack.c.h.b16 %v977
      %v2536 = vunpack.c.l.b16 %v978
      %v2537 = vunpack.c.h.b16 %v978
      %v2538 = vunpack.c.l.b16 %v979
      %v2539 = vunpack.c.h.b16 %v979
      %v2540 = vunpack.c.l.b16 %v980
      %v2541 = vunpack.c.h.b16 %v980
      %v2542 = vunpack.c.l.b16 %v981
      %v2543 = vunpack.c.h.b16 %v981
      %v2544 = vunpack.c.l.b16 %v982
      %v2545 = vunpack.c.h.b16 %v982
      %v2546 = vunpack.c.l.b16 %v983
      %v2547 = vunpack.c.h.b16 %v983
      %v2548 = vunpack.c.l.b16 %v984
      %v2549 = vunpack.c.h.b16 %v984
      %v2550 = vunpack.c.l.b16 %v985
      %v2551 = vunpack.c.h.b16 %v985
      %v2552 = vunpack.c.l.b16 %v986
      %v2553 = vunpack.c.h.b16 %v986
      %v2554 = vunpack.c.l.b16 %v987
      %v2555 = vunpack.c.h.b16 %v987
      %v2556 = vunpack.c.l.b16 %v988
      %v2557 = vunpack.c.h.b16 %v988
      %v2558 = vunpack.c.l.b16 %v989
      %v2559 = vunpack.c.h.b16 %v989
      %v2560 = vunpack.c.l.b16 %v990
      %v2561 = vunpack.c.h.b16 %v990
      %v2562 = vunpack.c.l.b16 %v991
      %v2563 = vunpack.c.h.b16 %v991
      %v2564 = vunpack.c.l.b16 %v992
      %v2565 = vunpack.c.h.b16 %v992
      %v2566 = vunpack.c.l.b16 %v993
      %v2567 = vunpack.c.h.b16 %v993
      %v2568 = vunpack.c.l.b16 %v994
      %v2569 = vunpack.c.h.b16 %v994
      %v2570 = vunpack.c.l.b16 %v995
      %v2571 = vunpack.c.h.b16 %v995
      %v2572 = vunpack.c.l.b16 %v996
      %v2573 = vunpack.c.h.b16 %v996
      %v2574 = vunpack.c.l.b16 %v997
      %v2575 = vunpack.c.h.b16 %v997
      %v2576 = vunpack.c.l.b16 %v998
      %v2577 = vunpack.c.h.b16 %v998
      %v2578 = vunpack.c.l.b16 %v999
      %v2579 = vunpack.c.h.b16 %v999
      %v2580 = vunpack.c.l.b16 %v1000
      %v2581 = vunpack.c.h.b16 %v1000
      %v2582 = vunpack.c.l.b16 %v1001
      %v2583 = vunpack.c.h.b16 %v1001
      %v2584 = vunpack.c.l.b16 %v1002
      %v2585 = vunpack.c.h.b16 %v1002
      %v2586 = vunpack.c.l.b16 %v1003
      %v2587 = vunpack.c.h.b16 %v1003
      %v2588 = vunpack.c.l.b16 %v1004
      %v2589 = vunpack.c.h.b16 %v1004
      %v2590 = vunpack.c.l.b16 %v1005
      %v2591 = vunpack.c.h.b16 %v1005
      %v2592 = vunpack.c.l.b16 %v1006
      %v2593 = vunpack.c.h.b16 %v1006
      %v2594 = vunpack.c.l.b16 %v1007
      %v2595 = vunpack.c.h.b16 %v1007
      %v2596 = vunpack.c.l.b16 %v1008
      %v2597 = vunpack.c.h.b16 %v1008
      %v2598 = vunpack.c.l.b16 %v1009
      %v2599 = vunpack.c.h.b16 %v1009
      %v2600 = vunpack.c.l.b16 %v1010
      %v2601 = vunpack.c.h.b16 %v1010
      %v2602 = vunpack.c.l.b16 %v1011
      %v2603 = vunpack.c.h.b16 %v1011
      %v2604 = vunpack.c.l.b16 %v1012
      %v2605 = vunpack.c.h.b16 %v1012
      %v2606 = vunpack.c.l.b16 %v1013
      %v2607 = vunpack.c.h.b16 %v1013
      %v2608 = vunpack.c.l.b16 %v1014
      %v2609 = vunpack.c.h.b16 %v1014
      %v2610 = vunpack.c.l.b16 %v1015
      %v2611 = vunpack.c.h.b16 %v1015
      %v2612 = vunpack.c.l.b16 %v1016
      %v2613 = vunpack.c.h.b16 %v1016
      %v2614 = vunpack.c.l.b16 %v1017
      %v2615 = vunpack.c.h.b16 %v1017
      %v2616 = vunpack.c.l.b16 %v1018
      %v2617 = vunpack.c.h.b16 %v1018
      %v2618 = vunpack.c.l.b16 %v1019
      %v2619 = vunpack.c.h.b16 %v1019
      %v2620 = vunpack.c.l.b16 %v1020
      %v2621 = vunpack.c.h.b16 %v1020
      %v2622 = vunpack.c.l.b16 %v1021
      %v2623 = vunpack.c.h.b16 %v1021
      %v2624 = vunpack.c.l.b16 %v1022
      %v2625 = vunpack.c.h.b16 %v1022
      %v2626 = vunpack.c.l.b16 %v1023
      %v2627 = vunpack.c.h.b16 %v1023
      %v2628 = vunpack.c.l.b16 %v1024
      %v2629 = vunpack.c.h.b16 %v1024
      %v2630 = vunpack.c.l.b16 %v1025
      %v2631 = vunpack.c.h.b16 %v1025
      %v2632 = vunpack.c.l.b16 %v1026
      %v2633 = vunpack.c.h.b16 %v1026
      %v2634 = vunpack.c.l.b16 %v1027
      %v2635 = vunpack.c.h.b16 %v1027
      %v2636 = vunpack.c.l.b16 %v1028
      %v2637 = vunpack.c.h.b16 %v1028
      %v2638 = vunpack.c.l.b16 %v1029
      %v2639 = vunpack.c.h.b16 %v1029
      %v2640 = vunpack.c.l.b16 %v1030
      %v2641 = vunpack.c.h.b16 %v1030
      %v2642 = vunpack.c.l.b16 %v1031
      %v2643 = vunpack.c.h.b16 %v1031
      %v2644 = vunpack.c.l.b16 %v1032
      %v2645 = vunpack.c.h.b16 %v1032
      %v2646 = vunpack.c.l.b16 %v1033
      %v2647 = vunpack.c.h.b16 %v1033
      %v2648 = vunpack.c.l.b16 %v1034
      %v2649 = vunpack.c.h.b16 %v1034
      %v2650 = vunpack.c.l.b16 %v1035
      %v2651 = vunpack.c.h.b16 %v1035
      %v2652 = vunpack.c.l.b16 %v1036
      %v2653 = vunpack.c.h.b16 %v1036
      %v2654 = vunpack.c.l.b16 %v1037
      %v2655 = vunpack.c.h.b16 %v1037
      %v2656 = vunpack.c.l.b16 %v1038
      %v2657 = vunpack.c.h.b16 %v1038
      %v2658 = vunpack.c.l.b16 %v1039
      %v2659 = vunpack.c.h.b16 %v1039
      %v2660 = vunpack.c.l.b16 %v1040
      %v2661 = vunpack.c.h.b16 %v1040
      %v2662 = vunpack.c.l.b16 %v1041
      %v2663 = vunpack.c.h.b16 %v1041
      %v2664 = vunpack.c.l.b16 %v1042
      %v2665 = vunpack.c.h.b16 %v1042
      %v2666 = vunpack.c.l.b16 %v1043
      %v2667 = vunpack.c.h.b16 %v1043
      %v2668 = vunpack.c.l.b16 %v1044
      %v2669 = vunpack.c.h.b16 %v1044
      %v2670 = vunpack.c.l.b16 %v1045
      %v2671 = vunpack.c.h.b16 %v1045
      %v2672 = vunpack.c.l.b16 %v1046
      %v2673 = vunpack.c.h.b16 %v1046
      %v2674 = vunpack.c.l.b16 %v1047
      %v2675 = vunpack.c.h.b16 %v1047
      %v2676 = vunpack.c.l.b16 %v1048
      %v2677 = vunpack.c.h.b16 %v1048
      %v2678 = vunpack.c.l.b16 %v1049
      %v2679 = vunpack.c.h.b16 %v1049
      %v2680 = vunpack.c.l.b16 %v1050
      %v2681 = vunpack.c.h.b16 %v1050
      %v2682 = vunpack.c.l.b16 %v1051
      %v2683 = vunpack.c.h.b16 %v1051
      %v2684 = vunpack.c.l.b16 %v1052
      %v2685 = vunpack.c.h.b16 %v1052
      %v2686 = vunpack.c.l.b16 %v1053
      %v2687 = vunpack.c.h.b16 %v1053
      %v2688 = vunpack.c.l.b16 %v1054
      %v2689 = vunpack.c.h.b16 %v1054
      %v2690 = vunpack.c.l.b16 %v1055
      %v2691 = vunpack.c.h.b16 %v1055
      %v2692 = vunpack.c.l.b16 %v1056
      %v2693 = vunpack.c.h.b16 %v1056
      %v2694 = vunpack.c.l.b16 %v1057
      %v2695 = vunpack.c.h.b16 %v1057
      %v2696 = vunpack.c.l.b16 %v1058
      %v2697 = vunpack.c.h.b16 %v1058
      %v2698 = vunpack.c.l.b16 %v1059
      %v2699 = vunpack.c.h.b16 %v1059
      %v2700 = vunpack.c.l.b16 %v1060
      %v2701 = vunpack.c.h.b16 %v1060
      %v2702 = vunpack.c.l.b16 %v1061
      %v2703 = vunpack.c.h.b16 %v1061
      %v2704 = vunpack.c.l.b16 %v1062
      %v2705 = vunpack.c.h.b16 %v1062
      %v2706 = vunpack.c.l.b16 %v1063
      %v2707 = vunpack.c.h.b16 %v1063
      %v2708 = vunpack.c.l.b16 %v1064
      %v2709 = vunpack.c.h.b16 %v1064
      %v2710 = vunpack.c.l.b16 %v1065
      %v2711 = vunpack.c.h.b16 %v1065
      %v2712 = vunpack.c.l.b16 %v1066
      %v2713 = vunpack.c.h.b16 %v1066
      %v2714 = vunpack.c.l.b16 %v1067
      %v2715 = vunpack.c.h.b16 %v1067
      %v2716 = vunpack.c.l.b16 %v1068
      %v2717 = vunpack.c.h.b16 %v1068
      %v2718 = vunpack.c.l.b16 %v1069
      %v2719 = vunpack.c.h.b16 %v1069
      %v2720 = vunpack.c.l.b16 %v1070
      %v2721 = vunpack.c.h.b16 %v1070
      %v2722 = vunpack.c.l.b16 %v1071
      %v2723 = vunpack.c.h.b16 %v1071
      %v2724 = vunpack.c.l.b16 %v1072
      %v2725 = vunpack.c.h.b16 %v1072
      %v2726 = vunpack.c.l.b16 %v1073
      %v2727 = vunpack.c.h.b16 %v1073
      %v2728 = vunpack.c.l.b16 %v1074
      %v2729 = vunpack.c.h.b16 %v1074
      %v2730 = vunpack.c.l.b16 %v1075
      %v2731 = vunpack.c.h.b16 %v1075
      %v2732 = vunpack.c.l.b16 %v1076
      %v2733 = vunpack.c.h.b16 %v1076
      %v2734 = vunpack.c.l.b16 %v1077
      %v2735 = vunpack.c.h.b16 %v1077
      %v2736 = vunpack.c.l.b16 %v1078
      %v2737 = vunpack.c.h.b16 %v1078
      %v2738 = vunpack.c.l.b16 %v1079
      %v2739 = vunpack.c.h.b16 %v1079
      %v2740 = vunpack.c.l.b16 %v1080
      %v2741 = vunpack.c.h.b16 %v1080
      %v2742 = vunpack.c.l.b16 %v1081
      %v2743 = vunpack.c.h.b16 %v1081
      %v2744 = vunpack.c.l.b16 %v1082
      %v2745 = vunpack.c.h.b16 %v1082
      %v2746 = vunpack.c.l.b16 %v1083
      %v2747 = vunpack.c.h.b16 %v1083
      %v2748 = vunpack.c.l.b16 %v1084
      %v2749 = vunpack.c.h.b16 %v1084
      %v2750 = vunpack.c.l.b16 %v1085
      %v2751 = vunpack.c.h.b16 %v1085
      %v2752 = vunpack.c.l.b16 %v1086
      %v2753 = vunpack.c.h.b16 %v1086
      %v2754 = vunpack.c.l.b16 %v1087
      %v2755 = vunpack.c.h.b16 %v1087
      %v2756 = vunpack.c.l.b16 %v1088
      %v2757 = vunpack.c.h.b16 %v1088
      %v2758 = vunpack.c.l.b16 %v1089
      %v2759 = vunpack.c.h.b16 %v1089
      %v2760 = vunpack.c.l.b16 %v1090
      %v2761 = vunpack.c.h.b16 %v1090
      %v2762 = vunpack.c.l.b16 %v1091
      %v2763 = vunpack.c.h.b16 %v1091
      %v2764 = vunpack.c.l.b16 %v1092
      %v2765 = vunpack.c.h.b16 %v1092
      %v2766 = vunpack.c.l.b16 %v1093
      %v2767 = vunpack.c.h.b16 %v1093
      %v2768 = vunpack.c.l.b16 %v1094
      %v2769 = vunpack.c.h.b16 %v1094
      %v2770 = vunpack.c.l.b16 %v1095
      %v2771 = vunpack.c.h.b16 %v1095
      %v2772 = vunpack.c.l.b16 %v1096
      %v2773 = vunpack.c.h.b16 %v1096
      %v2774 = vunpack.c.l.b16 %v1097
      %v2775 = vunpack.c.h.b16 %v1097
      %v2776 = vunpack.c.l.b16 %v1098
      %v2777 = vunpack.c.h.b16 %v1098
      %v2778 = vunpack.c.l.b16 %v1099
      %v2779 = vunpack.c.h.b16 %v1099
      %v2780 = vunpack.c.l.b16 %v1100
      %v2781 = vunpack.c.h.b16 %v1100
      %v2782 = vunpack.c.l.b16 %v1101
      %v2783 = vunpack.c.h.b16 %v1101
      %v2784 = vunpack.c.l.b16 %v1102
      %v2785 = vunpack.c.h.b16 %v1102
      %v2786 = vunpack.c.l.b16 %v1103
      %v2787 = vunpack.c.h.b16 %v1103
      %v2788 = vunpack.c.l.b16 %v1104
      %v2789 = vunpack.c.h.b16 %v1104
      %v2790 = vunpack.c.l.b16 %v1105
      %v2791 = vunpack.c.h.b16 %v1105
      %v2792 = vunpack.c.l.b16 %v1106
      %v2793 = vunpack.c.h.b16 %v1106
      %v2794 = vunpack.c.l.b16 %v1107
      %v2795 = vunpack.c.h.b16 %v1107
      %v2796 = vunpack.c.l.b16 %v1108
      %v2797 = vunpack.c.h.b16 %v1108
      %v2798 = vunpack.c.l.b16 %v1109
      %v2799 = vunpack.c.h.b16 %v1109
      %v2800 = vunpack.c.l.b16 %v1110
      %v2801 = vunpack.c.h.b16 %v1110
      %v2802 = vunpack.c.l.b16 %v1111
      %v2803 = vunpack.c.h.b16 %v1111
      %v2804 = vunpack.c.l.b16 %v1112
      %v2805 = vunpack.c.h.b16 %v1112
      %v2806 = vunpack.c.l.b16 %v1113
      %v2807 = vunpack.c.h.b16 %v1113
      %v2808 = vunpack.c.l.b16 %v1114
      %v2809 = vunpack.c.h.b16 %v1114
      %v2810 = vunpack.c.l.b16 %v1115
      %v2811 = vunpack.c.h.b16 %v1115
      %v2812 = vunpack.c.l.b16 %v1116
      %v2813 = vunpack.c.h.b16 %v1116
      %v2814 = vunpack.c.l.b16 %v1117
      %v2815 = vunpack.c.h.b16 %v1117
      %v2816 = vunpack.c.l.b16 %v1118
      %v2817 = vunpack.c.h.b16 %v1118
      %v2818 = vunpack.c.l.b16 %v1119
      %v2819 = vunpack.c.h.b16 %v1119
      %v2820 = vunpack.c.l.b16 %v1120
      %v2821 = vunpack.c.h.b16 %v1120
      %v2822 = vunpack.c.l.b16 %v1121
      %v2823 = vunpack.c.h.b16 %v1121
      %v2824 = vunpack.c.l.b16 %v1122
      %v2825 = vunpack.c.h.b16 %v1122
      %v2826 = vunpack.c.l.b16 %v1123
      %v2827 = vunpack.c.h.b16 %v1123
      %v2828 = vunpack.c.l.b16 %v1124
      %v2829 = vunpack.c.h.b16 %v1124
      %v2830 = vunpack.c.l.b16 %v1125
      %v2831 = vunpack.c.h.b16 %v1125
      %v2832 = vunpack.c.l.b16 %v1126
      %v2833 = vunpack.c.h.b16 %v1126
      %v2834 = vunpack.c.l.b16 %v1127
      %v2835 = vunpack.c.h.b16 %v1127
      %v2836 = vunpack.c.l.b16 %v1128
      %v2837 = vunpack.c.h.b16 %v1128
      %v2838 = vunpack.c.l.b16 %v1129
      %v2839 = vunpack.c.h.b16 %v1129
      %v2840 = vunpack.c.l.b16 %v1130
      %v2841 = vunpack.c.h.b16 %v1130
      %v2842 = vunpack.c.l.b16 %v1131
      %v2843 = vunpack.c.h.b16 %v1131
      %v2844 = vunpack.c.l.b16 %v1132
      %v2845 = vunpack.c.h.b16 %v1132
      %v2846 = vunpack.c.l.b16 %v1133
      %v2847 = vunpack.c.h.b16 %v1133
      %v2848 = vunpack.c.l.b16 %v1134
      %v2849 = vunpack.c.h.b16 %v1134
      %v2850 = vunpack.c.l.b16 %v1135
      %v2851 = vunpack.c.h.b16 %v1135
      %v2852 = vunpack.c.l.b16 %v1136
      %v2853 = vunpack.c.h.b16 %v1136
      %v2854 = vunpack.c.l.b16 %v1137
      %v2855 = vunpack.c.h.b16 %v1137
      %v2856 = vunpack.c.l.b16 %v1138
      %v2857 = vunpack.c.h.b16 %v1138
      %v2858 = vunpack.c.l.b16 %v1139
      %v2859 = vunpack.c.h.b16 %v1139
      %v2860 = vunpack.c.l.b16 %v1140
      %v2861 = vunpack.c.h.b16 %v1140
      %v2862 = vunpack.c.l.b16 %v1141
      %v2863 = vunpack.c.h.b16 %v1141
      %v2864 = vunpack.c.l.b16 %v1142
      %v2865 = vunpack.c.h.b16 %v1142
      %v2866 = vunpack.c.l.b16 %v1143
      %v2867 = vunpack.c.h.b16 %v1143
      %v2868 = vunpack.c.l.b16 %v1144
      %v2869 = vunpack.c.h.b16 %v1144
      %v2870 = vunpack.c.l.b16 %v1145
      %v2871 = vunpack.c.h.b16 %v1145
      %v2872 = vunpack.c.l.b16 %v1146
      %v2873 = vunpack.c.h.b16 %v1146
      %v2874 = vunpack.c.l.b16 %v1147
      %v2875 = vunpack.c.h.b16 %v1147
      %v2876 = vunpack.c.l.b16 %v1148
      %v2877 = vunpack.c.h.b16 %v1148
      %v2878 = vunpack.c.l.b16 %v1149
      %v2879 = vunpack.c.h.b16 %v1149
      %v2880 = vunpack.c.l.b16 %v1150
      %v2881 = vunpack.c.h.b16 %v1150
      %v2882 = vunpack.c.l.b16 %v1151
      %v2883 = vunpack.c.h.b16 %v1151
      %v2884 = vunpack.c.l.b16 %v1152
      %v2885 = vunpack.c.h.b16 %v1152
      %v2886 = vunpack.c.l.b16 %v1153
      %v2887 = vunpack.c.h.b16 %v1153
      %v2888 = vunpack.c.l.b16 %v1154
      %v2889 = vunpack.c.h.b16 %v1154
      %v2890 = vunpack.c.l.b16 %v1155
      %v2891 = vunpack.c.h.b16 %v1155
      %v2892 = vunpack.c.l.b16 %v1156
      %v2893 = vunpack.c.h.b16 %v1156
      %v2894 = vunpack.c.l.b16 %v1157
      %v2895 = vunpack.c.h.b16 %v1157
      %v2896 = vunpack.c.l.b16 %v1158
      %v2897 = vunpack.c.h.b16 %v1158
      %v2898 = vunpack.c.l.b16 %v1159
      %v2899 = vunpack.c.h.b16 %v1159
      %v2900 = vunpack.c.l.b16 %v1160
      %v2901 = vunpack.c.h.b16 %v1160
      %v2902 = vunpack.c.l.b16 %v1161
      %v2903 = vunpack.c.h.b16 %v1161
      %v2904 = vunpack.c.l.b16 %v1162
      %v2905 = vunpack.c.h.b16 %v1162
      %v2906 = vunpack.c.l.b16 %v1163
      %v2907 = vunpack.c.h.b16 %v1163
      %v2908 = vunpack.c.l.b16 %v1164
      %v2909 = vunpack.c.h.b16 %v1164
      %v2910 = vunpack.c.l.b16 %v1165
      %v2911 = vunpack.c.h.b16 %v1165
      %v2912 = vunpack.c.l.b16 %v1166
      %v2913 = vunpack.c.h.b16 %v1166
      %v2914 = vunpack.c.l.b16 %v1167
      %v2915 = vunpack.c.h.b16 %v1167
      %v2916 = vunpack.c.l.b16 %v1168
      %v2917 = vunpack.c.h.b16 %v1168
      %v2918 = vunpack.c.l.b16 %v1169
      %v2919 = vunpack.c.h.b16 %v1169
      %v2920 = vunpack.c.l.b16 %v1170
      %v2921 = vunpack.c.h.b16 %v1170
      %v2922 = vunpack.c.l.b16 %v1171
      %v2923 = vunpack.c.h.b16 %v1171
      %v2924 = vunpack.c.l.b16 %v1172
      %v2925 = vunpack.c.h.b16 %v1172
      %v2926 = vunpack.c.l.b16 %v1173
      %v2927 = vunpack.c.h.b16 %v1173
      %v2928 = vunpack.c.l.b16 %v1174
      %v2929 = vunpack.c.h.b16 %v1174
      %v2930 = vunpack.c.l.b16 %v1175
      %v2931 = vunpack.c.h.b16 %v1175
      %v2932 = vunpack.c.l.b16 %v1176
      %v2933 = vunpack.c.h.b16 %v1176
      %v2934 = vunpack.c.l.b16 %v1177
      %v2935 = vunpack.c.h.b16 %v1177
      %v2936 = vunpack.c.l.b16 %v1178
      %v2937 = vunpack.c.h.b16 %v1178
      %v2938 = vunpack.c.l.b16 %v1179
      %v2939 = vunpack.c.h.b16 %v1179
      %v2940 = vunpack.c.l.b16 %v1180
      %v2941 = vunpack.c.h.b16 %v1180
      %v2942 = vunpack.c.l.b16 %v1181
      %v2943 = vunpack.c.h.b16 %v1181
      %v2944 = vunpack.c.l.b16 %v1182
      %v2945 = vunpack.c.h.b16 %v1182
      %v2946 = vunpack.c.l.b16 %v1183
      %v2947 = vunpack.c.h.b16 %v1183
      %v2948 = vunpack.c.l.b16 %v1184
      %v2949 = vunpack.c.h.b16 %v1184
      %v2950 = vunpack.c.l.b16 %v1185
      %v2951 = vunpack.c.h.b16 %v1185
      %v2952 = vunpack.c.l.b16 %v1186
      %v2953 = vunpack.c.h.b16 %v1186
      %v2954 = vunpack.c.l.b16 %v1187
      %v2955 = vunpack.c.h.b16 %v1187
      %v2956 = vunpack.c.l.b16 %v1188
      %v2957 = vunpack.c.h.b16 %v1188
      %v2958 = vunpack.c.l.b16 %v1189
      %v2959 = vunpack.c.h.b16 %v1189
      %v2960 = vunpack.c.l.b16 %v1190
      %v2961 = vunpack.c.h.b16 %v1190
      %v2962 = vunpack.c.l.b16 %v1191
      %v2963 = vunpack.c.h.b16 %v1191
      %v2964 = vunpack.c.l.b16 %v1192
      %v2965 = vunpack.c.h.b16 %v1192
      %v2966 = vunpack.c.l.b16 %v1193
      %v2967 = vunpack.c.h.b16 %v1193
      %v2968 = vunpack.c.l.b16 %v1194
      %v2969 = vunpack.c.h.b16 %v1194
      %v2970 = vunpack.c.l.b16 %v1195
      %v2971 = vunpack.c.h.b16 %v1195
      %v2972 = vunpack.c.l.b16 %v1196
      %v2973 = vunpack.c.h.b16 %v1196
      %v2974 = vunpack.c.l.b16 %v1197
      %v2975 = vunpack.c.h.b16 %v1197
      %v2976 = vunpack.c.l.b16 %v1198
      %v2977 = vunpack.c.h.b16 %v1198
      %v2978 = vunpack.c.l.b16 %v1199
      %v2979 = vunpack.c.h.b16 %v1199
      %v2980 = vunpack.c.l.b16 %v1200
      %v2981 = vunpack.c.h.b16 %v1200
      %v2982 = vunpack.c.l.b16 %v1201
      %v2983 = vunpack.c.h.b16 %v1201
      %v2984 = vunpack.c.l.b16 %v1202
      %v2985 = vunpack.c.h.b16 %v1202
      %v2986 = vunpack.c.l.b16 %v1203
      %v2987 = vunpack.c.h.b16 %v1203
      %v2988 = vunpack.c.l.b16 %v1204
      %v2989 = vunpack.c.h.b16 %v1204
      %v2990 = vunpack.c.l.b16 %v1205
      %v2991 = vunpack.c.h.b16 %v1205
      %v2992 = vunpack.c.l.b16 %v1206
      %v2993 = vunpack.c.h.b16 %v1206
      %v2994 = vunpack.c.l.b16 %v1207
      %v2995 = vunpack.c.h.b16 %v1207
      %v2996 = vunpack.c.l.b16 %v1208
      %v2997 = vunpack.c.h.b16 %v1208
      %v2998 = vunpack.c.l.b16 %v1209
      %v2999 = vunpack.c.h.b16 %v1209
      %v3000 = vunpack.c.l.b16 %v1210
      %v3001 = vunpack.c.h.b16 %v1210
      %v3002 = vunpack.c.l.b16 %v1211
      %v3003 = vunpack.c.h.b16 %v1211
      %v3004 = vunpack.c.l.b16 %v1212
      %v3005 = vunpack.c.h.b16 %v1212
      %v3006 = vunpack.c.l.b16 %v1213
      %v3007 = vunpack.c.h.b16 %v1213
      %v3008 = vunpack.c.l.b16 %v1214
      %v3009 = vunpack.c.h.b16 %v1214
      %v3010 = vunpack.c.l.b16 %v1215
      %v3011 = vunpack.c.h.b16 %v1215
      %v3012 = vunpack.c.l.b16 %v1216
      %v3013 = vunpack.c.h.b16 %v1216
      %v3014 = vunpack.c.l.b16 %v1217
      %v3015 = vunpack.c.h.b16 %v1217
      %v3016 = vunpack.c.l.b16 %v1218
      %v3017 = vunpack.c.h.b16 %v1218
      %v3018 = vunpack.c.l.b16 %v1219
      %v3019 = vunpack.c.h.b16 %v1219
      %v3020 = vunpack.c.l.b16 %v1220
      %v3021 = vunpack.c.h.b16 %v1220
      %v3022 = vunpack.c.l.b16 %v1221
      %v3023 = vunpack.c.h.b16 %v1221
      %v3024 = vunpack.c.l.b16 %v1222
      %v3025 = vunpack.c.h.b16 %v1222
      %v3026 = vunpack.c.l.b16 %v1223
      %v3027 = vunpack.c.h.b16 %v1223
      %v3028 = vunpack.c.l.b16 %v1224
      %v3029 = vunpack.c.h.b16 %v1224
      %v3030 = vunpack.c.l.b16 %v1225
      %v3031 = vunpack.c.h.b16 %v1225
      %v3032 = vunpack.c.l.b16 %v1226
      %v3033 = vunpack.c.h.b16 %v1226
      %v3034 = vunpack.c.l.b16 %v1227
      %v3035 = vunpack.c.h.b16 %v1227
      %v3036 = vunpack.c.l.b16 %v1228
      %v3037 = vunpack.c.h.b16 %v1228
      %v3038 = vunpack.c.l.b16 %v1229
      %v3039 = vunpack.c.h.b16 %v1229
      %v3040 = vunpack.c.l.b16 %v1230
      %v3041 = vunpack.c.h.b16 %v1230
      %v3042 = vunpack.c.l.b16 %v1231
      %v3043 = vunpack.c.h.b16 %v1231
      %v3044 = vunpack.c.l.b16 %v1232
      %v3045 = vunpack.c.h.b16 %v1232
      %v3046 = vunpack.c.l.b16 %v1233
      %v3047 = vunpack.c.h.b16 %v1233
      %v3048 = vunpack.c.l.b16 %v1234
      %v3049 = vunpack.c.h.b16 %v1234
      %v3050 = vunpack.c.l.b16 %v1235
      %v3051 = vunpack.c.h.b16 %v1235
      %v3052 = vunpack.c.l.b16 %v1236
      %v3053 = vunpack.c.h.b16 %v1236
      %v3054 = vunpack.c.l.b16 %v1237
      %v3055 = vunpack.c.h.b16 %v1237
      %v3056 = vunpack.c.l.b16 %v1238
      %v3057 = vunpack.c.h.b16 %v1238
      %v3058 = vunpack.c.l.b16 %v1239
      %v3059 = vunpack.c.h.b16 %v1239
      %v3060 = vunpack.c.l.b16 %v1240
      %v3061 = vunpack.c.h.b16 %v1240
      %v3062 = vunpack.c.l.b16 %v1241
      %v3063 = vunpack.c.h.b16 %v1241
      %v3064 = vunpack.c.l.b16 %v1242
      %v3065 = vunpack.c.h.b16 %v1242
      %v3066 = vunpack.c.l.b16 %v1243
      %v3067 = vunpack.c.h.b16 %v1243
      %v3068 = vunpack.c.l.b16 %v1244
      %v3069 = vunpack.c.h.b16 %v1244
      %v3070 = vunpack.c.l.b16 %v1245
      %v3071 = vunpack.c.h.b16 %v1245
      %v3072 = vunpack.c.l.b16 %v1246
      %v3073 = vunpack.c.h.b16 %v1246
      %v3074 = vunpack.c.l.b16 %v1247
      %v3075 = vunpack.c.h.b16 %v1247
      %v3076 = vunpack.c.l.b16 %v1248
      %v3077 = vunpack.c.h.b16 %v1248
      %v3078 = vunpack.c.l.b16 %v1249
      %v3079 = vunpack.c.h.b16 %v1249
      %v3080 = vunpack.c.l.b16 %v1250
      %v3081 = vunpack.c.h.b16 %v1250
      %v3082 = vunpack.c.l.b16 %v1251
      %v3083 = vunpack.c.h.b16 %v1251
      %v3084 = vunpack.c.l.b16 %v1252
      %v3085 = vunpack.c.h.b16 %v1252
      %v3086 = vunpack.c.l.b16 %v1253
      %v3087 = vunpack.c.h.b16 %v1253
      %v3088 = vunpack.c.l.b16 %v1254
      %v3089 = vunpack.c.h.b16 %v1254
      %v3090 = vunpack.c.l.b16 %v1255
      %v3091 = vunpack.c.h.b16 %v1255
      %v3092 = vunpack.c.l.b16 %v1256
      %v3093 = vunpack.c.h.b16 %v1256
      %v3094 = vunpack.c.l.b16 %v1257
      %v3095 = vunpack.c.h.b16 %v1257
      %v3096 = vunpack.c.l.b16 %v1258
      %v3097 = vunpack.c.h.b16 %v1258
      %v3098 = vunpack.c.l.b16 %v1259
      %v3099 = vunpack.c.h.b16 %v1259
      %v3100 = vunpack.c.l.b16 %v1260
      %v3101 = vunpack.c.h.b16 %v1260
      %v3102 = vunpack.c.l.b16 %v1261
      %v3103 = vunpack.c.h.b16 %v1261
      %v3104 = vunpack.c.l.b16 %v1262
      %v3105 = vunpack.c.h.b16 %v1262
      %v3106 = vunpack.c.l.b16 %v1263
      %v3107 = vunpack.c.h.b16 %v1263
      %v3108 = vunpack.c.l.b16 %v1264
      %v3109 = vunpack.c.h.b16 %v1264
      %v3110 = vunpack.c.l.b16 %v1265
      %v3111 = vunpack.c.h.b16 %v1265
      %v3112 = vunpack.c.l.b16 %v1266
      %v3113 = vunpack.c.h.b16 %v1266
      %v3114 = vunpack.c.l.b16 %v1267
      %v3115 = vunpack.c.h.b16 %v1267
      %v3116 = vunpack.c.l.b16 %v1268
      %v3117 = vunpack.c.h.b16 %v1268
      %v3118 = vunpack.c.l.b16 %v1269
      %v3119 = vunpack.c.h.b16 %v1269
      %v3120 = vunpack.c.l.b16 %v1270
      %v3121 = vunpack.c.h.b16 %v1270
      %v3122 = vunpack.c.l.b16 %v1271
      %v3123 = vunpack.c.h.b16 %v1271
      %v3124 = vunpack.c.l.b16 %v1272
      %v3125 = vunpack.c.h.b16 %v1272
      %v3126 = vunpack.c.l.b16 %v1273
      %v3127 = vunpack.c.h.b16 %v1273
      %v3128 = vunpack.c.l.b16 %v1274
      %v3129 = vunpack.c.h.b16 %v1274
      %v3130 = vunpack.c.l.b16 %v1275
      %v3131 = vunpack.c.h.b16 %v1275
      %v3132 = vunpack.c.l.b16 %v1276
      %v3133 = vunpack.c.h.b16 %v1276
      %v3134 = vunpack.c.l.b16 %v1277
      %v3135 = vunpack.c.h.b16 %v1277
      %v3136 = vunpack.c.l.b16 %v1278
      %v3137 = vunpack.c.h.b16 %v1278
      %v3138 = vunpack.c.l.b16 %v1279
      %v3139 = vunpack.c.h.b16 %v1279
      %v3140 = vunpack.c.l.b16 %v1280
      %v3141 = vunpack.c.h.b16 %v1280
      %v3142 = vunpack.c.l.b16 %v1281
      %v3143 = vunpack.c.h.b16 %v1281
      %v3144 = vunpack.c.l.b16 %v1282
      %v3145 = vunpack.c.h.b16 %v1282
      %v3146 = vunpack.c.l.b16 %v1283
      %v3147 = vunpack.c.h.b16 %v1283
      %v3148 = vunpack.c.l.b16 %v1284
      %v3149 = vunpack.c.h.b16 %v1284
      %v3150 = vunpack.c.l.b16 %v1285
      %v3151 = vunpack.c.h.b16 %v1285
      %v3152 = vunpack.c.l.b16 %v1286
      %v3153 = vunpack.c.h.b16 %v1286
      %v3154 = vunpack.c.l.b16 %v1287
      %v3155 = vunpack.c.h.b16 %v1287
      %v3156 = vunpack.c.l.b16 %v1288
      %v3157 = vunpack.c.h.b16 %v1288
      %v3158 = vunpack.c.l.b16 %v1289
      %v3159 = vunpack.c.h.b16 %v1289
      %v3160 = vunpack.c.l.b16 %v1290
      %v3161 = vunpack.c.h.b16 %v1290
      %v3162 = vunpack.c.l.b16 %v1291
      %v3163 = vunpack.c.h.b16 %v1291
      %v3164 = vunpack.c.l.b16 %v1292
      %v3165 = vunpack.c.h.b16 %v1292
      %v3166 = vunpack.c.l.b16 %v1293
      %v3167 = vunpack.c.h.b16 %v1293
      %v3168 = vunpack.c.l.b16 %v1294
      %v3169 = vunpack.c.h.b16 %v1294
      %v3170 = vunpack.c.l.b16 %v1295
      %v3171 = vunpack.c.h.b16 %v1295
      %v3172 = vunpack.c.l.b16 %v1296
      %v3173 = vunpack.c.h.b16 %v1296
      %v3174 = vunpack.c.l.b16 %v1297
      %v3175 = vunpack.c.h.b16 %v1297
      %v3176 = vunpack.c.l.b16 %v1298
      %v3177 = vunpack.c.h.b16 %v1298
      %v3178 = vunpack.c.l.b16 %v1299
      %v3179 = vunpack.c.h.b16 %v1299
      %v3180 = vunpack.c.l.b16 %v1300
      %v3181 = vunpack.c.h.b16 %v1300
      %v3182 = vunpack.c.l.b16 %v1301
      %v3183 = vunpack.c.h.b16 %v1301
      %v3184 = vunpack.c.l.b16 %v1302
      %v3185 = vunpack.c.h.b16 %v1302
      %v3186 = vunpack.c.l.b16 %v1303
      %v3187 = vunpack.c.h.b16 %v1303
      %v3188 = vunpack.c.l.b16 %v1304
      %v3189 = vunpack.c.h.b16 %v1304
      %v3190 = vunpack.c.l.b16 %v1305
      %v3191 = vunpack.c.h.b16 %v1305
      %v3192 = vunpack.c.l.b16 %v1306
      %v3193 = vunpack.c.h.b16 %v1306
      %v3194 = vunpack.c.l.b16 %v1307
      %v3195 = vunpack.c.h.b16 %v1307
      %v3196 = vunpack.c.l.b16 %v1308
      %v3197 = vunpack.c.h.b16 %v1308
      %v3198 = vunpack.c.l.b16 %v1309
      %v3199 = vunpack.c.h.b16 %v1309
      %v3200 = vunpack.c.l.b16 %v1310
      %v3201 = vunpack.c.h.b16 %v1310
      %v3202 = vunpack.c.l.b16 %v1311
      %v3203 = vunpack.c.h.b16 %v1311
      %v3204 = vunpack.c.l.b16 %v1312
      %v3205 = vunpack.c.h.b16 %v1312
      %v3206 = vunpack.c.l.b16 %v1313
      %v3207 = vunpack.c.h.b16 %v1313
      %v3208 = vunpack.c.l.b16 %v1314
      %v3209 = vunpack.c.h.b16 %v1314
      %v3210 = vunpack.c.l.b16 %v1315
      %v3211 = vunpack.c.h.b16 %v1315
      %v3212 = vunpack.c.l.b16 %v1316
      %v3213 = vunpack.c.h.b16 %v1316
      %v3214 = vunpack.c.l.b16 %v1317
      %v3215 = vunpack.c.h.b16 %v1317
      %v3216 = vunpack.c.l.b16 %v1318
      %v3217 = vunpack.c.h.b16 %v1318
      %v3218 = vunpack.c.l.b16 %v1319
      %v3219 = vunpack.c.h.b16 %v1319
      %v3220 = vunpack.c.l.b16 %v1320
      %v3221 = vunpack.c.h.b16 %v1320
      %v3222 = vunpack.c.l.b16 %v1321
      %v3223 = vunpack.c.h.b16 %v1321
      %v3224 = vunpack.c.l.b16 %v1322
      %v3225 = vunpack.c.h.b16 %v1322
      %v3226 = vunpack.c.l.b16 %v1323
      %v3227 = vunpack.c.h.b16 %v1323
      %v3228 = vunpack.c.l.b16 %v1324
      %v3229 = vunpack.c.h.b16 %v1324
      %v3230 = vunpack.c.l.b16 %v1325
      %v3231 = vunpack.c.h.b16 %v1325
      %v3232 = vunpack.c.l.b16 %v1326
      %v3233 = vunpack.c.h.b16 %v1326
      %v3234 = vunpack.c.l.b16 %v1327
      %v3235 = vunpack.c.h.b16 %v1327
      %v3236 = vunpack.c.l.b16 %v1328
      %v3237 = vunpack.c.h.b16 %v1328
      %v3238 = vunpack.c.l.b16 %v1329
      %v3239 = vunpack.c.h.b16 %v1329
      %v3240 = vunpack.c.l.b16 %v1330
      %v3241 = vunpack.c.h.b16 %v1330
      %v3242 = vunpack.c.l.b16 %v1331
      %v3243 = vunpack.c.h.b16 %v1331
      %v3244 = vunpack.c.l.b16 %v1332
      %v3245 = vunpack.c.h.b16 %v1332
      %v3246 = vunpack.c.l.b16 %v1333
      %v3247 = vunpack.c.h.b16 %v1333
      %v3248 = vunpack.c.l.b16 %v1334
      %v3249 = vunpack.c.h.b16 %v1334
      %v3250 = vunpack.c.l.b16 %v1335
      %v3251 = vunpack.c.h.b16 %v1335
      %v3252 = vunpack.c.l.b16 %v1336
      %v3253 = vunpack.c.h.b16 %v1336
      %v3254 = vunpack.c.l.b16 %v1337
      %v3255 = vunpack.c.h.b16 %v1337
      %v3256 = vunpack.c.l.b16 %v1338
      %v3257 = vunpack.c.h.b16 %v1338
      %v3258 = vunpack.c.l.b16 %v1339
      %v3259 = vunpack.c.h.b16 %v1339
      %v3260 = vunpack.c.l.b16 %v1340
      %v3261 = vunpack.c.h.b16 %v1340
      %v3262 = vunpack.c.l.b16 %v1341
      %v3263 = vunpack.c.h.b16 %v1341
      %v3264 = vunpack.c.l.b16 %v1342
      %v3265 = vunpack.c.h.b16 %v1342
      %v3266 = vunpack.c.l.b16 %v1343
      %v3267 = vunpack.c.h.b16 %v1343
      %v3268 = vunpack.c.l.b16 %v1344
      %v3269 = vunpack.c.h.b16 %v1344
      %v3270 = vunpack.c.l.b16 %v1345
      %v3271 = vunpack.c.h.b16 %v1345
      %v3272 = vunpack.c.l.b16 %v1346
      %v3273 = vunpack.c.h.b16 %v1346
      %v3274 = vunpack.c.l.b16 %v1347
      %v3275 = vunpack.c.h.b16 %v1347
      %v3276 = vunpack.c.l.b16 %v1348
      %v3277 = vunpack.c.h.b16 %v1348
      %v3278 = vunpack.c.l.b16 %v1349
      %v3279 = vunpack.c.h.b16 %v1349
      %v3280 = vunpack.c.l.b16 %v1350
      %v3281 = vunpack.c.h.b16 %v1350
      %v3282 = vunpack.c.l.b16 %v1351
      %v3283 = vunpack.c.h.b16 %v1351
      %v3284 = vunpack.c.l.b16 %v1352
      %v3285 = vunpack.c.h.b16 %v1352
      %v3286 = vunpack.c.l.b16 %v1353
      %v3287 = vunpack.c.h.b16 %v1353
      %v3288 = vunpack.c.l.b16 %v1354
      %v3289 = vunpack.c.h.b16 %v1354
      %v3290 = vunpack.c.l.b16 %v1355
      %v3291 = vunpack.c.h.b16 %v1355
      %v3292 = vunpack.c.l.b16 %v1356
      %v3293 = vunpack.c.h.b16 %v1356
      %v3294 = vunpack.c.l.b16 %v1357
      %v3295 = vunpack.c.h.b16 %v1357
      %v3296 = vunpack.c.l.b16 %v1358
      %v3297 = vunpack.c.h.b16 %v1358
      %v3298 = vunpack.c.l.b16 %v1359
      %v3299 = vunpack.c.h.b16 %v1359
      %v3300 = vunpack.c.l.b16 %v1360
      %v3301 = vunpack.c.h.b16 %v1360
      %v3302 = vunpack.c.l.b16 %v1361
      %v3303 = vunpack.c.h.b16 %v1361
      %v3304 = vunpack.c.l.b16 %v1362
      %v3305 = vunpack.c.h.b16 %v1362
      %v3306 = vunpack.c.l.b16 %v1363
      %v3307 = vunpack.c.h.b16 %v1363
      %v3308 = vunpack.c.l.b16 %v1364
      %v3309 = vunpack.c.h.b16 %v1364
      %v3310 = vunpack.c.l.b16 %v1365
      %v3311 = vunpack.c.h.b16 %v1365
      %v3312 = vunpack.c.l.b16 %v1366
      %v3313 = vunpack.c.h.b16 %v1366
      %v3314 = vunpack.c.l.b16 %v1367
      %v3315 = vunpack.c.h.b16 %v1367
      %v3316 = vunpack.c.l.b16 %v1368
      %v3317 = vunpack.c.h.b16 %v1368
      %v3318 = vunpack.c.l.b16 %v1369
      %v3319 = vunpack.c.h.b16 %v1369
      %v3320 = vunpack.c.l.b16 %v1370
      %v3321 = vunpack.c.h.b16 %v1370
      %v3322 = vunpack.c.l.b16 %v1371
      %v3323 = vunpack.c.h.b16 %v1371
      %v3324 = vunpack.c.l.b16 %v1372
      %v3325 = vunpack.c.h.b16 %v1372
      %v3326 = vunpack.c.l.b16 %v1373
      %v3327 = vunpack.c.h.b16 %v1373
      %v3328 = vunpack.c.l.b16 %v1374
      %v3329 = vunpack.c.h.b16 %v1374
      %v3330 = vunpack.c.l.b16 %v1375
      %v3331 = vunpack.c.h.b16 %v1375
      %v3332 = vunpack.c.l.b16 %v1376
      %v3333 = vunpack.c.h.b16 %v1376
      %v3334 = vunpack.c.l.b16 %v1377
      %v3335 = vunpack.c.h.b16 %v1377
      %v3336 = vunpack.c.l.b16 %v1378
      %v3337 = vunpack.c.h.b16 %v1378
      %v3338 = vunpack.c.l.b16 %v1379
      %v3339 = vunpack.c.h.b16 %v1379
      %v3340 = vunpack.c.l.b16 %v1380
      %v3341 = vunpack.c.h.b16 %v1380
      %v3342 = vunpack.c.l.b16 %v1381
      %v3343 = vunpack.c.h.b16 %v1381
      %v3344 = vunpack.c.l.b16 %v1382
      %v3345 = vunpack.c.h.b16 %v1382
      %v3346 = vunpack.c.l.b16 %v1383
      %v3347 = vunpack.c.h.b16 %v1383
      %v3348 = vunpack.c.l.b16 %v1384
      %v3349 = vunpack.c.h.b16 %v1384
      %v3350 = vunpack.c.l.b16 %v1385
      %v3351 = vunpack.c.h.b16 %v1385
      %v3352 = vunpack.c.l.b16 %v1386
      %v3353 = vunpack.c.h.b16 %v1386
      %v3354 = vunpack.c.l.b16 %v1387
      %v3355 = vunpack.c.h.b16 %v1387
      %v3356 = vunpack.c.l.b16 %v1388
      %v3357 = vunpack.c.h.b16 %v1388
      %v3358 = vunpack.c.l.b16 %v1389
      %v3359 = vunpack.c.h.b16 %v1389
      %v3360 = vunpack.c.l.b16 %v1390
      %v3361 = vunpack.c.h.b16 %v1390
      %v3362 = vunpack.c.l.b16 %v1391
      %v3363 = vunpack.c.h.b16 %v1391
      %v3364 = vunpack.c.l.b16 %v1392
      %v3365 = vunpack.c.h.b16 %v1392
      %v3366 = vunpack.c.l.b16 %v1393
      %v3367 = vunpack.c.h.b16 %v1393
      %v3368 = vunpack.c.l.b16 %v1394
      %v3369 = vunpack.c.h.b16 %v1394
      %v3370 = vunpack.c.l.b16 %v1395
      %v3371 = vunpack.c.h.b16 %v1395
      %v3372 = vunpack.c.l.b16 %v1396
      %v3373 = vunpack.c.h.b16 %v1396
      %v3374 = vunpack.c.l.b16 %v1397
      %v3375 = vunpack.c.h.b16 %v1397
      %v3376 = vunpack.c.l.b16 %v1398
      %v3377 = vunpack.c.h.b16 %v1398
      %v3378 = vunpack.c.l.b16 %v1399
      %v3379 = vunpack.c.h.b16 %v1399
      %v3380 = vunpack.c.l.b16 %v1400
      %v3381 = vunpack.c.h.b16 %v1400
      %v3382 = vunpack.c.l.b16 %v1401
      %v3383 = vunpack.c.h.b16 %v1401
      %v3384 = vunpack.c.l.b16 %v1402
      %v3385 = vunpack.c.h.b16 %v1402
      %v3386 = vunpack.c.l.b16 %v1403
      %v3387 = vunpack.c.h.b16 %v1403
      %v3388 = vunpack.c.l.b16 %v1404
      %v3389 = vunpack.c.h.b16 %v1404
      %v3390 = vunpack.c.l.b16 %v1405
      %v3391 = vunpack.c.h.b16 %v1405
      %v3392 = vunpack.c.l.b16 %v1406
      %v3393 = vunpack.c.h.b16 %v1406
      %v3394 = vunpack.c.l.b16 %v1407
      %v3395 = vunpack.c.h.b16 %v1407
      %v3396 = vunpack.c.l.b16 %v1408
      %v3397 = vunpack.c.h.b16 %v1408
      %v3398 = vunpack.c.l.b16 %v1409
      %v3399 = vunpack.c.h.b16 %v1409
      %v3400 = vunpack.c.l.b16 %v1410
      %v3401 = vunpack.c.h.b16 %v1410
      %v3402 = vunpack.c.l.b16 %v1411
      %v3403 = vunpack.c.h.b16 %v1411
      %v3404 = vunpack.c.l.b16 %v1412
      %v3405 = vunpack.c.h.b16 %v1412
      %v3406 = vunpack.c.l.b16 %v1413
      %v3407 = vunpack.c.h.b16 %v1413
      %v3408 = vunpack.c.l.b16 %v1414
      %v3409 = vunpack.c.h.b16 %v1414
      %v3410 = vunpack.c.l.b16 %v1415
      %v3411 = vunpack.c.h.b16 %v1415
      %v3412 = vunpack.c.l.b16 %v1416
      %v3413 = vunpack.c.h.b16 %v1416
      %v3414 = vunpack.c.l.b16 %v1417
      %v3415 = vunpack.c.h.b16 %v1417
      %v3416 = vunpack.c.l.b16 %v1418
      %v3417 = vunpack.c.h.b16 %v1418
      %v3418 = vunpack.c.l.b16 %v1419
      %v3419 = vunpack.c.h.b16 %v1419
      %v3420 = vunpack.c.l.b16 %v1420
      %v3421 = vunpack.c.h.b16 %v1420
      %v3422 = vunpack.c.l.b16 %v1421
      %v3423 = vunpack.c.h.b16 %v1421
      %v3424 = vunpack.c.l.b16 %v1422
      %v3425 = vunpack.c.h.b16 %v1422
      %v3426 = vunpack.c.l.b16 %v1423
      %v3427 = vunpack.c.h.b16 %v1423
      %v3428 = vunpack.c.l.b16 %v1424
      %v3429 = vunpack.c.h.b16 %v1424
      %v3430 = vunpack.c.l.b16 %v1425
      %v3431 = vunpack.c.h.b16 %v1425
      %v3432 = vunpack.c.l.b16 %v1426
      %v3433 = vunpack.c.h.b16 %v1426
      %v3434 = vunpack.c.l.b16 %v1427
      %v3435 = vunpack.c.h.b16 %v1427
      %v3436 = vunpack.c.l.b16 %v1428
      %v3437 = vunpack.c.h.b16 %v1428
      %v3438 = vunpack.c.l.b16 %v1429
      %v3439 = vunpack.c.h.b16 %v1429
      %v3440 = vunpack.c.l.b16 %v1430
      %v3441 = vunpack.c.h.b16 %v1430
      %v3442 = vunpack.c.l.b16 %v1431
      %v3443 = vunpack.c.h.b16 %v1431
      %v3444 = vunpack.c.l.b16 %v1432
      %v3445 = vunpack.c.h.b16 %v1432
      %v3446 = vunpack.c.l.b16 %v1433
      %v3447 = vunpack.c.h.b16 %v1433
      %v3448 = vunpack.c.l.b16 %v1434
      %v3449 = vunpack.c.h.b16 %v1434
      %v3450 = vunpack.c.l.b16 %v1435
      %v3451 = vunpack.c.h.b16 %v1435
      %v3452 = vunpack.c.l.b16 %v1436
      %v3453 = vunpack.c.h.b16 %v1436
      %v3454 = vunpack.c.l.b16 %v1437
      %v3455 = vunpack.c.h.b16 %v1437
      %v3456 = vunpack.c.l.b16 %v1438
      %v3457 = vunpack.c.h.b16 %v1438
      %v3458 = vunpack.c.l.b16 %v1439
      %v3459 = vunpack.c.h.b16 %v1439
      %v3460 = vunpack.c.l.b16 %v1440
      %v3461 = vunpack.c.h.b16 %v1440
      %v3462 = vunpack.c.l.b16 %v1441
      %v3463 = vunpack.c.h.b16 %v1441
      %v3464 = vunpack.c.l.b16 %v1442
      %v3465 = vunpack.c.h.b16 %v1442
      %v3466 = vunpack.c.l.b16 %v1443
      %v3467 = vunpack.c.h.b16 %v1443
      %v3468 = vunpack.c.l.b16 %v1444
      %v3469 = vunpack.c.h.b16 %v1444
      %v3470 = vunpack.c.l.b16 %v1445
      %v3471 = vunpack.c.h.b16 %v1445
      %v3472 = vunpack.c.l.b16 %v1446
      %v3473 = vunpack.c.h.b16 %v1446
      %v3474 = vunpack.c.l.b16 %v1447
      %v3475 = vunpack.c.h.b16 %v1447
      %v3476 = vunpack.c.l.b16 %v1448
      %v3477 = vunpack.c.h.b16 %v1448
      %v3478 = vunpack.c.l.b16 %v1449
      %v3479 = vunpack.c.h.b16 %v1449
      %v3480 = vunpack.c.l.b16 %v1450
      %v3481 = vunpack.c.h.b16 %v1450
      %v3482 = vunpack.c.l.b16 %v1451
      %v3483 = vunpack.c.h.b16 %v1451
      %v3484 = vunpack.c.l.b16 %v1452
      %v3485 = vunpack.c.h.b16 %v1452
      %v3486 = vunpack.c.l.b16 %v1453
      %v3487 = vunpack.c.h.b16 %v1453
      %v3488 = vunpack.c.l.b16 %v1454
      %v3489 = vunpack.c.h.b16 %v1454
      %v3490 = vunpack.c.l.b16 %v1455
      %v3491 = vunpack.c.h.b16 %v1455
      %v3492 = vunpack.c.l.b16 %v1456
      %v3493 = vunpack.c.h.b16 %v1456
      %v3494 = vunpack.c.l.b16 %v1457
      %v3495 = vunpack.c.h.b16 %v1457
      %v3496 = vunpack.c.l.b16 %v1458
      %v3497 = vunpack.c.h.b16 %v1458
      %v3498 = vunpack.c.l.b16 %v1459
      %v3499 = vunpack.c.h.b16 %v1459
      %v3500 = vunpack.c.l.b16 %v1460
      %v3501 = vunpack.c.h.b16 %v1460
      %v3502 = vunpack.c.l.b16 %v1461
      %v3503 = vunpack.c.h.b16 %v1461
      %v3504 = vunpack.c.l.b16 %v1462
      %v3505 = vunpack.c.h.b16 %v1462
      %v3506 = vunpack.c.l.b16 %v1463
      %v3507 = vunpack.c.h.b16 %v1463
      %v3508 = vunpack.c.l.b16 %v1464
      %v3509 = vunpack.c.h.b16 %v1464
      %v3510 = vunpack.c.l.b16 %v1465
      %v3511 = vunpack.c.h.b16 %v1465
      %v3512 = vunpack.c.l.b16 %v1466
      %v3513 = vunpack.c.h.b16 %v1466
      %v3514 = vunpack.c.l.b16 %v1467
      %v3515 = vunpack.c.h.b16 %v1467
      %v3516 = vunpack.c.l.b16 %v1468
      %v3517 = vunpack.c.h.b16 %v1468
      %v3518 = vunpack.c.l.b16 %v1469
      %v3519 = vunpack.c.h.b16 %v1469
      %v3520 = vunpack.c.l.b16 %v1470
      %v3521 = vunpack.c.h.b16 %v1470
      %v3522 = vunpack.c.l.b16 %v1471
      %v3523 = vunpack.c.h.b16 %v1471
      %v3524 = vunpack.c.l.b16 %v1472
      %v3525 = vunpack.c.h.b16 %v1472
      %v3526 = vunpack.c.l.b16 %v1473
      %v3527 = vunpack.c.h.b16 %v1473
      %v3528 = vunpack.c.l.b16 %v1474
      %v3529 = vunpack.c.h.b16 %v1474
      %v3530 = vunpack.c.l.b16 %v1475
      %v3531 = vunpack.c.h.b16 %v1475
      %v3532 = vunpack.c.l.b16 %v1476
      %v3533 = vunpack.c.h.b16 %v1476
      %v3534 = vunpack.c.l.b16 %v1477
      %v3535 = vunpack.c.h.b16 %v1477
      %v3536 = vunpack.c.l.b16 %v1478
      %v3537 = vunpack.c.h.b16 %v1478
      %v3538 = vunpack.c.l.b16 %v1479
      %v3539 = vunpack.c.h.b16 %v1479
      %v3540 = vunpack.c.l.b16 %v1480
      %v3541 = vunpack.c.h.b16 %v1480
      %v3542 = vunpack.c.l.b16 %v1481
      %v3543 = vunpack.c.h.b16 %v1481
      %v3544 = vunpack.c.l.b16 %v1482
      %v3545 = vunpack.c.h.b16 %v1482
      %v3546 = vunpack.c.l.b16 %v1483
      %v3547 = vunpack.c.h.b16 %v1483
      %v3548 = vunpack.c.l.b16 %v1484
      %v3549 = vunpack.c.h.b16 %v1484
      %v3550 = vunpack.c.l.b16 %v1485
      %v3551 = vunpack.c.h.b16 %v1485
      %v3552 = vunpack.c.l.b16 %v1486
      %v3553 = vunpack.c.h.b16 %v1486
      %v3554 = vunpack.c.l.b16 %v1487
      %v3555 = vunpack.c.h.b16 %v1487
      %v3556 = vunpack.c.l.b16 %v1488
      %v3557 = vunpack.c.h.b16 %v1488
      %v3558 = vunpack.c.l.b16 %v1489
      %v3559 = vunpack.c.h.b16 %v1489
      %v3560 = vunpack.c.l.b16 %v1490
      %v3561 = vunpack.c.h.b16 %v1490
      %v3562 = vunpack.c.l.b16 %v1491
      %v3563 = vunpack.c.h.b16 %v1491
      %v3564 = vunpack.c.l.b16 %v1492
      %v3565 = vunpack.c.h.b16 %v1492
      %v3566 = vunpack.c.l.b16 %v1493
      %v3567 = vunpack.c.h.b16 %v1493
      %v3568 = vunpack.c.l.b16 %v1494
      %v3569 = vunpack.c.h.b16 %v1494
      %v3570 = vunpack.c.l.b16 %v1495
      %v3571 = vunpack.c.h.b16 %v1495
      %v3572 = vunpack.c.l.b16 %v1496
      %v3573 = vunpack.c.h.b16 %v1496
      %v3574 = vunpack.c.l.b16 %v1497
      %v3575 = vunpack.c.h.b16 %v1497
      %v3576 = vunpack.c.l.b16 %v1498
      %v3577 = vunpack.c.h.b16 %v1498
      %v3578 = vunpack.c.l.b16 %v1499
      %v3579 = vunpack.c.h.b16 %v1499
      %v3580 = vpack.c.b16 %v2212, %v2208
      %v3581 = vpack.c.b16 %v2213, %v2209
      %v3582 = vpack.c.b16 %v2214, %v2210
      %v3583 = vpack.c.b16 %v2215, %v2211
      %v3584 = vpack.c.b16 %v2220, %v2216
      %v3585 = vpack.c.b16 %v2221, %v2217
      %v3586 = vpack.c.b16 %v2222, %v2218
      %v3587 = vpack.c.b16 %v2223, %v2219
      %v3588 = vpack.c.b16 %v2228, %v2224
      %v3589 = vpack.c.b16 %v2229, %v2225
      %v3590 = vpack.c.b16 %v2230, %v2226
      %v3591 = vpack.c.b16 %v2231, %v2227
      %v3592 = vpack.c.b16 %v2236, %v2232
      %v3593 = vpack.c.b16 %v2237, %v2233
      %v3594 = vpack.c.b16 %v2238, %v2234
      %v3595 = vpack.c.b16 %v2239, %v2235
      %v3596 = vpack.c.b16 %v2244, %v2240
      %v3597 = vpack.c.b16 %v2245, %v2241
      %v3598 = vpack.c.b16 %v2246, %v2242
      %v3599 = vpack.c.b16 %v2247, %v2243
      %v3600 = vpack.c.b16 %v2252, %v2248
      %v3601 = vpack.c.b16 %v2253, %v2249
      %v3602 = vpack.c.b16 %v2254, %v2250
      %v3603 = vpack.c.b16 %v2255, %v2251
      %v3604 = vpack.c.b16 %v2260, %v2256
      %v3605 = vpack.c.b16 %v2261, %v2257
      %v3606 = vpack.c.b16 %v2262, %v2258
      %v3607 = vpack.c.b16 %v2263, %v2259
      %v3608 = vpack.c.b16 %v2268, %v2264
      %v3609 = vpack.c.b16 %v2269, %v2265
      %v3610 = vpack.c.b16 %v2270, %v2266
      %v3611 = vpack.c.b16 %v2271, %v2267
      %v3612 = vpack.c.b16 %v2276, %v2272
      %v3613 = vpack.c.b16 %v2277, %v2273
      %v3614 = vpack.c.b16 %v2278, %v2274
      %v3615 = vpack.c.b16 %v2279, %v2275
      %v3616 = vpack.c.b16 %v2284, %v2280
      %v3617 = vpack.c.b16 %v2285, %v2281
      %v3618 = vpack.c.b16 %v2286, %v2282
      %v3619 = vpack.c.b16 %v2287, %v2283
      %v3620 = vpack.c.b16 %v2292, %v2288
      %v3621 = vpack.c.b16 %v2293, %v2289
      %v3622 = vpack.c.b16 %v2294, %v2290
      %v3623 = vpack.c.b16 %v2295, %v2291
      %v3624 = vpack.c.b16 %v2300, %v2296
      %v3625 = vpack.c.b16 %v2301, %v2297
      %v3626 = vpack.c.b16 %v2302, %v2298
      %v3627 = vpack.c.b16 %v2303, %v2299
      %v3628 = vpack.c.b16 %v2308, %v2304
      %v3629 = vpack.c.b16 %v2309, %v2305
      %v3630 = vpack.c.b16 %v2310, %v2306
      %v3631 = vpack.c.b16 %v2311, %v2307
      %v3632 = vpack.c.b16 %v2316, %v2312
      %v3633 = vpack.c.b16 %v2317, %v2313
      %v3634 = vpack.c.b16 %v2318, %v2314
      %v3635 = vpack.c.b16 %v2319, %v2315
      %v3636 = vpack.c.b16 %v2324, %v2320
      %v3637 = vpack.c.b16 %v2325, %v2321
      %v3638 = vpack.c.b16 %v2326, %v2322
      %v3639 = vpack.c.b16 %v2327, %v2323
      %v3640 = vpack.c.b16 %v2332, %v2328
      %v3641 = vpack.c.b16 %v2333, %v2329
      %v3642 = vpack.c.b16 %v2334, %v2330
      %v3643 = vpack.c.b16 %v2335, %v2331
      %v3644 = vpack.c.b16 %v2340, %v2336
      %v3645 = vpack.c.b16 %v2341, %v2337
      %v3646 = vpack.c.b16 %v2342, %v2338
      %v3647 = vpack.c.b16 %v2343, %v2339
      %v3648 = vpack.c.b16 %v2348, %v2344
      %v3649 = vpack.c.b16 %v2349, %v2345
      %v3650 = vpack.c.b16 %v2350, %v2346
      %v3651 = vpack.c.b16 %v2351, %v2347
      %v3652 = vpack.c.b16 %v2356, %v2352
      %v3653 = vpack.c.b16 %v2357, %v2353
      %v3654 = vpack.c.b16 %v2358, %v2354
      %v3655 = vpack.c.b16 %v2359, %v2355
      %v3656 = vpack.c.b16 %v2364, %v2360
      %v3657 = vpack.c.b16 %v2365, %v2361
      %v3658 = vpack.c.b16 %v2366, %v2362
      %v3659 = vpack.c.b16 %v2367, %v2363
      %v3660 = vpack.c.b16 %v2372, %v2368
      %v3661 = vpack.c.b16 %v2373, %v2369
      %v3662 = vpack.c.b16 %v2374, %v2370
      %v3663 = vpack.c.b16 %v2375, %v2371
      %v3664 = vpack.c.b16 %v2380, %v2376
      %v3665 = vpack.c.b16 %v2381, %v2377
      %v3666 = vpack.c.b16 %v2382, %v2378
      %v3667 = vpack.c.b16 %v2383, %v2379
      %v3668 = vpack.c.b16 %v2388, %v2384
      %v3669 = vpack.c.b16 %v2389, %v2385
      %v3670 = vpack.c.b16 %v2390, %v2386
      %v3671 = vpack.c.b16 %v2391, %v2387
      %v3672 = vpack.c.b16 %v2396, %v2392
      %v3673 = vpack.c.b16 %v2397, %v2393
      %v3674 = vpack.c.b16 %v2398, %v2394
      %v3675 = vpack.c.b16 %v2399, %v2395
      %v3676 = vpack.c.b16 %v2404, %v2400
      %v3677 = vpack.c.b16 %v2405, %v2401
      %v3678 = vpack.c.b16 %v2406, %v2402
      %v3679 = vpack.c.b16 %v2407, %v2403
      %v3680 = vpack.c.b16 %v2412, %v2408
      %v3681 = vpack.c.b16 %v2413, %v2409
      %v3682 = vpack.c.b16 %v2414, %v2410
      %v3683 = vpack.c.b16 %v2415, %v2411
      %v3684 = vpack.c.b16 %v2420, %v2416
      %v3685 = vpack.c.b16 %v2421, %v2417
      %v3686 = vpack.c.b16 %v2422, %v2418
      %v3687 = vpack.c.b16 %v2423, %v2419
      %v3688 = vpack.c.b16 %v2428, %v2424
      %v3689 = vpack.c.b16 %v2429, %v2425
      %v3690 = vpack.c.b16 %v2430, %v2426
      %v3691 = vpack.c.b16 %v2431, %v2427
      %v3692 = vpack.c.b16 %v2436, %v2432
      %v3693 = vpack.c.b16 %v2437, %v2433
      %v3694 = vpack.c.b16 %v2438, %v2434
      %v3695 = vpack.c.b16 %v2439, %v2435
      %v3696 = vpack.c.b16 %v2444, %v2440
      %v3697 = vpack.c.b16 %v2445, %v2441
      %v3698 = vpack.c.b16 %v2446, %v2442
      %v3699 = vpack.c.b16 %v2447, %v2443
      %v3700 = vpack.c.b16 %v2452, %v2448
      %v3701 = vpack.c.b16 %v2453, %v2449
      %v3702 = vpack.c.b16 %v2454, %v2450
      %v3703 = vpack.c.b16 %v2455, %v2451
      %v3704 = vpack.c.b16 %v2460, %v2456
      %v3705 = vpack.c.b16 %v2461, %v2457
      %v3706 = vpack.c.b16 %v2462, %v2458
      %v3707 = vpack.c.b16 %v2463, %v2459
      %v3708 = vpack.c.b16 %v2468, %v2464
      %v3709 = vpack.c.b16 %v2469, %v2465
      %v3710 = vpack.c.b16 %v2470, %v2466
      %v3711 = vpack.c.b16 %v2471, %v2467
      %v3712 = vpack.c.b16 %v2476, %v2472
      %v3713 = vpack.c.b16 %v2477, %v2473
      %v3714 = vpack.c.b16 %v2478, %v2474
      %v3715 = vpack.c.b16 %v2479, %v2475
      %v3716 = vpack.c.b16 %v2484, %v2480
      %v3717 = vpack.c.b16 %v2485, %v2481
      %v3718 = vpack.c.b16 %v2486, %v2482
      %v3719 = vpack.c.b16 %v2487, %v2483
      %v3720 = vpack.c.b16 %v2492, %v2488
      %v3721 = vpack.c.b16 %v2493, %v2489
      %v3722 = vpack.c.b16 %v2494, %v2490
      %v3723 = vpack.c.b16 %v2495, %v2491
      %v3724 = vpack.c.b16 %v2500, %v2496
      %v3725 = vpack.c.b16 %v2501, %v2497
      %v3726 = vpack.c.b16 %v2502, %v2498
      %v3727 = vpack.c.b16 %v2503, %v2499
      %v3728 = vpack.c.b16 %v2508, %v2504
      %v3729 = vpack.c.b16 %v2509, %v2505
      %v3730 = vpack.c.b16 %v2510, %v2506
      %v3731 = vpack.c.b16 %v2511, %v2507
      %v3732 = vpack.c.b16 %v2516, %v2512
      %v3733 = vpack.c.b16 %v2517, %v2513
      %v3734 = vpack.c.b16 %v2518, %v2514
      %v3735 = vpack.c.b16 %v2519, %v2515
      %v3736 = vpack.c.b16 %v2524, %v2520
      %v3737 = vpack.c.b16 %v2525, %v2521
      %v3738 = vpack.c.b16 %v2526, %v2522
      %v3739 = vpack.c.b16 %v2527, %v2523
      %v3740 = vpack.c.b16 %v2532, %v2528
      %v3741 = vpack.c.b16 %v2533, %v2529
      %v3742 = vpack.c.b16 %v2534, %v2530
      %v3743 = vpack.c.b16 %v2535, %v2531
      %v3744 = vpack.c.b16 %v2540, %v2536
      %v3745 = vpack.c.b16 %v2541, %v2537
      %v3746 = vpack.c.b16 %v2542, %v2538
      %v3747 = vpack.c.b16 %v2543, %v2539
      %v3748 = vpack.c.b16 %v2548, %v2544
      %v3749 = vpack.c.b16 %v2549, %v2545
      %v3750 = vpack.c.b16 %v2550, %v2546
      %v3751 = vpack.c.b16 %v2551, %v2547
      %v3752 = vpack.c.b16 %v2556, %v2552
      %v3753 = vpack.c.b16 %v2557, %v2553
      %v3754 = vpack.c.b16 %v2558, %v2554
      %v3755 = vpack.c.b16 %v2559, %v2555
      %v3756 = vpack.c.b16 %v2564, %v2560
      %v3757 = vpack.c.b16 %v2565, %v2561
      %v3758 = vpack.c.b16 %v2566, %v2562
      %v3759 = vpack.c.b16 %v2567, %v2563
      %v3760 = vpack.c.b16 %v2572, %v2568
      %v3761 = vpack.c.b16 %v2573, %v2569
      %v3762 = vpack.c.b16 %v2574, %v2570
      %v3763 = vpack.c.b16 %v2575, %v2571
      %v3764 = vpack.c.b16 %v2580, %v2576
      %v3765 = vpack.c.b16 %v2581, %v2577
      %v3766 = vpack.c.b16 %v2582, %v2578
      %v3767 = vpack.c.b16 %v2583, %v2579
      %v3768 = vpack.c.b16 %v2588, %v2584
      %v3769 = vpack.c.b16 %v2589, %v2585
      %v3770 = vpack.c.b16 %v2590, %v2586
      %v3771 = vpack.c.b16 %v2591, %v2587
      %v3772 = vpack.c.b16 %v2596, %v2592
      %v3773 = vpack.c.b16 %v2597, %v2593
      %v3774 = vpack.c.b16 %v2598, %v2594
      %v3775 = vpack.c.b16 %v2599, %v2595
      %v3776 = vpack.c.b16 %v2604, %v2600
      %v3777 = vpack.c.b16 %v2605, %v2601
      %v3778 = vpack.c.b16 %v2606, %v2602
      %v3779 = vpack.c.b16 %v2607, %v2603
      %v3780 = vpack.c.b16 %v2612, %v2608
      %v3781 = vpack.c.b16 %v2613, %v2609
      %v3782 = vpack.c.b16 %v2614, %v2610
      %v3783 = vpack.c.b16 %v2615, %v2611
      %v3784 = vpack.c.b16 %v2620, %v2616
      %v3785 = vpack.c.b16 %v2621, %v2617
      %v3786 = vpack.c.b16 %v2622, %v2618
      %v3787 = vpack.c.b16 %v2623, %v2619
      %v3788 = vpack.c.b16 %v2628, %v2624
      %v3789 = vpack.c.b16 %v2629, %v2625
      %v3790 = vpack.c.b16 %v2630, %v2626
      %v3791 = vpack.c.b16 %v2631, %v2627
      %v3792 = vpack.c.b16 %v2636, %v2632
      %v3793 = vpack.c.b16 %v2637, %v2633
      %v3794 = vpack.c.b16 %v2638, %v2634
      %v3795 = vpack.c.b16 %v2639, %v2635
      %v3796 = vpack.c.b16 %v2644, %v2640
      %v3797 = vpack.c.b16 %v2645, %v2641
      %v3798 = vpack.c.b16 %v2646, %v2642
      %v3799 = vpack.c.b16 %v2647, %v2643
      %v3800 = vpack.c.b16 %v2652, %v2648
      %v3801 = vpack.c.b16 %v2653, %v2649
      %v3802 = vpack.c.b16 %v2654, %v2650
      %v3803 = vpack.c.b16 %v2655, %v2651
      %v3804 = vpack.c.b16 %v2660, %v2656
      %v3805 = vpack.c.b16 %v2661, %v2657
      %v3806 = vpack.c.b16 %v2662, %v2658
      %v3807 = vpack.c.b16 %v2663, %v2659
      %v3808 = vpack.c.b16 %v2668, %v2664
      %v3809 = vpack.c.b16 %v2669, %v2665
      %v3810 = vpack.c.b16 %v2670, %v2666
      %v3811 = vpack.c.b16 %v2671, %v2667
      %v3812 = vpack.c.b16 %v2676, %v2672
      %v3813 = vpack.c.b16 %v2677, %v2673
      %v3814 = vpack.c.b16 %v2678, %v2674
      %v3815 = vpack.c.b16 %v2679, %v2675
      %v3816 = vpack.c.b16 %v2684, %v2680
      %v3817 = vpack.c.b16 %v2685, %v2681
      %v3818 = vpack.c.b16 %v2686, %v2682
      %v3819 = vpack.c.b16 %v2687, %v2683
      %v3820 = vpack.c.b16 %v2692, %v2688
      %v3821 = vpack.c.b16 %v2693, %v2689
      %v3822 = vpack.c.b16 %v2694, %v2690
      %v3823 = vpack.c.b16 %v2695, %v2691
      %v3824 = vpack.c.b16 %v2700, %v2696
      %v3825 = vpack.c.b16 %v2701, %v2697
      %v3826 = vpack.c.b16 %v2702, %v2698
      %v3827 = vpack.c.b16 %v2703, %v2699
      %v3828 = vpack.c.b16 %v2708, %v2704
      %v3829 = vpack.c.b16 %v2709, %v2705
      %v3830 = vpack.c.b16 %v2710, %v2706
      %v3831 = vpack.c.b16 %v2711, %v2707
      %v3832 = vpack.c.b16 %v2716, %v2712
      %v3833 = vpack.c.b16 %v2717, %v2713
      %v3834 = vpack.c.b16 %v2718, %v2714
      %v3835 = vpack.c.b16 %v2719, %v2715
      %v3836 = vpack.c.b16 %v2724, %v2720
      %v3837 = vpack.c.b16 %v2725, %v2721
      %v3838 = vpack.c.b16 %v2726, %v2722
      %v3839 = vpack.c.b16 %v2727, %v2723
      %v3840 = vpack.c.b16 %v2732, %v2728
      %v3841 = vpack.c.b16 %v2733, %v2729
      %v3842 = vpack.c.b16 %v2734, %v2730
      %v3843 = vpack.c.b16 %v2735, %v2731
      %v3844 = vpack.c.b16 %v2740, %v2736
      %v3845 = vpack.c.b16 %v2741, %v2737
      %v3846 = vpack.c.b16 %v2742, %v2738
      %v3847 = vpack.c.b16 %v2743, %v2739
      %v3848 = vpack.c.b16 %v2748, %v2744
      %v3849 = vpack.c.b16 %v2749, %v2745
      %v3850 = vpack.c.b16 %v2750, %v2746
      %v3851 = vpack.c.b16 %v2751, %v2747
      %v3852 = vpack.c.b16 %v2756, %v2752
      %v3853 = vpack.c.b16 %v2757, %v2753
      %v3854 = vpack.c.b16 %v2758, %v2754
      %v3855 = vpack.c.b16 %v2759, %v2755
      %v3856 = vpack.c.b16 %v2764, %v2760
      %v3857 = vpack.c.b16 %v2765, %v2761
      %v3858 = vpack.c.b16 %v2766, %v2762
      %v3859 = vpack.c.b16 %v2767, %v2763
      %v3860 = vpack.c.b16 %v2772, %v2768
      %v3861 = vpack.c.b16 %v2773, %v2769
      %v3862 = vpack.c.b16 %v2774, %v2770
      %v3863 = vpack.c.b16 %v2775, %v2771
      %v3864 = vpack.c.b16 %v2780, %v2776
      %v3865 = vpack.c.b16 %v2781, %v2777
      %v3866 = vpack.c.b16 %v2782, %v2778
      %v3867 = vpack.c.b16 %v2783, %v2779
      %v3868 = vpack.c.b16 %v2788, %v2784
      %v3869 = vpack.c.b16 %v2789, %v2785
      %v3870 = vpack.c.b16 %v2790, %v2786
      %v3871 = vpack.c.b16 %v2791, %v2787
      %v3872 = vpack.c.b16 %v2796, %v2792
      %v3873 = vpack.c.b16 %v2797, %v2793
      %v3874 = vpack.c.b16 %v2798, %v2794
      %v3875 = vpack.c.b16 %v2799, %v2795
      %v3876 = vpack.c.b16 %v2804, %v2800
      %v3877 = vpack.c.b16 %v2805, %v2801
      %v3878 = vpack.c.b16 %v2806, %v2802
      %v3879 = vpack.c.b16 %v2807, %v2803
      %v3880 = vpack.c.b16 %v2812, %v2808
      %v3881 = vpack.c.b16 %v2813, %v2809
      %v3882 = vpack.c.b16 %v2814, %v2810
      %v3883 = vpack.c.b16 %v2815, %v2811
      %v3884 = vpack.c.b16 %v2820, %v2816
      %v3885 = vpack.c.b16 %v2821, %v2817
      %v3886 = vpack.c.b16 %v2822, %v2818
      %v3887 = vpack.c.b16 %v2823, %v2819
      %v3888 = vpack.c.b16 %v2828, %v2824
      %v3889 = vpack.c.b16 %v2829, %v2825
      %v3890 = vpack.c.b16 %v2830, %v2826
      %v3891 = vpack.c.b16 %v2831, %v2827
      %v3892 = vpack.c.b16 %v2836, %v2832
      %v3893 = vpack.c.b16 %v2837, %v2833
      %v3894 = vpack.c.b16 %v2838, %v2834
      %v3895 = vpack.c.b16 %v2839, %v2835
      %v3896 = vpack.c.b16 %v2844, %v2840
      %v3897 = vpack.c.b16 %v2845, %v2841
      %v3898 = vpack.c.b16 %v2846, %v2842
      %v3899 = vpack.c.b16 %v2847, %v2843
      %v3900 = vpack.c.b16 %v2852, %v2848
      %v3901 = vpack.c.b16 %v2853, %v2849
      %v3902 = vpack.c.b16 %v2854, %v2850
      %v3903 = vpack.c.b16 %v2855, %v2851
      %v3904 = vpack.c.b16 %v2860, %v2856
      %v3905 = vpack.c.b16 %v2861, %v2857
      %v3906 = vpack.c.b16 %v2862, %v2858
      %v3907 = vpack.c.b16 %v2863, %v2859
      %v3908 = vpack.c.b16 %v2868, %v2864
      %v3909 = vpack.c.b16 %v2869, %v2865
      %v3910 = vpack.c.b16 %v2870, %v2866
      %v3911 = vpack.c.b16 %v2871, %v2867
      %v3912 = vpack.c.b16 %v2876, %v2872
      %v3913 = vpack.c.b16 %v2877, %v2873
      %v3914 = vpack.c.b16 %v2878, %v2874
      %v3915 = vpack.c.b16 %v2879, %v2875
      %v3916 = vpack.c.b16 %v2884, %v2880
      %v3917 = vpack.c.b16 %v2885, %v2881
      %v3918 = vpack.c.b16 %v2886, %v2882
      %v3919 = vpack.c.b16 %v2887, %v2883
      %v3920 = vpack.c.b16 %v2892, %v2888
      %v3921 = vpack.c.b16 %v2893, %v2889
      %v3922 = vpack.c.b16 %v2894, %v2890
      %v3923 = vpack.c.b16 %v2895, %v2891
      %v3924 = vpack.c.b16 %v2900, %v2896
      %v3925 = vpack.c.b16 %v2901, %v2897
      %v3926 = vpack.c.b16 %v2902, %v2898
      %v3927 = vpack.c.b16 %v2903, %v2899
      %v3928 = vpack.c.b16 %v2908, %v2904
      %v3929 = vpack.c.b16 %v2909, %v2905
      %v3930 = vpack.c.b16 %v2910, %v2906
      %v3931 = vpack.c.b16 %v2911, %v2907
      %v3932 = vpack.c.b16 %v2916, %v2912
      %v3933 = vpack.c.b16 %v2917, %v2913
      %v3934 = vpack.c.b16 %v2918, %v2914
      %v3935 = vpack.c.b16 %v2919, %v2915
      %v3936 = vpack.c.b16 %v2924, %v2920
      %v3937 = vpack.c.b16 %v2925, %v2921
      %v3938 = vpack.c.b16 %v2926, %v2922
      %v3939 = vpack.c.b16 %v2927, %v2923
      %v3940 = vpack.c.b16 %v2932, %v2928
      %v3941 = vpack.c.b16 %v2933, %v2929
      %v3942 = vpack.c.b16 %v2934, %v2930
      %v3943 = vpack.c.b16 %v2935, %v2931
      %v3944 = vpack.c.b16 %v2940, %v2936
      %v3945 = vpack.c.b16 %v2941, %v2937
      %v3946 = vpack.c.b16 %v2942, %v2938
      %v3947 = vpack.c.b16 %v2943, %v2939
      %v3948 = vpack.c.b16 %v2948, %v2944
      %v3949 = vpack.c.b16 %v2949, %v2945
      %v3950 = vpack.c.b16 %v2950, %v2946
      %v3951 = vpack.c.b16 %v2951, %v2947
      %v3952 = vpack.c.b16 %v2956, %v2952
      %v3953 = vpack.c.b16 %v2957, %v2953
      %v3954 = vpack.c.b16 %v2958, %v2954
      %v3955 = vpack.c.b16 %v2959, %v2955
      %v3956 = vpack.c.b16 %v2964, %v2960
      %v3957 = vpack.c.b16 %v2965, %v2961
      %v3958 = vpack.c.b16 %v2966, %v2962
      %v3959 = vpack.c.b16 %v2967, %v2963
      %v3960 = vpack.c.b16 %v2972, %v2968
      %v3961 = vpack.c.b16 %v2973, %v2969
      %v3962 = vpack.c.b16 %v2974, %v2970
      %v3963 = vpack.c.b16 %v2975, %v2971
      %v3964 = vpack.c.b16 %v2980, %v2976
      %v3965 = vpack.c.b16 %v2981, %v2977
      %v3966 = vpack.c.b16 %v2982, %v2978
      %v3967 = vpack.c.b16 %v2983, %v2979
      %v3968 = vpack.c.b16 %v2988, %v2984
      %v3969 = vpack.c.b16 %v2989, %v2985
      %v3970 = vpack.c.b16 %v2990, %v2986
      %v3971 = vpack.c.b16 %v2991, %v2987
      %v3972 = vpack.c.b16 %v2996, %v2992
      %v3973 = vpack.c.b16 %v2997, %v2993
      %v3974 = vpack.c.b16 %v2998, %v2994
      %v3975 = vpack.c.b16 %v2999, %v2995
      %v3976 = vpack.c.b16 %v3004, %v3000
      %v3977 = vpack.c.b16 %v3005, %v3001
      %v3978 = vpack.c.b16 %v3006, %v3002
      %v3979 = vpack.c.b16 %v3007, %v3003
      %v3980 = vpack.c.b16 %v3012, %v3008
      %v3981 = vpack.c.b16 %v3013, %v3009
      %v3982 = vpack.c.b16 %v3014, %v3010
      %v3983 = vpack.c.b16 %v3015, %v3011
      %v3984 = vpack.c.b16 %v3020, %v3016
      %v3985 = vpack.c.b16 %v3021, %v3017
      %v3986 = vpack.c.b16 %v3022, %v3018
      %v3987 = vpack.c.b16 %v3023, %v3019
      %v3988 = vpack.c.b16 %v3028, %v3024
      %v3989 = vpack.c.b16 %v3029, %v3025
      %v3990 = vpack.c.b16 %v3030, %v3026
      %v3991 = vpack.c.b16 %v3031, %v3027
      %v3992 = vpack.c.b16 %v3036, %v3032
      %v3993 = vpack.c.b16 %v3037, %v3033
      %v3994 = vpack.c.b16 %v3038, %v3034
      %v3995 = vpack.c.b16 %v3039, %v3035
      %v3996 = vpack.c.b16 %v3044, %v3040
      %v3997 = vpack.c.b16 %v3045, %v3041
      %v3998 = vpack.c.b16 %v3046, %v3042
      %v3999 = vpack.c.b16 %v3047, %v3043
      %v4000 = vpack.c.b16 %v3052, %v3048
      %v4001 = vpack.c.b16 %v3053, %v3049
      %v4002 = vpack.c.b16 %v3054, %v3050
      %v4003 = vpack.c.b16 %v3055, %v3051
      %v4004 = vpack.c.b16 %v3060, %v3056
      %v4005 = vpack.c.b16 %v3061, %v3057
      %v4006 = vpack.c.b16 %v3062, %v3058
      %v4007 = vpack.c.b16 %v3063, %v3059
      %v4008 = vpack.c.b16 %v3068, %v3064
      %v4009 = vpack.c.b16 %v3069, %v3065
      %v4010 = vpack.c.b16 %v3070, %v3066
      %v4011 = vpack.c.b16 %v3071, %v3067
      %v4012 = vpack.c.b16 %v3076, %v3072
      %v4013 = vpack.c.b16 %v3077, %v3073
      %v4014 = vpack.c.b16 %v3078, %v3074
      %v4015 = vpack.c.b16 %v3079, %v3075
      %v4016 = vpack.c.b16 %v3084, %v3080
      %v4017 = vpack.c.b16 %v3085, %v3081
      %v4018 = vpack.c.b16 %v3086, %v3082
      %v4019 = vpack.c.b16 %v3087, %v3083
      %v4020 = vpack.c.b16 %v3092, %v3088
      %v4021 = vpack.c.b16 %v3093, %v3089
      %v4022 = vpack.c.b16 %v3094, %v3090
      %v4023 = vpack.c.b16 %v3095, %v3091
      %v4024 = vpack.c.b16 %v3100, %v3096
      %v4025 = vpack.c.b16 %v3101, %v3097
      %v4026 = vpack.c.b16 %v3102, %v3098
      %v4027 = vpack.c.b16 %v3103, %v3099
      %v4028 = vpack.c.b16 %v3108, %v3104
      %v4029 = vpack.c.b16 %v3109, %v3105
      %v4030 = vpack.c.b16 %v3110, %v3106
      %v4031 = vpack.c.b16 %v3111, %v3107
      %v4032 = vpack.c.b16 %v3116, %v3112
      %v4033 = vpack.c.b16 %v3117, %v3113
      %v4034 = vpack.c.b16 %v3118, %v3114
      %v4035 = vpack.c.b16 %v3119, %v3115
      %v4036 = vpack.c.b16 %v3124, %v3120
      %v4037 = vpack.c.b16 %v3125, %v3121
      %v4038 = vpack.c.b16 %v3126, %v3122
      %v4039 = vpack.c.b16 %v3127, %v3123
      %v4040 = vpack.c.b16 %v3132, %v3128
      %v4041 = vpack.c.b16 %v3133, %v3129
      %v4042 = vpack.c.b16 %v3134, %v3130
      %v4043 = vpack.c.b16 %v3135, %v3131
      %v4044 = vpack.c.b16 %v3140, %v3136
      %v4045 = vpack.c.b16 %v3141, %v3137
      %v4046 = vpack.c.b16 %v3142, %v3138
      %v4047 = vpack.c.b16 %v3143, %v3139
      %v4048 = vpack.c.b16 %v3148, %v3144
      %v4049 = vpack.c.b16 %v3149, %v3145
      %v4050 = vpack.c.b16 %v3150, %v3146
      %v4051 = vpack.c.b16 %v3151, %v3147
      %v4052 = vpack.c.b16 %v3156, %v3152
      %v4053 = vpack.c.b16 %v3157, %v3153
      %v4054 = vpack.c.b16 %v3158, %v3154
      %v4055 = vpack.c.b16 %v3159, %v3155
      %v4056 = vpack.c.b16 %v3164, %v3160
      %v4057 = vpack.c.b16 %v3165, %v3161
      %v4058 = vpack.c.b16 %v3166, %v3162
      %v4059 = vpack.c.b16 %v3167, %v3163
      %v4060 = vpack.c.b16 %v3172, %v3168
      %v4061 = vpack.c.b16 %v3173, %v3169
      %v4062 = vpack.c.b16 %v3174, %v3170
      %v4063 = vpack.c.b16 %v3175, %v3171
      %v4064 = vpack.c.b16 %v3180, %v3176
      %v4065 = vpack.c.b16 %v3181, %v3177
      %v4066 = vpack.c.b16 %v3182, %v3178
      %v4067 = vpack.c.b16 %v3183, %v3179
      %v4068 = vpack.c.b16 %v3188, %v3184
      %v4069 = vpack.c.b16 %v3189, %v3185
      %v4070 = vpack.c.b16 %v3190, %v3186
      %v4071 = vpack.c.b16 %v3191, %v3187
      %v4072 = vpack.c.b16 %v3196, %v3192
      %v4073 = vpack.c.b16 %v3197, %v3193
      %v4074 = vpack.c.b16 %v3198, %v3194
      %v4075 = vpack.c.b16 %v3199, %v3195
      %v4076 = vpack.c.b16 %v3204, %v3200
      %v4077 = vpack.c.b16 %v3205, %v3201
      %v4078 = vpack.c.b16 %v3206, %v3202
      %v4079 = vpack.c.b16 %v3207, %v3203
      %v4080 = vpack.c.b16 %v3212, %v3208
      %v4081 = vpack.c.b16 %v3213, %v3209
      %v4082 = vpack.c.b16 %v3214, %v3210
      %v4083 = vpack.c.b16 %v3215, %v3211
      %v4084 = vpack.c.b16 %v3220, %v3216
      %v4085 = vpack.c.b16 %v3221, %v3217
      %v4086 = vpack.c.b16 %v3222, %v3218
      %v4087 = vpack.c.b16 %v3223, %v3219
      %v4088 = vpack.c.b16 %v3228, %v3224
      %v4089 = vpack.c.b16 %v3229, %v3225
      %v4090 = vpack.c.b16 %v3230, %v3226
      %v4091 = vpack.c.b16 %v3231, %v3227
      %v4092 = vpack.c.b16 %v3236, %v3232
      %v4093 = vpack.c.b16 %v3237, %v3233
      %v4094 = vpack.c.b16 %v3238, %v3234
      %v4095 = vpack.c.b16 %v3239, %v3235
      %v4096 = vpack.c.b16 %v3244, %v3240
      %v4097 = vpack.c.b16 %v3245, %v3241
      %v4098 = vpack.c.b16 %v3246, %v3242
      %v4099 = vpack.c.b16 %v3247, %v3243
      %v4100 = vpack.c.b16 %v3252, %v3248
      %v4101 = vpack.c.b16 %v3253, %v3249
      %v4102 = vpack.c.b16 %v3254, %v3250
      %v4103 = vpack.c.b16 %v3255, %v3251
      %v4104 = vpack.c.b16 %v3260, %v3256
      %v4105 = vpack.c.b16 %v3261, %v3257
      %v4106 = vpack.c.b16 %v3262, %v3258
      %v4107 = vpack.c.b16 %v3263, %v3259
      %v4108 = vpack.c.b16 %v3268, %v3264
      %v4109 = vpack.c.b16 %v3269, %v3265
      %v4110 = vpack.c.b16 %v3270, %v3266
      %v4111 = vpack.c.b16 %v3271, %v3267
      %v4112 = vpack.c.b16 %v3276, %v3272
      %v4113 = vpack.c.b16 %v3277, %v3273
      %v4114 = vpack.c.b16 %v3278, %v3274
      %v4115 = vpack.c.b16 %v3279, %v3275
      %v4116 = vpack.c.b16 %v3284, %v3280
      %v4117 = vpack.c.b16 %v3285, %v3281
      %v4118 = vpack.c.b16 %v3286, %v3282
      %v4119 = vpack.c.b16 %v3287, %v3283
      %v4120 = vpack.c.b16 %v3292, %v3288
      %v4121 = vpack.c.b16 %v3293, %v3289
      %v4122 = vpack.c.b16 %v3294, %v3290
      %v4123 = vpack.c.b16 %v3295, %v3291
      %v4124 = vpack.c.b16 %v3300, %v3296
      %v4125 = vpack.c.b16 %v3301, %v3297
      %v4126 = vpack.c.b16 %v3302, %v3298
      %v4127 = vpack.c.b16 %v3303, %v3299
      %v4128 = vpack.c.b16 %v3308, %v3304
      %v4129 = vpack.c.b16 %v3309, %v3305
      %v4130 = vpack.c.b16 %v3310, %v3306
      %v4131 = vpack.c.b16 %v3311, %v3307
      %v4132 = vpack.c.b16 %v3316, %v3312
      %v4133 = vpack.c.b16 %v3317, %v3313
      %v4134 = vpack.c.b16 %v3318, %v3314
      %v4135 = vpack.c.b16 %v3319, %v3315
      %v4136 = vpack.c.b16 %v3324, %v3320
      %v4137 = vpack.c.b16 %v3325, %v3321
      %v4138 = vpack.c.b16 %v3326, %v3322
      %v4139 = vpack.c.b16 %v3327, %v3323
      %v4140 = vpack.c.b16 %v3332, %v3328
      %v4141 = vpack.c.b16 %v3333, %v3329
      %v4142 = vpack.c.b16 %v3334, %v3330
      %v4143 = vpack.c.b16 %v3335, %v3331
      %v4144 = vpack.c.b16 %v3340, %v3336
      %v4145 = vpack.c.b16 %v3341, %v3337
      %v4146 = vpack.c.b16 %v3342, %v3338
      %v4147 = vpack.c.b16 %v3343, %v3339
      %v4148 = vpack.c.b16 %v3348, %v3344
      %v4149 = vpack.c.b16 %v3349, %v3345
      %v4150 = vpack.c.b16 %v3350, %v3346
      %v4151 = vpack.c.b16 %v3351, %v3347
      %v4152 = vpack.c.b16 %v3356, %v3352
      %v4153 = vpack.c.b16 %v3357, %v3353
      %v4154 = vpack.c.b16 %v3358, %v3354
      %v4155 = vpack.c.b16 %v3359, %v3355
      %v4156 = vpack.c.b16 %v3364, %v3360
      %v4157 = vpack.c.b16 %v3365, %v3361
      %v4158 = vpack.c.b16 %v3366, %v3362
      %v4159 = vpack.c.b16 %v3367, %v3363
      %v4160 = vpack.c.b16 %v3372, %v3368
      %v4161 = vpack.c.b16 %v3373, %v3369
      %v4162 = vpack.c.b16 %v3374, %v3370
      %v4163 = vpack.c.b16 %v3375, %v3371
      %v4164 = vpack.c.b16 %v3380, %v3376
      %v4165 = vpack.c.b16 %v3381, %v3377
      %v4166 = vpack.c.b16 %v3382, %v3378
      %v4167 = vpack.c.b16 %v3383, %v3379
      %v4168 = vpack.c.b16 %v3388, %v3384
      %v4169 = vpack.c.b16 %v3389, %v3385
      %v4170 = vpack.c.b16 %v3390, %v3386
      %v4171 = vpack.c.b16 %v3391, %v3387
      %v4172 = vpack.c.b16 %v3396, %v3392
      %v4173 = vpack.c.b16 %v3397, %v3393
      %v4174 = vpack.c.b16 %v3398, %v3394
      %v4175 = vpack.c.b16 %v3399, %v3395
      %v4176 = vpack.c.b16 %v3404, %v3400
      %v4177 = vpack.c.b16 %v3405, %v3401
      %v4178 = vpack.c.b16 %v3406, %v3402
      %v4179 = vpack.c.b16 %v3407, %v3403
      %v4180 = vpack.c.b16 %v3412, %v3408
      %v4181 = vpack.c.b16 %v3413, %v3409
      %v4182 = vpack.c.b16 %v3414, %v3410
      %v4183 = vpack.c.b16 %v3415, %v3411
      %v4184 = vpack.c.b16 %v3420, %v3416
      %v4185 = vpack.c.b16 %v3421, %v3417
      %v4186 = vpack.c.b16 %v3422, %v3418
      %v4187 = vpack.c.b16 %v3423, %v3419
      %v4188 = vpack.c.b16 %v3428, %v3424
      %v4189 = vpack.c.b16 %v3429, %v3425
      %v4190 = vpack.c.b16 %v3430, %v3426
      %v4191 = vpack.c.b16 %v3431, %v3427
      %v4192 = vpack.c.b16 %v3436, %v3432
      %v4193 = vpack.c.b16 %v3437, %v3433
      %v4194 = vpack.c.b16 %v3438, %v3434
      %v4195 = vpack.c.b16 %v3439, %v3435
      %v4196 = vpack.c.b16 %v3444, %v3440
      %v4197 = vpack.c.b16 %v3445, %v3441
      %v4198 = vpack.c.b16 %v3446, %v3442
      %v4199 = vpack.c.b16 %v3447, %v3443
      %v4200 = vpack.c.b16 %v3452, %v3448
      %v4201 = vpack.c.b16 %v3453, %v3449
      %v4202 = vpack.c.b16 %v3454, %v3450
      %v4203 = vpack.c.b16 %v3455, %v3451
      %v4204 = vpack.c.b16 %v3460, %v3456
      %v4205 = vpack.c.b16 %v3461, %v3457
      %v4206 = vpack.c.b16 %v3462, %v3458
      %v4207 = vpack.c.b16 %v3463, %v3459
      %v4208 = vpack.c.b16 %v3468, %v3464
      %v4209 = vpack.c.b16 %v3469, %v3465
      %v4210 = vpack.c.b16 %v3470, %v3466
      %v4211 = vpack.c.b16 %v3471, %v3467
      %v4212 = vpack.c.b16 %v3476, %v3472
      %v4213 = vpack.c.b16 %v3477, %v3473
      %v4214 = vpack.c.b16 %v3478, %v3474
      %v4215 = vpack.c.b16 %v3479, %v3475
      %v4216 = vpack.c.b16 %v3484, %v3480
      %v4217 = vpack.c.b16 %v3485, %v3481
      %v4218 = vpack.c.b16 %v3486, %v3482
      %v4219 = vpack.c.b16 %v3487, %v3483
      %v4220 = vpack.c.b16 %v3492, %v3488
      %v4221 = vpack.c.b16 %v3493, %v3489
      %v4222 = vpack.c.b16 %v3494, %v3490
      %v4223 = vpack.c.b16 %v3495, %v3491
      %v4224 = vpack.c.b16 %v3500, %v3496
      %v4225 = vpack.c.b16 %v3501, %v3497
      %v4226 = vpack.c.b16 %v3502, %v3498
      %v4227 = vpack.c.b16 %v3503, %v3499
      %v4228 = vpack.c.b16 %v3508, %v3504
      %v4229 = vpack.c.b16 %v3509, %v3505
      %v4230 = vpack.c.b16 %v3510, %v3506
      %v4231 = vpack.c.b16 %v3511, %v3507
      %v4232 = vpack.c.b16 %v3516, %v3512
      %v4233 = vpack.c.b16 %v3517, %v3513
      %v4234 = vpack.c.b16 %v3518, %v3514
      %v4235 = vpack.c.b16 %v3519, %v3515
      %v4236 = vpack.c.b16 %v3524, %v3520
      %v4237 = vpack.c.b16 %v3525, %v3521
      %v4238 = vpack.c.b16 %v3526, %v3522
      %v4239 = vpack.c.b16 %v3527, %v3523
      %v4240 = vpack.c.b16 %v3532, %v3528
      %v4241 = vpack.c.b16 %v3533, %v3529
      %v4242 = vpack.c.b16 %v3534, %v3530
      %v4243 = vpack.c.b16 %v3535, %v3531
      %v4244 = vpack.c.b16 %v3540, %v3536
      %v4245 = vpack.c.b16 %v3541, %v3537
      %v4246 = vpack.c.b16 %v3542, %v3538
      %v4247 = vpack.c.b16 %v3543, %v3539
      %v4248 = vpack.c.b16 %v3548, %v3544
      %v4249 = vpack.c.b16 %v3549, %v3545
      %v4250 = vpack.c.b16 %v3550, %v3546
      %v4251 = vpack.c.b16 %v3551, %v3547
      %v4252 = vpack.c.b16 %v3556, %v3552
      %v4253 = vpack.c.b16 %v3557, %v3553
      %v4254 = vpack.c.b16 %v3558, %v3554
      %v4255 = vpack.c.b16 %v3559, %v3555
      %v4256 = vpack.c.b16 %v3564, %v3560
      %v4257 = vpack.c.b16 %v3565, %v3561
      %v4258 = vpack.c.b16 %v3566, %v3562
      %v4259 = vpack.c.b16 %v3567, %v3563
      %v4260 = vpack.c.b16 %v3572, %v3568
      %v4261 = vpack.c.b16 %v3573, %v3569
      %v4262 = vpack.c.b16 %v3574, %v3570
      %v4263 = vpack.c.b16 %v3575, %v3571
      %v4264 = vpack.c.b16 %v3576, %v3576
      %v4265 = vpack.c.b16 %v3577, %v3577
      %v4266 = vpack.c.b16 %v3578, %v3578
      %v4267 = vpack.c.b16 %v3579, %v3579
      %vm4952 = vcmask 457728
      %v4954 = vsel %vm4952, %v659, 0
      %v4957 = vsel %vm4952, %v681, 0
      %v4960 = vsel %vm4952, %v703, 0
      %v4963 = vsel %vm4952, %v725, 0
      %v4966 = vsel %vm4952, %v747, 0
      %v4969 = vsel %vm4952, %v769, 0
      %v4972 = vsel %vm4952, %v791, 0
      %v4975 = vsel %vm4952, %v813, 0
      %vm4977 = vcmask 1043456
      %v4979 = vsel %vm4977, %v4264, 0
      %v4982 = vsel %vm4977, %v4265, 0
      %v4985 = vsel %vm4977, %v4266, 0
      %v4988 = vsel %vm4977, %v4267, 0
      %4990 = vmatprep.subr.bf16.mxu0 %v3581
      %4991 = vmatpush1.bf16.msra.mxu0 %v3580
      %4992 = vmatprep.subr.bf16.mxu0 %v3585
      %4993 = vmatpush1.bf16.msra.mxu0 %v3584
      %4994 = vmatprep.subr.bf16.mxu0 %v3589
      %4995 = vmatpush1.bf16.msra.mxu0 %v3588
      %4996 = vmatprep.subr.bf16.mxu0 %v3593
      %4997 = vmatpush1.bf16.msra.mxu0 %v3592
      %4998 = vmatprep.subr.bf16.mxu0 %v3597
      %4999 = vmatpush1.bf16.msra.mxu0 %v3596
      %5000 = vmatprep.subr.bf16.mxu0 %v3601
      %5001 = vmatpush1.bf16.msra.mxu0 %v3600
      %5002 = vmatprep.subr.bf16.mxu0 %v3605
      %5003 = vmatpush1.bf16.msra.mxu0 %v3604
      %5004 = vmatprep.subr.bf16.mxu0 %v3609
      %5005 = vmatpush1.bf16.msra.mxu0 %v3608
      %5006 = vmatprep.subr.bf16.mxu0 %v3613
      %5007 = vmatpush1.bf16.msra.mxu0 %v3612
      %5008 = vmatprep.subr.bf16.mxu0 %v3617
      %5009 = vmatpush1.bf16.msra.mxu0 %v3616
      %5010 = vmatprep.subr.bf16.mxu0 %v3621
      %5011 = vmatpush1.bf16.msra.mxu0 %v3620
      %5012 = vmatprep.subr.bf16.mxu0 %v3625
      %5013 = vmatpush1.bf16.msra.mxu0 %v3624
      %5014 = vmatprep.subr.bf16.mxu0 %v3629
      %5015 = vmatpush1.bf16.msra.mxu0 %v3628
      %5016 = vmatprep.subr.bf16.mxu0 %v3633
      %5017 = vmatpush1.bf16.msra.mxu0 %v3632
      %5018 = vmatprep.subr.bf16.mxu0 %v3637
      %5019 = vmatpush1.bf16.msra.mxu0 %v3636
      %5020 = vmatprep.subr.bf16.mxu0 %v3641
      %5021 = vmatpush1.bf16.msra.mxu0 %v3640
      %5022 = vmatprep.mubr.bf16.mxu0 %v639
      %5023 = vmatmul.mubr.bf16.gmra.mrb[0].mxu0 %v638
      %v5024 = vpop.f32.mrb[0].mxu0
      %v5025 = vadd.f32 %v1505, %v5024
      %v5026 = vpop.f32.mrb[0].mxu0
      %v5027 = vadd.f32 %v1509, %v5026
      %v5028 = vpop.f32.mrb[0].mxu0
      %v5029 = vadd.f32 %v1505, %v5028
      %v5030 = vpop.f32.mrb[0].mxu0
      %v5031 = vadd.f32 %v1509, %v5030
      %5032 = vmatprep.mubr.bf16.mxu0 %v661
      %5033 = vmatmul.mubr.bf16.gmra.mrb[0].mxu0 %v660
      %v5034 = vpop.f32.mrb[0].mxu0
      %v5035 = vadd.f32 %v1505, %v5034
      %v5036 = vpop.f32.mrb[0].mxu0
      %v5037 = vadd.f32 %v1509, %v5036
      %v5038 = vpop.f32.mrb[0].mxu0
      %v5039 = vadd.f32 %v1505, %v5038
      %v5040 = vpop.f32.mrb[0].mxu0
      %v5041 = vadd.f32 %v1509, %v5040
      %5042 = vmatprep.mubr.bf16.mxu0 %v683
      %5043 = vmatmul.mubr.bf16.gmra.mrb[0].mxu0 %v682
      %v5044 = vpop.f32.mrb[0].mxu0
      %v5045 = vadd.f32 %v1505, %v5044
      %v5046 = vpop.f32.mrb[0].mxu0
      %v5047 = vadd.f32 %v1509, %v5046
      %v5048 = vpop.f32.mrb[0].mxu0
      %v5049 = vadd.f32 %v1505, %v5048
      %v5050 = vpop.f32.mrb[0].mxu0
      %v5051 = vadd.f32 %v1509, %v5050
      %5052 = vmatprep.mubr.bf16.mxu0 %v705
      %5053 = vmatmul.mubr.bf16.gmra.mrb[0].mxu0 %v704
      %v5054 = vpop.f32.mrb[0].mxu0
      %v5055 = vadd.f32 %v1505, %v5054
      %v5056 = vpop.f32.mrb[0].mxu0
      %v5057 = vadd.f32 %v1509, %v5056
      %v5058 = vpop.f32.mrb[0].mxu0
      %v5059 = vadd.f32 %v1505, %v5058
      %v5060 = vpop.f32.mrb[0].mxu0
      %v5061 = vadd.f32 %v1509, %v5060
      %5062 = vmatprep.mubr.bf16.mxu0 %v727
      %5063 = vmatmul.mubr.bf16.gmra.mrb[0].mxu0 %v726
      %v5064 = vpop.f32.mrb[0].mxu0
      %v5065 = vadd.f32 %v1505, %v5064
      %v5066 = vpop.f32.mrb[0].mxu0
      %v5067 = vadd.f32 %v1509, %v5066
      %v5068 = vpop.f32.mrb[0].mxu0
      %v5069 = vadd.f32 %v1505, %v5068
      %v5070 = vpop.f32.mrb[0].mxu0
      %v5071 = vadd.f32 %v1509, %v5070
      %5072 = vmatprep.mubr.bf16.mxu0 %v749
      %5073 = vmatmul.mubr.bf16.gmra.mrb[0].mxu0 %v748
      %v5074 = vpop.f32.mrb[0].mxu0
      %v5075 = vadd.f32 %v1505, %v5074
      %v5076 = vpop.f32.mrb[0].mxu0
      %v5077 = vadd.f32 %v1509, %v5076
      %v5078 = vpop.f32.mrb[0].mxu0
      %v5079 = vadd.f32 %v1505, %v5078
      %v5080 = vpop.f32.mrb[0].mxu0
      %v5081 = vadd.f32 %v1509, %v5080
      %5082 = vmatprep.mubr.bf16.mxu0 %v771
      %5083 = vmatmul.mubr.bf16.gmra.mrb[0].mxu0 %v770
      %v5084 = vpop.f32.mrb[0].mxu0
      %v5085 = vadd.f32 %v1505, %v5084
      %v5086 = vpop.f32.mrb[0].mxu0
      %v5087 = vadd.f32 %v1509, %v5086
      %v5088 = vpop.f32.mrb[0].mxu0
      %v5089 = vadd.f32 %v1505, %v5088
      %v5090 = vpop.f32.mrb[0].mxu0
      %v5091 = vadd.f32 %v1509, %v5090
      %5092 = vmatprep.mubr.bf16.mxu0 %v793
      %5093 = vmatmul.mubr.bf16.gmra.mrb[0].mxu0 %v792
      %v5094 = vpop.f32.mrb[0].mxu0
      %v5095 = vadd.f32 %v1505, %v5094
      %v5096 = vpop.f32.mrb[0].mxu0
      %v5097 = vadd.f32 %v1509, %v5096
      %v5098 = vpop.f32.mrb[0].mxu0
      %v5099 = vadd.f32 %v1505, %v5098
      %v5100 = vpop.f32.mrb[0].mxu0
      %v5101 = vadd.f32 %v1509, %v5100
      %5102 = vdwg.mxu0
      %5103 = vmatprep.subr.bf16.mxu0 %v3645
      %5104 = vmatpush1.bf16.msra.mxu0 %v3644
      %5105 = vmatprep.subr.bf16.mxu0 %v3649
      %5106 = vmatpush1.bf16.msra.mxu0 %v3648
      %5107 = vmatprep.subr.bf16.mxu0 %v3653
      %5108 = vmatpush1.bf16.msra.mxu0 %v3652
      %5109 = vmatprep.subr.bf16.mxu0 %v3657
      %5110 = vmatpush1.bf16.msra.mxu0 %v3656
      %5111 = vmatprep.subr.bf16.mxu0 %v3661
      %5112 = vmatpush1.bf16.msra.mxu0 %v3660
      %5113 = vmatprep.subr.bf16.mxu0 %v3665
      %5114 = vmatpush1.bf16.msra.mxu0 %v3664
      %5115 = vmatprep.subr.bf16.mxu0 %v3669
      %5116 = vmatpush1.bf16.msra.mxu0 %v3668
      %5117 = vmatprep.subr.bf16.mxu0 %v3673
      %5118 = vmatpush1.bf16.msra.mxu0 %v3672
      %5119 = vmatprep.subr.bf16.mxu0 %v3677
      %5120 = vmatpush1.bf16.msra.mxu0 %v3676
      %5121 = vmatprep.subr.bf16.mxu0 %v3681
      %5122 = vmatpush1.bf16.msra.mxu0 %v3680
      %5123 = vmatprep.subr.bf16.mxu0 %v3685
      %5124 = vmatpush1.bf16.msra.mxu0 %v3684
      %5125 = vmatprep.subr.bf16.mxu0 %v3689
      %5126 = vmatpush1.bf16.msra.mxu0 %v3688
      %5127 = vmatprep.subr.bf16.mxu0 %v3693
      %5128 = vmatpush1.bf16.msra.mxu0 %v3692
      %5129 = vmatprep.subr.bf16.mxu0 %v3697
      %5130 = vmatpush1.bf16.msra.mxu0 %v3696
      %5131 = vmatprep.subr.bf16.mxu0 %v3701
      %5132 = vmatpush1.bf16.msra.mxu0 %v3700
      %5133 = vmatprep.subr.bf16.mxu0 %v3705
      %5134 = vmatpush1.bf16.msra.mxu0 %v3704
      %5135 = vmatprep.mubr.bf16.mxu0 %v641
      %5136 = vmatmul.mubr.bf16.gmra.mrb[0].mxu0 %v640
      %v5137 = vpop.f32.mrb[0].mxu0
      %v5138 = vadd.f32 %v5025, %v5137
      %v5139 = vpop.f32.mrb[0].mxu0
      %v5140 = vadd.f32 %v5027, %v5139
      %v5141 = vpop.f32.mrb[0].mxu0
      %v5142 = vadd.f32 %v5029, %v5141
      %v5143 = vpop.f32.mrb[0].mxu0
      %v5144 = vadd.f32 %v5031, %v5143
      %5145 = vmatprep.mubr.bf16.mxu0 %v663
      %5146 = vmatmul.mubr.bf16.gmra.mrb[0].mxu0 %v662
      %v5147 = vpop.f32.mrb[0].mxu0
      %v5148 = vadd.f32 %v5035, %v5147
      %v5149 = vpop.f32.mrb[0].mxu0
      %v5150 = vadd.f32 %v5037, %v5149
      %v5151 = vpop.f32.mrb[0].mxu0
      %v5152 = vadd.f32 %v5039, %v5151
      %v5153 = vpop.f32.mrb[0].mxu0
      %v5154 = vadd.f32 %v5041, %v5153
      %5155 = vmatprep.mubr.bf16.mxu0 %v685
      %5156 = vmatmul.mubr.bf16.gmra.mrb[0].mxu0 %v684
      %v5157 = vpop.f32.mrb[0].mxu0
      %v5158 = vadd.f32 %v5045, %v5157
      %v5159 = vpop.f32.mrb[0].mxu0
      %v5160 = vadd.f32 %v5047, %v5159
      %v5161 = vpop.f32.mrb[0].mxu0
      %v5162 = vadd.f32 %v5049, %v5161
      %v5163 = vpop.f32.mrb[0].mxu0
      %v5164 = vadd.f32 %v5051, %v5163
      %5165 = vmatprep.mubr.bf16.mxu0 %v707
      %5166 = vmatmul.mubr.bf16.gmra.mrb[0].mxu0 %v706
      %v5167 = vpop.f32.mrb[0].mxu0
      %v5168 = vadd.f32 %v5055, %v5167
      %v5169 = vpop.f32.mrb[0].mxu0
      %v5170 = vadd.f32 %v5057, %v5169
      %v5171 = vpop.f32.mrb[0].mxu0
      %v5172 = vadd.f32 %v5059, %v5171
      %v5173 = vpop.f32.mrb[0].mxu0
      %v5174 = vadd.f32 %v5061, %v5173
      %5175 = vmatprep.mubr.bf16.mxu0 %v729
      %5176 = vmatmul.mubr.bf16.gmra.mrb[0].mxu0 %v728
      %v5177 = vpop.f32.mrb[0].mxu0
      %v5178 = vadd.f32 %v5065, %v5177
      %v5179 = vpop.f32.mrb[0].mxu0
      %v5180 = vadd.f32 %v5067, %v5179
      %v5181 = vpop.f32.mrb[0].mxu0
      %v5182 = vadd.f32 %v5069, %v5181
      %v5183 = vpop.f32.mrb[0].mxu0
      %v5184 = vadd.f32 %v5071, %v5183
      %5185 = vmatprep.mubr.bf16.mxu0 %v751
      %5186 = vmatmul.mubr.bf16.gmra.mrb[0].mxu0 %v750
      %v5187 = vpop.f32.mrb[0].mxu0
      %v5188 = vadd.f32 %v5075, %v5187
      %v5189 = vpop.f32.mrb[0].mxu0
      %v5190 = vadd.f32 %v5077, %v5189
      %v5191 = vpop.f32.mrb[0].mxu0
      %v5192 = vadd.f32 %v5079, %v5191
      %v5193 = vpop.f32.mrb[0].mxu0
      %v5194 = vadd.f32 %v5081, %v5193
      %5195 = vmatprep.mubr.bf16.mxu0 %v773
      %5196 = vmatmul.mubr.bf16.gmra.mrb[0].mxu0 %v772
      %v5197 = vpop.f32.mrb[0].mxu0
      %v5198 = vadd.f32 %v5085, %v5197
      %v5199 = vpop.f32.mrb[0].mxu0
      %v5200 = vadd.f32 %v5087, %v5199
      %v5201 = vpop.f32.mrb[0].mxu0
      %v5202 = vadd.f32 %v5089, %v5201
      %v5203 = vpop.f32.mrb[0].mxu0
      %v5204 = vadd.f32 %v5091, %v5203
      %5205 = vmatprep.mubr.bf16.mxu0 %v795
      %5206 = vmatmul.mubr.bf16.gmra.mrb[0].mxu0 %v794
      %v5207 = vpop.f32.mrb[0].mxu0
      %v5208 = vadd.f32 %v5095, %v5207
      %v5209 = vpop.f32.mrb[0].mxu0
      %v5210 = vadd.f32 %v5097, %v5209
      %v5211 = vpop.f32.mrb[0].mxu0
      %v5212 = vadd.f32 %v5099, %v5211
      %v5213 = vpop.f32.mrb[0].mxu0
      %v5214 = vadd.f32 %v5101, %v5213
      %5215 = vdwg.mxu0
      %5216 = vmatprep.subr.bf16.mxu0 %v3709
      %5217 = vmatpush1.bf16.msra.mxu0 %v3708
      %5218 = vmatprep.subr.bf16.mxu0 %v3713
      %5219 = vmatpush1.bf16.msra.mxu0 %v3712
      %5220 = vmatprep.subr.bf16.mxu0 %v3717
      %5221 = vmatpush1.bf16.msra.mxu0 %v3716
      %5222 = vmatprep.subr.bf16.mxu0 %v3721
      %5223 = vmatpush1.bf16.msra.mxu0 %v3720
      %5224 = vmatprep.subr.bf16.mxu0 %v3725
      %5225 = vmatpush1.bf16.msra.mxu0 %v3724
      %5226 = vmatprep.subr.bf16.mxu0 %v3729
      %5227 = vmatpush1.bf16.msra.mxu0 %v3728
      %5228 = vmatprep.subr.bf16.mxu0 %v3733
      %5229 = vmatpush1.bf16.msra.mxu0 %v3732
      %5230 = vmatprep.subr.bf16.mxu0 %v3737
      %5231 = vmatpush1.bf16.msra.mxu0 %v3736
      %5232 = vmatprep.subr.bf16.mxu0 %v3741
      %5233 = vmatpush1.bf16.msra.mxu0 %v3740
      %5234 = vmatprep.subr.bf16.mxu0 %v3745
      %5235 = vmatpush1.bf16.msra.mxu0 %v3744
      %5236 = vmatprep.subr.bf16.mxu0 %v3749
      %5237 = vmatpush1.bf16.msra.mxu0 %v3748
      %5238 = vmatprep.subr.bf16.mxu0 %v3753
      %5239 = vmatpush1.bf16.msra.mxu0 %v3752
      %5240 = vmatprep.subr.bf16.mxu0 %v3757
      %5241 = vmatpush1.bf16.msra.mxu0 %v3756
      %5242 = vmatprep.subr.bf16.mxu0 %v3761
      %5243 = vmatpush1.bf16.msra.mxu0 %v3760
      %5244 = vmatprep.subr.bf16.mxu0 %v3765
      %5245 = vmatpush1.bf16.msra.mxu0 %v3764
      %5246 = vmatprep.subr.bf16.mxu0 %v3769
      %5247 = vmatpush1.bf16.msra.mxu0 %v3768
      %5248 = vmatprep.mubr.bf16.mxu0 %v643
      %5249 = vmatmul.mubr.bf16.gmra.mrb[0].mxu0 %v642
      %v5250 = vpop.f32.mrb[0].mxu0
      %v5251 = vadd.f32 %v5138, %v5250
      %v5252 = vpop.f32.mrb[0].mxu0
      %v5253 = vadd.f32 %v5140, %v5252
      %v5254 = vpop.f32.mrb[0].mxu0
      %v5255 = vadd.f32 %v5142, %v5254
      %v5256 = vpop.f32.mrb[0].mxu0
      %v5257 = vadd.f32 %v5144, %v5256
      %5258 = vmatprep.mubr.bf16.mxu0 %v665
      %5259 = vmatmul.mubr.bf16.gmra.mrb[0].mxu0 %v664
      %v5260 = vpop.f32.mrb[0].mxu0
      %v5261 = vadd.f32 %v5148, %v5260
      %v5262 = vpop.f32.mrb[0].mxu0
      %v5263 = vadd.f32 %v5150, %v5262
      %v5264 = vpop.f32.mrb[0].mxu0
      %v5265 = vadd.f32 %v5152, %v5264
      %v5266 = vpop.f32.mrb[0].mxu0
      %v5267 = vadd.f32 %v5154, %v5266
      %5268 = vmatprep.mubr.bf16.mxu0 %v687
      %5269 = vmatmul.mubr.bf16.gmra.mrb[0].mxu0 %v686
      %v5270 = vpop.f32.mrb[0].mxu0
      %v5271 = vadd.f32 %v5158, %v5270
      %v5272 = vpop.f32.mrb[0].mxu0
      %v5273 = vadd.f32 %v5160, %v5272
      %v5274 = vpop.f32.mrb[0].mxu0
      %v5275 = vadd.f32 %v5162, %v5274
      %v5276 = vpop.f32.mrb[0].mxu0
      %v5277 = vadd.f32 %v5164, %v5276
      %5278 = vmatprep.mubr.bf16.mxu0 %v709
      %5279 = vmatmul.mubr.bf16.gmra.mrb[0].mxu0 %v708
      %v5280 = vpop.f32.mrb[0].mxu0
      %v5281 = vadd.f32 %v5168, %v5280
      %v5282 = vpop.f32.mrb[0].mxu0
      %v5283 = vadd.f32 %v5170, %v5282
      %v5284 = vpop.f32.mrb[0].mxu0
      %v5285 = vadd.f32 %v5172, %v5284
      %v5286 = vpop.f32.mrb[0].mxu0
      %v5287 = vadd.f32 %v5174, %v5286
      %5288 = vmatprep.mubr.bf16.mxu0 %v731
      %5289 = vmatmul.mubr.bf16.gmra.mrb[0].mxu0 %v730
      %v5290 = vpop.f32.mrb[0].mxu0
      %v5291 = vadd.f32 %v5178, %v5290
      %v5292 = vpop.f32.mrb[0].mxu0
      %v5293 = vadd.f32 %v5180, %v5292
      %v5294 = vpop.f32.mrb[0].mxu0
      %v5295 = vadd.f32 %v5182, %v5294
      %v5296 = vpop.f32.mrb[0].mxu0
      %v5297 = vadd.f32 %v5184, %v5296
      %5298 = vmatprep.mubr.bf16.mxu0 %v753
      %5299 = vmatmul.mubr.bf16.gmra.mrb[0].mxu0 %v752
      %v5300 = vpop.f32.mrb[0].mxu0
      %v5301 = vadd.f32 %v5188, %v5300
      %v5302 = vpop.f32.mrb[0].mxu0
      %v5303 = vadd.f32 %v5190, %v5302
      %v5304 = vpop.f32.mrb[0].mxu0
      %v5305 = vadd.f32 %v5192, %v5304
      %v5306 = vpop.f32.mrb[0].mxu0
      %v5307 = vadd.f32 %v5194, %v5306
      %5308 = vmatprep.mubr.bf16.mxu0 %v775
      %5309 = vmatmul.mubr.bf16.gmra.mrb[0].mxu0 %v774
      %v5310 = vpop.f32.mrb[0].mxu0
      %v5311 = vadd.f32 %v5198, %v5310
      %v5312 = vpop.f32.mrb[0].mxu0
      %v5313 = vadd.f32 %v5200, %v5312
      %v5314 = vpop.f32.mrb[0].mxu0
      %v5315 = vadd.f32 %v5202, %v5314
      %v5316 = vpop.f32.mrb[0].mxu0
      %v5317 = vadd.f32 %v5204, %v5316
      %5318 = vmatprep.mubr.bf16.mxu0 %v797
      %5319 = vmatmul.mubr.bf16.gmra.mrb[0].mxu0 %v796
      %v5320 = vpop.f32.mrb[0].mxu0
      %v5321 = vadd.f32 %v5208, %v5320
      %v5322 = vpop.f32.mrb[0].mxu0
      %v5323 = vadd.f32 %v5210, %v5322
      %v5324 = vpop.f32.mrb[0].mxu0
      %v5325 = vadd.f32 %v5212, %v5324
      %v5326 = vpop.f32.mrb[0].mxu0
      %v5327 = vadd.f32 %v5214, %v5326
      %5328 = vdwg.mxu0
      %5329 = vmatprep.subr.bf16.mxu0 %v3773
      %5330 = vmatpush1.bf16.msra.mxu0 %v3772
      %5331 = vmatprep.subr.bf16.mxu0 %v3777
      %5332 = vmatpush1.bf16.msra.mxu0 %v3776
      %5333 = vmatprep.subr.bf16.mxu0 %v3781
      %5334 = vmatpush1.bf16.msra.mxu0 %v3780
      %5335 = vmatprep.subr.bf16.mxu0 %v3785
      %5336 = vmatpush1.bf16.msra.mxu0 %v3784
      %5337 = vmatprep.subr.bf16.mxu0 %v3789
      %5338 = vmatpush1.bf16.msra.mxu0 %v3788
      %5339 = vmatprep.subr.bf16.mxu0 %v3793
      %5340 = vmatpush1.bf16.msra.mxu0 %v3792
      %5341 = vmatprep.subr.bf16.mxu0 %v3797
      %5342 = vmatpush1.bf16.msra.mxu0 %v3796
      %5343 = vmatprep.subr.bf16.mxu0 %v3801
      %5344 = vmatpush1.bf16.msra.mxu0 %v3800
      %5345 = vmatprep.subr.bf16.mxu0 %v3805
      %5346 = vmatpush1.bf16.msra.mxu0 %v3804
      %5347 = vmatprep.subr.bf16.mxu0 %v3809
      %5348 = vmatpush1.bf16.msra.mxu0 %v3808
      %5349 = vmatprep.subr.bf16.mxu0 %v3813
      %5350 = vmatpush1.bf16.msra.mxu0 %v3812
      %5351 = vmatprep.subr.bf16.mxu0 %v3817
      %5352 = vmatpush1.bf16.msra.mxu0 %v3816
      %5353 = vmatprep.subr.bf16.mxu0 %v3821
      %5354 = vmatpush1.bf16.msra.mxu0 %v3820
      %5355 = vmatprep.subr.bf16.mxu0 %v3825
      %5356 = vmatpush1.bf16.msra.mxu0 %v3824
      %5357 = vmatprep.subr.bf16.mxu0 %v3829
      %5358 = vmatpush1.bf16.msra.mxu0 %v3828
      %5359 = vmatprep.subr.bf16.mxu0 %v3833
      %5360 = vmatpush1.bf16.msra.mxu0 %v3832
      %5361 = vmatprep.mubr.bf16.mxu0 %v645
      %5362 = vmatmul.mubr.bf16.gmra.mrb[0].mxu0 %v644
      %v5363 = vpop.f32.mrb[0].mxu0
      %v5364 = vadd.f32 %v5251, %v5363
      %v5365 = vpop.f32.mrb[0].mxu0
      %v5366 = vadd.f32 %v5253, %v5365
      %v5367 = vpop.f32.mrb[0].mxu0
      %v5368 = vadd.f32 %v5255, %v5367
      %v5369 = vpop.f32.mrb[0].mxu0
      %v5370 = vadd.f32 %v5257, %v5369
      %5371 = vmatprep.mubr.bf16.mxu0 %v667
      %5372 = vmatmul.mubr.bf16.gmra.mrb[0].mxu0 %v666
      %v5373 = vpop.f32.mrb[0].mxu0
      %v5374 = vadd.f32 %v5261, %v5373
      %v5375 = vpop.f32.mrb[0].mxu0
      %v5376 = vadd.f32 %v5263, %v5375
      %v5377 = vpop.f32.mrb[0].mxu0
      %v5378 = vadd.f32 %v5265, %v5377
      %v5379 = vpop.f32.mrb[0].mxu0
      %v5380 = vadd.f32 %v5267, %v5379
      %5381 = vmatprep.mubr.bf16.mxu0 %v689
      %5382 = vmatmul.mubr.bf16.gmra.mrb[0].mxu0 %v688
      %v5383 = vpop.f32.mrb[0].mxu0
      %v5384 = vadd.f32 %v5271, %v5383
      %v5385 = vpop.f32.mrb[0].mxu0
      %v5386 = vadd.f32 %v5273, %v5385
      %v5387 = vpop.f32.mrb[0].mxu0
      %v5388 = vadd.f32 %v5275, %v5387
      %v5389 = vpop.f32.mrb[0].mxu0
      %v5390 = vadd.f32 %v5277, %v5389
      %5391 = vmatprep.mubr.bf16.mxu0 %v711
      %5392 = vmatmul.mubr.bf16.gmra.mrb[0].mxu0 %v710
      %v5393 = vpop.f32.mrb[0].mxu0
      %v5394 = vadd.f32 %v5281, %v5393
      %v5395 = vpop.f32.mrb[0].mxu0
      %v5396 = vadd.f32 %v5283, %v5395
      %v5397 = vpop.f32.mrb[0].mxu0
      %v5398 = vadd.f32 %v5285, %v5397
      %v5399 = vpop.f32.mrb[0].mxu0
      %v5400 = vadd.f32 %v5287, %v5399
      %5401 = vmatprep.mubr.bf16.mxu0 %v733
      %5402 = vmatmul.mubr.bf16.gmra.mrb[0].mxu0 %v732
      %v5403 = vpop.f32.mrb[0].mxu0
      %v5404 = vadd.f32 %v5291, %v5403
      %v5405 = vpop.f32.mrb[0].mxu0
      %v5406 = vadd.f32 %v5293, %v5405
      %v5407 = vpop.f32.mrb[0].mxu0
      %v5408 = vadd.f32 %v5295, %v5407
      %v5409 = vpop.f32.mrb[0].mxu0
      %v5410 = vadd.f32 %v5297, %v5409
      %5411 = vmatprep.mubr.bf16.mxu0 %v755
      %5412 = vmatmul.mubr.bf16.gmra.mrb[0].mxu0 %v754
      %v5413 = vpop.f32.mrb[0].mxu0
      %v5414 = vadd.f32 %v5301, %v5413
      %v5415 = vpop.f32.mrb[0].mxu0
      %v5416 = vadd.f32 %v5303, %v5415
      %v5417 = vpop.f32.mrb[0].mxu0
      %v5418 = vadd.f32 %v5305, %v5417
      %v5419 = vpop.f32.mrb[0].mxu0
      %v5420 = vadd.f32 %v5307, %v5419
      %5421 = vmatprep.mubr.bf16.mxu0 %v777
      %5422 = vmatmul.mubr.bf16.gmra.mrb[0].mxu0 %v776
      %v5423 = vpop.f32.mrb[0].mxu0
      %v5424 = vadd.f32 %v5311, %v5423
      %v5425 = vpop.f32.mrb[0].mxu0
      %v5426 = vadd.f32 %v5313, %v5425
      %v5427 = vpop.f32.mrb[0].mxu0
      %v5428 = vadd.f32 %v5315, %v5427
      %v5429 = vpop.f32.mrb[0].mxu0
      %v5430 = vadd.f32 %v5317, %v5429
      %5431 = vmatprep.mubr.bf16.mxu0 %v799
      %5432 = vmatmul.mubr.bf16.gmra.mrb[0].mxu0 %v798
      %v5433 = vpop.f32.mrb[0].mxu0
      %v5434 = vadd.f32 %v5321, %v5433
      %v5435 = vpop.f32.mrb[0].mxu0
      %v5436 = vadd.f32 %v5323, %v5435
      %v5437 = vpop.f32.mrb[0].mxu0
      %v5438 = vadd.f32 %v5325, %v5437
      %v5439 = vpop.f32.mrb[0].mxu0
      %v5440 = vadd.f32 %v5327, %v5439
      %5441 = vdwg.mxu0
      %5442 = vmatprep.subr.bf16.mxu0 %v3837
      %5443 = vmatpush1.bf16.msra.mxu0 %v3836
      %5444 = vmatprep.subr.bf16.mxu0 %v3841
      %5445 = vmatpush1.bf16.msra.mxu0 %v3840
      %5446 = vmatprep.subr.bf16.mxu0 %v3845
      %5447 = vmatpush1.bf16.msra.mxu0 %v3844
      %5448 = vmatprep.subr.bf16.mxu0 %v3849
      %5449 = vmatpush1.bf16.msra.mxu0 %v3848
      %5450 = vmatprep.subr.bf16.mxu0 %v3853
      %5451 = vmatpush1.bf16.msra.mxu0 %v3852
      %5452 = vmatprep.subr.bf16.mxu0 %v3857
      %5453 = vmatpush1.bf16.msra.mxu0 %v3856
      %5454 = vmatprep.subr.bf16.mxu0 %v3861
      %5455 = vmatpush1.bf16.msra.mxu0 %v3860
      %5456 = vmatprep.subr.bf16.mxu0 %v3865
      %5457 = vmatpush1.bf16.msra.mxu0 %v3864
      %5458 = vmatprep.subr.bf16.mxu0 %v3869
      %5459 = vmatpush1.bf16.msra.mxu0 %v3868
      %5460 = vmatprep.subr.bf16.mxu0 %v3873
      %5461 = vmatpush1.bf16.msra.mxu0 %v3872
      %5462 = vmatprep.subr.bf16.mxu0 %v3877
      %5463 = vmatpush1.bf16.msra.mxu0 %v3876
      %5464 = vmatprep.subr.bf16.mxu0 %v3881
      %5465 = vmatpush1.bf16.msra.mxu0 %v3880
      %5466 = vmatprep.subr.bf16.mxu0 %v3885
      %5467 = vmatpush1.bf16.msra.mxu0 %v3884
      %5468 = vmatprep.subr.bf16.mxu0 %v3889
      %5469 = vmatpush1.bf16.msra.mxu0 %v3888
      %5470 = vmatprep.subr.bf16.mxu0 %v3893
      %5471 = vmatpush1.bf16.msra.mxu0 %v3892
      %5472 = vmatprep.subr.bf16.mxu0 %v3897
      %5473 = vmatpush1.bf16.msra.mxu0 %v3896
      %5474 = vmatprep.mubr.bf16.mxu0 %v647
      %5475 = vmatmul.mubr.bf16.gmra.mrb[0].mxu0 %v646
      %v5476 = vpop.f32.mrb[0].mxu0
      %v5477 = vadd.f32 %v5364, %v5476
      %v5478 = vpop.f32.mrb[0].mxu0
      %v5479 = vadd.f32 %v5366, %v5478
      %v5480 = vpop.f32.mrb[0].mxu0
      %v5481 = vadd.f32 %v5368, %v5480
      %v5482 = vpop.f32.mrb[0].mxu0
      %v5483 = vadd.f32 %v5370, %v5482
      %5484 = vmatprep.mubr.bf16.mxu0 %v669
      %5485 = vmatmul.mubr.bf16.gmra.mrb[0].mxu0 %v668
      %v5486 = vpop.f32.mrb[0].mxu0
      %v5487 = vadd.f32 %v5374, %v5486
      %v5488 = vpop.f32.mrb[0].mxu0
      %v5489 = vadd.f32 %v5376, %v5488
      %v5490 = vpop.f32.mrb[0].mxu0
      %v5491 = vadd.f32 %v5378, %v5490
      %v5492 = vpop.f32.mrb[0].mxu0
      %v5493 = vadd.f32 %v5380, %v5492
      %5494 = vmatprep.mubr.bf16.mxu0 %v691
      %5495 = vmatmul.mubr.bf16.gmra.mrb[0].mxu0 %v690
      %v5496 = vpop.f32.mrb[0].mxu0
      %v5497 = vadd.f32 %v5384, %v5496
      %v5498 = vpop.f32.mrb[0].mxu0
      %v5499 = vadd.f32 %v5386, %v5498
      %v5500 = vpop.f32.mrb[0].mxu0
      %v5501 = vadd.f32 %v5388, %v5500
      %v5502 = vpop.f32.mrb[0].mxu0
      %v5503 = vadd.f32 %v5390, %v5502
      %5504 = vmatprep.mubr.bf16.mxu0 %v713
      %5505 = vmatmul.mubr.bf16.gmra.mrb[0].mxu0 %v712
      %v5506 = vpop.f32.mrb[0].mxu0
      %v5507 = vadd.f32 %v5394, %v5506
      %v5508 = vpop.f32.mrb[0].mxu0
      %v5509 = vadd.f32 %v5396, %v5508
      %v5510 = vpop.f32.mrb[0].mxu0
      %v5511 = vadd.f32 %v5398, %v5510
      %v5512 = vpop.f32.mrb[0].mxu0
      %v5513 = vadd.f32 %v5400, %v5512
      %5514 = vmatprep.mubr.bf16.mxu0 %v735
      %5515 = vmatmul.mubr.bf16.gmra.mrb[0].mxu0 %v734
      %v5516 = vpop.f32.mrb[0].mxu0
      %v5517 = vadd.f32 %v5404, %v5516
      %v5518 = vpop.f32.mrb[0].mxu0
      %v5519 = vadd.f32 %v5406, %v5518
      %v5520 = vpop.f32.mrb[0].mxu0
      %v5521 = vadd.f32 %v5408, %v5520
      %v5522 = vpop.f32.mrb[0].mxu0
      %v5523 = vadd.f32 %v5410, %v5522
      %5524 = vmatprep.mubr.bf16.mxu0 %v757
      %5525 = vmatmul.mubr.bf16.gmra.mrb[0].mxu0 %v756
      %v5526 = vpop.f32.mrb[0].mxu0
      %v5527 = vadd.f32 %v5414, %v5526
      %v5528 = vpop.f32.mrb[0].mxu0
      %v5529 = vadd.f32 %v5416, %v5528
      %v5530 = vpop.f32.mrb[0].mxu0
      %v5531 = vadd.f32 %v5418, %v5530
      %v5532 = vpop.f32.mrb[0].mxu0
      %v5533 = vadd.f32 %v5420, %v5532
      %5534 = vmatprep.mubr.bf16.mxu0 %v779
      %5535 = vmatmul.mubr.bf16.gmra.mrb[0].mxu0 %v778
      %v5536 = vpop.f32.mrb[0].mxu0
      %v5537 = vadd.f32 %v5424, %v5536
      %v5538 = vpop.f32.mrb[0].mxu0
      %v5539 = vadd.f32 %v5426, %v5538
      %v5540 = vpop.f32.mrb[0].mxu0
      %v5541 = vadd.f32 %v5428, %v5540
      %v5542 = vpop.f32.mrb[0].mxu0
      %v5543 = vadd.f32 %v5430, %v5542
      %5544 = vmatprep.mubr.bf16.mxu0 %v801
      %5545 = vmatmul.mubr.bf16.gmra.mrb[0].mxu0 %v800
      %v5546 = vpop.f32.mrb[0].mxu0
      %v5547 = vadd.f32 %v5434, %v5546
      %v5548 = vpop.f32.mrb[0].mxu0
      %v5549 = vadd.f32 %v5436, %v5548
      %v5550 = vpop.f32.mrb[0].mxu0
      %v5551 = vadd.f32 %v5438, %v5550
      %v5552 = vpop.f32.mrb[0].mxu0
      %v5553 = vadd.f32 %v5440, %v5552
      %5554 = vdwg.mxu0
      %5555 = vmatprep.subr.bf16.mxu0 %v3901
      %5556 = vmatpush1.bf16.msra.mxu0 %v3900
      %5557 = vmatprep.subr.bf16.mxu0 %v3905
      %5558 = vmatpush1.bf16.msra.mxu0 %v3904
      %5559 = vmatprep.subr.bf16.mxu0 %v3909
      %5560 = vmatpush1.bf16.msra.mxu0 %v3908
      %5561 = vmatprep.subr.bf16.mxu0 %v3913
      %5562 = vmatpush1.bf16.msra.mxu0 %v3912
      %5563 = vmatprep.subr.bf16.mxu0 %v3917
      %5564 = vmatpush1.bf16.msra.mxu0 %v3916
      %5565 = vmatprep.subr.bf16.mxu0 %v3921
      %5566 = vmatpush1.bf16.msra.mxu0 %v3920
      %5567 = vmatprep.subr.bf16.mxu0 %v3925
      %5568 = vmatpush1.bf16.msra.mxu0 %v3924
      %5569 = vmatprep.subr.bf16.mxu0 %v3929
      %5570 = vmatpush1.bf16.msra.mxu0 %v3928
      %5571 = vmatprep.subr.bf16.mxu0 %v3933
      %5572 = vmatpush1.bf16.msra.mxu0 %v3932
      %5573 = vmatprep.subr.bf16.mxu0 %v3937
      %5574 = vmatpush1.bf16.msra.mxu0 %v3936
      %5575 = vmatprep.subr.bf16.mxu0 %v3941
      %5576 = vmatpush1.bf16.msra.mxu0 %v3940
      %5577 = vmatprep.subr.bf16.mxu0 %v3945
      %5578 = vmatpush1.bf16.msra.mxu0 %v3944
      %5579 = vmatprep.subr.bf16.mxu0 %v3949
      %5580 = vmatpush1.bf16.msra.mxu0 %v3948
      %5581 = vmatprep.subr.bf16.mxu0 %v3953
      %5582 = vmatpush1.bf16.msra.mxu0 %v3952
      %5583 = vmatprep.subr.bf16.mxu0 %v3957
      %5584 = vmatpush1.bf16.msra.mxu0 %v3956
      %5585 = vmatprep.subr.bf16.mxu0 %v3961
      %5586 = vmatpush1.bf16.msra.mxu0 %v3960
      %5587 = vmatprep.mubr.bf16.mxu0 %v649
      %5588 = vmatmul.mubr.bf16.gmra.mrb[0].mxu0 %v648
      %v5589 = vpop.f32.mrb[0].mxu0
      %v5590 = vadd.f32 %v5477, %v5589
      %v5591 = vpop.f32.mrb[0].mxu0
      %v5592 = vadd.f32 %v5479, %v5591
      %v5593 = vpop.f32.mrb[0].mxu0
      %v5594 = vadd.f32 %v5481, %v5593
      %v5595 = vpop.f32.mrb[0].mxu0
      %v5596 = vadd.f32 %v5483, %v5595
      %5597 = vmatprep.mubr.bf16.mxu0 %v671
      %5598 = vmatmul.mubr.bf16.gmra.mrb[0].mxu0 %v670
      %v5599 = vpop.f32.mrb[0].mxu0
      %v5600 = vadd.f32 %v5487, %v5599
      %v5601 = vpop.f32.mrb[0].mxu0
      %v5602 = vadd.f32 %v5489, %v5601
      %v5603 = vpop.f32.mrb[0].mxu0
      %v5604 = vadd.f32 %v5491, %v5603
      %v5605 = vpop.f32.mrb[0].mxu0
      %v5606 = vadd.f32 %v5493, %v5605
      %5607 = vmatprep.mubr.bf16.mxu0 %v693
      %5608 = vmatmul.mubr.bf16.gmra.mrb[0].mxu0 %v692
      %v5609 = vpop.f32.mrb[0].mxu0
      %v5610 = vadd.f32 %v5497, %v5609
      %v5611 = vpop.f32.mrb[0].mxu0
      %v5612 = vadd.f32 %v5499, %v5611
      %v5613 = vpop.f32.mrb[0].mxu0
      %v5614 = vadd.f32 %v5501, %v5613
      %v5615 = vpop.f32.mrb[0].mxu0
      %v5616 = vadd.f32 %v5503, %v5615
      %5617 = vmatprep.mubr.bf16.mxu0 %v715
      %5618 = vmatmul.mubr.bf16.gmra.mrb[0].mxu0 %v714
      %v5619 = vpop.f32.mrb[0].mxu0
      %v5620 = vadd.f32 %v5507, %v5619
      %v5621 = vpop.f32.mrb[0].mxu0
      %v5622 = vadd.f32 %v5509, %v5621
      %v5623 = vpop.f32.mrb[0].mxu0
      %v5624 = vadd.f32 %v5511, %v5623
      %v5625 = vpop.f32.mrb[0].mxu0
      %v5626 = vadd.f32 %v5513, %v5625
      %5627 = vmatprep.mubr.bf16.mxu0 %v737
      %5628 = vmatmul.mubr.bf16.gmra.mrb[0].mxu0 %v736
      %v5629 = vpop.f32.mrb[0].mxu0
      %v5630 = vadd.f32 %v5517, %v5629
      %v5631 = vpop.f32.mrb[0].mxu0
      %v5632 = vadd.f32 %v5519, %v5631
      %v5633 = vpop.f32.mrb[0].mxu0
      %v5634 = vadd.f32 %v5521, %v5633
      %v5635 = vpop.f32.mrb[0].mxu0
      %v5636 = vadd.f32 %v5523, %v5635
      %5637 = vmatprep.mubr.bf16.mxu0 %v759
      %5638 = vmatmul.mubr.bf16.gmra.mrb[0].mxu0 %v758
      %v5639 = vpop.f32.mrb[0].mxu0
      %v5640 = vadd.f32 %v5527, %v5639
      %v5641 = vpop.f32.mrb[0].mxu0
      %v5642 = vadd.f32 %v5529, %v5641
      %v5643 = vpop.f32.mrb[0].mxu0
      %v5644 = vadd.f32 %v5531, %v5643
      %v5645 = vpop.f32.mrb[0].mxu0
      %v5646 = vadd.f32 %v5533, %v5645
      %5647 = vmatprep.mubr.bf16.mxu0 %v781
      %5648 = vmatmul.mubr.bf16.gmra.mrb[0].mxu0 %v780
      %v5649 = vpop.f32.mrb[0].mxu0
      %v5650 = vadd.f32 %v5537, %v5649
      %v5651 = vpop.f32.mrb[0].mxu0
      %v5652 = vadd.f32 %v5539, %v5651
      %v5653 = vpop.f32.mrb[0].mxu0
      %v5654 = vadd.f32 %v5541, %v5653
      %v5655 = vpop.f32.mrb[0].mxu0
      %v5656 = vadd.f32 %v5543, %v5655
      %5657 = vmatprep.mubr.bf16.mxu0 %v803
      %5658 = vmatmul.mubr.bf16.gmra.mrb[0].mxu0 %v802
      %v5659 = vpop.f32.mrb[0].mxu0
      %v5660 = vadd.f32 %v5547, %v5659
      %v5661 = vpop.f32.mrb[0].mxu0
      %v5662 = vadd.f32 %v5549, %v5661
      %v5663 = vpop.f32.mrb[0].mxu0
      %v5664 = vadd.f32 %v5551, %v5663
      %v5665 = vpop.f32.mrb[0].mxu0
      %v5666 = vadd.f32 %v5553, %v5665
      %5667 = vdwg.mxu0
      %5668 = vmatprep.subr.bf16.mxu0 %v3965
      %5669 = vmatpush1.bf16.msra.mxu0 %v3964
      %5670 = vmatprep.subr.bf16.mxu0 %v3969
      %5671 = vmatpush1.bf16.msra.mxu0 %v3968
      %5672 = vmatprep.subr.bf16.mxu0 %v3973
      %5673 = vmatpush1.bf16.msra.mxu0 %v3972
      %5674 = vmatprep.subr.bf16.mxu0 %v3977
      %5675 = vmatpush1.bf16.msra.mxu0 %v3976
      %5676 = vmatprep.subr.bf16.mxu0 %v3981
      %5677 = vmatpush1.bf16.msra.mxu0 %v3980
      %5678 = vmatprep.subr.bf16.mxu0 %v3985
      %5679 = vmatpush1.bf16.msra.mxu0 %v3984
      %5680 = vmatprep.subr.bf16.mxu0 %v3989
      %5681 = vmatpush1.bf16.msra.mxu0 %v3988
      %5682 = vmatprep.subr.bf16.mxu0 %v3993
      %5683 = vmatpush1.bf16.msra.mxu0 %v3992
      %5684 = vmatprep.subr.bf16.mxu0 %v3997
      %5685 = vmatpush1.bf16.msra.mxu0 %v3996
      %5686 = vmatprep.subr.bf16.mxu0 %v4001
      %5687 = vmatpush1.bf16.msra.mxu0 %v4000
      %5688 = vmatprep.subr.bf16.mxu0 %v4005
      %5689 = vmatpush1.bf16.msra.mxu0 %v4004
      %5690 = vmatprep.subr.bf16.mxu0 %v4009
      %5691 = vmatpush1.bf16.msra.mxu0 %v4008
      %5692 = vmatprep.subr.bf16.mxu0 %v4013
      %5693 = vmatpush1.bf16.msra.mxu0 %v4012
      %5694 = vmatprep.subr.bf16.mxu0 %v4017
      %5695 = vmatpush1.bf16.msra.mxu0 %v4016
      %5696 = vmatprep.subr.bf16.mxu0 %v4021
      %5697 = vmatpush1.bf16.msra.mxu0 %v4020
      %5698 = vmatprep.subr.bf16.mxu0 %v4025
      %5699 = vmatpush1.bf16.msra.mxu0 %v4024
      %5700 = vmatprep.mubr.bf16.mxu0 %v651
      %5701 = vmatmul.mubr.bf16.gmra.mrb[0].mxu0 %v650
      %v5702 = vpop.f32.mrb[0].mxu0
      %v5703 = vadd.f32 %v5590, %v5702
      %v5704 = vpop.f32.mrb[0].mxu0
      %v5705 = vadd.f32 %v5592, %v5704
      %v5706 = vpop.f32.mrb[0].mxu0
      %v5707 = vadd.f32 %v5594, %v5706
      %v5708 = vpop.f32.mrb[0].mxu0
      %v5709 = vadd.f32 %v5596, %v5708
      %5710 = vmatprep.mubr.bf16.mxu0 %v673
      %5711 = vmatmul.mubr.bf16.gmra.mrb[0].mxu0 %v672
      %v5712 = vpop.f32.mrb[0].mxu0
      %v5713 = vadd.f32 %v5600, %v5712
      %v5714 = vpop.f32.mrb[0].mxu0
      %v5715 = vadd.f32 %v5602, %v5714
      %v5716 = vpop.f32.mrb[0].mxu0
      %v5717 = vadd.f32 %v5604, %v5716
      %v5718 = vpop.f32.mrb[0].mxu0
      %v5719 = vadd.f32 %v5606, %v5718
      %5720 = vmatprep.mubr.bf16.mxu0 %v695
      %5721 = vmatmul.mubr.bf16.gmra.mrb[0].mxu0 %v694
      %v5722 = vpop.f32.mrb[0].mxu0
      %v5723 = vadd.f32 %v5610, %v5722
      %v5724 = vpop.f32.mrb[0].mxu0
      %v5725 = vadd.f32 %v5612, %v5724
      %v5726 = vpop.f32.mrb[0].mxu0
      %v5727 = vadd.f32 %v5614, %v5726
      %v5728 = vpop.f32.mrb[0].mxu0
      %v5729 = vadd.f32 %v5616, %v5728
      %5730 = vmatprep.mubr.bf16.mxu0 %v717
      %5731 = vmatmul.mubr.bf16.gmra.mrb[0].mxu0 %v716
      %v5732 = vpop.f32.mrb[0].mxu0
      %v5733 = vadd.f32 %v5620, %v5732
      %v5734 = vpop.f32.mrb[0].mxu0
      %v5735 = vadd.f32 %v5622, %v5734
      %v5736 = vpop.f32.mrb[0].mxu0
      %v5737 = vadd.f32 %v5624, %v5736
      %v5738 = vpop.f32.mrb[0].mxu0
      %v5739 = vadd.f32 %v5626, %v5738
      %5740 = vmatprep.mubr.bf16.mxu0 %v739
      %5741 = vmatmul.mubr.bf16.gmra.mrb[0].mxu0 %v738
      %v5742 = vpop.f32.mrb[0].mxu0
      %v5743 = vadd.f32 %v5630, %v5742
      %v5744 = vpop.f32.mrb[0].mxu0
      %v5745 = vadd.f32 %v5632, %v5744
      %v5746 = vpop.f32.mrb[0].mxu0
      %v5747 = vadd.f32 %v5634, %v5746
      %v5748 = vpop.f32.mrb[0].mxu0
      %v5749 = vadd.f32 %v5636, %v5748
      %5750 = vmatprep.mubr.bf16.mxu0 %v761
      %5751 = vmatmul.mubr.bf16.gmra.mrb[0].mxu0 %v760
      %v5752 = vpop.f32.mrb[0].mxu0
      %v5753 = vadd.f32 %v5640, %v5752
      %v5754 = vpop.f32.mrb[0].mxu0
      %v5755 = vadd.f32 %v5642, %v5754
      %v5756 = vpop.f32.mrb[0].mxu0
      %v5757 = vadd.f32 %v5644, %v5756
      %v5758 = vpop.f32.mrb[0].mxu0
      %v5759 = vadd.f32 %v5646, %v5758
      %5760 = vmatprep.mubr.bf16.mxu0 %v783
      %5761 = vmatmul.mubr.bf16.gmra.mrb[0].mxu0 %v782
      %v5762 = vpop.f32.mrb[0].mxu0
      %v5763 = vadd.f32 %v5650, %v5762
      %v5764 = vpop.f32.mrb[0].mxu0
      %v5765 = vadd.f32 %v5652, %v5764
      %v5766 = vpop.f32.mrb[0].mxu0
      %v5767 = vadd.f32 %v5654, %v5766
      %v5768 = vpop.f32.mrb[0].mxu0
      %v5769 = vadd.f32 %v5656, %v5768
      %5770 = vmatprep.mubr.bf16.mxu0 %v805
      %5771 = vmatmul.mubr.bf16.gmra.mrb[0].mxu0 %v804
      %v5772 = vpop.f32.mrb[0].mxu0
      %v5773 = vadd.f32 %v5660, %v5772
      %v5774 = vpop.f32.mrb[0].mxu0
      %v5775 = vadd.f32 %v5662, %v5774
      %v5776 = vpop.f32.mrb[0].mxu0
      %v5777 = vadd.f32 %v5664, %v5776
      %v5778 = vpop.f32.mrb[0].mxu0
      %v5779 = vadd.f32 %v5666, %v5778
      %5780 = vdwg.mxu0
      %5781 = vmatprep.subr.bf16.mxu0 %v4029
      %5782 = vmatpush1.bf16.msra.mxu0 %v4028
      %5783 = vmatprep.subr.bf16.mxu0 %v4033
      %5784 = vmatpush1.bf16.msra.mxu0 %v4032
      %5785 = vmatprep.subr.bf16.mxu0 %v4037
      %5786 = vmatpush1.bf16.msra.mxu0 %v4036
      %5787 = vmatprep.subr.bf16.mxu0 %v4041
      %5788 = vmatpush1.bf16.msra.mxu0 %v4040
      %5789 = vmatprep.subr.bf16.mxu0 %v4045
      %5790 = vmatpush1.bf16.msra.mxu0 %v4044
      %5791 = vmatprep.subr.bf16.mxu0 %v4049
      %5792 = vmatpush1.bf16.msra.mxu0 %v4048
      %5793 = vmatprep.subr.bf16.mxu0 %v4053
      %5794 = vmatpush1.bf16.msra.mxu0 %v4052
      %5795 = vmatprep.subr.bf16.mxu0 %v4057
      %5796 = vmatpush1.bf16.msra.mxu0 %v4056
      %5797 = vmatprep.subr.bf16.mxu0 %v4061
      %5798 = vmatpush1.bf16.msra.mxu0 %v4060
      %5799 = vmatprep.subr.bf16.mxu0 %v4065
      %5800 = vmatpush1.bf16.msra.mxu0 %v4064
      %5801 = vmatprep.subr.bf16.mxu0 %v4069
      %5802 = vmatpush1.bf16.msra.mxu0 %v4068
      %5803 = vmatprep.subr.bf16.mxu0 %v4073
      %5804 = vmatpush1.bf16.msra.mxu0 %v4072
      %5805 = vmatprep.subr.bf16.mxu0 %v4077
      %5806 = vmatpush1.bf16.msra.mxu0 %v4076
      %5807 = vmatprep.subr.bf16.mxu0 %v4081
      %5808 = vmatpush1.bf16.msra.mxu0 %v4080
      %5809 = vmatprep.subr.bf16.mxu0 %v4085
      %5810 = vmatpush1.bf16.msra.mxu0 %v4084
      %5811 = vmatprep.subr.bf16.mxu0 %v4089
      %5812 = vmatpush1.bf16.msra.mxu0 %v4088
      %5813 = vmatprep.mubr.bf16.mxu0 %v653
      %5814 = vmatmul.mubr.bf16.gmra.mrb[0].mxu0 %v652
      %v5815 = vpop.f32.mrb[0].mxu0
      %v5816 = vadd.f32 %v5703, %v5815
      %v5817 = vpop.f32.mrb[0].mxu0
      %v5818 = vadd.f32 %v5705, %v5817
      %v5819 = vpop.f32.mrb[0].mxu0
      %v5820 = vadd.f32 %v5707, %v5819
      %v5821 = vpop.f32.mrb[0].mxu0
      %v5822 = vadd.f32 %v5709, %v5821
      %5823 = vmatprep.mubr.bf16.mxu0 %v675
      %5824 = vmatmul.mubr.bf16.gmra.mrb[0].mxu0 %v674
      %v5825 = vpop.f32.mrb[0].mxu0
      %v5826 = vadd.f32 %v5713, %v5825
      %v5827 = vpop.f32.mrb[0].mxu0
      %v5828 = vadd.f32 %v5715, %v5827
      %v5829 = vpop.f32.mrb[0].mxu0
      %v5830 = vadd.f32 %v5717, %v5829
      %v5831 = vpop.f32.mrb[0].mxu0
      %v5832 = vadd.f32 %v5719, %v5831
      %5833 = vmatprep.mubr.bf16.mxu0 %v697
      %5834 = vmatmul.mubr.bf16.gmra.mrb[0].mxu0 %v696
      %v5835 = vpop.f32.mrb[0].mxu0
      %v5836 = vadd.f32 %v5723, %v5835
      %v5837 = vpop.f32.mrb[0].mxu0
      %v5838 = vadd.f32 %v5725, %v5837
      %v5839 = vpop.f32.mrb[0].mxu0
      %v5840 = vadd.f32 %v5727, %v5839
      %v5841 = vpop.f32.mrb[0].mxu0
      %v5842 = vadd.f32 %v5729, %v5841
      %5843 = vmatprep.mubr.bf16.mxu0 %v719
      %5844 = vmatmul.mubr.bf16.gmra.mrb[0].mxu0 %v718
      %v5845 = vpop.f32.mrb[0].mxu0
      %v5846 = vadd.f32 %v5733, %v5845
      %v5847 = vpop.f32.mrb[0].mxu0
      %v5848 = vadd.f32 %v5735, %v5847
      %v5849 = vpop.f32.mrb[0].mxu0
      %v5850 = vadd.f32 %v5737, %v5849
      %v5851 = vpop.f32.mrb[0].mxu0
      %v5852 = vadd.f32 %v5739, %v5851
      %5853 = vmatprep.mubr.bf16.mxu0 %v741
      %5854 = vmatmul.mubr.bf16.gmra.mrb[0].mxu0 %v740
      %v5855 = vpop.f32.mrb[0].mxu0
      %v5856 = vadd.f32 %v5743, %v5855
      %v5857 = vpop.f32.mrb[0].mxu0
      %v5858 = vadd.f32 %v5745, %v5857
      %v5859 = vpop.f32.mrb[0].mxu0
      %v5860 = vadd.f32 %v5747, %v5859
      %v5861 = vpop.f32.mrb[0].mxu0
      %v5862 = vadd.f32 %v5749, %v5861
      %5863 = vmatprep.mubr.bf16.mxu0 %v763
      %5864 = vmatmul.mubr.bf16.gmra.mrb[0].mxu0 %v762
      %v5865 = vpop.f32.mrb[0].mxu0
      %v5866 = vadd.f32 %v5753, %v5865
      %v5867 = vpop.f32.mrb[0].mxu0
      %v5868 = vadd.f32 %v5755, %v5867
      %v5869 = vpop.f32.mrb[0].mxu0
      %v5870 = vadd.f32 %v5757, %v5869
      %v5871 = vpop.f32.mrb[0].mxu0
      %v5872 = vadd.f32 %v5759, %v5871
      %5873 = vmatprep.mubr.bf16.mxu0 %v785
      %5874 = vmatmul.mubr.bf16.gmra.mrb[0].mxu0 %v784
      %v5875 = vpop.f32.mrb[0].mxu0
      %v5876 = vadd.f32 %v5763, %v5875
      %v5877 = vpop.f32.mrb[0].mxu0
      %v5878 = vadd.f32 %v5765, %v5877
      %v5879 = vpop.f32.mrb[0].mxu0
      %v5880 = vadd.f32 %v5767, %v5879
      %v5881 = vpop.f32.mrb[0].mxu0
      %v5882 = vadd.f32 %v5769, %v5881
      %5883 = vmatprep.mubr.bf16.mxu0 %v807
      %5884 = vmatmul.mubr.bf16.gmra.mrb[0].mxu0 %v806
      %v5885 = vpop.f32.mrb[0].mxu0
      %v5886 = vadd.f32 %v5773, %v5885
      %v5887 = vpop.f32.mrb[0].mxu0
      %v5888 = vadd.f32 %v5775, %v5887
      %v5889 = vpop.f32.mrb[0].mxu0
      %v5890 = vadd.f32 %v5777, %v5889
      %v5891 = vpop.f32.mrb[0].mxu0
      %v5892 = vadd.f32 %v5779, %v5891
      %5893 = vdwg.mxu0
      %5894 = vmatprep.subr.bf16.mxu0 %v4093
      %5895 = vmatpush1.bf16.msra.mxu0 %v4092
      %5896 = vmatprep.subr.bf16.mxu0 %v4097
      %5897 = vmatpush1.bf16.msra.mxu0 %v4096
      %5898 = vmatprep.subr.bf16.mxu0 %v4101
      %5899 = vmatpush1.bf16.msra.mxu0 %v4100
      %5900 = vmatprep.subr.bf16.mxu0 %v4105
      %5901 = vmatpush1.bf16.msra.mxu0 %v4104
      %5902 = vmatprep.subr.bf16.mxu0 %v4109
      %5903 = vmatpush1.bf16.msra.mxu0 %v4108
      %5904 = vmatprep.subr.bf16.mxu0 %v4113
      %5905 = vmatpush1.bf16.msra.mxu0 %v4112
      %5906 = vmatprep.subr.bf16.mxu0 %v4117
      %5907 = vmatpush1.bf16.msra.mxu0 %v4116
      %5908 = vmatprep.subr.bf16.mxu0 %v4121
      %5909 = vmatpush1.bf16.msra.mxu0 %v4120
      %5910 = vmatprep.subr.bf16.mxu0 %v4125
      %5911 = vmatpush1.bf16.msra.mxu0 %v4124
      %5912 = vmatprep.subr.bf16.mxu0 %v4129
      %5913 = vmatpush1.bf16.msra.mxu0 %v4128
      %5914 = vmatprep.subr.bf16.mxu0 %v4133
      %5915 = vmatpush1.bf16.msra.mxu0 %v4132
      %5916 = vmatprep.subr.bf16.mxu0 %v4137
      %5917 = vmatpush1.bf16.msra.mxu0 %v4136
      %5918 = vmatprep.subr.bf16.mxu0 %v4141
      %5919 = vmatpush1.bf16.msra.mxu0 %v4140
      %5920 = vmatprep.subr.bf16.mxu0 %v4145
      %5921 = vmatpush1.bf16.msra.mxu0 %v4144
      %5922 = vmatprep.subr.bf16.mxu0 %v4149
      %5923 = vmatpush1.bf16.msra.mxu0 %v4148
      %5924 = vmatprep.subr.bf16.mxu0 %v4153
      %5925 = vmatpush1.bf16.msra.mxu0 %v4152
      %5926 = vmatprep.mubr.bf16.mxu0 %v655
      %5927 = vmatmul.mubr.bf16.gmra.mrb[0].mxu0 %v654
      %v5928 = vpop.f32.mrb[0].mxu0
      %v5929 = vadd.f32 %v5816, %v5928
      %v5930 = vpop.f32.mrb[0].mxu0
      %v5931 = vadd.f32 %v5818, %v5930
      %v5932 = vpop.f32.mrb[0].mxu0
      %v5933 = vadd.f32 %v5820, %v5932
      %v5934 = vpop.f32.mrb[0].mxu0
      %v5935 = vadd.f32 %v5822, %v5934
      %5936 = vmatprep.mubr.bf16.mxu0 %v677
      %5937 = vmatmul.mubr.bf16.gmra.mrb[0].mxu0 %v676
      %v5938 = vpop.f32.mrb[0].mxu0
      %v5939 = vadd.f32 %v5826, %v5938
      %v5940 = vpop.f32.mrb[0].mxu0
      %v5941 = vadd.f32 %v5828, %v5940
      %v5942 = vpop.f32.mrb[0].mxu0
      %v5943 = vadd.f32 %v5830, %v5942
      %v5944 = vpop.f32.mrb[0].mxu0
      %v5945 = vadd.f32 %v5832, %v5944
      %5946 = vmatprep.mubr.bf16.mxu0 %v699
      %5947 = vmatmul.mubr.bf16.gmra.mrb[0].mxu0 %v698
      %v5948 = vpop.f32.mrb[0].mxu0
      %v5949 = vadd.f32 %v5836, %v5948
      %v5950 = vpop.f32.mrb[0].mxu0
      %v5951 = vadd.f32 %v5838, %v5950
      %v5952 = vpop.f32.mrb[0].mxu0
      %v5953 = vadd.f32 %v5840, %v5952
      %v5954 = vpop.f32.mrb[0].mxu0
      %v5955 = vadd.f32 %v5842, %v5954
      %5956 = vmatprep.mubr.bf16.mxu0 %v721
      %5957 = vmatmul.mubr.bf16.gmra.mrb[0].mxu0 %v720
      %v5958 = vpop.f32.mrb[0].mxu0
      %v5959 = vadd.f32 %v5846, %v5958
      %v5960 = vpop.f32.mrb[0].mxu0
      %v5961 = vadd.f32 %v5848, %v5960
      %v5962 = vpop.f32.mrb[0].mxu0
      %v5963 = vadd.f32 %v5850, %v5962
      %v5964 = vpop.f32.mrb[0].mxu0
      %v5965 = vadd.f32 %v5852, %v5964
      %5966 = vmatprep.mubr.bf16.mxu0 %v743
      %5967 = vmatmul.mubr.bf16.gmra.mrb[0].mxu0 %v742
      %v5968 = vpop.f32.mrb[0].mxu0
      %v5969 = vadd.f32 %v5856, %v5968
      %v5970 = vpop.f32.mrb[0].mxu0
      %v5971 = vadd.f32 %v5858, %v5970
      %v5972 = vpop.f32.mrb[0].mxu0
      %v5973 = vadd.f32 %v5860, %v5972
      %v5974 = vpop.f32.mrb[0].mxu0
      %v5975 = vadd.f32 %v5862, %v5974
      %5976 = vmatprep.mubr.bf16.mxu0 %v765
      %5977 = vmatmul.mubr.bf16.gmra.mrb[0].mxu0 %v764
      %v5978 = vpop.f32.mrb[0].mxu0
      %v5979 = vadd.f32 %v5866, %v5978
      %v5980 = vpop.f32.mrb[0].mxu0
      %v5981 = vadd.f32 %v5868, %v5980
      %v5982 = vpop.f32.mrb[0].mxu0
      %v5983 = vadd.f32 %v5870, %v5982
      %v5984 = vpop.f32.mrb[0].mxu0
      %v5985 = vadd.f32 %v5872, %v5984
      %5986 = vmatprep.mubr.bf16.mxu0 %v787
      %5987 = vmatmul.mubr.bf16.gmra.mrb[0].mxu0 %v786
      %v5988 = vpop.f32.mrb[0].mxu0
      %v5989 = vadd.f32 %v5876, %v5988
      %v5990 = vpop.f32.mrb[0].mxu0
      %v5991 = vadd.f32 %v5878, %v5990
      %v5992 = vpop.f32.mrb[0].mxu0
      %v5993 = vadd.f32 %v5880, %v5992
      %v5994 = vpop.f32.mrb[0].mxu0
      %v5995 = vadd.f32 %v5882, %v5994
      %5996 = vmatprep.mubr.bf16.mxu0 %v809
      %5997 = vmatmul.mubr.bf16.gmra.mrb[0].mxu0 %v808
      %v5998 = vpop.f32.mrb[0].mxu0
      %v5999 = vadd.f32 %v5886, %v5998
      %v6000 = vpop.f32.mrb[0].mxu0
      %v6001 = vadd.f32 %v5888, %v6000
      %v6002 = vpop.f32.mrb[0].mxu0
      %v6003 = vadd.f32 %v5890, %v6002
      %v6004 = vpop.f32.mrb[0].mxu0
      %v6005 = vadd.f32 %v5892, %v6004
      %6006 = vdwg.mxu0
      %6007 = vmatprep.subr.bf16.mxu0 %v4157
      %6008 = vmatpush1.bf16.msra.mxu0 %v4156
      %6009 = vmatprep.subr.bf16.mxu0 %v4161
      %6010 = vmatpush1.bf16.msra.mxu0 %v4160
      %6011 = vmatprep.subr.bf16.mxu0 %v4165
      %6012 = vmatpush1.bf16.msra.mxu0 %v4164
      %6013 = vmatprep.subr.bf16.mxu0 %v4169
      %6014 = vmatpush1.bf16.msra.mxu0 %v4168
      %6015 = vmatprep.subr.bf16.mxu0 %v4173
      %6016 = vmatpush1.bf16.msra.mxu0 %v4172
      %6017 = vmatprep.subr.bf16.mxu0 %v4177
      %6018 = vmatpush1.bf16.msra.mxu0 %v4176
      %6019 = vmatprep.subr.bf16.mxu0 %v4181
      %6020 = vmatpush1.bf16.msra.mxu0 %v4180
      %6021 = vmatprep.subr.bf16.mxu0 %v4185
      %6022 = vmatpush1.bf16.msra.mxu0 %v4184
      %6023 = vmatprep.subr.bf16.mxu0 %v4189
      %6024 = vmatpush1.bf16.msra.mxu0 %v4188
      %6025 = vmatprep.subr.bf16.mxu0 %v4193
      %6026 = vmatpush1.bf16.msra.mxu0 %v4192
      %6027 = vmatprep.subr.bf16.mxu0 %v4197
      %6028 = vmatpush1.bf16.msra.mxu0 %v4196
      %6029 = vmatprep.subr.bf16.mxu0 %v4201
      %6030 = vmatpush1.bf16.msra.mxu0 %v4200
      %6031 = vmatprep.subr.bf16.mxu0 %v4205
      %6032 = vmatpush1.bf16.msra.mxu0 %v4204
      %6033 = vmatprep.subr.bf16.mxu0 %v4209
      %6034 = vmatpush1.bf16.msra.mxu0 %v4208
      %6035 = vmatprep.subr.bf16.mxu0 %v4213
      %6036 = vmatpush1.bf16.msra.mxu0 %v4212
      %6037 = vmatprep.subr.bf16.mxu0 %v4217
      %6038 = vmatpush1.bf16.msra.mxu0 %v4216
      %6039 = vmatprep.mubr.bf16.mxu0 %v657
      %6040 = vmatmul.mubr.bf16.gmra.mrb[0].mxu0 %v656
      %v6041 = vpop.f32.mrb[0].mxu0
      %v6042 = vadd.f32 %v5929, %v6041
      %v6043 = vpop.f32.mrb[0].mxu0
      %v6044 = vadd.f32 %v5931, %v6043
      %v6045 = vpop.f32.mrb[0].mxu0
      %v6046 = vadd.f32 %v5933, %v6045
      %v6047 = vpop.f32.mrb[0].mxu0
      %v6048 = vadd.f32 %v5935, %v6047
      %6049 = vmatprep.mubr.bf16.mxu0 %v679
      %6050 = vmatmul.mubr.bf16.gmra.mrb[0].mxu0 %v678
      %v6051 = vpop.f32.mrb[0].mxu0
      %v6052 = vadd.f32 %v5939, %v6051
      %v6053 = vpop.f32.mrb[0].mxu0
      %v6054 = vadd.f32 %v5941, %v6053
      %v6055 = vpop.f32.mrb[0].mxu0
      %v6056 = vadd.f32 %v5943, %v6055
      %v6057 = vpop.f32.mrb[0].mxu0
      %v6058 = vadd.f32 %v5945, %v6057
      %6059 = vmatprep.mubr.bf16.mxu0 %v701
      %6060 = vmatmul.mubr.bf16.gmra.mrb[0].mxu0 %v700
      %v6061 = vpop.f32.mrb[0].mxu0
      %v6062 = vadd.f32 %v5949, %v6061
      %v6063 = vpop.f32.mrb[0].mxu0
      %v6064 = vadd.f32 %v5951, %v6063
      %v6065 = vpop.f32.mrb[0].mxu0
      %v6066 = vadd.f32 %v5953, %v6065
      %v6067 = vpop.f32.mrb[0].mxu0
      %v6068 = vadd.f32 %v5955, %v6067
      %6069 = vmatprep.mubr.bf16.mxu0 %v723
      %6070 = vmatmul.mubr.bf16.gmra.mrb[0].mxu0 %v722
      %v6071 = vpop.f32.mrb[0].mxu0
      %v6072 = vadd.f32 %v5959, %v6071
      %v6073 = vpop.f32.mrb[0].mxu0
      %v6074 = vadd.f32 %v5961, %v6073
      %v6075 = vpop.f32.mrb[0].mxu0
      %v6076 = vadd.f32 %v5963, %v6075
      %v6077 = vpop.f32.mrb[0].mxu0
      %v6078 = vadd.f32 %v5965, %v6077
      %6079 = vmatprep.mubr.bf16.mxu0 %v745
      %6080 = vmatmul.mubr.bf16.gmra.mrb[0].mxu0 %v744
      %v6081 = vpop.f32.mrb[0].mxu0
      %v6082 = vadd.f32 %v5969, %v6081
      %v6083 = vpop.f32.mrb[0].mxu0
      %v6084 = vadd.f32 %v5971, %v6083
      %v6085 = vpop.f32.mrb[0].mxu0
      %v6086 = vadd.f32 %v5973, %v6085
      %v6087 = vpop.f32.mrb[0].mxu0
      %v6088 = vadd.f32 %v5975, %v6087
      %6089 = vmatprep.mubr.bf16.mxu0 %v767
      %6090 = vmatmul.mubr.bf16.gmra.mrb[0].mxu0 %v766
      %v6091 = vpop.f32.mrb[0].mxu0
      %v6092 = vadd.f32 %v5979, %v6091
      %v6093 = vpop.f32.mrb[0].mxu0
      %v6094 = vadd.f32 %v5981, %v6093
      %v6095 = vpop.f32.mrb[0].mxu0
      %v6096 = vadd.f32 %v5983, %v6095
      %v6097 = vpop.f32.mrb[0].mxu0
      %v6098 = vadd.f32 %v5985, %v6097
      %6099 = vmatprep.mubr.bf16.mxu0 %v789
      %6100 = vmatmul.mubr.bf16.gmra.mrb[0].mxu0 %v788
      %v6101 = vpop.f32.mrb[0].mxu0
      %v6102 = vadd.f32 %v5989, %v6101
      %v6103 = vpop.f32.mrb[0].mxu0
      %v6104 = vadd.f32 %v5991, %v6103
      %v6105 = vpop.f32.mrb[0].mxu0
      %v6106 = vadd.f32 %v5993, %v6105
      %v6107 = vpop.f32.mrb[0].mxu0
      %v6108 = vadd.f32 %v5995, %v6107
      %6109 = vmatprep.mubr.bf16.mxu0 %v811
      %6110 = vmatmul.mubr.bf16.gmra.mrb[0].mxu0 %v810
      %v6111 = vpop.f32.mrb[0].mxu0
      %v6112 = vadd.f32 %v5999, %v6111
      %v6113 = vpop.f32.mrb[0].mxu0
      %v6114 = vadd.f32 %v6001, %v6113
      %v6115 = vpop.f32.mrb[0].mxu0
      %v6116 = vadd.f32 %v6003, %v6115
      %v6117 = vpop.f32.mrb[0].mxu0
      %v6118 = vadd.f32 %v6005, %v6117
      %6119 = vdwg.mxu0
      %6120 = vmatprep.subr.bf16.mxu0 %v4221
      %6121 = vmatpush1.bf16.msra.mxu0 %v4220
      %6122 = vmatprep.subr.bf16.mxu0 %v4225
      %6123 = vmatpush1.bf16.msra.mxu0 %v4224
      %6124 = vmatprep.subr.bf16.mxu0 %v4229
      %6125 = vmatpush1.bf16.msra.mxu0 %v4228
      %6126 = vmatprep.subr.bf16.mxu0 %v4233
      %6127 = vmatpush1.bf16.msra.mxu0 %v4232
      %6128 = vmatprep.subr.bf16.mxu0 %v4237
      %6129 = vmatpush1.bf16.msra.mxu0 %v4236
      %6130 = vmatprep.subr.bf16.mxu0 %v4241
      %6131 = vmatpush1.bf16.msra.mxu0 %v4240
      %6132 = vmatprep.subr.bf16.mxu0 %v4245
      %6133 = vmatpush1.bf16.msra.mxu0 %v4244
      %6134 = vmatprep.subr.bf16.mxu0 %v4249
      %6135 = vmatpush1.bf16.msra.mxu0 %v4248
      %6136 = vmatprep.subr.bf16.mxu0 %v4253
      %6137 = vmatpush1.bf16.msra.mxu0 %v4252
      %6138 = vmatprep.subr.bf16.mxu0 %v4257
      %6139 = vmatpush1.bf16.msra.mxu0 %v4256
      %6140 = vmatprep.subr.bf16.mxu0 %v4261
      %6141 = vmatpush1.bf16.msra.mxu0 %v4260
      %6142 = vmatprep.subr.bf16.mxu0 %v4982
      %6143 = vmatpush1.bf16.msra.mxu0 %v4979
      %6144 = vmatprep.subr.bf16.mxu0 0
      %6145 = vmatpush1.bf16.msra.mxu0 0
      %6146 = vmatprep.subr.bf16.mxu0 0
      %6147 = vmatpush1.bf16.msra.mxu0 0
      %6148 = vmatprep.subr.bf16.mxu0 0
      %6149 = vmatpush1.bf16.msra.mxu0 0
      %6150 = vmatprep.subr.bf16.mxu0 0
      %6151 = vmatpush1.bf16.msra.mxu0 0
      %6152 = vmatprep.mubr.bf16.mxu0 %v4954
      %6153 = vmatmul.mubr.bf16.gmra.mrb[0].mxu0 %v658
      %v6154 = vpop.f32.mrb[0].mxu0
      %v6155 = vadd.f32 %v6042, %v6154
      %v6156 = vpop.f32.mrb[0].mxu0
      %v6157 = vadd.f32 %v6044, %v6156
      %v6158 = vpop.f32.mrb[0].mxu0
      %v6159 = vadd.f32 %v6046, %v6158
      %v6160 = vpop.f32.mrb[0].mxu0
      %v6161 = vadd.f32 %v6048, %v6160
      %6162 = vmatprep.mubr.bf16.mxu0 %v4957
      %6163 = vmatmul.mubr.bf16.gmra.mrb[0].mxu0 %v680
      %v6164 = vpop.f32.mrb[0].mxu0
      %v6165 = vadd.f32 %v6052, %v6164
      %v6166 = vpop.f32.mrb[0].mxu0
      %v6167 = vadd.f32 %v6054, %v6166
      %v6168 = vpop.f32.mrb[0].mxu0
      %v6169 = vadd.f32 %v6056, %v6168
      %v6170 = vpop.f32.mrb[0].mxu0
      %v6171 = vadd.f32 %v6058, %v6170
      %6172 = vmatprep.mubr.bf16.mxu0 %v4960
      %6173 = vmatmul.mubr.bf16.gmra.mrb[0].mxu0 %v702
      %v6174 = vpop.f32.mrb[0].mxu0
      %v6175 = vadd.f32 %v6062, %v6174
      %v6176 = vpop.f32.mrb[0].mxu0
      %v6177 = vadd.f32 %v6064, %v6176
      %v6178 = vpop.f32.mrb[0].mxu0
      %v6179 = vadd.f32 %v6066, %v6178
      %v6180 = vpop.f32.mrb[0].mxu0
      %v6181 = vadd.f32 %v6068, %v6180
      %6182 = vmatprep.mubr.bf16.mxu0 %v4963
      %6183 = vmatmul.mubr.bf16.gmra.mrb[0].mxu0 %v724
      %v6184 = vpop.f32.mrb[0].mxu0
      %v6185 = vadd.f32 %v6072, %v6184
      %v6186 = vpop.f32.mrb[0].mxu0
      %v6187 = vadd.f32 %v6074, %v6186
      %v6188 = vpop.f32.mrb[0].mxu0
      %v6189 = vadd.f32 %v6076, %v6188
      %v6190 = vpop.f32.mrb[0].mxu0
      %v6191 = vadd.f32 %v6078, %v6190
      %6192 = vmatprep.mubr.bf16.mxu0 %v4966
      %6193 = vmatmul.mubr.bf16.gmra.mrb[0].mxu0 %v746
      %v6194 = vpop.f32.mrb[0].mxu0
      %v6195 = vadd.f32 %v6082, %v6194
      %v6196 = vpop.f32.mrb[0].mxu0
      %v6197 = vadd.f32 %v6084, %v6196
      %v6198 = vpop.f32.mrb[0].mxu0
      %v6199 = vadd.f32 %v6086, %v6198
      %v6200 = vpop.f32.mrb[0].mxu0
      %v6201 = vadd.f32 %v6088, %v6200
      %6202 = vmatprep.mubr.bf16.mxu0 %v4969
      %6203 = vmatmul.mubr.bf16.gmra.mrb[0].mxu0 %v768
      %v6204 = vpop.f32.mrb[0].mxu0
      %v6205 = vadd.f32 %v6092, %v6204
      %v6206 = vpop.f32.mrb[0].mxu0
      %v6207 = vadd.f32 %v6094, %v6206
      %v6208 = vpop.f32.mrb[0].mxu0
      %v6209 = vadd.f32 %v6096, %v6208
      %v6210 = vpop.f32.mrb[0].mxu0
      %v6211 = vadd.f32 %v6098, %v6210
      %6212 = vmatprep.mubr.bf16.mxu0 %v4972
      %6213 = vmatmul.mubr.bf16.gmra.mrb[0].mxu0 %v790
      %v6214 = vpop.f32.mrb[0].mxu0
      %v6215 = vadd.f32 %v6102, %v6214
      %v6216 = vpop.f32.mrb[0].mxu0
      %v6217 = vadd.f32 %v6104, %v6216
      %v6218 = vpop.f32.mrb[0].mxu0
      %v6219 = vadd.f32 %v6106, %v6218
      %v6220 = vpop.f32.mrb[0].mxu0
      %v6221 = vadd.f32 %v6108, %v6220
      %6222 = vmatprep.mubr.bf16.mxu0 %v4975
      %6223 = vmatmul.mubr.bf16.gmra.mrb[0].mxu0 %v812
      %v6224 = vpop.f32.mrb[0].mxu0
      %v6225 = vadd.f32 %v6112, %v6224
      %v6226 = vpop.f32.mrb[0].mxu0
      %v6227 = vadd.f32 %v6114, %v6226
      %v6228 = vpop.f32.mrb[0].mxu0
      %v6229 = vadd.f32 %v6116, %v6228
      %v6230 = vpop.f32.mrb[0].mxu0
      %v6231 = vadd.f32 %v6118, %v6230
      %6232 = vdwg.mxu0
      %6233 = vmatprep.subr.bf16.mxu0 %v3583
      %6234 = vmatpush1.bf16.msra.mxu0 %v3582
      %6235 = vmatprep.subr.bf16.mxu0 %v3587
      %6236 = vmatpush1.bf16.msra.mxu0 %v3586
      %6237 = vmatprep.subr.bf16.mxu0 %v3591
      %6238 = vmatpush1.bf16.msra.mxu0 %v3590
      %6239 = vmatprep.subr.bf16.mxu0 %v3595
      %6240 = vmatpush1.bf16.msra.mxu0 %v3594
      %6241 = vmatprep.subr.bf16.mxu0 %v3599
      %6242 = vmatpush1.bf16.msra.mxu0 %v3598
      %6243 = vmatprep.subr.bf16.mxu0 %v3603
      %6244 = vmatpush1.bf16.msra.mxu0 %v3602
      %6245 = vmatprep.subr.bf16.mxu0 %v3607
      %6246 = vmatpush1.bf16.msra.mxu0 %v3606
      %6247 = vmatprep.subr.bf16.mxu0 %v3611
      %6248 = vmatpush1.bf16.msra.mxu0 %v3610
      %6249 = vmatprep.subr.bf16.mxu0 %v3615
      %6250 = vmatpush1.bf16.msra.mxu0 %v3614
      %6251 = vmatprep.subr.bf16.mxu0 %v3619
      %6252 = vmatpush1.bf16.msra.mxu0 %v3618
      %6253 = vmatprep.subr.bf16.mxu0 %v3623
      %6254 = vmatpush1.bf16.msra.mxu0 %v3622
      %6255 = vmatprep.subr.bf16.mxu0 %v3627
      %6256 = vmatpush1.bf16.msra.mxu0 %v3626
      %6257 = vmatprep.subr.bf16.mxu0 %v3631
      %6258 = vmatpush1.bf16.msra.mxu0 %v3630
      %6259 = vmatprep.subr.bf16.mxu0 %v3635
      %6260 = vmatpush1.bf16.msra.mxu0 %v3634
      %6261 = vmatprep.subr.bf16.mxu0 %v3639
      %6262 = vmatpush1.bf16.msra.mxu0 %v3638
      %6263 = vmatprep.subr.bf16.mxu0 %v3643
      %6264 = vmatpush1.bf16.msra.mxu0 %v3642
      %6265 = vmatprep.mubr.bf16.mxu0 %v639
      %6266 = vmatmul.mubr.bf16.gmra.mrb[0].mxu0 %v638
      %v6267 = vpop.f32.mrb[0].mxu0
      %v6268 = vadd.f32 %v1513, %v6267
      %v6269 = vpop.f32.mrb[0].mxu0
      %v6270 = vadd.f32 %v1517, %v6269
      %v6271 = vpop.f32.mrb[0].mxu0
      %v6272 = vadd.f32 %v1513, %v6271
      %v6273 = vpop.f32.mrb[0].mxu0
      %v6274 = vadd.f32 %v1517, %v6273
      %6275 = vmatprep.mubr.bf16.mxu0 %v661
      %6276 = vmatmul.mubr.bf16.gmra.mrb[0].mxu0 %v660
      %v6277 = vpop.f32.mrb[0].mxu0
      %v6278 = vadd.f32 %v1513, %v6277
      %v6279 = vpop.f32.mrb[0].mxu0
      %v6280 = vadd.f32 %v1517, %v6279
      %v6281 = vpop.f32.mrb[0].mxu0
      %v6282 = vadd.f32 %v1513, %v6281
      %v6283 = vpop.f32.mrb[0].mxu0
      %v6284 = vadd.f32 %v1517, %v6283
      %6285 = vmatprep.mubr.bf16.mxu0 %v683
      %6286 = vmatmul.mubr.bf16.gmra.mrb[0].mxu0 %v682
      %v6287 = vpop.f32.mrb[0].mxu0
      %v6288 = vadd.f32 %v1513, %v6287
      %v6289 = vpop.f32.mrb[0].mxu0
      %v6290 = vadd.f32 %v1517, %v6289
      %v6291 = vpop.f32.mrb[0].mxu0
      %v6292 = vadd.f32 %v1513, %v6291
      %v6293 = vpop.f32.mrb[0].mxu0
      %v6294 = vadd.f32 %v1517, %v6293
      %6295 = vmatprep.mubr.bf16.mxu0 %v705
      %6296 = vmatmul.mubr.bf16.gmra.mrb[0].mxu0 %v704
      %v6297 = vpop.f32.mrb[0].mxu0
      %v6298 = vadd.f32 %v1513, %v6297
      %v6299 = vpop.f32.mrb[0].mxu0
      %v6300 = vadd.f32 %v1517, %v6299
      %v6301 = vpop.f32.mrb[0].mxu0
      %v6302 = vadd.f32 %v1513, %v6301
      %v6303 = vpop.f32.mrb[0].mxu0
      %v6304 = vadd.f32 %v1517, %v6303
      %6305 = vmatprep.mubr.bf16.mxu0 %v727
      %6306 = vmatmul.mubr.bf16.gmra.mrb[0].mxu0 %v726
      %v6307 = vpop.f32.mrb[0].mxu0
      %v6308 = vadd.f32 %v1513, %v6307
      %v6309 = vpop.f32.mrb[0].mxu0
      %v6310 = vadd.f32 %v1517, %v6309
      %v6311 = vpop.f32.mrb[0].mxu0
      %v6312 = vadd.f32 %v1513, %v6311
      %v6313 = vpop.f32.mrb[0].mxu0
      %v6314 = vadd.f32 %v1517, %v6313
      %6315 = vmatprep.mubr.bf16.mxu0 %v749
      %6316 = vmatmul.mubr.bf16.gmra.mrb[0].mxu0 %v748
      %v6317 = vpop.f32.mrb[0].mxu0
      %v6318 = vadd.f32 %v1513, %v6317
      %v6319 = vpop.f32.mrb[0].mxu0
      %v6320 = vadd.f32 %v1517, %v6319
      %v6321 = vpop.f32.mrb[0].mxu0
      %v6322 = vadd.f32 %v1513, %v6321
      %v6323 = vpop.f32.mrb[0].mxu0
      %v6324 = vadd.f32 %v1517, %v6323
      %6325 = vmatprep.mubr.bf16.mxu0 %v771
      %6326 = vmatmul.mubr.bf16.gmra.mrb[0].mxu0 %v770
      %v6327 = vpop.f32.mrb[0].mxu0
      %v6328 = vadd.f32 %v1513, %v6327
      %v6329 = vpop.f32.mrb[0].mxu0
      %v6330 = vadd.f32 %v1517, %v6329
      %v6331 = vpop.f32.mrb[0].mxu0
      %v6332 = vadd.f32 %v1513, %v6331
      %v6333 = vpop.f32.mrb[0].mxu0
      %v6334 = vadd.f32 %v1517, %v6333
      %6335 = vmatprep.mubr.bf16.mxu0 %v793
      %6336 = vmatmul.mubr.bf16.gmra.mrb[0].mxu0 %v792
      %v6337 = vpop.f32.mrb[0].mxu0
      %v6338 = vadd.f32 %v1513, %v6337
      %v6339 = vpop.f32.mrb[0].mxu0
      %v6340 = vadd.f32 %v1517, %v6339
      %v6341 = vpop.f32.mrb[0].mxu0
      %v6342 = vadd.f32 %v1513, %v6341
      %v6343 = vpop.f32.mrb[0].mxu0
      %v6344 = vadd.f32 %v1517, %v6343
      %6345 = vdwg.mxu0
      %6346 = vmatprep.subr.bf16.mxu0 %v3647
      %6347 = vmatpush1.bf16.msra.mxu0 %v3646
      %6348 = vmatprep.subr.bf16.mxu0 %v3651
      %6349 = vmatpush1.bf16.msra.mxu0 %v3650
      %6350 = vmatprep.subr.bf16.mxu0 %v3655
      %6351 = vmatpush1.bf16.msra.mxu0 %v3654
      %6352 = vmatprep.subr.bf16.mxu0 %v3659
      %6353 = vmatpush1.bf16.msra.mxu0 %v3658
      %6354 = vmatprep.subr.bf16.mxu0 %v3663
      %6355 = vmatpush1.bf16.msra.mxu0 %v3662
      %6356 = vmatprep.subr.bf16.mxu0 %v3667
      %6357 = vmatpush1.bf16.msra.mxu0 %v3666
      %6358 = vmatprep.subr.bf16.mxu0 %v3671
      %6359 = vmatpush1.bf16.msra.mxu0 %v3670
      %6360 = vmatprep.subr.bf16.mxu0 %v3675
      %6361 = vmatpush1.bf16.msra.mxu0 %v3674
      %6362 = vmatprep.subr.bf16.mxu0 %v3679
      %6363 = vmatpush1.bf16.msra.mxu0 %v3678
      %6364 = vmatprep.subr.bf16.mxu0 %v3683
      %6365 = vmatpush1.bf16.msra.mxu0 %v3682
      %6366 = vmatprep.subr.bf16.mxu0 %v3687
      %6367 = vmatpush1.bf16.msra.mxu0 %v3686
      %6368 = vmatprep.subr.bf16.mxu0 %v3691
      %6369 = vmatpush1.bf16.msra.mxu0 %v3690
      %6370 = vmatprep.subr.bf16.mxu0 %v3695
      %6371 = vmatpush1.bf16.msra.mxu0 %v3694
      %6372 = vmatprep.subr.bf16.mxu0 %v3699
      %6373 = vmatpush1.bf16.msra.mxu0 %v3698
      %6374 = vmatprep.subr.bf16.mxu0 %v3703
      %6375 = vmatpush1.bf16.msra.mxu0 %v3702
      %6376 = vmatprep.subr.bf16.mxu0 %v3707
      %6377 = vmatpush1.bf16.msra.mxu0 %v3706
      %6378 = vmatprep.mubr.bf16.mxu0 %v641
      %6379 = vmatmul.mubr.bf16.gmra.mrb[0].mxu0 %v640
      %v6380 = vpop.f32.mrb[0].mxu0
      %v6381 = vadd.f32 %v6268, %v6380
      %v6382 = vpop.f32.mrb[0].mxu0
      %v6383 = vadd.f32 %v6270, %v6382
      %v6384 = vpop.f32.mrb[0].mxu0
      %v6385 = vadd.f32 %v6272, %v6384
      %v6386 = vpop.f32.mrb[0].mxu0
      %v6387 = vadd.f32 %v6274, %v6386
      %6388 = vmatprep.mubr.bf16.mxu0 %v663
      %6389 = vmatmul.mubr.bf16.gmra.mrb[0].mxu0 %v662
      %v6390 = vpop.f32.mrb[0].mxu0
      %v6391 = vadd.f32 %v6278, %v6390
      %v6392 = vpop.f32.mrb[0].mxu0
      %v6393 = vadd.f32 %v6280, %v6392
      %v6394 = vpop.f32.mrb[0].mxu0
      %v6395 = vadd.f32 %v6282, %v6394
      %v6396 = vpop.f32.mrb[0].mxu0
      %v6397 = vadd.f32 %v6284, %v6396
      %6398 = vmatprep.mubr.bf16.mxu0 %v685
      %6399 = vmatmul.mubr.bf16.gmra.mrb[0].mxu0 %v684
      %v6400 = vpop.f32.mrb[0].mxu0
      %v6401 = vadd.f32 %v6288, %v6400
      %v6402 = vpop.f32.mrb[0].mxu0
      %v6403 = vadd.f32 %v6290, %v6402
      %v6404 = vpop.f32.mrb[0].mxu0
      %v6405 = vadd.f32 %v6292, %v6404
      %v6406 = vpop.f32.mrb[0].mxu0
      %v6407 = vadd.f32 %v6294, %v6406
      %6408 = vmatprep.mubr.bf16.mxu0 %v707
      %6409 = vmatmul.mubr.bf16.gmra.mrb[0].mxu0 %v706
      %v6410 = vpop.f32.mrb[0].mxu0
      %v6411 = vadd.f32 %v6298, %v6410
      %v6412 = vpop.f32.mrb[0].mxu0
      %v6413 = vadd.f32 %v6300, %v6412
      %v6414 = vpop.f32.mrb[0].mxu0
      %v6415 = vadd.f32 %v6302, %v6414
      %v6416 = vpop.f32.mrb[0].mxu0
      %v6417 = vadd.f32 %v6304, %v6416
      %6418 = vmatprep.mubr.bf16.mxu0 %v729
      %6419 = vmatmul.mubr.bf16.gmra.mrb[0].mxu0 %v728
      %v6420 = vpop.f32.mrb[0].mxu0
      %v6421 = vadd.f32 %v6308, %v6420
      %v6422 = vpop.f32.mrb[0].mxu0
      %v6423 = vadd.f32 %v6310, %v6422
      %v6424 = vpop.f32.mrb[0].mxu0
      %v6425 = vadd.f32 %v6312, %v6424
      %v6426 = vpop.f32.mrb[0].mxu0
      %v6427 = vadd.f32 %v6314, %v6426
      %6428 = vmatprep.mubr.bf16.mxu0 %v751
      %6429 = vmatmul.mubr.bf16.gmra.mrb[0].mxu0 %v750
      %v6430 = vpop.f32.mrb[0].mxu0
      %v6431 = vadd.f32 %v6318, %v6430
      %v6432 = vpop.f32.mrb[0].mxu0
      %v6433 = vadd.f32 %v6320, %v6432
      %v6434 = vpop.f32.mrb[0].mxu0
      %v6435 = vadd.f32 %v6322, %v6434
      %v6436 = vpop.f32.mrb[0].mxu0
      %v6437 = vadd.f32 %v6324, %v6436
      %6438 = vmatprep.mubr.bf16.mxu0 %v773
      %6439 = vmatmul.mubr.bf16.gmra.mrb[0].mxu0 %v772
      %v6440 = vpop.f32.mrb[0].mxu0
      %v6441 = vadd.f32 %v6328, %v6440
      %v6442 = vpop.f32.mrb[0].mxu0
      %v6443 = vadd.f32 %v6330, %v6442
      %v6444 = vpop.f32.mrb[0].mxu0
      %v6445 = vadd.f32 %v6332, %v6444
      %v6446 = vpop.f32.mrb[0].mxu0
      %v6447 = vadd.f32 %v6334, %v6446
      %6448 = vmatprep.mubr.bf16.mxu0 %v795
      %6449 = vmatmul.mubr.bf16.gmra.mrb[0].mxu0 %v794
      %v6450 = vpop.f32.mrb[0].mxu0
      %v6451 = vadd.f32 %v6338, %v6450
      %v6452 = vpop.f32.mrb[0].mxu0
      %v6453 = vadd.f32 %v6340, %v6452
      %v6454 = vpop.f32.mrb[0].mxu0
      %v6455 = vadd.f32 %v6342, %v6454
      %v6456 = vpop.f32.mrb[0].mxu0
      %v6457 = vadd.f32 %v6344, %v6456
      %6458 = vdwg.mxu0
      %6459 = vmatprep.subr.bf16.mxu0 %v3711
      %6460 = vmatpush1.bf16.msra.mxu0 %v3710
      %6461 = vmatprep.subr.bf16.mxu0 %v3715
      %6462 = vmatpush1.bf16.msra.mxu0 %v3714
      %6463 = vmatprep.subr.bf16.mxu0 %v3719
      %6464 = vmatpush1.bf16.msra.mxu0 %v3718
      %6465 = vmatprep.subr.bf16.mxu0 %v3723
      %6466 = vmatpush1.bf16.msra.mxu0 %v3722
      %6467 = vmatprep.subr.bf16.mxu0 %v3727
      %6468 = vmatpush1.bf16.msra.mxu0 %v3726
      %6469 = vmatprep.subr.bf16.mxu0 %v3731
      %6470 = vmatpush1.bf16.msra.mxu0 %v3730
      %6471 = vmatprep.subr.bf16.mxu0 %v3735
      %6472 = vmatpush1.bf16.msra.mxu0 %v3734
      %6473 = vmatprep.subr.bf16.mxu0 %v3739
      %6474 = vmatpush1.bf16.msra.mxu0 %v3738
      %6475 = vmatprep.subr.bf16.mxu0 %v3743
      %6476 = vmatpush1.bf16.msra.mxu0 %v3742
      %6477 = vmatprep.subr.bf16.mxu0 %v3747
      %6478 = vmatpush1.bf16.msra.mxu0 %v3746
      %6479 = vmatprep.subr.bf16.mxu0 %v3751
      %6480 = vmatpush1.bf16.msra.mxu0 %v3750
      %6481 = vmatprep.subr.bf16.mxu0 %v3755
      %6482 = vmatpush1.bf16.msra.mxu0 %v3754
      %6483 = vmatprep.subr.bf16.mxu0 %v3759
      %6484 = vmatpush1.bf16.msra.mxu0 %v3758
      %6485 = vmatprep.subr.bf16.mxu0 %v3763
      %6486 = vmatpush1.bf16.msra.mxu0 %v3762
      %6487 = vmatprep.subr.bf16.mxu0 %v3767
      %6488 = vmatpush1.bf16.msra.mxu0 %v3766
      %6489 = vmatprep.subr.bf16.mxu0 %v3771
      %6490 = vmatpush1.bf16.msra.mxu0 %v3770
      %6491 = vmatprep.mubr.bf16.mxu0 %v643
      %6492 = vmatmul.mubr.bf16.gmra.mrb[0].mxu0 %v642
      %v6493 = vpop.f32.mrb[0].mxu0
      %v6494 = vadd.f32 %v6381, %v6493
      %v6495 = vpop.f32.mrb[0].mxu0
      %v6496 = vadd.f32 %v6383, %v6495
      %v6497 = vpop.f32.mrb[0].mxu0
      %v6498 = vadd.f32 %v6385, %v6497
      %v6499 = vpop.f32.mrb[0].mxu0
      %v6500 = vadd.f32 %v6387, %v6499
      %6501 = vmatprep.mubr.bf16.mxu0 %v665
      %6502 = vmatmul.mubr.bf16.gmra.mrb[0].mxu0 %v664
      %v6503 = vpop.f32.mrb[0].mxu0
      %v6504 = vadd.f32 %v6391, %v6503
      %v6505 = vpop.f32.mrb[0].mxu0
      %v6506 = vadd.f32 %v6393, %v6505
      %v6507 = vpop.f32.mrb[0].mxu0
      %v6508 = vadd.f32 %v6395, %v6507
      %v6509 = vpop.f32.mrb[0].mxu0
      %v6510 = vadd.f32 %v6397, %v6509
      %6511 = vmatprep.mubr.bf16.mxu0 %v687
      %6512 = vmatmul.mubr.bf16.gmra.mrb[0].mxu0 %v686
      %v6513 = vpop.f32.mrb[0].mxu0
      %v6514 = vadd.f32 %v6401, %v6513
      %v6515 = vpop.f32.mrb[0].mxu0
      %v6516 = vadd.f32 %v6403, %v6515
      %v6517 = vpop.f32.mrb[0].mxu0
      %v6518 = vadd.f32 %v6405, %v6517
      %v6519 = vpop.f32.mrb[0].mxu0
      %v6520 = vadd.f32 %v6407, %v6519
      %6521 = vmatprep.mubr.bf16.mxu0 %v709
      %6522 = vmatmul.mubr.bf16.gmra.mrb[0].mxu0 %v708
      %v6523 = vpop.f32.mrb[0].mxu0
      %v6524 = vadd.f32 %v6411, %v6523
      %v6525 = vpop.f32.mrb[0].mxu0
      %v6526 = vadd.f32 %v6413, %v6525
      %v6527 = vpop.f32.mrb[0].mxu0
      %v6528 = vadd.f32 %v6415, %v6527
      %v6529 = vpop.f32.mrb[0].mxu0
      %v6530 = vadd.f32 %v6417, %v6529
      %6531 = vmatprep.mubr.bf16.mxu0 %v731
      %6532 = vmatmul.mubr.bf16.gmra.mrb[0].mxu0 %v730
      %v6533 = vpop.f32.mrb[0].mxu0
      %v6534 = vadd.f32 %v6421, %v6533
      %v6535 = vpop.f32.mrb[0].mxu0
      %v6536 = vadd.f32 %v6423, %v6535
      %v6537 = vpop.f32.mrb[0].mxu0
      %v6538 = vadd.f32 %v6425, %v6537
      %v6539 = vpop.f32.mrb[0].mxu0
      %v6540 = vadd.f32 %v6427, %v6539
      %6541 = vmatprep.mubr.bf16.mxu0 %v753
      %6542 = vmatmul.mubr.bf16.gmra.mrb[0].mxu0 %v752
      %v6543 = vpop.f32.mrb[0].mxu0
      %v6544 = vadd.f32 %v6431, %v6543
      %v6545 = vpop.f32.mrb[0].mxu0
      %v6546 = vadd.f32 %v6433, %v6545
      %v6547 = vpop.f32.mrb[0].mxu0
      %v6548 = vadd.f32 %v6435, %v6547
      %v6549 = vpop.f32.mrb[0].mxu0
      %v6550 = vadd.f32 %v6437, %v6549
      %6551 = vmatprep.mubr.bf16.mxu0 %v775
      %6552 = vmatmul.mubr.bf16.gmra.mrb[0].mxu0 %v774
      %v6553 = vpop.f32.mrb[0].mxu0
      %v6554 = vadd.f32 %v6441, %v6553
      %v6555 = vpop.f32.mrb[0].mxu0
      %v6556 = vadd.f32 %v6443, %v6555
      %v6557 = vpop.f32.mrb[0].mxu0
      %v6558 = vadd.f32 %v6445, %v6557
      %v6559 = vpop.f32.mrb[0].mxu0
      %v6560 = vadd.f32 %v6447, %v6559
      %6561 = vmatprep.mubr.bf16.mxu0 %v797
      %6562 = vmatmul.mubr.bf16.gmra.mrb[0].mxu0 %v796
      %v6563 = vpop.f32.mrb[0].mxu0
      %v6564 = vadd.f32 %v6451, %v6563
      %v6565 = vpop.f32.mrb[0].mxu0
      %v6566 = vadd.f32 %v6453, %v6565
      %v6567 = vpop.f32.mrb[0].mxu0
      %v6568 = vadd.f32 %v6455, %v6567
      %v6569 = vpop.f32.mrb[0].mxu0
      %v6570 = vadd.f32 %v6457, %v6569
      %6571 = vdwg.mxu0
      %6572 = vmatprep.subr.bf16.mxu0 %v3775
      %6573 = vmatpush1.bf16.msra.mxu0 %v3774
      %6574 = vmatprep.subr.bf16.mxu0 %v3779
      %6575 = vmatpush1.bf16.msra.mxu0 %v3778
      %6576 = vmatprep.subr.bf16.mxu0 %v3783
      %6577 = vmatpush1.bf16.msra.mxu0 %v3782
      %6578 = vmatprep.subr.bf16.mxu0 %v3787
      %6579 = vmatpush1.bf16.msra.mxu0 %v3786
      %6580 = vmatprep.subr.bf16.mxu0 %v3791
      %6581 = vmatpush1.bf16.msra.mxu0 %v3790
      %6582 = vmatprep.subr.bf16.mxu0 %v3795
      %6583 = vmatpush1.bf16.msra.mxu0 %v3794
      %6584 = vmatprep.subr.bf16.mxu0 %v3799
      %6585 = vmatpush1.bf16.msra.mxu0 %v3798
      %6586 = vmatprep.subr.bf16.mxu0 %v3803
      %6587 = vmatpush1.bf16.msra.mxu0 %v3802
      %6588 = vmatprep.subr.bf16.mxu0 %v3807
      %6589 = vmatpush1.bf16.msra.mxu0 %v3806
      %6590 = vmatprep.subr.bf16.mxu0 %v3811
      %6591 = vmatpush1.bf16.msra.mxu0 %v3810
      %6592 = vmatprep.subr.bf16.mxu0 %v3815
      %6593 = vmatpush1.bf16.msra.mxu0 %v3814
      %6594 = vmatprep.subr.bf16.mxu0 %v3819
      %6595 = vmatpush1.bf16.msra.mxu0 %v3818
      %6596 = vmatprep.subr.bf16.mxu0 %v3823
      %6597 = vmatpush1.bf16.msra.mxu0 %v3822
      %6598 = vmatprep.subr.bf16.mxu0 %v3827
      %6599 = vmatpush1.bf16.msra.mxu0 %v3826
      %6600 = vmatprep.subr.bf16.mxu0 %v3831
      %6601 = vmatpush1.bf16.msra.mxu0 %v3830
      %6602 = vmatprep.subr.bf16.mxu0 %v3835
      %6603 = vmatpush1.bf16.msra.mxu0 %v3834
      %6604 = vmatprep.mubr.bf16.mxu0 %v645
      %6605 = vmatmul.mubr.bf16.gmra.mrb[0].mxu0 %v644
      %v6606 = vpop.f32.mrb[0].mxu0
      %v6607 = vadd.f32 %v6494, %v6606
      %v6608 = vpop.f32.mrb[0].mxu0
      %v6609 = vadd.f32 %v6496, %v6608
      %v6610 = vpop.f32.mrb[0].mxu0
      %v6611 = vadd.f32 %v6498, %v6610
      %v6612 = vpop.f32.mrb[0].mxu0
      %v6613 = vadd.f32 %v6500, %v6612
      %6614 = vmatprep.mubr.bf16.mxu0 %v667
      %6615 = vmatmul.mubr.bf16.gmra.mrb[0].mxu0 %v666
      %v6616 = vpop.f32.mrb[0].mxu0
      %v6617 = vadd.f32 %v6504, %v6616
      %v6618 = vpop.f32.mrb[0].mxu0
      %v6619 = vadd.f32 %v6506, %v6618
      %v6620 = vpop.f32.mrb[0].mxu0
      %v6621 = vadd.f32 %v6508, %v6620
      %v6622 = vpop.f32.mrb[0].mxu0
      %v6623 = vadd.f32 %v6510, %v6622
      %6624 = vmatprep.mubr.bf16.mxu0 %v689
      %6625 = vmatmul.mubr.bf16.gmra.mrb[0].mxu0 %v688
      %v6626 = vpop.f32.mrb[0].mxu0
      %v6627 = vadd.f32 %v6514, %v6626
      %v6628 = vpop.f32.mrb[0].mxu0
      %v6629 = vadd.f32 %v6516, %v6628
      %v6630 = vpop.f32.mrb[0].mxu0
      %v6631 = vadd.f32 %v6518, %v6630
      %v6632 = vpop.f32.mrb[0].mxu0
      %v6633 = vadd.f32 %v6520, %v6632
      %6634 = vmatprep.mubr.bf16.mxu0 %v711
      %6635 = vmatmul.mubr.bf16.gmra.mrb[0].mxu0 %v710
      %v6636 = vpop.f32.mrb[0].mxu0
      %v6637 = vadd.f32 %v6524, %v6636
      %v6638 = vpop.f32.mrb[0].mxu0
      %v6639 = vadd.f32 %v6526, %v6638
      %v6640 = vpop.f32.mrb[0].mxu0
      %v6641 = vadd.f32 %v6528, %v6640
      %v6642 = vpop.f32.mrb[0].mxu0
      %v6643 = vadd.f32 %v6530, %v6642
      %6644 = vmatprep.mubr.bf16.mxu0 %v733
      %6645 = vmatmul.mubr.bf16.gmra.mrb[0].mxu0 %v732
      %v6646 = vpop.f32.mrb[0].mxu0
      %v6647 = vadd.f32 %v6534, %v6646
      %v6648 = vpop.f32.mrb[0].mxu0
      %v6649 = vadd.f32 %v6536, %v6648
      %v6650 = vpop.f32.mrb[0].mxu0
      %v6651 = vadd.f32 %v6538, %v6650
      %v6652 = vpop.f32.mrb[0].mxu0
      %v6653 = vadd.f32 %v6540, %v6652
      %6654 = vmatprep.mubr.bf16.mxu0 %v755
      %6655 = vmatmul.mubr.bf16.gmra.mrb[0].mxu0 %v754
      %v6656 = vpop.f32.mrb[0].mxu0
      %v6657 = vadd.f32 %v6544, %v6656
      %v6658 = vpop.f32.mrb[0].mxu0
      %v6659 = vadd.f32 %v6546, %v6658
      %v6660 = vpop.f32.mrb[0].mxu0
      %v6661 = vadd.f32 %v6548, %v6660
      %v6662 = vpop.f32.mrb[0].mxu0
      %v6663 = vadd.f32 %v6550, %v6662
      %6664 = vmatprep.mubr.bf16.mxu0 %v777
      %6665 = vmatmul.mubr.bf16.gmra.mrb[0].mxu0 %v776
      %v6666 = vpop.f32.mrb[0].mxu0
      %v6667 = vadd.f32 %v6554, %v6666
      %v6668 = vpop.f32.mrb[0].mxu0
      %v6669 = vadd.f32 %v6556, %v6668
      %v6670 = vpop.f32.mrb[0].mxu0
      %v6671 = vadd.f32 %v6558, %v6670
      %v6672 = vpop.f32.mrb[0].mxu0
      %v6673 = vadd.f32 %v6560, %v6672
      %6674 = vmatprep.mubr.bf16.mxu0 %v799
      %6675 = vmatmul.mubr.bf16.gmra.mrb[0].mxu0 %v798
      %v6676 = vpop.f32.mrb[0].mxu0
      %v6677 = vadd.f32 %v6564, %v6676
      %v6678 = vpop.f32.mrb[0].mxu0
      %v6679 = vadd.f32 %v6566, %v6678
      %v6680 = vpop.f32.mrb[0].mxu0
      %v6681 = vadd.f32 %v6568, %v6680
      %v6682 = vpop.f32.mrb[0].mxu0
      %v6683 = vadd.f32 %v6570, %v6682
      %6684 = vdwg.mxu0
      %6685 = vmatprep.subr.bf16.mxu0 %v3839
      %6686 = vmatpush1.bf16.msra.mxu0 %v3838
      %6687 = vmatprep.subr.bf16.mxu0 %v3843
      %6688 = vmatpush1.bf16.msra.mxu0 %v3842
      %6689 = vmatprep.subr.bf16.mxu0 %v3847
      %6690 = vmatpush1.bf16.msra.mxu0 %v3846
      %6691 = vmatprep.subr.bf16.mxu0 %v3851
      %6692 = vmatpush1.bf16.msra.mxu0 %v3850
      %6693 = vmatprep.subr.bf16.mxu0 %v3855
      %6694 = vmatpush1.bf16.msra.mxu0 %v3854
      %6695 = vmatprep.subr.bf16.mxu0 %v3859
      %6696 = vmatpush1.bf16.msra.mxu0 %v3858
      %6697 = vmatprep.subr.bf16.mxu0 %v3863
      %6698 = vmatpush1.bf16.msra.mxu0 %v3862
      %6699 = vmatprep.subr.bf16.mxu0 %v3867
      %6700 = vmatpush1.bf16.msra.mxu0 %v3866
      %6701 = vmatprep.subr.bf16.mxu0 %v3871
      %6702 = vmatpush1.bf16.msra.mxu0 %v3870
      %6703 = vmatprep.subr.bf16.mxu0 %v3875
      %6704 = vmatpush1.bf16.msra.mxu0 %v3874
      %6705 = vmatprep.subr.bf16.mxu0 %v3879
      %6706 = vmatpush1.bf16.msra.mxu0 %v3878
      %6707 = vmatprep.subr.bf16.mxu0 %v3883
      %6708 = vmatpush1.bf16.msra.mxu0 %v3882
      %6709 = vmatprep.subr.bf16.mxu0 %v3887
      %6710 = vmatpush1.bf16.msra.mxu0 %v3886
      %6711 = vmatprep.subr.bf16.mxu0 %v3891
      %6712 = vmatpush1.bf16.msra.mxu0 %v3890
      %6713 = vmatprep.subr.bf16.mxu0 %v3895
      %6714 = vmatpush1.bf16.msra.mxu0 %v3894
      %6715 = vmatprep.subr.bf16.mxu0 %v3899
      %6716 = vmatpush1.bf16.msra.mxu0 %v3898
      %6717 = vmatprep.mubr.bf16.mxu0 %v647
      %6718 = vmatmul.mubr.bf16.gmra.mrb[0].mxu0 %v646
      %v6719 = vpop.f32.mrb[0].mxu0
      %v6720 = vadd.f32 %v6607, %v6719
      %v6721 = vpop.f32.mrb[0].mxu0
      %v6722 = vadd.f32 %v6609, %v6721
      %v6723 = vpop.f32.mrb[0].mxu0
      %v6724 = vadd.f32 %v6611, %v6723
      %v6725 = vpop.f32.mrb[0].mxu0
      %v6726 = vadd.f32 %v6613, %v6725
      %6727 = vmatprep.mubr.bf16.mxu0 %v669
      %6728 = vmatmul.mubr.bf16.gmra.mrb[0].mxu0 %v668
      %v6729 = vpop.f32.mrb[0].mxu0
      %v6730 = vadd.f32 %v6617, %v6729
      %v6731 = vpop.f32.mrb[0].mxu0
      %v6732 = vadd.f32 %v6619, %v6731
      %v6733 = vpop.f32.mrb[0].mxu0
      %v6734 = vadd.f32 %v6621, %v6733
      %v6735 = vpop.f32.mrb[0].mxu0
      %v6736 = vadd.f32 %v6623, %v6735
      %6737 = vmatprep.mubr.bf16.mxu0 %v691
      %6738 = vmatmul.mubr.bf16.gmra.mrb[0].mxu0 %v690
      %v6739 = vpop.f32.mrb[0].mxu0
      %v6740 = vadd.f32 %v6627, %v6739
      %v6741 = vpop.f32.mrb[0].mxu0
      %v6742 = vadd.f32 %v6629, %v6741
      %v6743 = vpop.f32.mrb[0].mxu0
      %v6744 = vadd.f32 %v6631, %v6743
      %v6745 = vpop.f32.mrb[0].mxu0
      %v6746 = vadd.f32 %v6633, %v6745
      %6747 = vmatprep.mubr.bf16.mxu0 %v713
      %6748 = vmatmul.mubr.bf16.gmra.mrb[0].mxu0 %v712
      %v6749 = vpop.f32.mrb[0].mxu0
      %v6750 = vadd.f32 %v6637, %v6749
      %v6751 = vpop.f32.mrb[0].mxu0
      %v6752 = vadd.f32 %v6639, %v6751
      %v6753 = vpop.f32.mrb[0].mxu0
      %v6754 = vadd.f32 %v6641, %v6753
      %v6755 = vpop.f32.mrb[0].mxu0
      %v6756 = vadd.f32 %v6643, %v6755
      %6757 = vmatprep.mubr.bf16.mxu0 %v735
      %6758 = vmatmul.mubr.bf16.gmra.mrb[0].mxu0 %v734
      %v6759 = vpop.f32.mrb[0].mxu0
      %v6760 = vadd.f32 %v6647, %v6759
      %v6761 = vpop.f32.mrb[0].mxu0
      %v6762 = vadd.f32 %v6649, %v6761
      %v6763 = vpop.f32.mrb[0].mxu0
      %v6764 = vadd.f32 %v6651, %v6763
      %v6765 = vpop.f32.mrb[0].mxu0
      %v6766 = vadd.f32 %v6653, %v6765
      %6767 = vmatprep.mubr.bf16.mxu0 %v757
      %6768 = vmatmul.mubr.bf16.gmra.mrb[0].mxu0 %v756
      %v6769 = vpop.f32.mrb[0].mxu0
      %v6770 = vadd.f32 %v6657, %v6769
      %v6771 = vpop.f32.mrb[0].mxu0
      %v6772 = vadd.f32 %v6659, %v6771
      %v6773 = vpop.f32.mrb[0].mxu0
      %v6774 = vadd.f32 %v6661, %v6773
      %v6775 = vpop.f32.mrb[0].mxu0
      %v6776 = vadd.f32 %v6663, %v6775
      %6777 = vmatprep.mubr.bf16.mxu0 %v779
      %6778 = vmatmul.mubr.bf16.gmra.mrb[0].mxu0 %v778
      %v6779 = vpop.f32.mrb[0].mxu0
      %v6780 = vadd.f32 %v6667, %v6779
      %v6781 = vpop.f32.mrb[0].mxu0
      %v6782 = vadd.f32 %v6669, %v6781
      %v6783 = vpop.f32.mrb[0].mxu0
      %v6784 = vadd.f32 %v6671, %v6783
      %v6785 = vpop.f32.mrb[0].mxu0
      %v6786 = vadd.f32 %v6673, %v6785
      %6787 = vmatprep.mubr.bf16.mxu0 %v801
      %6788 = vmatmul.mubr.bf16.gmra.mrb[0].mxu0 %v800
      %v6789 = vpop.f32.mrb[0].mxu0
      %v6790 = vadd.f32 %v6677, %v6789
      %v6791 = vpop.f32.mrb[0].mxu0
      %v6792 = vadd.f32 %v6679, %v6791
      %v6793 = vpop.f32.mrb[0].mxu0
      %v6794 = vadd.f32 %v6681, %v6793
      %v6795 = vpop.f32.mrb[0].mxu0
      %v6796 = vadd.f32 %v6683, %v6795
      %6797 = vdwg.mxu0
      %6798 = vmatprep.subr.bf16.mxu0 %v3903
      %6799 = vmatpush1.bf16.msra.mxu0 %v3902
      %6800 = vmatprep.subr.bf16.mxu0 %v3907
      %6801 = vmatpush1.bf16.msra.mxu0 %v3906
      %6802 = vmatprep.subr.bf16.mxu0 %v3911
      %6803 = vmatpush1.bf16.msra.mxu0 %v3910
      %6804 = vmatprep.subr.bf16.mxu0 %v3915
      %6805 = vmatpush1.bf16.msra.mxu0 %v3914
      %6806 = vmatprep.subr.bf16.mxu0 %v3919
      %6807 = vmatpush1.bf16.msra.mxu0 %v3918
      %6808 = vmatprep.subr.bf16.mxu0 %v3923
      %6809 = vmatpush1.bf16.msra.mxu0 %v3922
      %6810 = vmatprep.subr.bf16.mxu0 %v3927
      %6811 = vmatpush1.bf16.msra.mxu0 %v3926
      %6812 = vmatprep.subr.bf16.mxu0 %v3931
      %6813 = vmatpush1.bf16.msra.mxu0 %v3930
      %6814 = vmatprep.subr.bf16.mxu0 %v3935
      %6815 = vmatpush1.bf16.msra.mxu0 %v3934
      %6816 = vmatprep.subr.bf16.mxu0 %v3939
      %6817 = vmatpush1.bf16.msra.mxu0 %v3938
      %6818 = vmatprep.subr.bf16.mxu0 %v3943
      %6819 = vmatpush1.bf16.msra.mxu0 %v3942
      %6820 = vmatprep.subr.bf16.mxu0 %v3947
      %6821 = vmatpush1.bf16.msra.mxu0 %v3946
      %6822 = vmatprep.subr.bf16.mxu0 %v3951
      %6823 = vmatpush1.bf16.msra.mxu0 %v3950
      %6824 = vmatprep.subr.bf16.mxu0 %v3955
      %6825 = vmatpush1.bf16.msra.mxu0 %v3954
      %6826 = vmatprep.subr.bf16.mxu0 %v3959
      %6827 = vmatpush1.bf16.msra.mxu0 %v3958
      %6828 = vmatprep.subr.bf16.mxu0 %v3963
      %6829 = vmatpush1.bf16.msra.mxu0 %v3962
      %6830 = vmatprep.mubr.bf16.mxu0 %v649
      %6831 = vmatmul.mubr.bf16.gmra.mrb[0].mxu0 %v648
      %v6832 = vpop.f32.mrb[0].mxu0
      %v6833 = vadd.f32 %v6720, %v6832
      %v6834 = vpop.f32.mrb[0].mxu0
      %v6835 = vadd.f32 %v6722, %v6834
      %v6836 = vpop.f32.mrb[0].mxu0
      %v6837 = vadd.f32 %v6724, %v6836
      %v6838 = vpop.f32.mrb[0].mxu0
      %v6839 = vadd.f32 %v6726, %v6838
      %6840 = vmatprep.mubr.bf16.mxu0 %v671
      %6841 = vmatmul.mubr.bf16.gmra.mrb[0].mxu0 %v670
      %v6842 = vpop.f32.mrb[0].mxu0
      %v6843 = vadd.f32 %v6730, %v6842
      %v6844 = vpop.f32.mrb[0].mxu0
      %v6845 = vadd.f32 %v6732, %v6844
      %v6846 = vpop.f32.mrb[0].mxu0
      %v6847 = vadd.f32 %v6734, %v6846
      %v6848 = vpop.f32.mrb[0].mxu0
      %v6849 = vadd.f32 %v6736, %v6848
      %6850 = vmatprep.mubr.bf16.mxu0 %v693
      %6851 = vmatmul.mubr.bf16.gmra.mrb[0].mxu0 %v692
      %v6852 = vpop.f32.mrb[0].mxu0
      %v6853 = vadd.f32 %v6740, %v6852
      %v6854 = vpop.f32.mrb[0].mxu0
      %v6855 = vadd.f32 %v6742, %v6854
      %v6856 = vpop.f32.mrb[0].mxu0
      %v6857 = vadd.f32 %v6744, %v6856
      %v6858 = vpop.f32.mrb[0].mxu0
      %v6859 = vadd.f32 %v6746, %v6858
      %6860 = vmatprep.mubr.bf16.mxu0 %v715
      %6861 = vmatmul.mubr.bf16.gmra.mrb[0].mxu0 %v714
      %v6862 = vpop.f32.mrb[0].mxu0
      %v6863 = vadd.f32 %v6750, %v6862
      %v6864 = vpop.f32.mrb[0].mxu0
      %v6865 = vadd.f32 %v6752, %v6864
      %v6866 = vpop.f32.mrb[0].mxu0
      %v6867 = vadd.f32 %v6754, %v6866
      %v6868 = vpop.f32.mrb[0].mxu0
      %v6869 = vadd.f32 %v6756, %v6868
      %6870 = vmatprep.mubr.bf16.mxu0 %v737
      %6871 = vmatmul.mubr.bf16.gmra.mrb[0].mxu0 %v736
      %v6872 = vpop.f32.mrb[0].mxu0
      %v6873 = vadd.f32 %v6760, %v6872
      %v6874 = vpop.f32.mrb[0].mxu0
      %v6875 = vadd.f32 %v6762, %v6874
      %v6876 = vpop.f32.mrb[0].mxu0
      %v6877 = vadd.f32 %v6764, %v6876
      %v6878 = vpop.f32.mrb[0].mxu0
      %v6879 = vadd.f32 %v6766, %v6878
      %6880 = vmatprep.mubr.bf16.mxu0 %v759
      %6881 = vmatmul.mubr.bf16.gmra.mrb[0].mxu0 %v758
      %v6882 = vpop.f32.mrb[0].mxu0
      %v6883 = vadd.f32 %v6770, %v6882
      %v6884 = vpop.f32.mrb[0].mxu0
      %v6885 = vadd.f32 %v6772, %v6884
      %v6886 = vpop.f32.mrb[0].mxu0
      %v6887 = vadd.f32 %v6774, %v6886
      %v6888 = vpop.f32.mrb[0].mxu0
      %v6889 = vadd.f32 %v6776, %v6888
      %6890 = vmatprep.mubr.bf16.mxu0 %v781
      %6891 = vmatmul.mubr.bf16.gmra.mrb[0].mxu0 %v780
      %v6892 = vpop.f32.mrb[0].mxu0
      %v6893 = vadd.f32 %v6780, %v6892
      %v6894 = vpop.f32.mrb[0].mxu0
      %v6895 = vadd.f32 %v6782, %v6894
      %v6896 = vpop.f32.mrb[0].mxu0
      %v6897 = vadd.f32 %v6784, %v6896
      %v6898 = vpop.f32.mrb[0].mxu0
      %v6899 = vadd.f32 %v6786, %v6898
      %6900 = vmatprep.mubr.bf16.mxu0 %v803
      %6901 = vmatmul.mubr.bf16.gmra.mrb[0].mxu0 %v802
      %v6902 = vpop.f32.mrb[0].mxu0
      %v6903 = vadd.f32 %v6790, %v6902
      %v6904 = vpop.f32.mrb[0].mxu0
      %v6905 = vadd.f32 %v6792, %v6904
      %v6906 = vpop.f32.mrb[0].mxu0
      %v6907 = vadd.f32 %v6794, %v6906
      %v6908 = vpop.f32.mrb[0].mxu0
      %v6909 = vadd.f32 %v6796, %v6908
      %6910 = vdwg.mxu0
      %6911 = vmatprep.subr.bf16.mxu0 %v3967
      %6912 = vmatpush1.bf16.msra.mxu0 %v3966
      %6913 = vmatprep.subr.bf16.mxu0 %v3971
      %6914 = vmatpush1.bf16.msra.mxu0 %v3970
      %6915 = vmatprep.subr.bf16.mxu0 %v3975
      %6916 = vmatpush1.bf16.msra.mxu0 %v3974
      %6917 = vmatprep.subr.bf16.mxu0 %v3979
      %6918 = vmatpush1.bf16.msra.mxu0 %v3978
      %6919 = vmatprep.subr.bf16.mxu0 %v3983
      %6920 = vmatpush1.bf16.msra.mxu0 %v3982
      %6921 = vmatprep.subr.bf16.mxu0 %v3987
      %6922 = vmatpush1.bf16.msra.mxu0 %v3986
      %6923 = vmatprep.subr.bf16.mxu0 %v3991
      %6924 = vmatpush1.bf16.msra.mxu0 %v3990
      %6925 = vmatprep.subr.bf16.mxu0 %v3995
      %6926 = vmatpush1.bf16.msra.mxu0 %v3994
      %6927 = vmatprep.subr.bf16.mxu0 %v3999
      %6928 = vmatpush1.bf16.msra.mxu0 %v3998
      %6929 = vmatprep.subr.bf16.mxu0 %v4003
      %6930 = vmatpush1.bf16.msra.mxu0 %v4002
      %6931 = vmatprep.subr.bf16.mxu0 %v4007
      %6932 = vmatpush1.bf16.msra.mxu0 %v4006
      %6933 = vmatprep.subr.bf16.mxu0 %v4011
      %6934 = vmatpush1.bf16.msra.mxu0 %v4010
      %6935 = vmatprep.subr.bf16.mxu0 %v4015
      %6936 = vmatpush1.bf16.msra.mxu0 %v4014
      %6937 = vmatprep.subr.bf16.mxu0 %v4019
      %6938 = vmatpush1.bf16.msra.mxu0 %v4018
      %6939 = vmatprep.subr.bf16.mxu0 %v4023
      %6940 = vmatpush1.bf16.msra.mxu0 %v4022
      %6941 = vmatprep.subr.bf16.mxu0 %v4027
      %6942 = vmatpush1.bf16.msra.mxu0 %v4026
      %6943 = vmatprep.mubr.bf16.mxu0 %v651
      %6944 = vmatmul.mubr.bf16.gmra.mrb[0].mxu0 %v650
      %v6945 = vpop.f32.mrb[0].mxu0
      %v6946 = vadd.f32 %v6833, %v6945
      %v6947 = vpop.f32.mrb[0].mxu0
      %v6948 = vadd.f32 %v6835, %v6947
      %v6949 = vpop.f32.mrb[0].mxu0
      %v6950 = vadd.f32 %v6837, %v6949
      %v6951 = vpop.f32.mrb[0].mxu0
      %v6952 = vadd.f32 %v6839, %v6951
      %6953 = vmatprep.mubr.bf16.mxu0 %v673
      %6954 = vmatmul.mubr.bf16.gmra.mrb[0].mxu0 %v672
      %v6955 = vpop.f32.mrb[0].mxu0
      %v6956 = vadd.f32 %v6843, %v6955
      %v6957 = vpop.f32.mrb[0].mxu0
      %v6958 = vadd.f32 %v6845, %v6957
      %v6959 = vpop.f32.mrb[0].mxu0
      %v6960 = vadd.f32 %v6847, %v6959
      %v6961 = vpop.f32.mrb[0].mxu0
      %v6962 = vadd.f32 %v6849, %v6961
      %6963 = vmatprep.mubr.bf16.mxu0 %v695
      %6964 = vmatmul.mubr.bf16.gmra.mrb[0].mxu0 %v694
      %v6965 = vpop.f32.mrb[0].mxu0
      %v6966 = vadd.f32 %v6853, %v6965
      %v6967 = vpop.f32.mrb[0].mxu0
      %v6968 = vadd.f32 %v6855, %v6967
      %v6969 = vpop.f32.mrb[0].mxu0
      %v6970 = vadd.f32 %v6857, %v6969
      %v6971 = vpop.f32.mrb[0].mxu0
      %v6972 = vadd.f32 %v6859, %v6971
      %6973 = vmatprep.mubr.bf16.mxu0 %v717
      %6974 = vmatmul.mubr.bf16.gmra.mrb[0].mxu0 %v716
      %v6975 = vpop.f32.mrb[0].mxu0
      %v6976 = vadd.f32 %v6863, %v6975
      %v6977 = vpop.f32.mrb[0].mxu0
      %v6978 = vadd.f32 %v6865, %v6977
      %v6979 = vpop.f32.mrb[0].mxu0
      %v6980 = vadd.f32 %v6867, %v6979
      %v6981 = vpop.f32.mrb[0].mxu0
      %v6982 = vadd.f32 %v6869, %v6981
      %6983 = vmatprep.mubr.bf16.mxu0 %v739
      %6984 = vmatmul.mubr.bf16.gmra.mrb[0].mxu0 %v738
      %v6985 = vpop.f32.mrb[0].mxu0
      %v6986 = vadd.f32 %v6873, %v6985
      %v6987 = vpop.f32.mrb[0].mxu0
      %v6988 = vadd.f32 %v6875, %v6987
      %v6989 = vpop.f32.mrb[0].mxu0
      %v6990 = vadd.f32 %v6877, %v6989
      %v6991 = vpop.f32.mrb[0].mxu0
      %v6992 = vadd.f32 %v6879, %v6991
      %6993 = vmatprep.mubr.bf16.mxu0 %v761
      %6994 = vmatmul.mubr.bf16.gmra.mrb[0].mxu0 %v760
      %v6995 = vpop.f32.mrb[0].mxu0
      %v6996 = vadd.f32 %v6883, %v6995
      %v6997 = vpop.f32.mrb[0].mxu0
      %v6998 = vadd.f32 %v6885, %v6997
      %v6999 = vpop.f32.mrb[0].mxu0
      %v7000 = vadd.f32 %v6887, %v6999
      %v7001 = vpop.f32.mrb[0].mxu0
      %v7002 = vadd.f32 %v6889, %v7001
      %7003 = vmatprep.mubr.bf16.mxu0 %v783
      %7004 = vmatmul.mubr.bf16.gmra.mrb[0].mxu0 %v782
      %v7005 = vpop.f32.mrb[0].mxu0
      %v7006 = vadd.f32 %v6893, %v7005
      %v7007 = vpop.f32.mrb[0].mxu0
      %v7008 = vadd.f32 %v6895, %v7007
      %v7009 = vpop.f32.mrb[0].mxu0
      %v7010 = vadd.f32 %v6897, %v7009
      %v7011 = vpop.f32.mrb[0].mxu0
      %v7012 = vadd.f32 %v6899, %v7011
      %7013 = vmatprep.mubr.bf16.mxu0 %v805
      %7014 = vmatmul.mubr.bf16.gmra.mrb[0].mxu0 %v804
      %v7015 = vpop.f32.mrb[0].mxu0
      %v7016 = vadd.f32 %v6903, %v7015
      %v7017 = vpop.f32.mrb[0].mxu0
      %v7018 = vadd.f32 %v6905, %v7017
      %v7019 = vpop.f32.mrb[0].mxu0
      %v7020 = vadd.f32 %v6907, %v7019
      %v7021 = vpop.f32.mrb[0].mxu0
      %v7022 = vadd.f32 %v6909, %v7021
      %7023 = vdwg.mxu0
      %7024 = vmatprep.subr.bf16.mxu0 %v4031
      %7025 = vmatpush1.bf16.msra.mxu0 %v4030
      %7026 = vmatprep.subr.bf16.mxu0 %v4035
      %7027 = vmatpush1.bf16.msra.mxu0 %v4034
      %7028 = vmatprep.subr.bf16.mxu0 %v4039
      %7029 = vmatpush1.bf16.msra.mxu0 %v4038
      %7030 = vmatprep.subr.bf16.mxu0 %v4043
      %7031 = vmatpush1.bf16.msra.mxu0 %v4042
      %7032 = vmatprep.subr.bf16.mxu0 %v4047
      %7033 = vmatpush1.bf16.msra.mxu0 %v4046
      %7034 = vmatprep.subr.bf16.mxu0 %v4051
      %7035 = vmatpush1.bf16.msra.mxu0 %v4050
      %7036 = vmatprep.subr.bf16.mxu0 %v4055
      %7037 = vmatpush1.bf16.msra.mxu0 %v4054
      %7038 = vmatprep.subr.bf16.mxu0 %v4059
      %7039 = vmatpush1.bf16.msra.mxu0 %v4058
      %7040 = vmatprep.subr.bf16.mxu0 %v4063
      %7041 = vmatpush1.bf16.msra.mxu0 %v4062
      %7042 = vmatprep.subr.bf16.mxu0 %v4067
      %7043 = vmatpush1.bf16.msra.mxu0 %v4066
      %7044 = vmatprep.subr.bf16.mxu0 %v4071
      %7045 = vmatpush1.bf16.msra.mxu0 %v4070
      %7046 = vmatprep.subr.bf16.mxu0 %v4075
      %7047 = vmatpush1.bf16.msra.mxu0 %v4074
      %7048 = vmatprep.subr.bf16.mxu0 %v4079
      %7049 = vmatpush1.bf16.msra.mxu0 %v4078
      %7050 = vmatprep.subr.bf16.mxu0 %v4083
      %7051 = vmatpush1.bf16.msra.mxu0 %v4082
      %7052 = vmatprep.subr.bf16.mxu0 %v4087
      %7053 = vmatpush1.bf16.msra.mxu0 %v4086
      %7054 = vmatprep.subr.bf16.mxu0 %v4091
      %7055 = vmatpush1.bf16.msra.mxu0 %v4090
      %7056 = vmatprep.mubr.bf16.mxu0 %v653
      %7057 = vmatmul.mubr.bf16.gmra.mrb[0].mxu0 %v652
      %v7058 = vpop.f32.mrb[0].mxu0
      %v7059 = vadd.f32 %v6946, %v7058
      %v7060 = vpop.f32.mrb[0].mxu0
      %v7061 = vadd.f32 %v6948, %v7060
      %v7062 = vpop.f32.mrb[0].mxu0
      %v7063 = vadd.f32 %v6950, %v7062
      %v7064 = vpop.f32.mrb[0].mxu0
      %v7065 = vadd.f32 %v6952, %v7064
      %7066 = vmatprep.mubr.bf16.mxu0 %v675
      %7067 = vmatmul.mubr.bf16.gmra.mrb[0].mxu0 %v674
      %v7068 = vpop.f32.mrb[0].mxu0
      %v7069 = vadd.f32 %v6956, %v7068
      %v7070 = vpop.f32.mrb[0].mxu0
      %v7071 = vadd.f32 %v6958, %v7070
      %v7072 = vpop.f32.mrb[0].mxu0
      %v7073 = vadd.f32 %v6960, %v7072
      %v7074 = vpop.f32.mrb[0].mxu0
      %v7075 = vadd.f32 %v6962, %v7074
      %7076 = vmatprep.mubr.bf16.mxu0 %v697
      %7077 = vmatmul.mubr.bf16.gmra.mrb[0].mxu0 %v696
      %v7078 = vpop.f32.mrb[0].mxu0
      %v7079 = vadd.f32 %v6966, %v7078
      %v7080 = vpop.f32.mrb[0].mxu0
      %v7081 = vadd.f32 %v6968, %v7080
      %v7082 = vpop.f32.mrb[0].mxu0
      %v7083 = vadd.f32 %v6970, %v7082
      %v7084 = vpop.f32.mrb[0].mxu0
      %v7085 = vadd.f32 %v6972, %v7084
      %7086 = vmatprep.mubr.bf16.mxu0 %v719
      %7087 = vmatmul.mubr.bf16.gmra.mrb[0].mxu0 %v718
      %v7088 = vpop.f32.mrb[0].mxu0
      %v7089 = vadd.f32 %v6976, %v7088
      %v7090 = vpop.f32.mrb[0].mxu0
      %v7091 = vadd.f32 %v6978, %v7090
      %v7092 = vpop.f32.mrb[0].mxu0
      %v7093 = vadd.f32 %v6980, %v7092
      %v7094 = vpop.f32.mrb[0].mxu0
      %v7095 = vadd.f32 %v6982, %v7094
      %7096 = vmatprep.mubr.bf16.mxu0 %v741
      %7097 = vmatmul.mubr.bf16.gmra.mrb[0].mxu0 %v740
      %v7098 = vpop.f32.mrb[0].mxu0
      %v7099 = vadd.f32 %v6986, %v7098
      %v7100 = vpop.f32.mrb[0].mxu0
      %v7101 = vadd.f32 %v6988, %v7100
      %v7102 = vpop.f32.mrb[0].mxu0
      %v7103 = vadd.f32 %v6990, %v7102
      %v7104 = vpop.f32.mrb[0].mxu0
      %v7105 = vadd.f32 %v6992, %v7104
      %7106 = vmatprep.mubr.bf16.mxu0 %v763
      %7107 = vmatmul.mubr.bf16.gmra.mrb[0].mxu0 %v762
      %v7108 = vpop.f32.mrb[0].mxu0
      %v7109 = vadd.f32 %v6996, %v7108
      %v7110 = vpop.f32.mrb[0].mxu0
      %v7111 = vadd.f32 %v6998, %v7110
      %v7112 = vpop.f32.mrb[0].mxu0
      %v7113 = vadd.f32 %v7000, %v7112
      %v7114 = vpop.f32.mrb[0].mxu0
      %v7115 = vadd.f32 %v7002, %v7114
      %7116 = vmatprep.mubr.bf16.mxu0 %v785
      %7117 = vmatmul.mubr.bf16.gmra.mrb[0].mxu0 %v784
      %v7118 = vpop.f32.mrb[0].mxu0
      %v7119 = vadd.f32 %v7006, %v7118
      %v7120 = vpop.f32.mrb[0].mxu0
      %v7121 = vadd.f32 %v7008, %v7120
      %v7122 = vpop.f32.mrb[0].mxu0
      %v7123 = vadd.f32 %v7010, %v7122
      %v7124 = vpop.f32.mrb[0].mxu0
      %v7125 = vadd.f32 %v7012, %v7124
      %7126 = vmatprep.mubr.bf16.mxu0 %v807
      %7127 = vmatmul.mubr.bf16.gmra.mrb[0].mxu0 %v806
      %v7128 = vpop.f32.mrb[0].mxu0
      %v7129 = vadd.f32 %v7016, %v7128
      %v7130 = vpop.f32.mrb[0].mxu0
      %v7131 = vadd.f32 %v7018, %v7130
      %v7132 = vpop.f32.mrb[0].mxu0
      %v7133 = vadd.f32 %v7020, %v7132
      %v7134 = vpop.f32.mrb[0].mxu0
      %v7135 = vadd.f32 %v7022, %v7134
      %7136 = vdwg.mxu0
      %7137 = vmatprep.subr.bf16.mxu0 %v4095
      %7138 = vmatpush1.bf16.msra.mxu0 %v4094
      %7139 = vmatprep.subr.bf16.mxu0 %v4099
      %7140 = vmatpush1.bf16.msra.mxu0 %v4098
      %7141 = vmatprep.subr.bf16.mxu0 %v4103
      %7142 = vmatpush1.bf16.msra.mxu0 %v4102
      %7143 = vmatprep.subr.bf16.mxu0 %v4107
      %7144 = vmatpush1.bf16.msra.mxu0 %v4106
      %7145 = vmatprep.subr.bf16.mxu0 %v4111
      %7146 = vmatpush1.bf16.msra.mxu0 %v4110
      %7147 = vmatprep.subr.bf16.mxu0 %v4115
      %7148 = vmatpush1.bf16.msra.mxu0 %v4114
      %7149 = vmatprep.subr.bf16.mxu0 %v4119
      %7150 = vmatpush1.bf16.msra.mxu0 %v4118
      %7151 = vmatprep.subr.bf16.mxu0 %v4123
      %7152 = vmatpush1.bf16.msra.mxu0 %v4122
      %7153 = vmatprep.subr.bf16.mxu0 %v4127
      %7154 = vmatpush1.bf16.msra.mxu0 %v4126
      %7155 = vmatprep.subr.bf16.mxu0 %v4131
      %7156 = vmatpush1.bf16.msra.mxu0 %v4130
      %7157 = vmatprep.subr.bf16.mxu0 %v4135
      %7158 = vmatpush1.bf16.msra.mxu0 %v4134
      %7159 = vmatprep.subr.bf16.mxu0 %v4139
      %7160 = vmatpush1.bf16.msra.mxu0 %v4138
      %7161 = vmatprep.subr.bf16.mxu0 %v4143
      %7162 = vmatpush1.bf16.msra.mxu0 %v4142
      %7163 = vmatprep.subr.bf16.mxu0 %v4147
      %7164 = vmatpush1.bf16.msra.mxu0 %v4146
      %7165 = vmatprep.subr.bf16.mxu0 %v4151
      %7166 = vmatpush1.bf16.msra.mxu0 %v4150
      %7167 = vmatprep.subr.bf16.mxu0 %v4155
      %7168 = vmatpush1.bf16.msra.mxu0 %v4154
      %7169 = vmatprep.mubr.bf16.mxu0 %v655
      %7170 = vmatmul.mubr.bf16.gmra.mrb[0].mxu0 %v654
      %v7171 = vpop.f32.mrb[0].mxu0
      %v7172 = vadd.f32 %v7059, %v7171
      %v7173 = vpop.f32.mrb[0].mxu0
      %v7174 = vadd.f32 %v7061, %v7173
      %v7175 = vpop.f32.mrb[0].mxu0
      %v7176 = vadd.f32 %v7063, %v7175
      %v7177 = vpop.f32.mrb[0].mxu0
      %v7178 = vadd.f32 %v7065, %v7177
      %7179 = vmatprep.mubr.bf16.mxu0 %v677
      %7180 = vmatmul.mubr.bf16.gmra.mrb[0].mxu0 %v676
      %v7181 = vpop.f32.mrb[0].mxu0
      %v7182 = vadd.f32 %v7069, %v7181
      %v7183 = vpop.f32.mrb[0].mxu0
      %v7184 = vadd.f32 %v7071, %v7183
      %v7185 = vpop.f32.mrb[0].mxu0
      %v7186 = vadd.f32 %v7073, %v7185
      %v7187 = vpop.f32.mrb[0].mxu0
      %v7188 = vadd.f32 %v7075, %v7187
      %7189 = vmatprep.mubr.bf16.mxu0 %v699
      %7190 = vmatmul.mubr.bf16.gmra.mrb[0].mxu0 %v698
      %v7191 = vpop.f32.mrb[0].mxu0
      %v7192 = vadd.f32 %v7079, %v7191
      %v7193 = vpop.f32.mrb[0].mxu0
      %v7194 = vadd.f32 %v7081, %v7193
      %v7195 = vpop.f32.mrb[0].mxu0
      %v7196 = vadd.f32 %v7083, %v7195
      %v7197 = vpop.f32.mrb[0].mxu0
      %v7198 = vadd.f32 %v7085, %v7197
      %7199 = vmatprep.mubr.bf16.mxu0 %v721
      %7200 = vmatmul.mubr.bf16.gmra.mrb[0].mxu0 %v720
      %v7201 = vpop.f32.mrb[0].mxu0
      %v7202 = vadd.f32 %v7089, %v7201
      %v7203 = vpop.f32.mrb[0].mxu0
      %v7204 = vadd.f32 %v7091, %v7203
      %v7205 = vpop.f32.mrb[0].mxu0
      %v7206 = vadd.f32 %v7093, %v7205
      %v7207 = vpop.f32.mrb[0].mxu0
      %v7208 = vadd.f32 %v7095, %v7207
      %7209 = vmatprep.mubr.bf16.mxu0 %v743
      %7210 = vmatmul.mubr.bf16.gmra.mrb[0].mxu0 %v742
      %v7211 = vpop.f32.mrb[0].mxu0
      %v7212 = vadd.f32 %v7099, %v7211
      %v7213 = vpop.f32.mrb[0].mxu0
      %v7214 = vadd.f32 %v7101, %v7213
      %v7215 = vpop.f32.mrb[0].mxu0
      %v7216 = vadd.f32 %v7103, %v7215
      %v7217 = vpop.f32.mrb[0].mxu0
      %v7218 = vadd.f32 %v7105, %v7217
      %7219 = vmatprep.mubr.bf16.mxu0 %v765
      %7220 = vmatmul.mubr.bf16.gmra.mrb[0].mxu0 %v764
      %v7221 = vpop.f32.mrb[0].mxu0
      %v7222 = vadd.f32 %v7109, %v7221
      %v7223 = vpop.f32.mrb[0].mxu0
      %v7224 = vadd.f32 %v7111, %v7223
      %v7225 = vpop.f32.mrb[0].mxu0
      %v7226 = vadd.f32 %v7113, %v7225
      %v7227 = vpop.f32.mrb[0].mxu0
      %v7228 = vadd.f32 %v7115, %v7227
      %7229 = vmatprep.mubr.bf16.mxu0 %v787
      %7230 = vmatmul.mubr.bf16.gmra.mrb[0].mxu0 %v786
      %v7231 = vpop.f32.mrb[0].mxu0
      %v7232 = vadd.f32 %v7119, %v7231
      %v7233 = vpop.f32.mrb[0].mxu0
      %v7234 = vadd.f32 %v7121, %v7233
      %v7235 = vpop.f32.mrb[0].mxu0
      %v7236 = vadd.f32 %v7123, %v7235
      %v7237 = vpop.f32.mrb[0].mxu0
      %v7238 = vadd.f32 %v7125, %v7237
      %7239 = vmatprep.mubr.bf16.mxu0 %v809
      %7240 = vmatmul.mubr.bf16.gmra.mrb[0].mxu0 %v808
      %v7241 = vpop.f32.mrb[0].mxu0
      %v7242 = vadd.f32 %v7129, %v7241
      %v7243 = vpop.f32.mrb[0].mxu0
      %v7244 = vadd.f32 %v7131, %v7243
      %v7245 = vpop.f32.mrb[0].mxu0
      %v7246 = vadd.f32 %v7133, %v7245
      %v7247 = vpop.f32.mrb[0].mxu0
      %v7248 = vadd.f32 %v7135, %v7247
      %7249 = vdwg.mxu0
      %7250 = vmatprep.subr.bf16.mxu0 %v4159
      %7251 = vmatpush1.bf16.msra.mxu0 %v4158
      %7252 = vmatprep.subr.bf16.mxu0 %v4163
      %7253 = vmatpush1.bf16.msra.mxu0 %v4162
      %7254 = vmatprep.subr.bf16.mxu0 %v4167
      %7255 = vmatpush1.bf16.msra.mxu0 %v4166
      %7256 = vmatprep.subr.bf16.mxu0 %v4171
      %7257 = vmatpush1.bf16.msra.mxu0 %v4170
      %7258 = vmatprep.subr.bf16.mxu0 %v4175
      %7259 = vmatpush1.bf16.msra.mxu0 %v4174
      %7260 = vmatprep.subr.bf16.mxu0 %v4179
      %7261 = vmatpush1.bf16.msra.mxu0 %v4178
      %7262 = vmatprep.subr.bf16.mxu0 %v4183
      %7263 = vmatpush1.bf16.msra.mxu0 %v4182
      %7264 = vmatprep.subr.bf16.mxu0 %v4187
      %7265 = vmatpush1.bf16.msra.mxu0 %v4186
      %7266 = vmatprep.subr.bf16.mxu0 %v4191
      %7267 = vmatpush1.bf16.msra.mxu0 %v4190
      %7268 = vmatprep.subr.bf16.mxu0 %v4195
      %7269 = vmatpush1.bf16.msra.mxu0 %v4194
      %7270 = vmatprep.subr.bf16.mxu0 %v4199
      %7271 = vmatpush1.bf16.msra.mxu0 %v4198
      %7272 = vmatprep.subr.bf16.mxu0 %v4203
      %7273 = vmatpush1.bf16.msra.mxu0 %v4202
      %7274 = vmatprep.subr.bf16.mxu0 %v4207
      %7275 = vmatpush1.bf16.msra.mxu0 %v4206
      %7276 = vmatprep.subr.bf16.mxu0 %v4211
      %7277 = vmatpush1.bf16.msra.mxu0 %v4210
      %7278 = vmatprep.subr.bf16.mxu0 %v4215
      %7279 = vmatpush1.bf16.msra.mxu0 %v4214
      %7280 = vmatprep.subr.bf16.mxu0 %v4219
      %7281 = vmatpush1.bf16.msra.mxu0 %v4218
      %7282 = vmatprep.mubr.bf16.mxu0 %v657
      %7283 = vmatmul.mubr.bf16.gmra.mrb[0].mxu0 %v656
      %v7284 = vpop.f32.mrb[0].mxu0
      %v7285 = vadd.f32 %v7172, %v7284
      %v7286 = vpop.f32.mrb[0].mxu0
      %v7287 = vadd.f32 %v7174, %v7286
      %v7288 = vpop.f32.mrb[0].mxu0
      %v7289 = vadd.f32 %v7176, %v7288
      %v7290 = vpop.f32.mrb[0].mxu0
      %v7291 = vadd.f32 %v7178, %v7290
      %7292 = vmatprep.mubr.bf16.mxu0 %v679
      %7293 = vmatmul.mubr.bf16.gmra.mrb[0].mxu0 %v678
      %v7294 = vpop.f32.mrb[0].mxu0
      %v7295 = vadd.f32 %v7182, %v7294
      %v7296 = vpop.f32.mrb[0].mxu0
      %v7297 = vadd.f32 %v7184, %v7296
      %v7298 = vpop.f32.mrb[0].mxu0
      %v7299 = vadd.f32 %v7186, %v7298
      %v7300 = vpop.f32.mrb[0].mxu0
      %v7301 = vadd.f32 %v7188, %v7300
      %7302 = vmatprep.mubr.bf16.mxu0 %v701
      %7303 = vmatmul.mubr.bf16.gmra.mrb[0].mxu0 %v700
      %v7304 = vpop.f32.mrb[0].mxu0
      %v7305 = vadd.f32 %v7192, %v7304
      %v7306 = vpop.f32.mrb[0].mxu0
      %v7307 = vadd.f32 %v7194, %v7306
      %v7308 = vpop.f32.mrb[0].mxu0
      %v7309 = vadd.f32 %v7196, %v7308
      %v7310 = vpop.f32.mrb[0].mxu0
      %v7311 = vadd.f32 %v7198, %v7310
      %7312 = vmatprep.mubr.bf16.mxu0 %v723
      %7313 = vmatmul.mubr.bf16.gmra.mrb[0].mxu0 %v722
      %v7314 = vpop.f32.mrb[0].mxu0
      %v7315 = vadd.f32 %v7202, %v7314
      %v7316 = vpop.f32.mrb[0].mxu0
      %v7317 = vadd.f32 %v7204, %v7316
      %v7318 = vpop.f32.mrb[0].mxu0
      %v7319 = vadd.f32 %v7206, %v7318
      %v7320 = vpop.f32.mrb[0].mxu0
      %v7321 = vadd.f32 %v7208, %v7320
      %7322 = vmatprep.mubr.bf16.mxu0 %v745
      %7323 = vmatmul.mubr.bf16.gmra.mrb[0].mxu0 %v744
      %v7324 = vpop.f32.mrb[0].mxu0
      %v7325 = vadd.f32 %v7212, %v7324
      %v7326 = vpop.f32.mrb[0].mxu0
      %v7327 = vadd.f32 %v7214, %v7326
      %v7328 = vpop.f32.mrb[0].mxu0
      %v7329 = vadd.f32 %v7216, %v7328
      %v7330 = vpop.f32.mrb[0].mxu0
      %v7331 = vadd.f32 %v7218, %v7330
      %7332 = vmatprep.mubr.bf16.mxu0 %v767
      %7333 = vmatmul.mubr.bf16.gmra.mrb[0].mxu0 %v766
      %v7334 = vpop.f32.mrb[0].mxu0
      %v7335 = vadd.f32 %v7222, %v7334
      %v7336 = vpop.f32.mrb[0].mxu0
      %v7337 = vadd.f32 %v7224, %v7336
      %v7338 = vpop.f32.mrb[0].mxu0
      %v7339 = vadd.f32 %v7226, %v7338
      %v7340 = vpop.f32.mrb[0].mxu0
      %v7341 = vadd.f32 %v7228, %v7340
      %7342 = vmatprep.mubr.bf16.mxu0 %v789
      %7343 = vmatmul.mubr.bf16.gmra.mrb[0].mxu0 %v788
      %v7344 = vpop.f32.mrb[0].mxu0
      %v7345 = vadd.f32 %v7232, %v7344
      %v7346 = vpop.f32.mrb[0].mxu0
      %v7347 = vadd.f32 %v7234, %v7346
      %v7348 = vpop.f32.mrb[0].mxu0
      %v7349 = vadd.f32 %v7236, %v7348
      %v7350 = vpop.f32.mrb[0].mxu0
      %v7351 = vadd.f32 %v7238, %v7350
      %7352 = vmatprep.mubr.bf16.mxu0 %v811
      %7353 = vmatmul.mubr.bf16.gmra.mrb[0].mxu0 %v810
      %v7354 = vpop.f32.mrb[0].mxu0
      %v7355 = vadd.f32 %v7242, %v7354
      %v7356 = vpop.f32.mrb[0].mxu0
      %v7357 = vadd.f32 %v7244, %v7356
      %v7358 = vpop.f32.mrb[0].mxu0
      %v7359 = vadd.f32 %v7246, %v7358
      %v7360 = vpop.f32.mrb[0].mxu0
      %v7361 = vadd.f32 %v7248, %v7360
      %7362 = vdwg.mxu0
      %7363 = vmatprep.subr.bf16.mxu0 %v4223
      %7364 = vmatpush1.bf16.msra.mxu0 %v4222
      %7365 = vmatprep.subr.bf16.mxu0 %v4227
      %7366 = vmatpush1.bf16.msra.mxu0 %v4226
      %7367 = vmatprep.subr.bf16.mxu0 %v4231
      %7368 = vmatpush1.bf16.msra.mxu0 %v4230
      %7369 = vmatprep.subr.bf16.mxu0 %v4235
      %7370 = vmatpush1.bf16.msra.mxu0 %v4234
      %7371 = vmatprep.subr.bf16.mxu0 %v4239
      %7372 = vmatpush1.bf16.msra.mxu0 %v4238
      %7373 = vmatprep.subr.bf16.mxu0 %v4243
      %7374 = vmatpush1.bf16.msra.mxu0 %v4242
      %7375 = vmatprep.subr.bf16.mxu0 %v4247
      %7376 = vmatpush1.bf16.msra.mxu0 %v4246
      %7377 = vmatprep.subr.bf16.mxu0 %v4251
      %7378 = vmatpush1.bf16.msra.mxu0 %v4250
      %7379 = vmatprep.subr.bf16.mxu0 %v4255
      %7380 = vmatpush1.bf16.msra.mxu0 %v4254
      %7381 = vmatprep.subr.bf16.mxu0 %v4259
      %7382 = vmatpush1.bf16.msra.mxu0 %v4258
      %7383 = vmatprep.subr.bf16.mxu0 %v4263
      %7384 = vmatpush1.bf16.msra.mxu0 %v4262
      %7385 = vmatprep.subr.bf16.mxu0 %v4988
      %7386 = vmatpush1.bf16.msra.mxu0 %v4985
      %7387 = vmatprep.subr.bf16.mxu0 0
      %7388 = vmatpush1.bf16.msra.mxu0 0
      %7389 = vmatprep.subr.bf16.mxu0 0
      %7390 = vmatpush1.bf16.msra.mxu0 0
      %7391 = vmatprep.subr.bf16.mxu0 0
      %7392 = vmatpush1.bf16.msra.mxu0 0
      %7393 = vmatprep.subr.bf16.mxu0 0
      %7394 = vmatpush1.bf16.msra.mxu0 0
      %7395 = vmatprep.mubr.bf16.mxu0 %v4954
      %7396 = vmatmul.mubr.bf16.gmra.mrb[0].mxu0 %v658
      %v7397 = vpop.f32.mrb[0].mxu0
      %v7398 = vadd.f32 %v7285, %v7397
      %v7399 = vpop.f32.mrb[0].mxu0
      %v7400 = vadd.f32 %v7287, %v7399
      %v7401 = vpop.f32.mrb[0].mxu0
      %v7402 = vadd.f32 %v7289, %v7401
      %v7403 = vpop.f32.mrb[0].mxu0
      %v7404 = vadd.f32 %v7291, %v7403
      %7405 = vmatprep.mubr.bf16.mxu0 %v4957
      %7406 = vmatmul.mubr.bf16.gmra.mrb[0].mxu0 %v680
      %v7407 = vpop.f32.mrb[0].mxu0
      %v7408 = vadd.f32 %v7295, %v7407
      %v7409 = vpop.f32.mrb[0].mxu0
      %v7410 = vadd.f32 %v7297, %v7409
      %v7411 = vpop.f32.mrb[0].mxu0
      %v7412 = vadd.f32 %v7299, %v7411
      %v7413 = vpop.f32.mrb[0].mxu0
      %v7414 = vadd.f32 %v7301, %v7413
      %7415 = vmatprep.mubr.bf16.mxu0 %v4960
      %7416 = vmatmul.mubr.bf16.gmra.mrb[0].mxu0 %v702
      %v7417 = vpop.f32.mrb[0].mxu0
      %v7418 = vadd.f32 %v7305, %v7417
      %v7419 = vpop.f32.mrb[0].mxu0
      %v7420 = vadd.f32 %v7307, %v7419
      %v7421 = vpop.f32.mrb[0].mxu0
      %v7422 = vadd.f32 %v7309, %v7421
      %v7423 = vpop.f32.mrb[0].mxu0
      %v7424 = vadd.f32 %v7311, %v7423
      %7425 = vmatprep.mubr.bf16.mxu0 %v4963
      %7426 = vmatmul.mubr.bf16.gmra.mrb[0].mxu0 %v724
      %v7427 = vpop.f32.mrb[0].mxu0
      %v7428 = vadd.f32 %v7315, %v7427
      %v7429 = vpop.f32.mrb[0].mxu0
      %v7430 = vadd.f32 %v7317, %v7429
      %v7431 = vpop.f32.mrb[0].mxu0
      %v7432 = vadd.f32 %v7319, %v7431
      %v7433 = vpop.f32.mrb[0].mxu0
      %v7434 = vadd.f32 %v7321, %v7433
      %7435 = vmatprep.mubr.bf16.mxu0 %v4966
      %7436 = vmatmul.mubr.bf16.gmra.mrb[0].mxu0 %v746
      %v7437 = vpop.f32.mrb[0].mxu0
      %v7438 = vadd.f32 %v7325, %v7437
      %v7439 = vpop.f32.mrb[0].mxu0
      %v7440 = vadd.f32 %v7327, %v7439
      %v7441 = vpop.f32.mrb[0].mxu0
      %v7442 = vadd.f32 %v7329, %v7441
      %v7443 = vpop.f32.mrb[0].mxu0
      %v7444 = vadd.f32 %v7331, %v7443
      %7445 = vmatprep.mubr.bf16.mxu0 %v4969
      %7446 = vmatmul.mubr.bf16.gmra.mrb[0].mxu0 %v768
      %v7447 = vpop.f32.mrb[0].mxu0
      %v7448 = vadd.f32 %v7335, %v7447
      %v7449 = vpop.f32.mrb[0].mxu0
      %v7450 = vadd.f32 %v7337, %v7449
      %v7451 = vpop.f32.mrb[0].mxu0
      %v7452 = vadd.f32 %v7339, %v7451
      %v7453 = vpop.f32.mrb[0].mxu0
      %v7454 = vadd.f32 %v7341, %v7453
      %7455 = vmatprep.mubr.bf16.mxu0 %v4972
      %7456 = vmatmul.mubr.bf16.gmra.mrb[0].mxu0 %v790
      %v7457 = vpop.f32.mrb[0].mxu0
      %v7458 = vadd.f32 %v7345, %v7457
      %v7459 = vpop.f32.mrb[0].mxu0
      %v7460 = vadd.f32 %v7347, %v7459
      %v7461 = vpop.f32.mrb[0].mxu0
      %v7462 = vadd.f32 %v7349, %v7461
      %v7463 = vpop.f32.mrb[0].mxu0
      %v7464 = vadd.f32 %v7351, %v7463
      %7465 = vmatprep.mubr.bf16.mxu0 %v4975
      %7466 = vmatmul.mubr.bf16.gmra.mrb[0].mxu0 %v812
      %v7467 = vpop.f32.mrb[0].mxu0
      %v7468 = vadd.f32 %v7355, %v7467
      %v7469 = vpop.f32.mrb[0].mxu0
      %v7470 = vadd.f32 %v7357, %v7469
      %v7471 = vpop.f32.mrb[0].mxu0
      %v7472 = vadd.f32 %v7359, %v7471
      %v7473 = vpop.f32.mrb[0].mxu0
      %v7474 = vadd.f32 %v7361, %v7473
      %7475 = vdwg.mxu0
      %v7476 = vmax.f32 %v6155, 0.0
      %v7477 = vmax.f32 %v6157, 0.0
      %v7478 = vmax.f32 %v7398, 0.0
      %v7479 = vmax.f32 %v7400, 0.0
      %v7480 = vmax.f32 %v6159, 0.0
      %v7481 = vmax.f32 %v6161, 0.0
      %v7482 = vmax.f32 %v7402, 0.0
      %v7483 = vmax.f32 %v7404, 0.0
      %v7484 = vmax.f32 %v6165, 0.0
      %v7485 = vmax.f32 %v6167, 0.0
      %v7486 = vmax.f32 %v7408, 0.0
      %v7487 = vmax.f32 %v7410, 0.0
      %v7488 = vmax.f32 %v6169, 0.0
      %v7489 = vmax.f32 %v6171, 0.0
      %v7490 = vmax.f32 %v7412, 0.0
      %v7491 = vmax.f32 %v7414, 0.0
      %v7492 = vmax.f32 %v6175, 0.0
      %v7493 = vmax.f32 %v6177, 0.0
      %v7494 = vmax.f32 %v7418, 0.0
      %v7495 = vmax.f32 %v7420, 0.0
      %v7496 = vmax.f32 %v6179, 0.0
      %v7497 = vmax.f32 %v6181, 0.0
      %v7498 = vmax.f32 %v7422, 0.0
      %v7499 = vmax.f32 %v7424, 0.0
      %v7500 = vmax.f32 %v6185, 0.0
      %v7501 = vmax.f32 %v6187, 0.0
      %v7502 = vmax.f32 %v7428, 0.0
      %v7503 = vmax.f32 %v7430, 0.0
      %v7504 = vmax.f32 %v6189, 0.0
      %v7505 = vmax.f32 %v6191, 0.0
      %v7506 = vmax.f32 %v7432, 0.0
      %v7507 = vmax.f32 %v7434, 0.0
      %v7508 = vmax.f32 %v6195, 0.0
      %v7509 = vmax.f32 %v6197, 0.0
      %v7510 = vmax.f32 %v7438, 0.0
      %v7511 = vmax.f32 %v7440, 0.0
      %v7512 = vmax.f32 %v6199, 0.0
      %v7513 = vmax.f32 %v6201, 0.0
      %v7514 = vmax.f32 %v7442, 0.0
      %v7515 = vmax.f32 %v7444, 0.0
      %v7516 = vmax.f32 %v6205, 0.0
      %v7517 = vmax.f32 %v6207, 0.0
      %v7518 = vmax.f32 %v7448, 0.0
      %v7519 = vmax.f32 %v7450, 0.0
      %v7520 = vmax.f32 %v6209, 0.0
      %v7521 = vmax.f32 %v6211, 0.0
      %v7522 = vmax.f32 %v7452, 0.0
      %v7523 = vmax.f32 %v7454, 0.0
      %v7524 = vmax.f32 %v6215, 0.0
      %v7525 = vmax.f32 %v6217, 0.0
      %v7526 = vmax.f32 %v7458, 0.0
      %v7527 = vmax.f32 %v7460, 0.0
      %v7528 = vmax.f32 %v6219, 0.0
      %v7529 = vmax.f32 %v6221, 0.0
      %v7530 = vmax.f32 %v7462, 0.0
      %v7531 = vmax.f32 %v7464, 0.0
      %v7532 = vmax.f32 %v6225, 0.0
      %v7533 = vmax.f32 %v6227, 0.0
      %v7534 = vmax.f32 %v7468, 0.0
      %v7535 = vmax.f32 %v7470, 0.0
      %v7536 = vmax.f32 %v6229, 0.0
      %v7537 = vmax.f32 %v6231, 0.0
      %v7538 = vmax.f32 %v7472, 0.0
      %v7539 = vmax.f32 %v7474, 0.0
      %v7540 = vpack.c.bf16 %v7480, %v7476
      %v7541 = vpack.c.bf16 %v7481, %v7477
      %v7542 = vpack.c.bf16 %v7482, %v7478
      %v7543 = vpack.c.bf16 %v7483, %v7479
      %v7544 = vpack.c.bf16 %v7488, %v7484
      %v7545 = vpack.c.bf16 %v7489, %v7485
      %v7546 = vpack.c.bf16 %v7490, %v7486
      %v7547 = vpack.c.bf16 %v7491, %v7487
      %v7548 = vpack.c.bf16 %v7496, %v7492
      %v7549 = vpack.c.bf16 %v7497, %v7493
      %v7550 = vpack.c.bf16 %v7498, %v7494
      %v7551 = vpack.c.bf16 %v7499, %v7495
      %v7552 = vpack.c.bf16 %v7504, %v7500
      %v7553 = vpack.c.bf16 %v7505, %v7501
      %v7554 = vpack.c.bf16 %v7506, %v7502
      %v7555 = vpack.c.bf16 %v7507, %v7503
      %v7556 = vpack.c.bf16 %v7512, %v7508
      %v7557 = vpack.c.bf16 %v7513, %v7509
      %v7558 = vpack.c.bf16 %v7514, %v7510
      %v7559 = vpack.c.bf16 %v7515, %v7511
      %v7560 = vpack.c.bf16 %v7520, %v7516
      %v7561 = vpack.c.bf16 %v7521, %v7517
      %v7562 = vpack.c.bf16 %v7522, %v7518
      %v7563 = vpack.c.bf16 %v7523, %v7519
      %v7564 = vpack.c.bf16 %v7528, %v7524
      %v7565 = vpack.c.bf16 %v7529, %v7525
      %v7566 = vpack.c.bf16 %v7530, %v7526
      %v7567 = vpack.c.bf16 %v7531, %v7527
      %v7568 = vpack.c.bf16 %v7536, %v7532
      %v7569 = vpack.c.bf16 %v7537, %v7533
      %v7570 = vpack.c.bf16 %v7538, %v7534
      %v7571 = vpack.c.bf16 %v7539, %v7535
      %v7572 = vld [vmem:[%s3] sm:$0xf]
      %v7573 = vld [vmem:[%s3 + $0x4] sm:$0xf]
      %v7574 = vld [vmem:[%s3 + $0x8] sm:$0xf]
      %v7575 = vld [vmem:[%s3 + $0xc] sm:$0xf]
      %v7576 = vld [vmem:[%s3 + $0x10] sm:$0xf]
      %v7577 = vld [vmem:[%s3 + $0x14] sm:$0xf]
      %v7578 = vld [vmem:[%s3 + $0x18] sm:$0xf]
      %v7579 = vld [vmem:[%s3 + $0x1c] sm:$0xf]
      %v7580 = vld [vmem:[%s3 + $0x20] sm:$0xf]
      %v7581 = vld [vmem:[%s3 + $0x24] sm:$0xf]
      %v7582 = vld [vmem:[%s3 + $0x28] sm:$0xf]
      %v7583 = vld [vmem:[%s3 + $0x2c] sm:$0xf]
      %v7584 = vld [vmem:[%s3 + $0x30] sm:$0xf]
      %v7585 = vld [vmem:[%s3 + $0x34] sm:$0xf]
      %v7586 = vld [vmem:[%s3 + $0x38] sm:$0xf]
      %v7587 = vld [vmem:[%s3 + $0x3c] sm:$0xf]
      %v7588 = vld [vmem:[%s3 + $0x40] sm:$0xf]
      %v7589 = vld [vmem:[%s3 + $0x44] sm:$0xf]
      %v7590 = vld [vmem:[%s3 + $0x48] sm:$0xf]
      %v7591 = vld [vmem:[%s3 + $0x4c] sm:$0xf]
      %v7592 = vld [vmem:[%s3 + $0x50] sm:$0xf]
      %v7593 = vld [vmem:[%s3 + $0x54] sm:$0xf]
      %v7594 = vld [vmem:[%s3 + $0x58] sm:$0xf]
      %v7595 = vld [vmem:[%s3 + $0x5c] sm:$0xf]
      %v7596 = vld [vmem:[%s3 + $0x60] sm:$0xf]
      %v7597 = vld [vmem:[%s3 + $0x64] sm:$0xf]
      %v7598 = vld [vmem:[%s3 + $0x68] sm:$0xf]
      %v7599 = vld [vmem:[%s3 + $0x6c] sm:$0xf]
      %v7600 = vld [vmem:[%s3 + $0x70] sm:$0xf]
      %v7601 = vld [vmem:[%s3 + $0x74] sm:$0xf]
      %v7602 = vld [vmem:[%s3 + $0x78] sm:$0xf]
      %v7603 = vld [vmem:[%s3 + $0x7c] sm:$0xf]
      %v7604 = vld [vmem:[%s3 + $0x80] sm:$0xf]
      %v7605 = vld [vmem:[%s3 + $0x84] sm:$0xf]
      %v7606 = vld [vmem:[%s3 + $0x88] sm:$0xf]
      %v7607 = vld [vmem:[%s3 + $0x8c] sm:$0xf]
      %v7608 = vld [vmem:[%s3 + $0x90] sm:$0xf]
      %v7609 = vld [vmem:[%s3 + $0x94] sm:$0xf]
      %v7610 = vld [vmem:[%s3 + $0x98] sm:$0xf]
      %v7611 = vld [vmem:[%s3 + $0x9c] sm:$0xf]
      %v7612 = vld [vmem:[%s3 + $0xa0] sm:$0xf]
      %v7613 = vld [vmem:[%s3 + $0xa4] sm:$0xf]
      %v7614 = vld [vmem:[%s3 + $0xa8] sm:$0xf]
      %v7615 = vld [vmem:[%s3 + $0xac] sm:$0xf]
      %v7616 = vld [vmem:[%s3 + $0xb0] sm:$0xf]
      %v7617 = vld [vmem:[%s3 + $0xb4] sm:$0xf]
      %v7618 = vld [vmem:[%s3 + $0xb8] sm:$0xf]
      %v7619 = vld [vmem:[%s3 + $0xbc] sm:$0xf]
      %v7620 = vld [vmem:[%s3 + $0xc0] sm:$0xf]
      %v7621 = vld [vmem:[%s4] sm:$0x1]
      %v7623 = vlaneseq
      %v7624 = vshrl.u32 %v7623, 7
      %v7625 = vsub.s32 0, %v7624
      %v7626 = vrot.slane %v7621, %v7625
      %v7677 = vunpack.c.l.b16 %v7572
      %v7678 = vunpack.c.l.b16 %v7573
      %v7679 = vunpack.c.l.b16 %v7574
      %v7680 = vunpack.c.l.b16 %v7575
      %v7681 = vunpack.c.l.b16 %v7576
      %v7682 = vunpack.c.l.b16 %v7577
      %v7683 = vunpack.c.l.b16 %v7578
      %v7684 = vunpack.c.l.b16 %v7579
      %v7685 = vunpack.c.l.b16 %v7580
      %v7686 = vunpack.c.l.b16 %v7581
      %v7687 = vunpack.c.l.b16 %v7582
      %v7688 = vunpack.c.l.b16 %v7583
      %v7689 = vunpack.c.l.b16 %v7584
      %v7690 = vunpack.c.l.b16 %v7585
      %v7691 = vunpack.c.l.b16 %v7586
      %v7692 = vunpack.c.l.b16 %v7587
      %v7693 = vunpack.c.l.b16 %v7588
      %v7694 = vunpack.c.l.b16 %v7589
      %v7695 = vunpack.c.l.b16 %v7590
      %v7696 = vunpack.c.l.b16 %v7591
      %v7697 = vunpack.c.l.b16 %v7592
      %v7698 = vunpack.c.l.b16 %v7593
      %v7699 = vunpack.c.l.b16 %v7594
      %v7700 = vunpack.c.l.b16 %v7595
      %v7701 = vunpack.c.l.b16 %v7596
      %v7702 = vunpack.c.l.b16 %v7597
      %v7703 = vunpack.c.l.b16 %v7598
      %v7704 = vunpack.c.l.b16 %v7599
      %v7705 = vunpack.c.l.b16 %v7600
      %v7706 = vunpack.c.l.b16 %v7601
      %v7707 = vunpack.c.l.b16 %v7602
      %v7708 = vunpack.c.l.b16 %v7603
      %v7709 = vunpack.c.l.b16 %v7604
      %v7710 = vunpack.c.l.b16 %v7605
      %v7711 = vunpack.c.l.b16 %v7606
      %v7712 = vunpack.c.l.b16 %v7607
      %v7713 = vunpack.c.l.b16 %v7608
      %v7714 = vunpack.c.l.b16 %v7609
      %v7715 = vunpack.c.l.b16 %v7610
      %v7716 = vunpack.c.l.b16 %v7611
      %v7717 = vunpack.c.l.b16 %v7612
      %v7718 = vunpack.c.l.b16 %v7613
      %v7719 = vunpack.c.l.b16 %v7614
      %v7720 = vunpack.c.l.b16 %v7615
      %v7721 = vunpack.c.l.b16 %v7616
      %v7722 = vunpack.c.l.b16 %v7617
      %v7723 = vunpack.c.l.b16 %v7618
      %v7724 = vunpack.c.l.b16 %v7619
      %v7725 = vunpack.c.l.b16 %v7620
      %v7726 = vpack.c.b16 %v7678, %v7677
      %v7727 = vpack.c.b16 %v7680, %v7679
      %v7728 = vpack.c.b16 %v7682, %v7681
      %v7729 = vpack.c.b16 %v7684, %v7683
      %v7730 = vpack.c.b16 %v7686, %v7685
      %v7731 = vpack.c.b16 %v7688, %v7687
      %v7732 = vpack.c.b16 %v7690, %v7689
      %v7733 = vpack.c.b16 %v7692, %v7691
      %v7734 = vpack.c.b16 %v7694, %v7693
      %v7735 = vpack.c.b16 %v7696, %v7695
      %v7736 = vpack.c.b16 %v7698, %v7697
      %v7737 = vpack.c.b16 %v7700, %v7699
      %v7738 = vpack.c.b16 %v7702, %v7701
      %v7739 = vpack.c.b16 %v7704, %v7703
      %v7740 = vpack.c.b16 %v7706, %v7705
      %v7741 = vpack.c.b16 %v7708, %v7707
      %v7742 = vpack.c.b16 %v7710, %v7709
      %v7743 = vpack.c.b16 %v7712, %v7711
      %v7744 = vpack.c.b16 %v7714, %v7713
      %v7745 = vpack.c.b16 %v7716, %v7715
      %v7746 = vpack.c.b16 %v7718, %v7717
      %v7747 = vpack.c.b16 %v7720, %v7719
      %v7748 = vpack.c.b16 %v7722, %v7721
      %v7749 = vpack.c.b16 %v7724, %v7723
      %v7750 = vpack.c.b16 %v7725, %v7725
      %vm7775 = vcmask 64512
      %v7777 = vsel %vm7775, %v7543, 0
      %v7780 = vsel %vm7775, %v7547, 0
      %v7783 = vsel %vm7775, %v7551, 0
      %v7786 = vsel %vm7775, %v7555, 0
      %v7789 = vsel %vm7775, %v7559, 0
      %v7792 = vsel %vm7775, %v7563, 0
      %v7795 = vsel %vm7775, %v7567, 0
      %v7798 = vsel %vm7775, %v7571, 0
      %v7801 = vsel %vm4977, %v7750, 0
      %7803 = vmatprep.subr.bf16.mxu0 0
      %7804 = vmatpush1.bf16.msra.mxu0 %v7726
      %7805 = vmatprep.subr.bf16.mxu0 0
      %7806 = vmatpush1.bf16.msra.mxu0 %v7727
      %7807 = vmatprep.subr.bf16.mxu0 0
      %7808 = vmatpush1.bf16.msra.mxu0 %v7728
      %7809 = vmatprep.subr.bf16.mxu0 0
      %7810 = vmatpush1.bf16.msra.mxu0 %v7729
      %7811 = vmatprep.subr.bf16.mxu0 0
      %7812 = vmatpush1.bf16.msra.mxu0 %v7730
      %7813 = vmatprep.subr.bf16.mxu0 0
      %7814 = vmatpush1.bf16.msra.mxu0 %v7731
      %7815 = vmatprep.subr.bf16.mxu0 0
      %7816 = vmatpush1.bf16.msra.mxu0 %v7732
      %7817 = vmatprep.subr.bf16.mxu0 0
      %7818 = vmatpush1.bf16.msra.mxu0 %v7733
      %7819 = vmatprep.subr.bf16.mxu0 0
      %7820 = vmatpush1.bf16.msra.mxu0 %v7734
      %7821 = vmatprep.subr.bf16.mxu0 0
      %7822 = vmatpush1.bf16.msra.mxu0 %v7735
      %7823 = vmatprep.subr.bf16.mxu0 0
      %7824 = vmatpush1.bf16.msra.mxu0 %v7736
      %7825 = vmatprep.subr.bf16.mxu0 0
      %7826 = vmatpush1.bf16.msra.mxu0 %v7737
      %7827 = vmatprep.subr.bf16.mxu0 0
      %7828 = vmatpush1.bf16.msra.mxu0 %v7738
      %7829 = vmatprep.subr.bf16.mxu0 0
      %7830 = vmatpush1.bf16.msra.mxu0 %v7739
      %7831 = vmatprep.subr.bf16.mxu0 0
      %7832 = vmatpush1.bf16.msra.mxu0 %v7740
      %7833 = vmatprep.subr.bf16.mxu0 0
      %7834 = vmatpush1.bf16.msra.mxu0 %v7741
      %7835 = vmatprep.mubr.bf16.mxu0 %v7541
      %7836 = vmatmul.mubr.bf16.gmra.mrb[0].mxu0 %v7540
      %v7837 = vpop.f32.mrb[0].mxu0
      %v7838 = vadd.f32 %v7626, %v7837
      %v7839 = vpop.f32.mrb[0].mxu0
      %v7840 = vpop.f32.mrb[0].mxu0
      %v7841 = vadd.f32 %v7626, %v7840
      %v7842 = vpop.f32.mrb[0].mxu0
      %7843 = vmatprep.mubr.bf16.mxu0 %v7545
      %7844 = vmatmul.mubr.bf16.gmra.mrb[0].mxu0 %v7544
      %v7845 = vpop.f32.mrb[0].mxu0
      %v7846 = vadd.f32 %v7626, %v7845
      %v7847 = vpop.f32.mrb[0].mxu0
      %v7848 = vpop.f32.mrb[0].mxu0
      %v7849 = vadd.f32 %v7626, %v7848
      %v7850 = vpop.f32.mrb[0].mxu0
      %7851 = vmatprep.mubr.bf16.mxu0 %v7549
      %7852 = vmatmul.mubr.bf16.gmra.mrb[0].mxu0 %v7548
      %v7853 = vpop.f32.mrb[0].mxu0
      %v7854 = vadd.f32 %v7626, %v7853
      %v7855 = vpop.f32.mrb[0].mxu0
      %v7856 = vpop.f32.mrb[0].mxu0
      %v7857 = vadd.f32 %v7626, %v7856
      %v7858 = vpop.f32.mrb[0].mxu0
      %7859 = vmatprep.mubr.bf16.mxu0 %v7553
      %7860 = vmatmul.mubr.bf16.gmra.mrb[0].mxu0 %v7552
      %v7861 = vpop.f32.mrb[0].mxu0
      %v7862 = vadd.f32 %v7626, %v7861
      %v7863 = vpop.f32.mrb[0].mxu0
      %v7864 = vpop.f32.mrb[0].mxu0
      %v7865 = vadd.f32 %v7626, %v7864
      %v7866 = vpop.f32.mrb[0].mxu0
      %7867 = vmatprep.mubr.bf16.mxu0 %v7557
      %7868 = vmatmul.mubr.bf16.gmra.mrb[0].mxu0 %v7556
      %v7869 = vpop.f32.mrb[0].mxu0
      %v7870 = vadd.f32 %v7626, %v7869
      %v7871 = vpop.f32.mrb[0].mxu0
      %v7872 = vpop.f32.mrb[0].mxu0
      %v7873 = vadd.f32 %v7626, %v7872
      %v7874 = vpop.f32.mrb[0].mxu0
      %7875 = vmatprep.mubr.bf16.mxu0 %v7561
      %7876 = vmatmul.mubr.bf16.gmra.mrb[0].mxu0 %v7560
      %v7877 = vpop.f32.mrb[0].mxu0
      %v7878 = vadd.f32 %v7626, %v7877
      %v7879 = vpop.f32.mrb[0].mxu0
      %v7880 = vpop.f32.mrb[0].mxu0
      %v7881 = vadd.f32 %v7626, %v7880
      %v7882 = vpop.f32.mrb[0].mxu0
      %7883 = vmatprep.mubr.bf16.mxu0 %v7565
      %7884 = vmatmul.mubr.bf16.gmra.mrb[0].mxu0 %v7564
      %v7885 = vpop.f32.mrb[0].mxu0
      %v7886 = vadd.f32 %v7626, %v7885
      %v7887 = vpop.f32.mrb[0].mxu0
      %v7888 = vpop.f32.mrb[0].mxu0
      %v7889 = vadd.f32 %v7626, %v7888
      %v7890 = vpop.f32.mrb[0].mxu0
      %7891 = vmatprep.mubr.bf16.mxu0 %v7569
      %7892 = vmatmul.mubr.bf16.gmra.mrb[0].mxu0 %v7568
      %v7893 = vpop.f32.mrb[0].mxu0
      %v7894 = vadd.f32 %v7626, %v7893
      %v7895 = vpop.f32.mrb[0].mxu0
      %v7896 = vpop.f32.mrb[0].mxu0
      %v7897 = vadd.f32 %v7626, %v7896
      %v7898 = vpop.f32.mrb[0].mxu0
      %7899 = vdwg.mxu0
      %7900 = vmatprep.subr.bf16.mxu0 0
      %7901 = vmatpush1.bf16.msra.mxu0 %v7742
      %7902 = vmatprep.subr.bf16.mxu0 0
      %7903 = vmatpush1.bf16.msra.mxu0 %v7743
      %7904 = vmatprep.subr.bf16.mxu0 0
      %7905 = vmatpush1.bf16.msra.mxu0 %v7744
      %7906 = vmatprep.subr.bf16.mxu0 0
      %7907 = vmatpush1.bf16.msra.mxu0 %v7745
      %7908 = vmatprep.subr.bf16.mxu0 0
      %7909 = vmatpush1.bf16.msra.mxu0 %v7746
      %7910 = vmatprep.subr.bf16.mxu0 0
      %7911 = vmatpush1.bf16.msra.mxu0 %v7747
      %7912 = vmatprep.subr.bf16.mxu0 0
      %7913 = vmatpush1.bf16.msra.mxu0 %v7748
      %7914 = vmatprep.subr.bf16.mxu0 0
      %7915 = vmatpush1.bf16.msra.mxu0 %v7749
      %7916 = vmatprep.subr.bf16.mxu0 0
      %7917 = vmatpush1.bf16.msra.mxu0 %v7801
      %7918 = vmatprep.subr.bf16.mxu0 0
      %7919 = vmatpush1.bf16.msra.mxu0 0
      %7920 = vmatprep.subr.bf16.mxu0 0
      %7921 = vmatpush1.bf16.msra.mxu0 0
      %7922 = vmatprep.subr.bf16.mxu0 0
      %7923 = vmatpush1.bf16.msra.mxu0 0
      %7924 = vmatprep.subr.bf16.mxu0 0
      %7925 = vmatpush1.bf16.msra.mxu0 0
      %7926 = vmatprep.subr.bf16.mxu0 0
      %7927 = vmatpush1.bf16.msra.mxu0 0
      %7928 = vmatprep.subr.bf16.mxu0 0
      %7929 = vmatpush1.bf16.msra.mxu0 0
      %7930 = vmatprep.subr.bf16.mxu0 0
      %7931 = vmatpush1.bf16.msra.mxu0 0
      %7932 = vmatprep.mubr.bf16.mxu0 %v7777
      %7933 = vmatmul.mubr.bf16.gmra.mrb[0].mxu0 %v7542
      %v7934 = vpop.f32.mrb[0].mxu0
      %v7935 = vadd.f32 %v7838, %v7934
      %v7936 = vpop.f32.mrb[0].mxu0
      %v7937 = vpop.f32.mrb[0].mxu0
      %v7938 = vadd.f32 %v7841, %v7937
      %v7939 = vpop.f32.mrb[0].mxu0
      %7940 = vmatprep.mubr.bf16.mxu0 %v7780
      %7941 = vmatmul.mubr.bf16.gmra.mrb[0].mxu0 %v7546
      %v7942 = vpop.f32.mrb[0].mxu0
      %v7943 = vadd.f32 %v7846, %v7942
      %v7944 = vpop.f32.mrb[0].mxu0
      %v7945 = vpop.f32.mrb[0].mxu0
      %v7946 = vadd.f32 %v7849, %v7945
      %v7947 = vpop.f32.mrb[0].mxu0
      %7948 = vmatprep.mubr.bf16.mxu0 %v7783
      %7949 = vmatmul.mubr.bf16.gmra.mrb[0].mxu0 %v7550
      %v7950 = vpop.f32.mrb[0].mxu0
      %v7951 = vadd.f32 %v7854, %v7950
      %v7952 = vpop.f32.mrb[0].mxu0
      %v7953 = vpop.f32.mrb[0].mxu0
      %v7954 = vadd.f32 %v7857, %v7953
      %v7955 = vpop.f32.mrb[0].mxu0
      %7956 = vmatprep.mubr.bf16.mxu0 %v7786
      %7957 = vmatmul.mubr.bf16.gmra.mrb[0].mxu0 %v7554
      %v7958 = vpop.f32.mrb[0].mxu0
      %v7959 = vadd.f32 %v7862, %v7958
      %v7960 = vpop.f32.mrb[0].mxu0
      %v7961 = vpop.f32.mrb[0].mxu0
      %v7962 = vadd.f32 %v7865, %v7961
      %v7963 = vpop.f32.mrb[0].mxu0
      %7964 = vmatprep.mubr.bf16.mxu0 %v7789
      %7965 = vmatmul.mubr.bf16.gmra.mrb[0].mxu0 %v7558
      %v7966 = vpop.f32.mrb[0].mxu0
      %v7967 = vadd.f32 %v7870, %v7966
      %v7968 = vpop.f32.mrb[0].mxu0
      %v7969 = vpop.f32.mrb[0].mxu0
      %v7970 = vadd.f32 %v7873, %v7969
      %v7971 = vpop.f32.mrb[0].mxu0
      %7972 = vmatprep.mubr.bf16.mxu0 %v7792
      %7973 = vmatmul.mubr.bf16.gmra.mrb[0].mxu0 %v7562
      %v7974 = vpop.f32.mrb[0].mxu0
      %v7975 = vadd.f32 %v7878, %v7974
      %v7976 = vpop.f32.mrb[0].mxu0
      %v7977 = vpop.f32.mrb[0].mxu0
      %v7978 = vadd.f32 %v7881, %v7977
      %v7979 = vpop.f32.mrb[0].mxu0
      %7980 = vmatprep.mubr.bf16.mxu0 %v7795
      %7981 = vmatmul.mubr.bf16.gmra.mrb[0].mxu0 %v7566
      %v7982 = vpop.f32.mrb[0].mxu0
      %v7983 = vadd.f32 %v7886, %v7982
      %v7984 = vpop.f32.mrb[0].mxu0
      %v7985 = vpop.f32.mrb[0].mxu0
      %v7986 = vadd.f32 %v7889, %v7985
      %v7987 = vpop.f32.mrb[0].mxu0
      %7988 = vmatprep.mubr.bf16.mxu0 %v7798
      %7989 = vmatmul.mubr.bf16.gmra.mrb[0].mxu0 %v7570
      %v7990 = vpop.f32.mrb[0].mxu0
      %v7991 = vadd.f32 %v7894, %v7990
      %v7992 = vpop.f32.mrb[0].mxu0
      %v7993 = vpop.f32.mrb[0].mxu0
      %v7994 = vadd.f32 %v7897, %v7993
      %v7995 = vpop.f32.mrb[0].mxu0
      %7996 = vdwg.mxu0
      %v7997 = vmax.f32 %v7935, 0.0
      %v7998 = vmax.f32 %v7938, 0.0
      %v7999 = vmax.f32 %v7943, 0.0
      %v8000 = vmax.f32 %v7946, 0.0
      %v8001 = vmax.f32 %v7951, 0.0
      %v8002 = vmax.f32 %v7954, 0.0
      %v8003 = vmax.f32 %v7959, 0.0
      %v8004 = vmax.f32 %v7962, 0.0
      %v8005 = vmax.f32 %v7967, 0.0
      %v8006 = vmax.f32 %v7970, 0.0
      %v8007 = vmax.f32 %v7975, 0.0
      %v8008 = vmax.f32 %v7978, 0.0
      %v8009 = vmax.f32 %v7983, 0.0
      %v8010 = vmax.f32 %v7986, 0.0
      %v8011 = vmax.f32 %v7991, 0.0
      %v8012 = vmax.f32 %v7994, 0.0
      %v8013 = vpack.c.bf16 %v7998, %v7997
      %v8014 = vpack.c.bf16 %v8000, %v7999
      %v8015 = vpack.c.bf16 %v8002, %v8001
      %v8016 = vpack.c.bf16 %v8004, %v8003
      %v8017 = vpack.c.bf16 %v8006, %v8005
      %v8018 = vpack.c.bf16 %v8008, %v8007
      %v8019 = vpack.c.bf16 %v8010, %v8009
      %v8020 = vpack.c.bf16 %v8012, %v8011
      %v8021 = vld [vmem:[%s5] sm:$0xf]
      %v8022 = vld [vmem:[%s5 + $0x4] sm:$0xf]
      %v8023 = vld [vmem:[%s5 + $0x8] sm:$0xf]
      %v8024 = vld [vmem:[%s5 + $0xc] sm:$0xf]
      %v8025 = vld [vmem:[%s6] sm:$0x1]
      %v8027 = vlaneseq
      %v8028 = vshrl.u32 %v8027, 7
      %v8029 = vsub.s32 0, %v8028
      %v8030 = vrot.slane %v8025, %v8029
      %v8036 = vunpack.c.l.b16 %v8021
      %v8037 = vunpack.c.l.b16 %v8022
      %v8038 = vunpack.c.l.b16 %v8023
      %v8039 = vunpack.c.l.b16 %v8024
      %v8040 = vpack.c.b16 %v8037, %v8036
      %v8041 = vpack.c.b16 %v8039, %v8038
      %vm8044 = vcmask 261120
      %v8046 = vsel %vm8044, %v8013, 0
      %v8049 = vsel %vm8044, %v8014, 0
      %v8052 = vsel %vm8044, %v8015, 0
      %v8055 = vsel %vm8044, %v8016, 0
      %v8058 = vsel %vm8044, %v8017, 0
      %v8061 = vsel %vm8044, %v8018, 0
      %v8064 = vsel %vm8044, %v8019, 0
      %v8067 = vsel %vm8044, %v8020, 0
      %8069 = vmatprep.subr.bf16.mxu0 0
      %8070 = vmatpush1.bf16.msra.mxu0 %v8040
      %8071 = vmatprep.subr.bf16.mxu0 0
      %8072 = vmatpush1.bf16.msra.mxu0 %v8041
      %8073 = vmatprep.subr.bf16.mxu0 0
      %8074 = vmatpush1.bf16.msra.mxu0 0
      %8075 = vmatprep.subr.bf16.mxu0 0
      %8076 = vmatpush1.bf16.msra.mxu0 0
      %8077 = vmatprep.subr.bf16.mxu0 0
      %8078 = vmatpush1.bf16.msra.mxu0 0
      %8079 = vmatprep.subr.bf16.mxu0 0
      %8080 = vmatpush1.bf16.msra.mxu0 0
      %8081 = vmatprep.subr.bf16.mxu0 0
      %8082 = vmatpush1.bf16.msra.mxu0 0
      %8083 = vmatprep.subr.bf16.mxu0 0
      %8084 = vmatpush1.bf16.msra.mxu0 0
      %8085 = vmatprep.subr.bf16.mxu0 0
      %8086 = vmatpush1.bf16.msra.mxu0 0
      %8087 = vmatprep.subr.bf16.mxu0 0
      %8088 = vmatpush1.bf16.msra.mxu0 0
      %8089 = vmatprep.subr.bf16.mxu0 0
      %8090 = vmatpush1.bf16.msra.mxu0 0
      %8091 = vmatprep.subr.bf16.mxu0 0
      %8092 = vmatpush1.bf16.msra.mxu0 0
      %8093 = vmatprep.subr.bf16.mxu0 0
      %8094 = vmatpush1.bf16.msra.mxu0 0
      %8095 = vmatprep.subr.bf16.mxu0 0
      %8096 = vmatpush1.bf16.msra.mxu0 0
      %8097 = vmatprep.subr.bf16.mxu0 0
      %8098 = vmatpush1.bf16.msra.mxu0 0
      %8099 = vmatprep.subr.bf16.mxu0 0
      %8100 = vmatpush1.bf16.msra.mxu0 0
      %8101 = vmatprep.mubr.bf16.mxu0 0
      %8102 = vmatmul.mubr.bf16.gmra.mrb[0].mxu0 %v8046
      %v8103 = vpop.f32.mrb[0].mxu0
      %v8104 = vadd.f32 %v8030, %v8103
      %v8105 = vpop.f32.mrb[0].mxu0
      %v8106 = vpop.f32.mrb[0].mxu0
      %v8107 = vadd.f32 %v8030, %v8106
      %v8108 = vpop.f32.mrb[0].mxu0
      %8109 = vmatprep.mubr.bf16.mxu0 0
      %8110 = vmatmul.mubr.bf16.gmra.mrb[0].mxu0 %v8049
      %v8111 = vpop.f32.mrb[0].mxu0
      %v8112 = vadd.f32 %v8030, %v8111
      %v8113 = vpop.f32.mrb[0].mxu0
      %v8114 = vpop.f32.mrb[0].mxu0
      %v8115 = vadd.f32 %v8030, %v8114
      %v8116 = vpop.f32.mrb[0].mxu0
      %8117 = vmatprep.mubr.bf16.mxu0 0
      %8118 = vmatmul.mubr.bf16.gmra.mrb[0].mxu0 %v8052
      %v8119 = vpop.f32.mrb[0].mxu0
      %v8120 = vadd.f32 %v8030, %v8119
      %v8121 = vpop.f32.mrb[0].mxu0
      %v8122 = vpop.f32.mrb[0].mxu0
      %v8123 = vadd.f32 %v8030, %v8122
      %v8124 = vpop.f32.mrb[0].mxu0
      %8125 = vmatprep.mubr.bf16.mxu0 0
      %8126 = vmatmul.mubr.bf16.gmra.mrb[0].mxu0 %v8055
      %v8127 = vpop.f32.mrb[0].mxu0
      %v8128 = vadd.f32 %v8030, %v8127
      %v8129 = vpop.f32.mrb[0].mxu0
      %v8130 = vpop.f32.mrb[0].mxu0
      %v8131 = vadd.f32 %v8030, %v8130
      %v8132 = vpop.f32.mrb[0].mxu0
      %8133 = vmatprep.mubr.bf16.mxu0 0
      %8134 = vmatmul.mubr.bf16.gmra.mrb[0].mxu0 %v8058
      %v8135 = vpop.f32.mrb[0].mxu0
      %v8136 = vadd.f32 %v8030, %v8135
      %v8137 = vpop.f32.mrb[0].mxu0
      %v8138 = vpop.f32.mrb[0].mxu0
      %v8139 = vadd.f32 %v8030, %v8138
      %v8140 = vpop.f32.mrb[0].mxu0
      %8141 = vmatprep.mubr.bf16.mxu0 0
      %8142 = vmatmul.mubr.bf16.gmra.mrb[0].mxu0 %v8061
      %v8143 = vpop.f32.mrb[0].mxu0
      %v8144 = vadd.f32 %v8030, %v8143
      %v8145 = vpop.f32.mrb[0].mxu0
      %v8146 = vpop.f32.mrb[0].mxu0
      %v8147 = vadd.f32 %v8030, %v8146
      %v8148 = vpop.f32.mrb[0].mxu0
      %8149 = vmatprep.mubr.bf16.mxu0 0
      %8150 = vmatmul.mubr.bf16.gmra.mrb[0].mxu0 %v8064
      %v8151 = vpop.f32.mrb[0].mxu0
      %v8152 = vadd.f32 %v8030, %v8151
      %v8153 = vpop.f32.mrb[0].mxu0
      %v8154 = vpop.f32.mrb[0].mxu0
      %v8155 = vadd.f32 %v8030, %v8154
      %v8156 = vpop.f32.mrb[0].mxu0
      %8157 = vmatprep.mubr.bf16.mxu0 0
      %8158 = vmatmul.mubr.bf16.gmra.mrb[0].mxu0 %v8067
      %v8159 = vpop.f32.mrb[0].mxu0
      %v8160 = vadd.f32 %v8030, %v8159
      %v8161 = vpop.f32.mrb[0].mxu0
      %v8162 = vpop.f32.mrb[0].mxu0
      %v8163 = vadd.f32 %v8030, %v8162
      %v8164 = vpop.f32.mrb[0].mxu0
      %8165 = vdwg.mxu0
      %v8166 = vmax.f32 %v8104, 0.0
      %v8167 = vmax.f32 %v8107, 0.0
      %v8168 = vmax.f32 %v8112, 0.0
      %v8169 = vmax.f32 %v8115, 0.0
      %v8170 = vmax.f32 %v8120, 0.0
      %v8171 = vmax.f32 %v8123, 0.0
      %v8172 = vmax.f32 %v8128, 0.0
      %v8173 = vmax.f32 %v8131, 0.0
      %v8174 = vmax.f32 %v8136, 0.0
      %v8175 = vmax.f32 %v8139, 0.0
      %v8176 = vmax.f32 %v8144, 0.0
      %v8177 = vmax.f32 %v8147, 0.0
      %v8178 = vmax.f32 %v8152, 0.0
      %v8179 = vmax.f32 %v8155, 0.0
      %v8180 = vmax.f32 %v8160, 0.0
      %v8181 = vmax.f32 %v8163, 0.0
      %8182 = vst.msk [vmem:[%s283] sm:$0xff] %vm8044, %v8166
      %8183 = vst.msk [vmem:[%s283 + $0x8] sm:$0xff] %vm8044, %v8167
      %8184 = vst.msk [vmem:[%s283 + $0x10] sm:$0xff] %vm8044, %v8168
      %8185 = vst.msk [vmem:[%s283 + $0x18] sm:$0xff] %vm8044, %v8169
      %8186 = vst.msk [vmem:[%s283 + $0x20] sm:$0xff] %vm8044, %v8170
      %8187 = vst.msk [vmem:[%s283 + $0x28] sm:$0xff] %vm8044, %v8171
      %8188 = vst.msk [vmem:[%s283 + $0x30] sm:$0xff] %vm8044, %v8172
      %8189 = vst.msk [vmem:[%s283 + $0x38] sm:$0xff] %vm8044, %v8173
      %8190 = vst.msk [vmem:[%s283 + $0x40] sm:$0xff] %vm8044, %v8174
      %8191 = vst.msk [vmem:[%s283 + $0x48] sm:$0xff] %vm8044, %v8175
      %8192 = vst.msk [vmem:[%s283 + $0x50] sm:$0xff] %vm8044, %v8176
      %8193 = vst.msk [vmem:[%s283 + $0x58] sm:$0xff] %vm8044, %v8177
      %8194 = vst.msk [vmem:[%s283 + $0x60] sm:$0xff] %vm8044, %v8178
      %8195 = vst.msk [vmem:[%s283 + $0x68] sm:$0xff] %vm8044, %v8179
      %8196 = vst.msk [vmem:[%s283 + $0x70] sm:$0xff] %vm8044, %v8180
      %8197 = vst.msk [vmem:[%s283 + $0x78] sm:$0xff] %vm8044, %v8181
      %s8198 = smul.u32 16, %s18
      %p8199 = scmp.lt.s32.totalorder %s8198, 31
      %s8200 = scalar_select %p8199, %s8198, 31
      %s8201 = smul.addr %s8200, 8
      %s8202 = scalar_lea.vmem %s7, %s8201
      // Predicated region
      $region49: #{tpu_custom_call.1} parent=47 // pred_check
        %p8203 = pneg %p188
      $region50: #{tpu_custom_call.1} parent=47 // pred_check_branch
        %8205 = sbr.rel (%p8203) target = $region52
      $region51: #{tpu_custom_call.1} parent=47 // pred_region
        %s8206 = smul.u32 16, %s18
      $region52: #{tpu_custom_call.1} parent=47 // pred_fallthru
        _
    $region48: #{tpu_custom_call.1} parent=5 // pred_fallthru
      _
    %p8207 = scmp.le.s32.totalorder 2, %s13
    // Predicated region
    $region53: #{tpu_custom_call.1} parent=5 // pred_check
      %p8208 = pneg %p8207
    $region54: #{tpu_custom_call.1} parent=5 // pred_check_branch
      %8210 = sbr.rel (%p8208) target = $region56
    $region55: #{tpu_custom_call.1} parent=5 // pred_region
      %s8211 = ssub.s32 %s13, 2
      // Predicated region
      $region57: #{tpu_custom_call.1} parent=55 // pred_check
        %p8212 = pneg %p194
      $region58: #{tpu_custom_call.1} parent=55 // pred_check_branch
        %8214 = sbr.rel (%p8212) target = $region60
      $region59: #{tpu_custom_call.1} parent=55 // pred_region
        %s8215 = smul.u32 16, %s19
        %p8216 = scmp.lt.s32.totalorder %s8215, 31
        %s8217 = scalar_select %p8216, %s8215, 31
        %s8218 = smul.addr %s8217, 8
        %s8219 = scalar_lea.vmem %s7, %s8218
      $region60: #{tpu_custom_call.1} parent=55 // pred_fallthru
        _
    $region56: #{tpu_custom_call.1} parent=5 // pred_fallthru
      _
  $region6: #{tpu_custom_call.1} parent=0 // loop_footer
    %s17 = sadd.s32 1, %s13
  $region7: #{tpu_custom_call.1} parent=0 // loop_footer_branch
    %12 = sbr.rel target = $region3
  $region8: #{tpu_custom_call.1} parent=0 // loop_exit
    _

</llo_original>
